<compile_context>
chip_gen: v6e
topology: v6e:2x2x1
jax: 0.10.0
libtpu: 0.0.40
codegen_flags: <defaults>
</compile_context>

<pallas_src>
import functools

import jax
import jax.numpy as jnp
from jax.experimental import pallas as pl
from jax.experimental.pallas import tpu as pltpu


def _round_up(x, m):
    return ((x + m - 1) // m) * m


def _vmem_budget_bytes():
    """Generation-aware soft VMEM budget for the pipeline's working set."""
    try:
        phys = int(pltpu.get_tpu_info().vmem_capacity_bytes)
    except Exception:
        phys = 0
    if phys >= (96 << 20):
        return 96 << 20          # v5e / v6e: 128 MiB physical VMEM
    return 40 << 20              # v7x (64 MiB physical) or unknown: conservative


def _pick_batch_tile(B, C, HW, in_itemsize, n_pad, budget_bytes):
    """Largest batch tile whose *padded* VMEM footprint fits budget_bytes.

    Accounts for:
      * lane padding of the last block dim (HW -> round_up(HW, 128)),
      * double-buffering of the input and output blocks,
      * the resident (constant index-map) weight + bias, also double-buffered.
    Returns (bt, footprint_bytes).
    """
    hw_pad = _round_up(HW, 128)
    per_row = 2 * (C * hw_pad * in_itemsize) + 2 * (n_pad * 4)       # in + out blocks, x2 buffers
    resident = 2 * (C * n_pad * in_itemsize) + 2 * (8 * n_pad * 4)   # weight + bias, x2 buffers
    rows = max(1, (budget_bytes - resident) // per_row)

    if rows >= B:
        bt = B
    elif rows >= 16:
        bt = (rows // 16) * 16      # sublane-aligned (16 covers bf16 packing)
    elif rows >= 8:
        bt = 8
    else:
        # Output block sublanes must be a multiple of 8 (or equal B); accept a
        # small overshoot of the soft budget in this rare case.
        bt = min(B, 8)

    # Keep >= 2 grid steps for large batches so v7x's two TensorCores can both
    # be fed through the "parallel" batch axis.
    if B >= 32:
        half = _round_up((B + 1) // 2, 16)
        bt = min(bt, max(16, half))

    footprint = resident + bt * per_row
    return bt, footprint


def _head_kernel(x_ref, w_ref, b_ref, o_ref):
    """Fused global-avg-pool + Linear for one batch tile.

    x_ref: (Bt, C, HW)  bf16 backbone feature map (C on sublanes, HW on lanes)
    w_ref: (C, Npad)    bf16 Linear weight, transposed, pre-scaled by 1/HW,
                        zero-padded to a multiple of 128 lanes
    b_ref: (1, Npad)    f32 Linear bias, zero-padded
    o_ref: (Bt, Npad)   f32 padded logits (lane-dense, unmasked stores)
    """
    # Sum-pool in f32 (the 1/HW mean scale is folded into the weight).
    pooled = jnp.sum(x_ref[...].astype(jnp.float32), axis=-1)          # (Bt, C)
    logits = jnp.dot(pooled.astype(w_ref.dtype), w_ref[...],
                     preferred_element_type=jnp.float32)               # (Bt, Npad)
    o_ref[...] = logits + b_ref[...].astype(jnp.float32)


@functools.partial(jax.jit, static_argnames=("num_classes",))
def tf_efficientnet_b5_ns_forward(feat_nchw, w_pad, b_pad, num_classes):
    """feat_nchw: (B, C, H, W) backbone feature map (NCHW, bf16 preferred).
    w_pad: (C, Npad) padded transposed Linear weight (bf16, pre-scaled by 1/HW).
    b_pad: (1, Npad) padded Linear bias (f32).
    Returns (B, num_classes) logits in float32."""
    B, C, H, W = feat_nchw.shape
    HW = H * W
    x = feat_nchw.reshape(B, C, HW)            # free reshape, no HBM transpose
    n_pad = w_pad.shape[1]
    in_itemsize = jnp.dtype(x.dtype).itemsize
    w_itemsize = jnp.dtype(w_pad.dtype).itemsize

    budget = _vmem_budget_bytes()
    bt, footprint = _pick_batch_tile(B, C, HW, in_itemsize, n_pad, budget)
    grid = (pl.cdiv(B, bt),)

    vmem_limit = int(min(max(footprint + (8 << 20), 32 << 20),
                         budget + (16 << 20)))

    cost = pl.CostEstimate(
        flops=int(2 * B * C * n_pad + B * C * HW),
        transcendentals=0,
        bytes_accessed=int(B * C * HW * in_itemsize
                           + C * n_pad * w_itemsize
                           + n_pad * 4
                           + B * n_pad * 4),
    )

    out_pad = pl.pallas_call(
        _head_kernel,
        out_shape=jax.ShapeDtypeStruct((B, n_pad), jnp.float32),
        grid=grid,
        in_specs=[
            pl.BlockSpec((bt, C, HW), lambda i: (i, 0, 0)),
            pl.BlockSpec((C, n_pad), lambda i: (0, 0)),    # resident weight
            pl.BlockSpec((1, n_pad), lambda i: (0, 0)),    # resident bias
        ],
        out_specs=pl.BlockSpec((bt, n_pad), lambda i: (i, 0)),
        compiler_params=pltpu.CompilerParams(
            dimension_semantics=("parallel",),
            vmem_limit_bytes=vmem_limit),
        cost_estimate=cost,
    )(x, w_pad, b_pad)

    return out_pad[:, :num_classes]


def init_linear_params(key, in_features, num_classes, hw):
    """PyTorch nn.Linear default init: U(-1/sqrt(C), 1/sqrt(C)) for W and b.

    Returns f32 reference (w, b) plus kernel-ready buffers:
      w_pad: (C, Npad) bf16, transposed, pre-scaled by 1/HW (folds mean pool)
      b_pad: (1, Npad) f32
    """
    kw, kb = jax.random.split(key)
    bound = 1.0 / (in_features ** 0.5)
    w = jax.random.uniform(kw, (in_features, num_classes), jnp.float32,
                           -bound, bound)
    b = jax.random.uniform(kb, (num_classes,), jnp.float32, -bound, bound)
    n_pad = _round_up(num_classes, 128)
    w_pad = jnp.zeros((in_features, n_pad), jnp.bfloat16)
    w_pad = w_pad.at[:, :num_classes].set((w / float(hw)).astype(jnp.bfloat16))
    b_pad = jnp.zeros((1, n_pad), jnp.float32).at[0, :num_classes].set(b)
    return w, b, w_pad, b_pad


def _reference(feat_nchw_f32, w, b):
    """Pure-JAX f32 reference of global-avg-pool + Linear (for validation)."""
    pooled = jnp.mean(feat_nchw_f32, axis=(2, 3))            # (B, C)
    return pooled @ w + b


if __name__ == "__main__":
    key = jax.random.PRNGKey(0)
    k_feat, k_params = jax.random.split(key)

    # EfficientNet-B5 classifier in_features = 2048; small 7x7 spatial map and
    # batch=2 keep the demo tiny while exercising the real channel width.
    B, C, H, W = 2, 2048, 7, 7
    num_classes = 10

    feat_f32 = jax.random.normal(k_feat, (B, C, H, W), dtype=jnp.float32)
    feat = feat_f32.astype(jnp.bfloat16)       # backbone emits bf16 features
    w, b, w_pad, b_pad = init_linear_params(k_params, C, num_classes, H * W)

    out = tf_efficientnet_b5_ns_forward(feat, w_pad, b_pad, num_classes)
    out = jax.block_until_ready(out)

    # Reference on the same bf16 feature values, evaluated in f32 math, so the
    # comparison isolates the kernel (bf16 weight / MXU path) rather than the
    # input cast.
    ref = _reference(feat.astype(jnp.float32), w, b)
    err = float(jnp.max(jnp.abs(out - ref)))

    if out.shape == (B, num_classes) and err < 5e-3:
        print("KERNEL_OK")
    else:
        print("MISMATCH  max_abs_err =", err, " shape =", out.shape)
</pallas_src>

<mosaic_0001>
module attributes {stable_mosaic.version = 11 : i64} {
  func.func @_head_kernel(%arg0: i32, %arg1: memref<2x2048x49xbf16, #tpu.memory_space<vmem>>, %arg2: memref<2048x128xbf16, #tpu.memory_space<vmem>>, %arg3: memref<1x128xf32, #tpu.memory_space<vmem>>, %arg4: memref<2x128xf32, #tpu.memory_space<vmem>>) attributes {dimension_semantics = [#tpu.dimension_semantics<parallel>], iteration_bounds = array<i64: 1>, scalar_prefetch = 0 : i64, scratch_operands = 0 : i64, tpu.core_type = #tpu.core_type<tc>, window_params = [{transform_indices = @transform_0, window_bounds = array<i64: 2, 2048, 49>}, {pipeline_mode = #tpu.pipeline_mode<synchronous>, transform_indices = @transform_1, window_bounds = array<i64: 2048, 128>}, {pipeline_mode = #tpu.pipeline_mode<synchronous>, transform_indices = @transform_2, window_bounds = array<i64: 1, 128>}, {transform_indices = @transform_3, window_bounds = array<i64: 2, 128>}]} {
    %c0 = arith.constant 0 : index
    %c0_0 = arith.constant 0 : index
    %c0_1 = arith.constant 0 : index
    %0 = vector.load %arg1[%c0, %c0_0, %c0_1] : memref<2x2048x49xbf16, #tpu.memory_space<vmem>>, vector<2x2048x49xbf16>
    %1 = arith.extf %0 : vector<2x2048x49xbf16> to vector<2x2048x49xf32>
    %cst = arith.constant dense<0.000000e+00> : vector<2x2048xf32>
    %2 = vector.multi_reduction <add>, %1, %cst [2] : vector<2x2048x49xf32> to vector<2x2048xf32>
    %3 = arith.truncf %2 : vector<2x2048xf32> to vector<2x2048xbf16>
    %c0_2 = arith.constant 0 : index
    %c0_3 = arith.constant 0 : index
    %4 = vector.load %arg2[%c0_2, %c0_3] : memref<2048x128xbf16, #tpu.memory_space<vmem>>, vector<2048x128xbf16>
    %cst_4 = arith.constant dense<0.000000e+00> : vector<2x128xf32>
    %5 = tpu.matmul %3, %4, %cst_4 {dimension_numbers = #tpu.dot_dimension_numbers<[1], [0], [0], [1], [0, 0, 1, 1], [], []>} : vector<2x2048xbf16>, vector<2048x128xbf16>, vector<2x128xf32> -> vector<2x128xf32>
    %c0_5 = arith.constant 0 : index
    %c0_6 = arith.constant 0 : index
    %6 = vector.load %arg3[%c0_5, %c0_6] : memref<1x128xf32, #tpu.memory_space<vmem>>, vector<1x128xf32>
    %7 = vector.broadcast %6 : vector<1x128xf32> to vector<2x128xf32>
    %8 = arith.addf %5, %7 : vector<2x128xf32>
    %c0_7 = arith.constant 0 : index
    %c0_8 = arith.constant 0 : index
    %9 = vector.load %arg4[%c0_7, %c0_8] : memref<2x128xf32, #tpu.memory_space<vmem>>, vector<2x128xf32>
    tpu.vector_store %arg4[%c0_7, %c0_8], %8 {strides = array<i32>} : memref<2x128xf32, #tpu.memory_space<vmem>>, vector<2x128xf32>,
    return
  }
  func.func @transform_0(%arg0: i32) -> (i32, i32, i32) {
    %c0_i32 = arith.constant 0 : i32
    %c0_i32_0 = arith.constant 0 : i32
    %c0_i32_1 = arith.constant 0 : i32
    return %arg0, %c0_i32, %c0_i32_0 : i32, i32, i32
  }
  func.func @transform_1(%arg0: i32) -> (i32, i32) {
    %c0_i32 = arith.constant 0 : i32
    %c0_i32_0 = arith.constant 0 : i32
    %c0_i32_1 = arith.constant 0 : i32
    return %c0_i32, %c0_i32_0 : i32, i32
  }
  func.func @transform_2(%arg0: i32) -> (i32, i32) {
    %c0_i32 = arith.constant 0 : i32
    %c0_i32_0 = arith.constant 0 : i32
    %c0_i32_1 = arith.constant 0 : i32
    return %c0_i32, %c0_i32_0 : i32, i32
  }
  func.func @transform_3(%arg0: i32) -> (i32, i32) {
    %c0_i32 = arith.constant 0 : i32
    %c0_i32_0 = arith.constant 0 : i32
    return %arg0, %c0_i32 : i32, i32
  }
}

</mosaic_0001>

<llo_original>
// kernel: tf_efficientnet_b5_ns_forward.1
$region0: #{tf_efficientnet_b5_ns_forward.1}
  #allocation0 [shape = 'u32[]', space=smem, size = 0x4, offset = 0x4, fixed_abs, tag = 'smem constant byte address 0x4 - core index']
  #allocation1 [shape = 'u32[144,128]{1,0:T(1,128)}', space=vmem, size = 0x12000, scoped, tag = 'internal scratch']
  %s0 = inlined_call_operand.vmem [shape: bf16[2,2048,49], index: 0, kind: input, shape index: {}]
  %s1 = inlined_call_operand.vmem [shape: bf16[2048,128], index: 1, kind: input, shape index: {}]
  %s2 = inlined_call_operand.vmem [shape: f32[1,128], index: 2, kind: input, shape index: {}]
  %s3 = inlined_call_operand.hbm [shape: f32[2,128], index: 3, kind: output, shape index: {}]
  %s4 = sld [smem:[#allocation0]]
  $region22: #{tf_efficientnet_b5_ns_forward.1} parent=0
    _
  %s6 = ssub.s32 1, %s4
  %s7 = scalar_select 0, %s6, %s4
  $region1: #{tf_efficientnet_b5_ns_forward.1} parent=0
    #allocation2 [shape = 'u8[1024]{0}', space=vmem, size = 0x400, scoped, tag = 'output window, operand 0, single buffered']
    #allocation3 [shape = 's32[1]{0}', space=sflag, size = 0x4, scoped, tag = 'scoped memory for tf_efficientnet_b5_ns_forward.1']
    %8 = vsyncpa [#allocation3], 0
    // Predicated region
    $region2: #{tf_efficientnet_b5_ns_forward.1} parent=1 // pred_check
      _
    $region3: #{tf_efficientnet_b5_ns_forward.1} parent=1 // pred_check_branch
      %10 = sbr.rel (0) target = $region5
    $region4: #{tf_efficientnet_b5_ns_forward.1} parent=1 // pred_region
      _
    $region5: #{tf_efficientnet_b5_ns_forward.1} parent=1 // pred_fallthru
      _
    // Predicated region
    $region6: #{tf_efficientnet_b5_ns_forward.1} parent=1 // pred_check
      _
    $region7: #{tf_efficientnet_b5_ns_forward.1} parent=1 // pred_check_branch
      %12 = sbr.rel (0) target = $region9
    $region8: #{tf_efficientnet_b5_ns_forward.1} parent=1 // pred_region
      _
    $region9: #{tf_efficientnet_b5_ns_forward.1} parent=1 // pred_fallthru
      _
    // Predicated region
    $region10: #{tf_efficientnet_b5_ns_forward.1} parent=1 // pred_check
      _
    $region11: #{tf_efficientnet_b5_ns_forward.1} parent=1 // pred_check_branch
      %14 = sbr.rel (0) target = $region13
    $region12: #{tf_efficientnet_b5_ns_forward.1} parent=1 // pred_region
      _
    $region13: #{tf_efficientnet_b5_ns_forward.1} parent=1 // pred_fallthru
      _
    %v16 = vld [vmem:[%s0] sm:$0xf]
    %v17 = vld [vmem:[%s0 + $0x4] sm:$0xf]
    %v18 = vld [vmem:[%s0 + $0x8] sm:$0xf]
    %v19 = vld [vmem:[%s0 + $0xc] sm:$0xf]
    %v20 = vld [vmem:[%s0 + $0x10] sm:$0xf]
    %v21 = vld [vmem:[%s0 + $0x14] sm:$0xf]
    %v22 = vld [vmem:[%s0 + $0x18] sm:$0xf]
    %v23 = vld [vmem:[%s0 + $0x1c] sm:$0xf]
    %v24 = vld [vmem:[%s0 + $0x20] sm:$0xf]
    %v25 = vld [vmem:[%s0 + $0x24] sm:$0xf]
    %v26 = vld [vmem:[%s0 + $0x28] sm:$0xf]
    %v27 = vld [vmem:[%s0 + $0x2c] sm:$0xf]
    %v28 = vld [vmem:[%s0 + $0x30] sm:$0xf]
    %v29 = vld [vmem:[%s0 + $0x34] sm:$0xf]
    %v30 = vld [vmem:[%s0 + $0x38] sm:$0xf]
    %v31 = vld [vmem:[%s0 + $0x3c] sm:$0xf]
    %v32 = vld [vmem:[%s0 + $0x40] sm:$0xf]
    %v33 = vld [vmem:[%s0 + $0x44] sm:$0xf]
    %v34 = vld [vmem:[%s0 + $0x48] sm:$0xf]
    %v35 = vld [vmem:[%s0 + $0x4c] sm:$0xf]
    %v36 = vld [vmem:[%s0 + $0x50] sm:$0xf]
    %v37 = vld [vmem:[%s0 + $0x54] sm:$0xf]
    %v38 = vld [vmem:[%s0 + $0x58] sm:$0xf]
    %v39 = vld [vmem:[%s0 + $0x5c] sm:$0xf]
    %v40 = vld [vmem:[%s0 + $0x60] sm:$0xf]
    %v41 = vld [vmem:[%s0 + $0x64] sm:$0xf]
    %v42 = vld [vmem:[%s0 + $0x68] sm:$0xf]
    %v43 = vld [vmem:[%s0 + $0x6c] sm:$0xf]
    %v44 = vld [vmem:[%s0 + $0x70] sm:$0xf]
    %v45 = vld [vmem:[%s0 + $0x74] sm:$0xf]
    %v46 = vld [vmem:[%s0 + $0x78] sm:$0xf]
    %v47 = vld [vmem:[%s0 + $0x7c] sm:$0xf]
    %v48 = vld [vmem:[%s0 + $0x80] sm:$0xf]
    %v49 = vld [vmem:[%s0 + $0x84] sm:$0xf]
    %v50 = vld [vmem:[%s0 + $0x88] sm:$0xf]
    %v51 = vld [vmem:[%s0 + $0x8c] sm:$0xf]
    %v52 = vld [vmem:[%s0 + $0x90] sm:$0xf]
    %v53 = vld [vmem:[%s0 + $0x94] sm:$0xf]
    %v54 = vld [vmem:[%s0 + $0x98] sm:$0xf]
    %v55 = vld [vmem:[%s0 + $0x9c] sm:$0xf]
    %v56 = vld [vmem:[%s0 + $0xa0] sm:$0xf]
    %v57 = vld [vmem:[%s0 + $0xa4] sm:$0xf]
    %v58 = vld [vmem:[%s0 + $0xa8] sm:$0xf]
    %v59 = vld [vmem:[%s0 + $0xac] sm:$0xf]
    %v60 = vld [vmem:[%s0 + $0xb0] sm:$0xf]
    %v61 = vld [vmem:[%s0 + $0xb4] sm:$0xf]
    %v62 = vld [vmem:[%s0 + $0xb8] sm:$0xf]
    %v63 = vld [vmem:[%s0 + $0xbc] sm:$0xf]
    %v64 = vld [vmem:[%s0 + $0xc0] sm:$0xf]
    %v65 = vld [vmem:[%s0 + $0xc4] sm:$0xf]
    %v66 = vld [vmem:[%s0 + $0xc8] sm:$0xf]
    %v67 = vld [vmem:[%s0 + $0xcc] sm:$0xf]
    %v68 = vld [vmem:[%s0 + $0xd0] sm:$0xf]
    %v69 = vld [vmem:[%s0 + $0xd4] sm:$0xf]
    %v70 = vld [vmem:[%s0 + $0xd8] sm:$0xf]
    %v71 = vld [vmem:[%s0 + $0xdc] sm:$0xf]
    %v72 = vld [vmem:[%s0 + $0xe0] sm:$0xf]
    %v73 = vld [vmem:[%s0 + $0xe4] sm:$0xf]
    %v74 = vld [vmem:[%s0 + $0xe8] sm:$0xf]
    %v75 = vld [vmem:[%s0 + $0xec] sm:$0xf]
    %v76 = vld [vmem:[%s0 + $0xf0] sm:$0xf]
    %v77 = vld [vmem:[%s0 + $0xf4] sm:$0xf]
    %v78 = vld [vmem:[%s0 + $0xf8] sm:$0xf]
    %v79 = vld [vmem:[%s0 + $0xfc] sm:$0xf]
    %v80 = vld [vmem:[%s0 + $0x100] sm:$0xf]
    %v81 = vld [vmem:[%s0 + $0x104] sm:$0xf]
    %v82 = vld [vmem:[%s0 + $0x108] sm:$0xf]
    %v83 = vld [vmem:[%s0 + $0x10c] sm:$0xf]
    %v84 = vld [vmem:[%s0 + $0x110] sm:$0xf]
    %v85 = vld [vmem:[%s0 + $0x114] sm:$0xf]
    %v86 = vld [vmem:[%s0 + $0x118] sm:$0xf]
    %v87 = vld [vmem:[%s0 + $0x11c] sm:$0xf]
    %v88 = vld [vmem:[%s0 + $0x120] sm:$0xf]
    %v89 = vld [vmem:[%s0 + $0x124] sm:$0xf]
    %v90 = vld [vmem:[%s0 + $0x128] sm:$0xf]
    %v91 = vld [vmem:[%s0 + $0x12c] sm:$0xf]
    %v92 = vld [vmem:[%s0 + $0x130] sm:$0xf]
    %v93 = vld [vmem:[%s0 + $0x134] sm:$0xf]
    %v94 = vld [vmem:[%s0 + $0x138] sm:$0xf]
    %v95 = vld [vmem:[%s0 + $0x13c] sm:$0xf]
    %v96 = vld [vmem:[%s0 + $0x140] sm:$0xf]
    %v97 = vld [vmem:[%s0 + $0x144] sm:$0xf]
    %v98 = vld [vmem:[%s0 + $0x148] sm:$0xf]
    %v99 = vld [vmem:[%s0 + $0x14c] sm:$0xf]
    %v100 = vld [vmem:[%s0 + $0x150] sm:$0xf]
    %v101 = vld [vmem:[%s0 + $0x154] sm:$0xf]
    %v102 = vld [vmem:[%s0 + $0x158] sm:$0xf]
    %v103 = vld [vmem:[%s0 + $0x15c] sm:$0xf]
    %v104 = vld [vmem:[%s0 + $0x160] sm:$0xf]
    %v105 = vld [vmem:[%s0 + $0x164] sm:$0xf]
    %v106 = vld [vmem:[%s0 + $0x168] sm:$0xf]
    %v107 = vld [vmem:[%s0 + $0x16c] sm:$0xf]
    %v108 = vld [vmem:[%s0 + $0x170] sm:$0xf]
    %v109 = vld [vmem:[%s0 + $0x174] sm:$0xf]
    %v110 = vld [vmem:[%s0 + $0x178] sm:$0xf]
    %v111 = vld [vmem:[%s0 + $0x17c] sm:$0xf]
    %v112 = vld [vmem:[%s0 + $0x180] sm:$0xf]
    %v113 = vld [vmem:[%s0 + $0x184] sm:$0xf]
    %v114 = vld [vmem:[%s0 + $0x188] sm:$0xf]
    %v115 = vld [vmem:[%s0 + $0x18c] sm:$0xf]
    %v116 = vld [vmem:[%s0 + $0x190] sm:$0xf]
    %v117 = vld [vmem:[%s0 + $0x194] sm:$0xf]
    %v118 = vld [vmem:[%s0 + $0x198] sm:$0xf]
    %v119 = vld [vmem:[%s0 + $0x19c] sm:$0xf]
    %v120 = vld [vmem:[%s0 + $0x1a0] sm:$0xf]
    %v121 = vld [vmem:[%s0 + $0x1a4] sm:$0xf]
    %v122 = vld [vmem:[%s0 + $0x1a8] sm:$0xf]
    %v123 = vld [vmem:[%s0 + $0x1ac] sm:$0xf]
    %v124 = vld [vmem:[%s0 + $0x1b0] sm:$0xf]
    %v125 = vld [vmem:[%s0 + $0x1b4] sm:$0xf]
    %v126 = vld [vmem:[%s0 + $0x1b8] sm:$0xf]
    %v127 = vld [vmem:[%s0 + $0x1bc] sm:$0xf]
    %v128 = vld [vmem:[%s0 + $0x1c0] sm:$0xf]
    %v129 = vld [vmem:[%s0 + $0x1c4] sm:$0xf]
    %v130 = vld [vmem:[%s0 + $0x1c8] sm:$0xf]
    %v131 = vld [vmem:[%s0 + $0x1cc] sm:$0xf]
    %v132 = vld [vmem:[%s0 + $0x1d0] sm:$0xf]
    %v133 = vld [vmem:[%s0 + $0x1d4] sm:$0xf]
    %v134 = vld [vmem:[%s0 + $0x1d8] sm:$0xf]
    %v135 = vld [vmem:[%s0 + $0x1dc] sm:$0xf]
    %v136 = vld [vmem:[%s0 + $0x1e0] sm:$0xf]
    %v137 = vld [vmem:[%s0 + $0x1e4] sm:$0xf]
    %v138 = vld [vmem:[%s0 + $0x1e8] sm:$0xf]
    %v139 = vld [vmem:[%s0 + $0x1ec] sm:$0xf]
    %v140 = vld [vmem:[%s0 + $0x1f0] sm:$0xf]
    %v141 = vld [vmem:[%s0 + $0x1f4] sm:$0xf]
    %v142 = vld [vmem:[%s0 + $0x1f8] sm:$0xf]
    %v143 = vld [vmem:[%s0 + $0x1fc] sm:$0xf]
    %v144 = vld [vmem:[%s0 + $0x200] sm:$0xf]
    %v145 = vld [vmem:[%s0 + $0x204] sm:$0xf]
    %v146 = vld [vmem:[%s0 + $0x208] sm:$0xf]
    %v147 = vld [vmem:[%s0 + $0x20c] sm:$0xf]
    %v148 = vld [vmem:[%s0 + $0x210] sm:$0xf]
    %v149 = vld [vmem:[%s0 + $0x214] sm:$0xf]
    %v150 = vld [vmem:[%s0 + $0x218] sm:$0xf]
    %v151 = vld [vmem:[%s0 + $0x21c] sm:$0xf]
    %v152 = vld [vmem:[%s0 + $0x220] sm:$0xf]
    %v153 = vld [vmem:[%s0 + $0x224] sm:$0xf]
    %v154 = vld [vmem:[%s0 + $0x228] sm:$0xf]
    %v155 = vld [vmem:[%s0 + $0x22c] sm:$0xf]
    %v156 = vld [vmem:[%s0 + $0x230] sm:$0xf]
    %v157 = vld [vmem:[%s0 + $0x234] sm:$0xf]
    %v158 = vld [vmem:[%s0 + $0x238] sm:$0xf]
    %v159 = vld [vmem:[%s0 + $0x23c] sm:$0xf]
    %v160 = vld [vmem:[%s0 + $0x240] sm:$0xf]
    %v161 = vld [vmem:[%s0 + $0x244] sm:$0xf]
    %v162 = vld [vmem:[%s0 + $0x248] sm:$0xf]
    %v163 = vld [vmem:[%s0 + $0x24c] sm:$0xf]
    %v164 = vld [vmem:[%s0 + $0x250] sm:$0xf]
    %v165 = vld [vmem:[%s0 + $0x254] sm:$0xf]
    %v166 = vld [vmem:[%s0 + $0x258] sm:$0xf]
    %v167 = vld [vmem:[%s0 + $0x25c] sm:$0xf]
    %v168 = vld [vmem:[%s0 + $0x260] sm:$0xf]
    %v169 = vld [vmem:[%s0 + $0x264] sm:$0xf]
    %v170 = vld [vmem:[%s0 + $0x268] sm:$0xf]
    %v171 = vld [vmem:[%s0 + $0x26c] sm:$0xf]
    %v172 = vld [vmem:[%s0 + $0x270] sm:$0xf]
    %v173 = vld [vmem:[%s0 + $0x274] sm:$0xf]
    %v174 = vld [vmem:[%s0 + $0x278] sm:$0xf]
    %v175 = vld [vmem:[%s0 + $0x27c] sm:$0xf]
    %v176 = vld [vmem:[%s0 + $0x280] sm:$0xf]
    %v177 = vld [vmem:[%s0 + $0x284] sm:$0xf]
    %v178 = vld [vmem:[%s0 + $0x288] sm:$0xf]
    %v179 = vld [vmem:[%s0 + $0x28c] sm:$0xf]
    %v180 = vld [vmem:[%s0 + $0x290] sm:$0xf]
    %v181 = vld [vmem:[%s0 + $0x294] sm:$0xf]
    %v182 = vld [vmem:[%s0 + $0x298] sm:$0xf]
    %v183 = vld [vmem:[%s0 + $0x29c] sm:$0xf]
    %v184 = vld [vmem:[%s0 + $0x2a0] sm:$0xf]
    %v185 = vld [vmem:[%s0 + $0x2a4] sm:$0xf]
    %v186 = vld [vmem:[%s0 + $0x2a8] sm:$0xf]
    %v187 = vld [vmem:[%s0 + $0x2ac] sm:$0xf]
    %v188 = vld [vmem:[%s0 + $0x2b0] sm:$0xf]
    %v189 = vld [vmem:[%s0 + $0x2b4] sm:$0xf]
    %v190 = vld [vmem:[%s0 + $0x2b8] sm:$0xf]
    %v191 = vld [vmem:[%s0 + $0x2bc] sm:$0xf]
    %v192 = vld [vmem:[%s0 + $0x2c0] sm:$0xf]
    %v193 = vld [vmem:[%s0 + $0x2c4] sm:$0xf]
    %v194 = vld [vmem:[%s0 + $0x2c8] sm:$0xf]
    %v195 = vld [vmem:[%s0 + $0x2cc] sm:$0xf]
    %v196 = vld [vmem:[%s0 + $0x2d0] sm:$0xf]
    %v197 = vld [vmem:[%s0 + $0x2d4] sm:$0xf]
    %v198 = vld [vmem:[%s0 + $0x2d8] sm:$0xf]
    %v199 = vld [vmem:[%s0 + $0x2dc] sm:$0xf]
    %v200 = vld [vmem:[%s0 + $0x2e0] sm:$0xf]
    %v201 = vld [vmem:[%s0 + $0x2e4] sm:$0xf]
    %v202 = vld [vmem:[%s0 + $0x2e8] sm:$0xf]
    %v203 = vld [vmem:[%s0 + $0x2ec] sm:$0xf]
    %v204 = vld [vmem:[%s0 + $0x2f0] sm:$0xf]
    %v205 = vld [vmem:[%s0 + $0x2f4] sm:$0xf]
    %v206 = vld [vmem:[%s0 + $0x2f8] sm:$0xf]
    %v207 = vld [vmem:[%s0 + $0x2fc] sm:$0xf]
    %v208 = vld [vmem:[%s0 + $0x300] sm:$0xf]
    %v209 = vld [vmem:[%s0 + $0x304] sm:$0xf]
    %v210 = vld [vmem:[%s0 + $0x308] sm:$0xf]
    %v211 = vld [vmem:[%s0 + $0x30c] sm:$0xf]
    %v212 = vld [vmem:[%s0 + $0x310] sm:$0xf]
    %v213 = vld [vmem:[%s0 + $0x314] sm:$0xf]
    %v214 = vld [vmem:[%s0 + $0x318] sm:$0xf]
    %v215 = vld [vmem:[%s0 + $0x31c] sm:$0xf]
    %v216 = vld [vmem:[%s0 + $0x320] sm:$0xf]
    %v217 = vld [vmem:[%s0 + $0x324] sm:$0xf]
    %v218 = vld [vmem:[%s0 + $0x328] sm:$0xf]
    %v219 = vld [vmem:[%s0 + $0x32c] sm:$0xf]
    %v220 = vld [vmem:[%s0 + $0x330] sm:$0xf]
    %v221 = vld [vmem:[%s0 + $0x334] sm:$0xf]
    %v222 = vld [vmem:[%s0 + $0x338] sm:$0xf]
    %v223 = vld [vmem:[%s0 + $0x33c] sm:$0xf]
    %v224 = vld [vmem:[%s0 + $0x340] sm:$0xf]
    %v225 = vld [vmem:[%s0 + $0x344] sm:$0xf]
    %v226 = vld [vmem:[%s0 + $0x348] sm:$0xf]
    %v227 = vld [vmem:[%s0 + $0x34c] sm:$0xf]
    %v228 = vld [vmem:[%s0 + $0x350] sm:$0xf]
    %v229 = vld [vmem:[%s0 + $0x354] sm:$0xf]
    %v230 = vld [vmem:[%s0 + $0x358] sm:$0xf]
    %v231 = vld [vmem:[%s0 + $0x35c] sm:$0xf]
    %v232 = vld [vmem:[%s0 + $0x360] sm:$0xf]
    %v233 = vld [vmem:[%s0 + $0x364] sm:$0xf]
    %v234 = vld [vmem:[%s0 + $0x368] sm:$0xf]
    %v235 = vld [vmem:[%s0 + $0x36c] sm:$0xf]
    %v236 = vld [vmem:[%s0 + $0x370] sm:$0xf]
    %v237 = vld [vmem:[%s0 + $0x374] sm:$0xf]
    %v238 = vld [vmem:[%s0 + $0x378] sm:$0xf]
    %v239 = vld [vmem:[%s0 + $0x37c] sm:$0xf]
    %v240 = vld [vmem:[%s0 + $0x380] sm:$0xf]
    %v241 = vld [vmem:[%s0 + $0x384] sm:$0xf]
    %v242 = vld [vmem:[%s0 + $0x388] sm:$0xf]
    %v243 = vld [vmem:[%s0 + $0x38c] sm:$0xf]
    %v244 = vld [vmem:[%s0 + $0x390] sm:$0xf]
    %v245 = vld [vmem:[%s0 + $0x394] sm:$0xf]
    %v246 = vld [vmem:[%s0 + $0x398] sm:$0xf]
    %v247 = vld [vmem:[%s0 + $0x39c] sm:$0xf]
    %v248 = vld [vmem:[%s0 + $0x3a0] sm:$0xf]
    %v249 = vld [vmem:[%s0 + $0x3a4] sm:$0xf]
    %v250 = vld [vmem:[%s0 + $0x3a8] sm:$0xf]
    %v251 = vld [vmem:[%s0 + $0x3ac] sm:$0xf]
    %v252 = vld [vmem:[%s0 + $0x3b0] sm:$0xf]
    %v253 = vld [vmem:[%s0 + $0x3b4] sm:$0xf]
    %v254 = vld [vmem:[%s0 + $0x3b8] sm:$0xf]
    %v255 = vld [vmem:[%s0 + $0x3bc] sm:$0xf]
    %v256 = vld [vmem:[%s0 + $0x3c0] sm:$0xf]
    %v257 = vld [vmem:[%s0 + $0x3c4] sm:$0xf]
    %v258 = vld [vmem:[%s0 + $0x3c8] sm:$0xf]
    %v259 = vld [vmem:[%s0 + $0x3cc] sm:$0xf]
    %v260 = vld [vmem:[%s0 + $0x3d0] sm:$0xf]
    %v261 = vld [vmem:[%s0 + $0x3d4] sm:$0xf]
    %v262 = vld [vmem:[%s0 + $0x3d8] sm:$0xf]
    %v263 = vld [vmem:[%s0 + $0x3dc] sm:$0xf]
    %v264 = vld [vmem:[%s0 + $0x3e0] sm:$0xf]
    %v265 = vld [vmem:[%s0 + $0x3e4] sm:$0xf]
    %v266 = vld [vmem:[%s0 + $0x3e8] sm:$0xf]
    %v267 = vld [vmem:[%s0 + $0x3ec] sm:$0xf]
    %v268 = vld [vmem:[%s0 + $0x3f0] sm:$0xf]
    %v269 = vld [vmem:[%s0 + $0x3f4] sm:$0xf]
    %v270 = vld [vmem:[%s0 + $0x3f8] sm:$0xf]
    %v271 = vld [vmem:[%s0 + $0x3fc] sm:$0xf]
    %v272 = vld [vmem:[%s0 + $0x400] sm:$0xf]
    %v273 = vld [vmem:[%s0 + $0x404] sm:$0xf]
    %v274 = vld [vmem:[%s0 + $0x408] sm:$0xf]
    %v275 = vld [vmem:[%s0 + $0x40c] sm:$0xf]
    %v276 = vld [vmem:[%s0 + $0x410] sm:$0xf]
    %v277 = vld [vmem:[%s0 + $0x414] sm:$0xf]
    %v278 = vld [vmem:[%s0 + $0x418] sm:$0xf]
    %v279 = vld [vmem:[%s0 + $0x41c] sm:$0xf]
    %v280 = vld [vmem:[%s0 + $0x420] sm:$0xf]
    %v281 = vld [vmem:[%s0 + $0x424] sm:$0xf]
    %v282 = vld [vmem:[%s0 + $0x428] sm:$0xf]
    %v283 = vld [vmem:[%s0 + $0x42c] sm:$0xf]
    %v284 = vld [vmem:[%s0 + $0x430] sm:$0xf]
    %v285 = vld [vmem:[%s0 + $0x434] sm:$0xf]
    %v286 = vld [vmem:[%s0 + $0x438] sm:$0xf]
    %v287 = vld [vmem:[%s0 + $0x43c] sm:$0xf]
    %v288 = vld [vmem:[%s0 + $0x440] sm:$0xf]
    %v289 = vld [vmem:[%s0 + $0x444] sm:$0xf]
    %v290 = vld [vmem:[%s0 + $0x448] sm:$0xf]
    %v291 = vld [vmem:[%s0 + $0x44c] sm:$0xf]
    %v292 = vld [vmem:[%s0 + $0x450] sm:$0xf]
    %v293 = vld [vmem:[%s0 + $0x454] sm:$0xf]
    %v294 = vld [vmem:[%s0 + $0x458] sm:$0xf]
    %v295 = vld [vmem:[%s0 + $0x45c] sm:$0xf]
    %v296 = vld [vmem:[%s0 + $0x460] sm:$0xf]
    %v297 = vld [vmem:[%s0 + $0x464] sm:$0xf]
    %v298 = vld [vmem:[%s0 + $0x468] sm:$0xf]
    %v299 = vld [vmem:[%s0 + $0x46c] sm:$0xf]
    %v300 = vld [vmem:[%s0 + $0x470] sm:$0xf]
    %v301 = vld [vmem:[%s0 + $0x474] sm:$0xf]
    %v302 = vld [vmem:[%s0 + $0x478] sm:$0xf]
    %v303 = vld [vmem:[%s0 + $0x47c] sm:$0xf]
    %v304 = vld [vmem:[%s0 + $0x480] sm:$0xf]
    %v305 = vld [vmem:[%s0 + $0x484] sm:$0xf]
    %v306 = vld [vmem:[%s0 + $0x488] sm:$0xf]
    %v307 = vld [vmem:[%s0 + $0x48c] sm:$0xf]
    %v308 = vld [vmem:[%s0 + $0x490] sm:$0xf]
    %v309 = vld [vmem:[%s0 + $0x494] sm:$0xf]
    %v310 = vld [vmem:[%s0 + $0x498] sm:$0xf]
    %v311 = vld [vmem:[%s0 + $0x49c] sm:$0xf]
    %v312 = vld [vmem:[%s0 + $0x4a0] sm:$0xf]
    %v313 = vld [vmem:[%s0 + $0x4a4] sm:$0xf]
    %v314 = vld [vmem:[%s0 + $0x4a8] sm:$0xf]
    %v315 = vld [vmem:[%s0 + $0x4ac] sm:$0xf]
    %v316 = vld [vmem:[%s0 + $0x4b0] sm:$0xf]
    %v317 = vld [vmem:[%s0 + $0x4b4] sm:$0xf]
    %v318 = vld [vmem:[%s0 + $0x4b8] sm:$0xf]
    %v319 = vld [vmem:[%s0 + $0x4bc] sm:$0xf]
    %v320 = vld [vmem:[%s0 + $0x4c0] sm:$0xf]
    %v321 = vld [vmem:[%s0 + $0x4c4] sm:$0xf]
    %v322 = vld [vmem:[%s0 + $0x4c8] sm:$0xf]
    %v323 = vld [vmem:[%s0 + $0x4cc] sm:$0xf]
    %v324 = vld [vmem:[%s0 + $0x4d0] sm:$0xf]
    %v325 = vld [vmem:[%s0 + $0x4d4] sm:$0xf]
    %v326 = vld [vmem:[%s0 + $0x4d8] sm:$0xf]
    %v327 = vld [vmem:[%s0 + $0x4dc] sm:$0xf]
    %v328 = vld [vmem:[%s0 + $0x4e0] sm:$0xf]
    %v329 = vld [vmem:[%s0 + $0x4e4] sm:$0xf]
    %v330 = vld [vmem:[%s0 + $0x4e8] sm:$0xf]
    %v331 = vld [vmem:[%s0 + $0x4ec] sm:$0xf]
    %v332 = vld [vmem:[%s0 + $0x4f0] sm:$0xf]
    %v333 = vld [vmem:[%s0 + $0x4f4] sm:$0xf]
    %v334 = vld [vmem:[%s0 + $0x4f8] sm:$0xf]
    %v335 = vld [vmem:[%s0 + $0x4fc] sm:$0xf]
    %v336 = vld [vmem:[%s0 + $0x500] sm:$0xf]
    %v337 = vld [vmem:[%s0 + $0x504] sm:$0xf]
    %v338 = vld [vmem:[%s0 + $0x508] sm:$0xf]
    %v339 = vld [vmem:[%s0 + $0x50c] sm:$0xf]
    %v340 = vld [vmem:[%s0 + $0x510] sm:$0xf]
    %v341 = vld [vmem:[%s0 + $0x514] sm:$0xf]
    %v342 = vld [vmem:[%s0 + $0x518] sm:$0xf]
    %v343 = vld [vmem:[%s0 + $0x51c] sm:$0xf]
    %v344 = vld [vmem:[%s0 + $0x520] sm:$0xf]
    %v345 = vld [vmem:[%s0 + $0x524] sm:$0xf]
    %v346 = vld [vmem:[%s0 + $0x528] sm:$0xf]
    %v347 = vld [vmem:[%s0 + $0x52c] sm:$0xf]
    %v348 = vld [vmem:[%s0 + $0x530] sm:$0xf]
    %v349 = vld [vmem:[%s0 + $0x534] sm:$0xf]
    %v350 = vld [vmem:[%s0 + $0x538] sm:$0xf]
    %v351 = vld [vmem:[%s0 + $0x53c] sm:$0xf]
    %v352 = vld [vmem:[%s0 + $0x540] sm:$0xf]
    %v353 = vld [vmem:[%s0 + $0x544] sm:$0xf]
    %v354 = vld [vmem:[%s0 + $0x548] sm:$0xf]
    %v355 = vld [vmem:[%s0 + $0x54c] sm:$0xf]
    %v356 = vld [vmem:[%s0 + $0x550] sm:$0xf]
    %v357 = vld [vmem:[%s0 + $0x554] sm:$0xf]
    %v358 = vld [vmem:[%s0 + $0x558] sm:$0xf]
    %v359 = vld [vmem:[%s0 + $0x55c] sm:$0xf]
    %v360 = vld [vmem:[%s0 + $0x560] sm:$0xf]
    %v361 = vld [vmem:[%s0 + $0x564] sm:$0xf]
    %v362 = vld [vmem:[%s0 + $0x568] sm:$0xf]
    %v363 = vld [vmem:[%s0 + $0x56c] sm:$0xf]
    %v364 = vld [vmem:[%s0 + $0x570] sm:$0xf]
    %v365 = vld [vmem:[%s0 + $0x574] sm:$0xf]
    %v366 = vld [vmem:[%s0 + $0x578] sm:$0xf]
    %v367 = vld [vmem:[%s0 + $0x57c] sm:$0xf]
    %v368 = vld [vmem:[%s0 + $0x580] sm:$0xf]
    %v369 = vld [vmem:[%s0 + $0x584] sm:$0xf]
    %v370 = vld [vmem:[%s0 + $0x588] sm:$0xf]
    %v371 = vld [vmem:[%s0 + $0x58c] sm:$0xf]
    %v372 = vld [vmem:[%s0 + $0x590] sm:$0xf]
    %v373 = vld [vmem:[%s0 + $0x594] sm:$0xf]
    %v374 = vld [vmem:[%s0 + $0x598] sm:$0xf]
    %v375 = vld [vmem:[%s0 + $0x59c] sm:$0xf]
    %v376 = vld [vmem:[%s0 + $0x5a0] sm:$0xf]
    %v377 = vld [vmem:[%s0 + $0x5a4] sm:$0xf]
    %v378 = vld [vmem:[%s0 + $0x5a8] sm:$0xf]
    %v379 = vld [vmem:[%s0 + $0x5ac] sm:$0xf]
    %v380 = vld [vmem:[%s0 + $0x5b0] sm:$0xf]
    %v381 = vld [vmem:[%s0 + $0x5b4] sm:$0xf]
    %v382 = vld [vmem:[%s0 + $0x5b8] sm:$0xf]
    %v383 = vld [vmem:[%s0 + $0x5bc] sm:$0xf]
    %v384 = vld [vmem:[%s0 + $0x5c0] sm:$0xf]
    %v385 = vld [vmem:[%s0 + $0x5c4] sm:$0xf]
    %v386 = vld [vmem:[%s0 + $0x5c8] sm:$0xf]
    %v387 = vld [vmem:[%s0 + $0x5cc] sm:$0xf]
    %v388 = vld [vmem:[%s0 + $0x5d0] sm:$0xf]
    %v389 = vld [vmem:[%s0 + $0x5d4] sm:$0xf]
    %v390 = vld [vmem:[%s0 + $0x5d8] sm:$0xf]
    %v391 = vld [vmem:[%s0 + $0x5dc] sm:$0xf]
    %v392 = vld [vmem:[%s0 + $0x5e0] sm:$0xf]
    %v393 = vld [vmem:[%s0 + $0x5e4] sm:$0xf]
    %v394 = vld [vmem:[%s0 + $0x5e8] sm:$0xf]
    %v395 = vld [vmem:[%s0 + $0x5ec] sm:$0xf]
    %v396 = vld [vmem:[%s0 + $0x5f0] sm:$0xf]
    %v397 = vld [vmem:[%s0 + $0x5f4] sm:$0xf]
    %v398 = vld [vmem:[%s0 + $0x5f8] sm:$0xf]
    %v399 = vld [vmem:[%s0 + $0x5fc] sm:$0xf]
    %v400 = vld [vmem:[%s0 + $0x600] sm:$0xf]
    %v401 = vld [vmem:[%s0 + $0x604] sm:$0xf]
    %v402 = vld [vmem:[%s0 + $0x608] sm:$0xf]
    %v403 = vld [vmem:[%s0 + $0x60c] sm:$0xf]
    %v404 = vld [vmem:[%s0 + $0x610] sm:$0xf]
    %v405 = vld [vmem:[%s0 + $0x614] sm:$0xf]
    %v406 = vld [vmem:[%s0 + $0x618] sm:$0xf]
    %v407 = vld [vmem:[%s0 + $0x61c] sm:$0xf]
    %v408 = vld [vmem:[%s0 + $0x620] sm:$0xf]
    %v409 = vld [vmem:[%s0 + $0x624] sm:$0xf]
    %v410 = vld [vmem:[%s0 + $0x628] sm:$0xf]
    %v411 = vld [vmem:[%s0 + $0x62c] sm:$0xf]
    %v412 = vld [vmem:[%s0 + $0x630] sm:$0xf]
    %v413 = vld [vmem:[%s0 + $0x634] sm:$0xf]
    %v414 = vld [vmem:[%s0 + $0x638] sm:$0xf]
    %v415 = vld [vmem:[%s0 + $0x63c] sm:$0xf]
    %v416 = vld [vmem:[%s0 + $0x640] sm:$0xf]
    %v417 = vld [vmem:[%s0 + $0x644] sm:$0xf]
    %v418 = vld [vmem:[%s0 + $0x648] sm:$0xf]
    %v419 = vld [vmem:[%s0 + $0x64c] sm:$0xf]
    %v420 = vld [vmem:[%s0 + $0x650] sm:$0xf]
    %v421 = vld [vmem:[%s0 + $0x654] sm:$0xf]
    %v422 = vld [vmem:[%s0 + $0x658] sm:$0xf]
    %v423 = vld [vmem:[%s0 + $0x65c] sm:$0xf]
    %v424 = vld [vmem:[%s0 + $0x660] sm:$0xf]
    %v425 = vld [vmem:[%s0 + $0x664] sm:$0xf]
    %v426 = vld [vmem:[%s0 + $0x668] sm:$0xf]
    %v427 = vld [vmem:[%s0 + $0x66c] sm:$0xf]
    %v428 = vld [vmem:[%s0 + $0x670] sm:$0xf]
    %v429 = vld [vmem:[%s0 + $0x674] sm:$0xf]
    %v430 = vld [vmem:[%s0 + $0x678] sm:$0xf]
    %v431 = vld [vmem:[%s0 + $0x67c] sm:$0xf]
    %v432 = vld [vmem:[%s0 + $0x680] sm:$0xf]
    %v433 = vld [vmem:[%s0 + $0x684] sm:$0xf]
    %v434 = vld [vmem:[%s0 + $0x688] sm:$0xf]
    %v435 = vld [vmem:[%s0 + $0x68c] sm:$0xf]
    %v436 = vld [vmem:[%s0 + $0x690] sm:$0xf]
    %v437 = vld [vmem:[%s0 + $0x694] sm:$0xf]
    %v438 = vld [vmem:[%s0 + $0x698] sm:$0xf]
    %v439 = vld [vmem:[%s0 + $0x69c] sm:$0xf]
    %v440 = vld [vmem:[%s0 + $0x6a0] sm:$0xf]
    %v441 = vld [vmem:[%s0 + $0x6a4] sm:$0xf]
    %v442 = vld [vmem:[%s0 + $0x6a8] sm:$0xf]
    %v443 = vld [vmem:[%s0 + $0x6ac] sm:$0xf]
    %v444 = vld [vmem:[%s0 + $0x6b0] sm:$0xf]
    %v445 = vld [vmem:[%s0 + $0x6b4] sm:$0xf]
    %v446 = vld [vmem:[%s0 + $0x6b8] sm:$0xf]
    %v447 = vld [vmem:[%s0 + $0x6bc] sm:$0xf]
    %v448 = vld [vmem:[%s0 + $0x6c0] sm:$0xf]
    %v449 = vld [vmem:[%s0 + $0x6c4] sm:$0xf]
    %v450 = vld [vmem:[%s0 + $0x6c8] sm:$0xf]
    %v451 = vld [vmem:[%s0 + $0x6cc] sm:$0xf]
    %v452 = vld [vmem:[%s0 + $0x6d0] sm:$0xf]
    %v453 = vld [vmem:[%s0 + $0x6d4] sm:$0xf]
    %v454 = vld [vmem:[%s0 + $0x6d8] sm:$0xf]
    %v455 = vld [vmem:[%s0 + $0x6dc] sm:$0xf]
    %v456 = vld [vmem:[%s0 + $0x6e0] sm:$0xf]
    %v457 = vld [vmem:[%s0 + $0x6e4] sm:$0xf]
    %v458 = vld [vmem:[%s0 + $0x6e8] sm:$0xf]
    %v459 = vld [vmem:[%s0 + $0x6ec] sm:$0xf]
    %v460 = vld [vmem:[%s0 + $0x6f0] sm:$0xf]
    %v461 = vld [vmem:[%s0 + $0x6f4] sm:$0xf]
    %v462 = vld [vmem:[%s0 + $0x6f8] sm:$0xf]
    %v463 = vld [vmem:[%s0 + $0x6fc] sm:$0xf]
    %v464 = vld [vmem:[%s0 + $0x700] sm:$0xf]
    %v465 = vld [vmem:[%s0 + $0x704] sm:$0xf]
    %v466 = vld [vmem:[%s0 + $0x708] sm:$0xf]
    %v467 = vld [vmem:[%s0 + $0x70c] sm:$0xf]
    %v468 = vld [vmem:[%s0 + $0x710] sm:$0xf]
    %v469 = vld [vmem:[%s0 + $0x714] sm:$0xf]
    %v470 = vld [vmem:[%s0 + $0x718] sm:$0xf]
    %v471 = vld [vmem:[%s0 + $0x71c] sm:$0xf]
    %v472 = vld [vmem:[%s0 + $0x720] sm:$0xf]
    %v473 = vld [vmem:[%s0 + $0x724] sm:$0xf]
    %v474 = vld [vmem:[%s0 + $0x728] sm:$0xf]
    %v475 = vld [vmem:[%s0 + $0x72c] sm:$0xf]
    %v476 = vld [vmem:[%s0 + $0x730] sm:$0xf]
    %v477 = vld [vmem:[%s0 + $0x734] sm:$0xf]
    %v478 = vld [vmem:[%s0 + $0x738] sm:$0xf]
    %v479 = vld [vmem:[%s0 + $0x73c] sm:$0xf]
    %v480 = vld [vmem:[%s0 + $0x740] sm:$0xf]
    %v481 = vld [vmem:[%s0 + $0x744] sm:$0xf]
    %v482 = vld [vmem:[%s0 + $0x748] sm:$0xf]
    %v483 = vld [vmem:[%s0 + $0x74c] sm:$0xf]
    %v484 = vld [vmem:[%s0 + $0x750] sm:$0xf]
    %v485 = vld [vmem:[%s0 + $0x754] sm:$0xf]
    %v486 = vld [vmem:[%s0 + $0x758] sm:$0xf]
    %v487 = vld [vmem:[%s0 + $0x75c] sm:$0xf]
    %v488 = vld [vmem:[%s0 + $0x760] sm:$0xf]
    %v489 = vld [vmem:[%s0 + $0x764] sm:$0xf]
    %v490 = vld [vmem:[%s0 + $0x768] sm:$0xf]
    %v491 = vld [vmem:[%s0 + $0x76c] sm:$0xf]
    %v492 = vld [vmem:[%s0 + $0x770] sm:$0xf]
    %v493 = vld [vmem:[%s0 + $0x774] sm:$0xf]
    %v494 = vld [vmem:[%s0 + $0x778] sm:$0xf]
    %v495 = vld [vmem:[%s0 + $0x77c] sm:$0xf]
    %v496 = vld [vmem:[%s0 + $0x780] sm:$0xf]
    %v497 = vld [vmem:[%s0 + $0x784] sm:$0xf]
    %v498 = vld [vmem:[%s0 + $0x788] sm:$0xf]
    %v499 = vld [vmem:[%s0 + $0x78c] sm:$0xf]
    %v500 = vld [vmem:[%s0 + $0x790] sm:$0xf]
    %v501 = vld [vmem:[%s0 + $0x794] sm:$0xf]
    %v502 = vld [vmem:[%s0 + $0x798] sm:$0xf]
    %v503 = vld [vmem:[%s0 + $0x79c] sm:$0xf]
    %v504 = vld [vmem:[%s0 + $0x7a0] sm:$0xf]
    %v505 = vld [vmem:[%s0 + $0x7a4] sm:$0xf]
    %v506 = vld [vmem:[%s0 + $0x7a8] sm:$0xf]
    %v507 = vld [vmem:[%s0 + $0x7ac] sm:$0xf]
    %v508 = vld [vmem:[%s0 + $0x7b0] sm:$0xf]
    %v509 = vld [vmem:[%s0 + $0x7b4] sm:$0xf]
    %v510 = vld [vmem:[%s0 + $0x7b8] sm:$0xf]
    %v511 = vld [vmem:[%s0 + $0x7bc] sm:$0xf]
    %v512 = vld [vmem:[%s0 + $0x7c0] sm:$0xf]
    %v513 = vld [vmem:[%s0 + $0x7c4] sm:$0xf]
    %v514 = vld [vmem:[%s0 + $0x7c8] sm:$0xf]
    %v515 = vld [vmem:[%s0 + $0x7cc] sm:$0xf]
    %v516 = vld [vmem:[%s0 + $0x7d0] sm:$0xf]
    %v517 = vld [vmem:[%s0 + $0x7d4] sm:$0xf]
    %v518 = vld [vmem:[%s0 + $0x7d8] sm:$0xf]
    %v519 = vld [vmem:[%s0 + $0x7dc] sm:$0xf]
    %v520 = vld [vmem:[%s0 + $0x7e0] sm:$0xf]
    %v521 = vld [vmem:[%s0 + $0x7e4] sm:$0xf]
    %v522 = vld [vmem:[%s0 + $0x7e8] sm:$0xf]
    %v523 = vld [vmem:[%s0 + $0x7ec] sm:$0xf]
    %v524 = vld [vmem:[%s0 + $0x7f0] sm:$0xf]
    %v525 = vld [vmem:[%s0 + $0x7f4] sm:$0xf]
    %v526 = vld [vmem:[%s0 + $0x7f8] sm:$0xf]
    %v527 = vld [vmem:[%s0 + $0x7fc] sm:$0xf]
    %v528 = vunpack.c.l.bf16 %v16
    %v529 = vunpack.c.l.bf16 %v17
    %v530 = vunpack.c.l.bf16 %v18
    %v531 = vunpack.c.l.bf16 %v19
    %v532 = vunpack.c.l.bf16 %v20
    %v533 = vunpack.c.l.bf16 %v21
    %v534 = vunpack.c.l.bf16 %v22
    %v535 = vunpack.c.l.bf16 %v23
    %v536 = vunpack.c.l.bf16 %v24
    %v537 = vunpack.c.l.bf16 %v25
    %v538 = vunpack.c.l.bf16 %v26
    %v539 = vunpack.c.l.bf16 %v27
    %v540 = vunpack.c.l.bf16 %v28
    %v541 = vunpack.c.l.bf16 %v29
    %v542 = vunpack.c.l.bf16 %v30
    %v543 = vunpack.c.l.bf16 %v31
    %v544 = vunpack.c.l.bf16 %v32
    %v545 = vunpack.c.l.bf16 %v33
    %v546 = vunpack.c.l.bf16 %v34
    %v547 = vunpack.c.l.bf16 %v35
    %v548 = vunpack.c.l.bf16 %v36
    %v549 = vunpack.c.l.bf16 %v37
    %v550 = vunpack.c.l.bf16 %v38
    %v551 = vunpack.c.l.bf16 %v39
    %v552 = vunpack.c.l.bf16 %v40
    %v553 = vunpack.c.l.bf16 %v41
    %v554 = vunpack.c.l.bf16 %v42
    %v555 = vunpack.c.l.bf16 %v43
    %v556 = vunpack.c.l.bf16 %v44
    %v557 = vunpack.c.l.bf16 %v45
    %v558 = vunpack.c.l.bf16 %v46
    %v559 = vunpack.c.l.bf16 %v47
    %v560 = vunpack.c.l.bf16 %v48
    %v561 = vunpack.c.l.bf16 %v49
    %v562 = vunpack.c.l.bf16 %v50
    %v563 = vunpack.c.l.bf16 %v51
    %v564 = vunpack.c.l.bf16 %v52
    %v565 = vunpack.c.l.bf16 %v53
    %v566 = vunpack.c.l.bf16 %v54
    %v567 = vunpack.c.l.bf16 %v55
    %v568 = vunpack.c.l.bf16 %v56
    %v569 = vunpack.c.l.bf16 %v57
    %v570 = vunpack.c.l.bf16 %v58
    %v571 = vunpack.c.l.bf16 %v59
    %v572 = vunpack.c.l.bf16 %v60
    %v573 = vunpack.c.l.bf16 %v61
    %v574 = vunpack.c.l.bf16 %v62
    %v575 = vunpack.c.l.bf16 %v63
    %v576 = vunpack.c.l.bf16 %v64
    %v577 = vunpack.c.l.bf16 %v65
    %v578 = vunpack.c.l.bf16 %v66
    %v579 = vunpack.c.l.bf16 %v67
    %v580 = vunpack.c.l.bf16 %v68
    %v581 = vunpack.c.l.bf16 %v69
    %v582 = vunpack.c.l.bf16 %v70
    %v583 = vunpack.c.l.bf16 %v71
    %v584 = vunpack.c.l.bf16 %v72
    %v585 = vunpack.c.l.bf16 %v73
    %v586 = vunpack.c.l.bf16 %v74
    %v587 = vunpack.c.l.bf16 %v75
    %v588 = vunpack.c.l.bf16 %v76
    %v589 = vunpack.c.l.bf16 %v77
    %v590 = vunpack.c.l.bf16 %v78
    %v591 = vunpack.c.l.bf16 %v79
    %v592 = vunpack.c.l.bf16 %v80
    %v593 = vunpack.c.l.bf16 %v81
    %v594 = vunpack.c.l.bf16 %v82
    %v595 = vunpack.c.l.bf16 %v83
    %v596 = vunpack.c.l.bf16 %v84
    %v597 = vunpack.c.l.bf16 %v85
    %v598 = vunpack.c.l.bf16 %v86
    %v599 = vunpack.c.l.bf16 %v87
    %v600 = vunpack.c.l.bf16 %v88
    %v601 = vunpack.c.l.bf16 %v89
    %v602 = vunpack.c.l.bf16 %v90
    %v603 = vunpack.c.l.bf16 %v91
    %v604 = vunpack.c.l.bf16 %v92
    %v605 = vunpack.c.l.bf16 %v93
    %v606 = vunpack.c.l.bf16 %v94
    %v607 = vunpack.c.l.bf16 %v95
    %v608 = vunpack.c.l.bf16 %v96
    %v609 = vunpack.c.l.bf16 %v97
    %v610 = vunpack.c.l.bf16 %v98
    %v611 = vunpack.c.l.bf16 %v99
    %v612 = vunpack.c.l.bf16 %v100
    %v613 = vunpack.c.l.bf16 %v101
    %v614 = vunpack.c.l.bf16 %v102
    %v615 = vunpack.c.l.bf16 %v103
    %v616 = vunpack.c.l.bf16 %v104
    %v617 = vunpack.c.l.bf16 %v105
    %v618 = vunpack.c.l.bf16 %v106
    %v619 = vunpack.c.l.bf16 %v107
    %v620 = vunpack.c.l.bf16 %v108
    %v621 = vunpack.c.l.bf16 %v109
    %v622 = vunpack.c.l.bf16 %v110
    %v623 = vunpack.c.l.bf16 %v111
    %v624 = vunpack.c.l.bf16 %v112
    %v625 = vunpack.c.l.bf16 %v113
    %v626 = vunpack.c.l.bf16 %v114
    %v627 = vunpack.c.l.bf16 %v115
    %v628 = vunpack.c.l.bf16 %v116
    %v629 = vunpack.c.l.bf16 %v117
    %v630 = vunpack.c.l.bf16 %v118
    %v631 = vunpack.c.l.bf16 %v119
    %v632 = vunpack.c.l.bf16 %v120
    %v633 = vunpack.c.l.bf16 %v121
    %v634 = vunpack.c.l.bf16 %v122
    %v635 = vunpack.c.l.bf16 %v123
    %v636 = vunpack.c.l.bf16 %v124
    %v637 = vunpack.c.l.bf16 %v125
    %v638 = vunpack.c.l.bf16 %v126
    %v639 = vunpack.c.l.bf16 %v127
    %v640 = vunpack.c.l.bf16 %v128
    %v641 = vunpack.c.l.bf16 %v129
    %v642 = vunpack.c.l.bf16 %v130
    %v643 = vunpack.c.l.bf16 %v131
    %v644 = vunpack.c.l.bf16 %v132
    %v645 = vunpack.c.l.bf16 %v133
    %v646 = vunpack.c.l.bf16 %v134
    %v647 = vunpack.c.l.bf16 %v135
    %v648 = vunpack.c.l.bf16 %v136
    %v649 = vunpack.c.l.bf16 %v137
    %v650 = vunpack.c.l.bf16 %v138
    %v651 = vunpack.c.l.bf16 %v139
    %v652 = vunpack.c.l.bf16 %v140
    %v653 = vunpack.c.l.bf16 %v141
    %v654 = vunpack.c.l.bf16 %v142
    %v655 = vunpack.c.l.bf16 %v143
    %v656 = vunpack.c.l.bf16 %v144
    %v657 = vunpack.c.l.bf16 %v145
    %v658 = vunpack.c.l.bf16 %v146
    %v659 = vunpack.c.l.bf16 %v147
    %v660 = vunpack.c.l.bf16 %v148
    %v661 = vunpack.c.l.bf16 %v149
    %v662 = vunpack.c.l.bf16 %v150
    %v663 = vunpack.c.l.bf16 %v151
    %v664 = vunpack.c.l.bf16 %v152
    %v665 = vunpack.c.l.bf16 %v153
    %v666 = vunpack.c.l.bf16 %v154
    %v667 = vunpack.c.l.bf16 %v155
    %v668 = vunpack.c.l.bf16 %v156
    %v669 = vunpack.c.l.bf16 %v157
    %v670 = vunpack.c.l.bf16 %v158
    %v671 = vunpack.c.l.bf16 %v159
    %v672 = vunpack.c.l.bf16 %v160
    %v673 = vunpack.c.l.bf16 %v161
    %v674 = vunpack.c.l.bf16 %v162
    %v675 = vunpack.c.l.bf16 %v163
    %v676 = vunpack.c.l.bf16 %v164
    %v677 = vunpack.c.l.bf16 %v165
    %v678 = vunpack.c.l.bf16 %v166
    %v679 = vunpack.c.l.bf16 %v167
    %v680 = vunpack.c.l.bf16 %v168
    %v681 = vunpack.c.l.bf16 %v169
    %v682 = vunpack.c.l.bf16 %v170
    %v683 = vunpack.c.l.bf16 %v171
    %v684 = vunpack.c.l.bf16 %v172
    %v685 = vunpack.c.l.bf16 %v173
    %v686 = vunpack.c.l.bf16 %v174
    %v687 = vunpack.c.l.bf16 %v175
    %v688 = vunpack.c.l.bf16 %v176
    %v689 = vunpack.c.l.bf16 %v177
    %v690 = vunpack.c.l.bf16 %v178
    %v691 = vunpack.c.l.bf16 %v179
    %v692 = vunpack.c.l.bf16 %v180
    %v693 = vunpack.c.l.bf16 %v181
    %v694 = vunpack.c.l.bf16 %v182
    %v695 = vunpack.c.l.bf16 %v183
    %v696 = vunpack.c.l.bf16 %v184
    %v697 = vunpack.c.l.bf16 %v185
    %v698 = vunpack.c.l.bf16 %v186
    %v699 = vunpack.c.l.bf16 %v187
    %v700 = vunpack.c.l.bf16 %v188
    %v701 = vunpack.c.l.bf16 %v189
    %v702 = vunpack.c.l.bf16 %v190
    %v703 = vunpack.c.l.bf16 %v191
    %v704 = vunpack.c.l.bf16 %v192
    %v705 = vunpack.c.l.bf16 %v193
    %v706 = vunpack.c.l.bf16 %v194
    %v707 = vunpack.c.l.bf16 %v195
    %v708 = vunpack.c.l.bf16 %v196
    %v709 = vunpack.c.l.bf16 %v197
    %v710 = vunpack.c.l.bf16 %v198
    %v711 = vunpack.c.l.bf16 %v199
    %v712 = vunpack.c.l.bf16 %v200
    %v713 = vunpack.c.l.bf16 %v201
    %v714 = vunpack.c.l.bf16 %v202
    %v715 = vunpack.c.l.bf16 %v203
    %v716 = vunpack.c.l.bf16 %v204
    %v717 = vunpack.c.l.bf16 %v205
    %v718 = vunpack.c.l.bf16 %v206
    %v719 = vunpack.c.l.bf16 %v207
    %v720 = vunpack.c.l.bf16 %v208
    %v721 = vunpack.c.l.bf16 %v209
    %v722 = vunpack.c.l.bf16 %v210
    %v723 = vunpack.c.l.bf16 %v211
    %v724 = vunpack.c.l.bf16 %v212
    %v725 = vunpack.c.l.bf16 %v213
    %v726 = vunpack.c.l.bf16 %v214
    %v727 = vunpack.c.l.bf16 %v215
    %v728 = vunpack.c.l.bf16 %v216
    %v729 = vunpack.c.l.bf16 %v217
    %v730 = vunpack.c.l.bf16 %v218
    %v731 = vunpack.c.l.bf16 %v219
    %v732 = vunpack.c.l.bf16 %v220
    %v733 = vunpack.c.l.bf16 %v221
    %v734 = vunpack.c.l.bf16 %v222
    %v735 = vunpack.c.l.bf16 %v223
    %v736 = vunpack.c.l.bf16 %v224
    %v737 = vunpack.c.l.bf16 %v225
    %v738 = vunpack.c.l.bf16 %v226
    %v739 = vunpack.c.l.bf16 %v227
    %v740 = vunpack.c.l.bf16 %v228
    %v741 = vunpack.c.l.bf16 %v229
    %v742 = vunpack.c.l.bf16 %v230
    %v743 = vunpack.c.l.bf16 %v231
    %v744 = vunpack.c.l.bf16 %v232
    %v745 = vunpack.c.l.bf16 %v233
    %v746 = vunpack.c.l.bf16 %v234
    %v747 = vunpack.c.l.bf16 %v235
    %v748 = vunpack.c.l.bf16 %v236
    %v749 = vunpack.c.l.bf16 %v237
    %v750 = vunpack.c.l.bf16 %v238
    %v751 = vunpack.c.l.bf16 %v239
    %v752 = vunpack.c.l.bf16 %v240
    %v753 = vunpack.c.l.bf16 %v241
    %v754 = vunpack.c.l.bf16 %v242
    %v755 = vunpack.c.l.bf16 %v243
    %v756 = vunpack.c.l.bf16 %v244
    %v757 = vunpack.c.l.bf16 %v245
    %v758 = vunpack.c.l.bf16 %v246
    %v759 = vunpack.c.l.bf16 %v247
    %v760 = vunpack.c.l.bf16 %v248
    %v761 = vunpack.c.l.bf16 %v249
    %v762 = vunpack.c.l.bf16 %v250
    %v763 = vunpack.c.l.bf16 %v251
    %v764 = vunpack.c.l.bf16 %v252
    %v765 = vunpack.c.l.bf16 %v253
    %v766 = vunpack.c.l.bf16 %v254
    %v767 = vunpack.c.l.bf16 %v255
    %v768 = vunpack.c.l.bf16 %v256
    %v769 = vunpack.c.l.bf16 %v257
    %v770 = vunpack.c.l.bf16 %v258
    %v771 = vunpack.c.l.bf16 %v259
    %v772 = vunpack.c.l.bf16 %v260
    %v773 = vunpack.c.l.bf16 %v261
    %v774 = vunpack.c.l.bf16 %v262
    %v775 = vunpack.c.l.bf16 %v263
    %v776 = vunpack.c.l.bf16 %v264
    %v777 = vunpack.c.l.bf16 %v265
    %v778 = vunpack.c.l.bf16 %v266
    %v779 = vunpack.c.l.bf16 %v267
    %v780 = vunpack.c.l.bf16 %v268
    %v781 = vunpack.c.l.bf16 %v269
    %v782 = vunpack.c.l.bf16 %v270
    %v783 = vunpack.c.l.bf16 %v271
    %v784 = vunpack.c.l.bf16 %v272
    %v785 = vunpack.c.l.bf16 %v273
    %v786 = vunpack.c.l.bf16 %v274
    %v787 = vunpack.c.l.bf16 %v275
    %v788 = vunpack.c.l.bf16 %v276
    %v789 = vunpack.c.l.bf16 %v277
    %v790 = vunpack.c.l.bf16 %v278
    %v791 = vunpack.c.l.bf16 %v279
    %v792 = vunpack.c.l.bf16 %v280
    %v793 = vunpack.c.l.bf16 %v281
    %v794 = vunpack.c.l.bf16 %v282
    %v795 = vunpack.c.l.bf16 %v283
    %v796 = vunpack.c.l.bf16 %v284
    %v797 = vunpack.c.l.bf16 %v285
    %v798 = vunpack.c.l.bf16 %v286
    %v799 = vunpack.c.l.bf16 %v287
    %v800 = vunpack.c.l.bf16 %v288
    %v801 = vunpack.c.l.bf16 %v289
    %v802 = vunpack.c.l.bf16 %v290
    %v803 = vunpack.c.l.bf16 %v291
    %v804 = vunpack.c.l.bf16 %v292
    %v805 = vunpack.c.l.bf16 %v293
    %v806 = vunpack.c.l.bf16 %v294
    %v807 = vunpack.c.l.bf16 %v295
    %v808 = vunpack.c.l.bf16 %v296
    %v809 = vunpack.c.l.bf16 %v297
    %v810 = vunpack.c.l.bf16 %v298
    %v811 = vunpack.c.l.bf16 %v299
    %v812 = vunpack.c.l.bf16 %v300
    %v813 = vunpack.c.l.bf16 %v301
    %v814 = vunpack.c.l.bf16 %v302
    %v815 = vunpack.c.l.bf16 %v303
    %v816 = vunpack.c.l.bf16 %v304
    %v817 = vunpack.c.l.bf16 %v305
    %v818 = vunpack.c.l.bf16 %v306
    %v819 = vunpack.c.l.bf16 %v307
    %v820 = vunpack.c.l.bf16 %v308
    %v821 = vunpack.c.l.bf16 %v309
    %v822 = vunpack.c.l.bf16 %v310
    %v823 = vunpack.c.l.bf16 %v311
    %v824 = vunpack.c.l.bf16 %v312
    %v825 = vunpack.c.l.bf16 %v313
    %v826 = vunpack.c.l.bf16 %v314
    %v827 = vunpack.c.l.bf16 %v315
    %v828 = vunpack.c.l.bf16 %v316
    %v829 = vunpack.c.l.bf16 %v317
    %v830 = vunpack.c.l.bf16 %v318
    %v831 = vunpack.c.l.bf16 %v319
    %v832 = vunpack.c.l.bf16 %v320
    %v833 = vunpack.c.l.bf16 %v321
    %v834 = vunpack.c.l.bf16 %v322
    %v835 = vunpack.c.l.bf16 %v323
    %v836 = vunpack.c.l.bf16 %v324
    %v837 = vunpack.c.l.bf16 %v325
    %v838 = vunpack.c.l.bf16 %v326
    %v839 = vunpack.c.l.bf16 %v327
    %v840 = vunpack.c.l.bf16 %v328
    %v841 = vunpack.c.l.bf16 %v329
    %v842 = vunpack.c.l.bf16 %v330
    %v843 = vunpack.c.l.bf16 %v331
    %v844 = vunpack.c.l.bf16 %v332
    %v845 = vunpack.c.l.bf16 %v333
    %v846 = vunpack.c.l.bf16 %v334
    %v847 = vunpack.c.l.bf16 %v335
    %v848 = vunpack.c.l.bf16 %v336
    %v849 = vunpack.c.l.bf16 %v337
    %v850 = vunpack.c.l.bf16 %v338
    %v851 = vunpack.c.l.bf16 %v339
    %v852 = vunpack.c.l.bf16 %v340
    %v853 = vunpack.c.l.bf16 %v341
    %v854 = vunpack.c.l.bf16 %v342
    %v855 = vunpack.c.l.bf16 %v343
    %v856 = vunpack.c.l.bf16 %v344
    %v857 = vunpack.c.l.bf16 %v345
    %v858 = vunpack.c.l.bf16 %v346
    %v859 = vunpack.c.l.bf16 %v347
    %v860 = vunpack.c.l.bf16 %v348
    %v861 = vunpack.c.l.bf16 %v349
    %v862 = vunpack.c.l.bf16 %v350
    %v863 = vunpack.c.l.bf16 %v351
    %v864 = vunpack.c.l.bf16 %v352
    %v865 = vunpack.c.l.bf16 %v353
    %v866 = vunpack.c.l.bf16 %v354
    %v867 = vunpack.c.l.bf16 %v355
    %v868 = vunpack.c.l.bf16 %v356
    %v869 = vunpack.c.l.bf16 %v357
    %v870 = vunpack.c.l.bf16 %v358
    %v871 = vunpack.c.l.bf16 %v359
    %v872 = vunpack.c.l.bf16 %v360
    %v873 = vunpack.c.l.bf16 %v361
    %v874 = vunpack.c.l.bf16 %v362
    %v875 = vunpack.c.l.bf16 %v363
    %v876 = vunpack.c.l.bf16 %v364
    %v877 = vunpack.c.l.bf16 %v365
    %v878 = vunpack.c.l.bf16 %v366
    %v879 = vunpack.c.l.bf16 %v367
    %v880 = vunpack.c.l.bf16 %v368
    %v881 = vunpack.c.l.bf16 %v369
    %v882 = vunpack.c.l.bf16 %v370
    %v883 = vunpack.c.l.bf16 %v371
    %v884 = vunpack.c.l.bf16 %v372
    %v885 = vunpack.c.l.bf16 %v373
    %v886 = vunpack.c.l.bf16 %v374
    %v887 = vunpack.c.l.bf16 %v375
    %v888 = vunpack.c.l.bf16 %v376
    %v889 = vunpack.c.l.bf16 %v377
    %v890 = vunpack.c.l.bf16 %v378
    %v891 = vunpack.c.l.bf16 %v379
    %v892 = vunpack.c.l.bf16 %v380
    %v893 = vunpack.c.l.bf16 %v381
    %v894 = vunpack.c.l.bf16 %v382
    %v895 = vunpack.c.l.bf16 %v383
    %v896 = vunpack.c.l.bf16 %v384
    %v897 = vunpack.c.l.bf16 %v385
    %v898 = vunpack.c.l.bf16 %v386
    %v899 = vunpack.c.l.bf16 %v387
    %v900 = vunpack.c.l.bf16 %v388
    %v901 = vunpack.c.l.bf16 %v389
    %v902 = vunpack.c.l.bf16 %v390
    %v903 = vunpack.c.l.bf16 %v391
    %v904 = vunpack.c.l.bf16 %v392
    %v905 = vunpack.c.l.bf16 %v393
    %v906 = vunpack.c.l.bf16 %v394
    %v907 = vunpack.c.l.bf16 %v395
    %v908 = vunpack.c.l.bf16 %v396
    %v909 = vunpack.c.l.bf16 %v397
    %v910 = vunpack.c.l.bf16 %v398
    %v911 = vunpack.c.l.bf16 %v399
    %v912 = vunpack.c.l.bf16 %v400
    %v913 = vunpack.c.l.bf16 %v401
    %v914 = vunpack.c.l.bf16 %v402
    %v915 = vunpack.c.l.bf16 %v403
    %v916 = vunpack.c.l.bf16 %v404
    %v917 = vunpack.c.l.bf16 %v405
    %v918 = vunpack.c.l.bf16 %v406
    %v919 = vunpack.c.l.bf16 %v407
    %v920 = vunpack.c.l.bf16 %v408
    %v921 = vunpack.c.l.bf16 %v409
    %v922 = vunpack.c.l.bf16 %v410
    %v923 = vunpack.c.l.bf16 %v411
    %v924 = vunpack.c.l.bf16 %v412
    %v925 = vunpack.c.l.bf16 %v413
    %v926 = vunpack.c.l.bf16 %v414
    %v927 = vunpack.c.l.bf16 %v415
    %v928 = vunpack.c.l.bf16 %v416
    %v929 = vunpack.c.l.bf16 %v417
    %v930 = vunpack.c.l.bf16 %v418
    %v931 = vunpack.c.l.bf16 %v419
    %v932 = vunpack.c.l.bf16 %v420
    %v933 = vunpack.c.l.bf16 %v421
    %v934 = vunpack.c.l.bf16 %v422
    %v935 = vunpack.c.l.bf16 %v423
    %v936 = vunpack.c.l.bf16 %v424
    %v937 = vunpack.c.l.bf16 %v425
    %v938 = vunpack.c.l.bf16 %v426
    %v939 = vunpack.c.l.bf16 %v427
    %v940 = vunpack.c.l.bf16 %v428
    %v941 = vunpack.c.l.bf16 %v429
    %v942 = vunpack.c.l.bf16 %v430
    %v943 = vunpack.c.l.bf16 %v431
    %v944 = vunpack.c.l.bf16 %v432
    %v945 = vunpack.c.l.bf16 %v433
    %v946 = vunpack.c.l.bf16 %v434
    %v947 = vunpack.c.l.bf16 %v435
    %v948 = vunpack.c.l.bf16 %v436
    %v949 = vunpack.c.l.bf16 %v437
    %v950 = vunpack.c.l.bf16 %v438
    %v951 = vunpack.c.l.bf16 %v439
    %v952 = vunpack.c.l.bf16 %v440
    %v953 = vunpack.c.l.bf16 %v441
    %v954 = vunpack.c.l.bf16 %v442
    %v955 = vunpack.c.l.bf16 %v443
    %v956 = vunpack.c.l.bf16 %v444
    %v957 = vunpack.c.l.bf16 %v445
    %v958 = vunpack.c.l.bf16 %v446
    %v959 = vunpack.c.l.bf16 %v447
    %v960 = vunpack.c.l.bf16 %v448
    %v961 = vunpack.c.l.bf16 %v449
    %v962 = vunpack.c.l.bf16 %v450
    %v963 = vunpack.c.l.bf16 %v451
    %v964 = vunpack.c.l.bf16 %v452
    %v965 = vunpack.c.l.bf16 %v453
    %v966 = vunpack.c.l.bf16 %v454
    %v967 = vunpack.c.l.bf16 %v455
    %v968 = vunpack.c.l.bf16 %v456
    %v969 = vunpack.c.l.bf16 %v457
    %v970 = vunpack.c.l.bf16 %v458
    %v971 = vunpack.c.l.bf16 %v459
    %v972 = vunpack.c.l.bf16 %v460
    %v973 = vunpack.c.l.bf16 %v461
    %v974 = vunpack.c.l.bf16 %v462
    %v975 = vunpack.c.l.bf16 %v463
    %v976 = vunpack.c.l.bf16 %v464
    %v977 = vunpack.c.l.bf16 %v465
    %v978 = vunpack.c.l.bf16 %v466
    %v979 = vunpack.c.l.bf16 %v467
    %v980 = vunpack.c.l.bf16 %v468
    %v981 = vunpack.c.l.bf16 %v469
    %v982 = vunpack.c.l.bf16 %v470
    %v983 = vunpack.c.l.bf16 %v471
    %v984 = vunpack.c.l.bf16 %v472
    %v985 = vunpack.c.l.bf16 %v473
    %v986 = vunpack.c.l.bf16 %v474
    %v987 = vunpack.c.l.bf16 %v475
    %v988 = vunpack.c.l.bf16 %v476
    %v989 = vunpack.c.l.bf16 %v477
    %v990 = vunpack.c.l.bf16 %v478
    %v991 = vunpack.c.l.bf16 %v479
    %v992 = vunpack.c.l.bf16 %v480
    %v993 = vunpack.c.l.bf16 %v481
    %v994 = vunpack.c.l.bf16 %v482
    %v995 = vunpack.c.l.bf16 %v483
    %v996 = vunpack.c.l.bf16 %v484
    %v997 = vunpack.c.l.bf16 %v485
    %v998 = vunpack.c.l.bf16 %v486
    %v999 = vunpack.c.l.bf16 %v487
    %v1000 = vunpack.c.l.bf16 %v488
    %v1001 = vunpack.c.l.bf16 %v489
    %v1002 = vunpack.c.l.bf16 %v490
    %v1003 = vunpack.c.l.bf16 %v491
    %v1004 = vunpack.c.l.bf16 %v492
    %v1005 = vunpack.c.l.bf16 %v493
    %v1006 = vunpack.c.l.bf16 %v494
    %v1007 = vunpack.c.l.bf16 %v495
    %v1008 = vunpack.c.l.bf16 %v496
    %v1009 = vunpack.c.l.bf16 %v497
    %v1010 = vunpack.c.l.bf16 %v498
    %v1011 = vunpack.c.l.bf16 %v499
    %v1012 = vunpack.c.l.bf16 %v500
    %v1013 = vunpack.c.l.bf16 %v501
    %v1014 = vunpack.c.l.bf16 %v502
    %v1015 = vunpack.c.l.bf16 %v503
    %v1016 = vunpack.c.l.bf16 %v504
    %v1017 = vunpack.c.l.bf16 %v505
    %v1018 = vunpack.c.l.bf16 %v506
    %v1019 = vunpack.c.l.bf16 %v507
    %v1020 = vunpack.c.l.bf16 %v508
    %v1021 = vunpack.c.l.bf16 %v509
    %v1022 = vunpack.c.l.bf16 %v510
    %v1023 = vunpack.c.l.bf16 %v511
    %v1024 = vunpack.c.l.bf16 %v512
    %v1025 = vunpack.c.l.bf16 %v513
    %v1026 = vunpack.c.l.bf16 %v514
    %v1027 = vunpack.c.l.bf16 %v515
    %v1028 = vunpack.c.l.bf16 %v516
    %v1029 = vunpack.c.l.bf16 %v517
    %v1030 = vunpack.c.l.bf16 %v518
    %v1031 = vunpack.c.l.bf16 %v519
    %v1032 = vunpack.c.l.bf16 %v520
    %v1033 = vunpack.c.l.bf16 %v521
    %v1034 = vunpack.c.l.bf16 %v522
    %v1035 = vunpack.c.l.bf16 %v523
    %v1036 = vunpack.c.l.bf16 %v524
    %v1037 = vunpack.c.l.bf16 %v525
    %v1038 = vunpack.c.l.bf16 %v526
    %v1039 = vunpack.c.l.bf16 %v527
    %vm1040 = vcmask 400384
    %v1041 = vsel %vm1040, %v528, 0.0
    %1042 = vadd.xlane.f32.xlu0 %v1041
    %v1043 = vpop.xlane.xlu0 %1042
    %v1044 = vsel %vm1040, %v529, 0.0
    %1045 = vadd.xlane.f32.xlu0 %v1044
    %v1046 = vpop.xlane.xlu0 %1045
    %v1047 = vsel %vm1040, %v530, 0.0
    %1048 = vadd.xlane.f32.xlu0 %v1047
    %v1049 = vpop.xlane.xlu0 %1048
    %v1050 = vsel %vm1040, %v531, 0.0
    %1051 = vadd.xlane.f32.xlu0 %v1050
    %v1052 = vpop.xlane.xlu0 %1051
    %v1053 = vsel %vm1040, %v532, 0.0
    %1054 = vadd.xlane.f32.xlu0 %v1053
    %v1055 = vpop.xlane.xlu0 %1054
    %v1056 = vsel %vm1040, %v533, 0.0
    %1057 = vadd.xlane.f32.xlu0 %v1056
    %v1058 = vpop.xlane.xlu0 %1057
    %v1059 = vsel %vm1040, %v534, 0.0
    %1060 = vadd.xlane.f32.xlu0 %v1059
    %v1061 = vpop.xlane.xlu0 %1060
    %v1062 = vsel %vm1040, %v535, 0.0
    %1063 = vadd.xlane.f32.xlu0 %v1062
    %v1064 = vpop.xlane.xlu0 %1063
    %v1065 = vsel %vm1040, %v536, 0.0
    %1066 = vadd.xlane.f32.xlu0 %v1065
    %v1067 = vpop.xlane.xlu0 %1066
    %v1068 = vsel %vm1040, %v537, 0.0
    %1069 = vadd.xlane.f32.xlu0 %v1068
    %v1070 = vpop.xlane.xlu0 %1069
    %v1071 = vsel %vm1040, %v538, 0.0
    %1072 = vadd.xlane.f32.xlu0 %v1071
    %v1073 = vpop.xlane.xlu0 %1072
    %v1074 = vsel %vm1040, %v539, 0.0
    %1075 = vadd.xlane.f32.xlu0 %v1074
    %v1076 = vpop.xlane.xlu0 %1075
    %v1077 = vsel %vm1040, %v540, 0.0
    %1078 = vadd.xlane.f32.xlu0 %v1077
    %v1079 = vpop.xlane.xlu0 %1078
    %v1080 = vsel %vm1040, %v541, 0.0
    %1081 = vadd.xlane.f32.xlu0 %v1080
    %v1082 = vpop.xlane.xlu0 %1081
    %v1083 = vsel %vm1040, %v542, 0.0
    %1084 = vadd.xlane.f32.xlu0 %v1083
    %v1085 = vpop.xlane.xlu0 %1084
    %v1086 = vsel %vm1040, %v543, 0.0
    %1087 = vadd.xlane.f32.xlu0 %v1086
    %v1088 = vpop.xlane.xlu0 %1087
    %v1089 = vsel %vm1040, %v544, 0.0
    %1090 = vadd.xlane.f32.xlu0 %v1089
    %v1091 = vpop.xlane.xlu0 %1090
    %v1092 = vsel %vm1040, %v545, 0.0
    %1093 = vadd.xlane.f32.xlu0 %v1092
    %v1094 = vpop.xlane.xlu0 %1093
    %v1095 = vsel %vm1040, %v546, 0.0
    %1096 = vadd.xlane.f32.xlu0 %v1095
    %v1097 = vpop.xlane.xlu0 %1096
    %v1098 = vsel %vm1040, %v547, 0.0
    %1099 = vadd.xlane.f32.xlu0 %v1098
    %v1100 = vpop.xlane.xlu0 %1099
    %v1101 = vsel %vm1040, %v548, 0.0
    %1102 = vadd.xlane.f32.xlu0 %v1101
    %v1103 = vpop.xlane.xlu0 %1102
    %v1104 = vsel %vm1040, %v549, 0.0
    %1105 = vadd.xlane.f32.xlu0 %v1104
    %v1106 = vpop.xlane.xlu0 %1105
    %v1107 = vsel %vm1040, %v550, 0.0
    %1108 = vadd.xlane.f32.xlu0 %v1107
    %v1109 = vpop.xlane.xlu0 %1108
    %v1110 = vsel %vm1040, %v551, 0.0
    %1111 = vadd.xlane.f32.xlu0 %v1110
    %v1112 = vpop.xlane.xlu0 %1111
    %v1113 = vsel %vm1040, %v552, 0.0
    %1114 = vadd.xlane.f32.xlu0 %v1113
    %v1115 = vpop.xlane.xlu0 %1114
    %v1116 = vsel %vm1040, %v553, 0.0
    %1117 = vadd.xlane.f32.xlu0 %v1116
    %v1118 = vpop.xlane.xlu0 %1117
    %v1119 = vsel %vm1040, %v554, 0.0
    %1120 = vadd.xlane.f32.xlu0 %v1119
    %v1121 = vpop.xlane.xlu0 %1120
    %v1122 = vsel %vm1040, %v555, 0.0
    %1123 = vadd.xlane.f32.xlu0 %v1122
    %v1124 = vpop.xlane.xlu0 %1123
    %v1125 = vsel %vm1040, %v556, 0.0
    %1126 = vadd.xlane.f32.xlu0 %v1125
    %v1127 = vpop.xlane.xlu0 %1126
    %v1128 = vsel %vm1040, %v557, 0.0
    %1129 = vadd.xlane.f32.xlu0 %v1128
    %v1130 = vpop.xlane.xlu0 %1129
    %v1131 = vsel %vm1040, %v558, 0.0
    %1132 = vadd.xlane.f32.xlu0 %v1131
    %v1133 = vpop.xlane.xlu0 %1132
    %v1134 = vsel %vm1040, %v559, 0.0
    %1135 = vadd.xlane.f32.xlu0 %v1134
    %v1136 = vpop.xlane.xlu0 %1135
    %v1137 = vsel %vm1040, %v560, 0.0
    %1138 = vadd.xlane.f32.xlu0 %v1137
    %v1139 = vpop.xlane.xlu0 %1138
    %v1140 = vsel %vm1040, %v561, 0.0
    %1141 = vadd.xlane.f32.xlu0 %v1140
    %v1142 = vpop.xlane.xlu0 %1141
    %v1143 = vsel %vm1040, %v562, 0.0
    %1144 = vadd.xlane.f32.xlu0 %v1143
    %v1145 = vpop.xlane.xlu0 %1144
    %v1146 = vsel %vm1040, %v563, 0.0
    %1147 = vadd.xlane.f32.xlu0 %v1146
    %v1148 = vpop.xlane.xlu0 %1147
    %v1149 = vsel %vm1040, %v564, 0.0
    %1150 = vadd.xlane.f32.xlu0 %v1149
    %v1151 = vpop.xlane.xlu0 %1150
    %v1152 = vsel %vm1040, %v565, 0.0
    %1153 = vadd.xlane.f32.xlu0 %v1152
    %v1154 = vpop.xlane.xlu0 %1153
    %v1155 = vsel %vm1040, %v566, 0.0
    %1156 = vadd.xlane.f32.xlu0 %v1155
    %v1157 = vpop.xlane.xlu0 %1156
    %v1158 = vsel %vm1040, %v567, 0.0
    %1159 = vadd.xlane.f32.xlu0 %v1158
    %v1160 = vpop.xlane.xlu0 %1159
    %v1161 = vsel %vm1040, %v568, 0.0
    %1162 = vadd.xlane.f32.xlu0 %v1161
    %v1163 = vpop.xlane.xlu0 %1162
    %v1164 = vsel %vm1040, %v569, 0.0
    %1165 = vadd.xlane.f32.xlu0 %v1164
    %v1166 = vpop.xlane.xlu0 %1165
    %v1167 = vsel %vm1040, %v570, 0.0
    %1168 = vadd.xlane.f32.xlu0 %v1167
    %v1169 = vpop.xlane.xlu0 %1168
    %v1170 = vsel %vm1040, %v571, 0.0
    %1171 = vadd.xlane.f32.xlu0 %v1170
    %v1172 = vpop.xlane.xlu0 %1171
    %v1173 = vsel %vm1040, %v572, 0.0
    %1174 = vadd.xlane.f32.xlu0 %v1173
    %v1175 = vpop.xlane.xlu0 %1174
    %v1176 = vsel %vm1040, %v573, 0.0
    %1177 = vadd.xlane.f32.xlu0 %v1176
    %v1178 = vpop.xlane.xlu0 %1177
    %v1179 = vsel %vm1040, %v574, 0.0
    %1180 = vadd.xlane.f32.xlu0 %v1179
    %v1181 = vpop.xlane.xlu0 %1180
    %v1182 = vsel %vm1040, %v575, 0.0
    %1183 = vadd.xlane.f32.xlu0 %v1182
    %v1184 = vpop.xlane.xlu0 %1183
    %v1185 = vsel %vm1040, %v576, 0.0
    %1186 = vadd.xlane.f32.xlu0 %v1185
    %v1187 = vpop.xlane.xlu0 %1186
    %v1188 = vsel %vm1040, %v577, 0.0
    %1189 = vadd.xlane.f32.xlu0 %v1188
    %v1190 = vpop.xlane.xlu0 %1189
    %v1191 = vsel %vm1040, %v578, 0.0
    %1192 = vadd.xlane.f32.xlu0 %v1191
    %v1193 = vpop.xlane.xlu0 %1192
    %v1194 = vsel %vm1040, %v579, 0.0
    %1195 = vadd.xlane.f32.xlu0 %v1194
    %v1196 = vpop.xlane.xlu0 %1195
    %v1197 = vsel %vm1040, %v580, 0.0
    %1198 = vadd.xlane.f32.xlu0 %v1197
    %v1199 = vpop.xlane.xlu0 %1198
    %v1200 = vsel %vm1040, %v581, 0.0
    %1201 = vadd.xlane.f32.xlu0 %v1200
    %v1202 = vpop.xlane.xlu0 %1201
    %v1203 = vsel %vm1040, %v582, 0.0
    %1204 = vadd.xlane.f32.xlu0 %v1203
    %v1205 = vpop.xlane.xlu0 %1204
    %v1206 = vsel %vm1040, %v583, 0.0
    %1207 = vadd.xlane.f32.xlu0 %v1206
    %v1208 = vpop.xlane.xlu0 %1207
    %v1209 = vsel %vm1040, %v584, 0.0
    %1210 = vadd.xlane.f32.xlu0 %v1209
    %v1211 = vpop.xlane.xlu0 %1210
    %v1212 = vsel %vm1040, %v585, 0.0
    %1213 = vadd.xlane.f32.xlu0 %v1212
    %v1214 = vpop.xlane.xlu0 %1213
    %v1215 = vsel %vm1040, %v586, 0.0
    %1216 = vadd.xlane.f32.xlu0 %v1215
    %v1217 = vpop.xlane.xlu0 %1216
    %v1218 = vsel %vm1040, %v587, 0.0
    %1219 = vadd.xlane.f32.xlu0 %v1218
    %v1220 = vpop.xlane.xlu0 %1219
    %v1221 = vsel %vm1040, %v588, 0.0
    %1222 = vadd.xlane.f32.xlu0 %v1221
    %v1223 = vpop.xlane.xlu0 %1222
    %v1224 = vsel %vm1040, %v589, 0.0
    %1225 = vadd.xlane.f32.xlu0 %v1224
    %v1226 = vpop.xlane.xlu0 %1225
    %v1227 = vsel %vm1040, %v590, 0.0
    %1228 = vadd.xlane.f32.xlu0 %v1227
    %v1229 = vpop.xlane.xlu0 %1228
    %v1230 = vsel %vm1040, %v591, 0.0
    %1231 = vadd.xlane.f32.xlu0 %v1230
    %v1232 = vpop.xlane.xlu0 %1231
    %v1233 = vsel %vm1040, %v592, 0.0
    %1234 = vadd.xlane.f32.xlu0 %v1233
    %v1235 = vpop.xlane.xlu0 %1234
    %v1236 = vsel %vm1040, %v593, 0.0
    %1237 = vadd.xlane.f32.xlu0 %v1236
    %v1238 = vpop.xlane.xlu0 %1237
    %v1239 = vsel %vm1040, %v594, 0.0
    %1240 = vadd.xlane.f32.xlu0 %v1239
    %v1241 = vpop.xlane.xlu0 %1240
    %v1242 = vsel %vm1040, %v595, 0.0
    %1243 = vadd.xlane.f32.xlu0 %v1242
    %v1244 = vpop.xlane.xlu0 %1243
    %v1245 = vsel %vm1040, %v596, 0.0
    %1246 = vadd.xlane.f32.xlu0 %v1245
    %v1247 = vpop.xlane.xlu0 %1246
    %v1248 = vsel %vm1040, %v597, 0.0
    %1249 = vadd.xlane.f32.xlu0 %v1248
    %v1250 = vpop.xlane.xlu0 %1249
    %v1251 = vsel %vm1040, %v598, 0.0
    %1252 = vadd.xlane.f32.xlu0 %v1251
    %v1253 = vpop.xlane.xlu0 %1252
    %v1254 = vsel %vm1040, %v599, 0.0
    %1255 = vadd.xlane.f32.xlu0 %v1254
    %v1256 = vpop.xlane.xlu0 %1255
    %v1257 = vsel %vm1040, %v600, 0.0
    %1258 = vadd.xlane.f32.xlu0 %v1257
    %v1259 = vpop.xlane.xlu0 %1258
    %v1260 = vsel %vm1040, %v601, 0.0
    %1261 = vadd.xlane.f32.xlu0 %v1260
    %v1262 = vpop.xlane.xlu0 %1261
    %v1263 = vsel %vm1040, %v602, 0.0
    %1264 = vadd.xlane.f32.xlu0 %v1263
    %v1265 = vpop.xlane.xlu0 %1264
    %v1266 = vsel %vm1040, %v603, 0.0
    %1267 = vadd.xlane.f32.xlu0 %v1266
    %v1268 = vpop.xlane.xlu0 %1267
    %v1269 = vsel %vm1040, %v604, 0.0
    %1270 = vadd.xlane.f32.xlu0 %v1269
    %v1271 = vpop.xlane.xlu0 %1270
    %v1272 = vsel %vm1040, %v605, 0.0
    %1273 = vadd.xlane.f32.xlu0 %v1272
    %v1274 = vpop.xlane.xlu0 %1273
    %v1275 = vsel %vm1040, %v606, 0.0
    %1276 = vadd.xlane.f32.xlu0 %v1275
    %v1277 = vpop.xlane.xlu0 %1276
    %v1278 = vsel %vm1040, %v607, 0.0
    %1279 = vadd.xlane.f32.xlu0 %v1278
    %v1280 = vpop.xlane.xlu0 %1279
    %v1281 = vsel %vm1040, %v608, 0.0
    %1282 = vadd.xlane.f32.xlu0 %v1281
    %v1283 = vpop.xlane.xlu0 %1282
    %v1284 = vsel %vm1040, %v609, 0.0
    %1285 = vadd.xlane.f32.xlu0 %v1284
    %v1286 = vpop.xlane.xlu0 %1285
    %v1287 = vsel %vm1040, %v610, 0.0
    %1288 = vadd.xlane.f32.xlu0 %v1287
    %v1289 = vpop.xlane.xlu0 %1288
    %v1290 = vsel %vm1040, %v611, 0.0
    %1291 = vadd.xlane.f32.xlu0 %v1290
    %v1292 = vpop.xlane.xlu0 %1291
    %v1293 = vsel %vm1040, %v612, 0.0
    %1294 = vadd.xlane.f32.xlu0 %v1293
    %v1295 = vpop.xlane.xlu0 %1294
    %v1296 = vsel %vm1040, %v613, 0.0
    %1297 = vadd.xlane.f32.xlu0 %v1296
    %v1298 = vpop.xlane.xlu0 %1297
    %v1299 = vsel %vm1040, %v614, 0.0
    %1300 = vadd.xlane.f32.xlu0 %v1299
    %v1301 = vpop.xlane.xlu0 %1300
    %v1302 = vsel %vm1040, %v615, 0.0
    %1303 = vadd.xlane.f32.xlu0 %v1302
    %v1304 = vpop.xlane.xlu0 %1303
    %v1305 = vsel %vm1040, %v616, 0.0
    %1306 = vadd.xlane.f32.xlu0 %v1305
    %v1307 = vpop.xlane.xlu0 %1306
    %v1308 = vsel %vm1040, %v617, 0.0
    %1309 = vadd.xlane.f32.xlu0 %v1308
    %v1310 = vpop.xlane.xlu0 %1309
    %v1311 = vsel %vm1040, %v618, 0.0
    %1312 = vadd.xlane.f32.xlu0 %v1311
    %v1313 = vpop.xlane.xlu0 %1312
    %v1314 = vsel %vm1040, %v619, 0.0
    %1315 = vadd.xlane.f32.xlu0 %v1314
    %v1316 = vpop.xlane.xlu0 %1315
    %v1317 = vsel %vm1040, %v620, 0.0
    %1318 = vadd.xlane.f32.xlu0 %v1317
    %v1319 = vpop.xlane.xlu0 %1318
    %v1320 = vsel %vm1040, %v621, 0.0
    %1321 = vadd.xlane.f32.xlu0 %v1320
    %v1322 = vpop.xlane.xlu0 %1321
    %v1323 = vsel %vm1040, %v622, 0.0
    %1324 = vadd.xlane.f32.xlu0 %v1323
    %v1325 = vpop.xlane.xlu0 %1324
    %v1326 = vsel %vm1040, %v623, 0.0
    %1327 = vadd.xlane.f32.xlu0 %v1326
    %v1328 = vpop.xlane.xlu0 %1327
    %v1329 = vsel %vm1040, %v624, 0.0
    %1330 = vadd.xlane.f32.xlu0 %v1329
    %v1331 = vpop.xlane.xlu0 %1330
    %v1332 = vsel %vm1040, %v625, 0.0
    %1333 = vadd.xlane.f32.xlu0 %v1332
    %v1334 = vpop.xlane.xlu0 %1333
    %v1335 = vsel %vm1040, %v626, 0.0
    %1336 = vadd.xlane.f32.xlu0 %v1335
    %v1337 = vpop.xlane.xlu0 %1336
    %v1338 = vsel %vm1040, %v627, 0.0
    %1339 = vadd.xlane.f32.xlu0 %v1338
    %v1340 = vpop.xlane.xlu0 %1339
    %v1341 = vsel %vm1040, %v628, 0.0
    %1342 = vadd.xlane.f32.xlu0 %v1341
    %v1343 = vpop.xlane.xlu0 %1342
    %v1344 = vsel %vm1040, %v629, 0.0
    %1345 = vadd.xlane.f32.xlu0 %v1344
    %v1346 = vpop.xlane.xlu0 %1345
    %v1347 = vsel %vm1040, %v630, 0.0
    %1348 = vadd.xlane.f32.xlu0 %v1347
    %v1349 = vpop.xlane.xlu0 %1348
    %v1350 = vsel %vm1040, %v631, 0.0
    %1351 = vadd.xlane.f32.xlu0 %v1350
    %v1352 = vpop.xlane.xlu0 %1351
    %v1353 = vsel %vm1040, %v632, 0.0
    %1354 = vadd.xlane.f32.xlu0 %v1353
    %v1355 = vpop.xlane.xlu0 %1354
    %v1356 = vsel %vm1040, %v633, 0.0
    %1357 = vadd.xlane.f32.xlu0 %v1356
    %v1358 = vpop.xlane.xlu0 %1357
    %v1359 = vsel %vm1040, %v634, 0.0
    %1360 = vadd.xlane.f32.xlu0 %v1359
    %v1361 = vpop.xlane.xlu0 %1360
    %v1362 = vsel %vm1040, %v635, 0.0
    %1363 = vadd.xlane.f32.xlu0 %v1362
    %v1364 = vpop.xlane.xlu0 %1363
    %v1365 = vsel %vm1040, %v636, 0.0
    %1366 = vadd.xlane.f32.xlu0 %v1365
    %v1367 = vpop.xlane.xlu0 %1366
    %v1368 = vsel %vm1040, %v637, 0.0
    %1369 = vadd.xlane.f32.xlu0 %v1368
    %v1370 = vpop.xlane.xlu0 %1369
    %v1371 = vsel %vm1040, %v638, 0.0
    %1372 = vadd.xlane.f32.xlu0 %v1371
    %v1373 = vpop.xlane.xlu0 %1372
    %v1374 = vsel %vm1040, %v639, 0.0
    %1375 = vadd.xlane.f32.xlu0 %v1374
    %v1376 = vpop.xlane.xlu0 %1375
    %v1377 = vsel %vm1040, %v640, 0.0
    %1378 = vadd.xlane.f32.xlu0 %v1377
    %v1379 = vpop.xlane.xlu0 %1378
    %v1380 = vsel %vm1040, %v641, 0.0
    %1381 = vadd.xlane.f32.xlu0 %v1380
    %v1382 = vpop.xlane.xlu0 %1381
    %v1383 = vsel %vm1040, %v642, 0.0
    %1384 = vadd.xlane.f32.xlu0 %v1383
    %v1385 = vpop.xlane.xlu0 %1384
    %v1386 = vsel %vm1040, %v643, 0.0
    %1387 = vadd.xlane.f32.xlu0 %v1386
    %v1388 = vpop.xlane.xlu0 %1387
    %v1389 = vsel %vm1040, %v644, 0.0
    %1390 = vadd.xlane.f32.xlu0 %v1389
    %v1391 = vpop.xlane.xlu0 %1390
    %v1392 = vsel %vm1040, %v645, 0.0
    %1393 = vadd.xlane.f32.xlu0 %v1392
    %v1394 = vpop.xlane.xlu0 %1393
    %v1395 = vsel %vm1040, %v646, 0.0
    %1396 = vadd.xlane.f32.xlu0 %v1395
    %v1397 = vpop.xlane.xlu0 %1396
    %v1398 = vsel %vm1040, %v647, 0.0
    %1399 = vadd.xlane.f32.xlu0 %v1398
    %v1400 = vpop.xlane.xlu0 %1399
    %v1401 = vsel %vm1040, %v648, 0.0
    %1402 = vadd.xlane.f32.xlu0 %v1401
    %v1403 = vpop.xlane.xlu0 %1402
    %v1404 = vsel %vm1040, %v649, 0.0
    %1405 = vadd.xlane.f32.xlu0 %v1404
    %v1406 = vpop.xlane.xlu0 %1405
    %v1407 = vsel %vm1040, %v650, 0.0
    %1408 = vadd.xlane.f32.xlu0 %v1407
    %v1409 = vpop.xlane.xlu0 %1408
    %v1410 = vsel %vm1040, %v651, 0.0
    %1411 = vadd.xlane.f32.xlu0 %v1410
    %v1412 = vpop.xlane.xlu0 %1411
    %v1413 = vsel %vm1040, %v652, 0.0
    %1414 = vadd.xlane.f32.xlu0 %v1413
    %v1415 = vpop.xlane.xlu0 %1414
    %v1416 = vsel %vm1040, %v653, 0.0
    %1417 = vadd.xlane.f32.xlu0 %v1416
    %v1418 = vpop.xlane.xlu0 %1417
    %v1419 = vsel %vm1040, %v654, 0.0
    %1420 = vadd.xlane.f32.xlu0 %v1419
    %v1421 = vpop.xlane.xlu0 %1420
    %v1422 = vsel %vm1040, %v655, 0.0
    %1423 = vadd.xlane.f32.xlu0 %v1422
    %v1424 = vpop.xlane.xlu0 %1423
    %v1425 = vsel %vm1040, %v656, 0.0
    %1426 = vadd.xlane.f32.xlu0 %v1425
    %v1427 = vpop.xlane.xlu0 %1426
    %v1428 = vsel %vm1040, %v657, 0.0
    %1429 = vadd.xlane.f32.xlu0 %v1428
    %v1430 = vpop.xlane.xlu0 %1429
    %v1431 = vsel %vm1040, %v658, 0.0
    %1432 = vadd.xlane.f32.xlu0 %v1431
    %v1433 = vpop.xlane.xlu0 %1432
    %v1434 = vsel %vm1040, %v659, 0.0
    %1435 = vadd.xlane.f32.xlu0 %v1434
    %v1436 = vpop.xlane.xlu0 %1435
    %v1437 = vsel %vm1040, %v660, 0.0
    %1438 = vadd.xlane.f32.xlu0 %v1437
    %v1439 = vpop.xlane.xlu0 %1438
    %v1440 = vsel %vm1040, %v661, 0.0
    %1441 = vadd.xlane.f32.xlu0 %v1440
    %v1442 = vpop.xlane.xlu0 %1441
    %v1443 = vsel %vm1040, %v662, 0.0
    %1444 = vadd.xlane.f32.xlu0 %v1443
    %v1445 = vpop.xlane.xlu0 %1444
    %v1446 = vsel %vm1040, %v663, 0.0
    %1447 = vadd.xlane.f32.xlu0 %v1446
    %v1448 = vpop.xlane.xlu0 %1447
    %v1449 = vsel %vm1040, %v664, 0.0
    %1450 = vadd.xlane.f32.xlu0 %v1449
    %v1451 = vpop.xlane.xlu0 %1450
    %v1452 = vsel %vm1040, %v665, 0.0
    %1453 = vadd.xlane.f32.xlu0 %v1452
    %v1454 = vpop.xlane.xlu0 %1453
    %v1455 = vsel %vm1040, %v666, 0.0
    %1456 = vadd.xlane.f32.xlu0 %v1455
    %v1457 = vpop.xlane.xlu0 %1456
    %v1458 = vsel %vm1040, %v667, 0.0
    %1459 = vadd.xlane.f32.xlu0 %v1458
    %v1460 = vpop.xlane.xlu0 %1459
    %v1461 = vsel %vm1040, %v668, 0.0
    %1462 = vadd.xlane.f32.xlu0 %v1461
    %v1463 = vpop.xlane.xlu0 %1462
    %v1464 = vsel %vm1040, %v669, 0.0
    %1465 = vadd.xlane.f32.xlu0 %v1464
    %v1466 = vpop.xlane.xlu0 %1465
    %v1467 = vsel %vm1040, %v670, 0.0
    %1468 = vadd.xlane.f32.xlu0 %v1467
    %v1469 = vpop.xlane.xlu0 %1468
    %v1470 = vsel %vm1040, %v671, 0.0
    %1471 = vadd.xlane.f32.xlu0 %v1470
    %v1472 = vpop.xlane.xlu0 %1471
    %v1473 = vsel %vm1040, %v672, 0.0
    %1474 = vadd.xlane.f32.xlu0 %v1473
    %v1475 = vpop.xlane.xlu0 %1474
    %v1476 = vsel %vm1040, %v673, 0.0
    %1477 = vadd.xlane.f32.xlu0 %v1476
    %v1478 = vpop.xlane.xlu0 %1477
    %v1479 = vsel %vm1040, %v674, 0.0
    %1480 = vadd.xlane.f32.xlu0 %v1479
    %v1481 = vpop.xlane.xlu0 %1480
    %v1482 = vsel %vm1040, %v675, 0.0
    %1483 = vadd.xlane.f32.xlu0 %v1482
    %v1484 = vpop.xlane.xlu0 %1483
    %v1485 = vsel %vm1040, %v676, 0.0
    %1486 = vadd.xlane.f32.xlu0 %v1485
    %v1487 = vpop.xlane.xlu0 %1486
    %v1488 = vsel %vm1040, %v677, 0.0
    %1489 = vadd.xlane.f32.xlu0 %v1488
    %v1490 = vpop.xlane.xlu0 %1489
    %v1491 = vsel %vm1040, %v678, 0.0
    %1492 = vadd.xlane.f32.xlu0 %v1491
    %v1493 = vpop.xlane.xlu0 %1492
    %v1494 = vsel %vm1040, %v679, 0.0
    %1495 = vadd.xlane.f32.xlu0 %v1494
    %v1496 = vpop.xlane.xlu0 %1495
    %v1497 = vsel %vm1040, %v680, 0.0
    %1498 = vadd.xlane.f32.xlu0 %v1497
    %v1499 = vpop.xlane.xlu0 %1498
    %v1500 = vsel %vm1040, %v681, 0.0
    %1501 = vadd.xlane.f32.xlu0 %v1500
    %v1502 = vpop.xlane.xlu0 %1501
    %v1503 = vsel %vm1040, %v682, 0.0
    %1504 = vadd.xlane.f32.xlu0 %v1503
    %v1505 = vpop.xlane.xlu0 %1504
    %v1506 = vsel %vm1040, %v683, 0.0
    %1507 = vadd.xlane.f32.xlu0 %v1506
    %v1508 = vpop.xlane.xlu0 %1507
    %v1509 = vsel %vm1040, %v684, 0.0
    %1510 = vadd.xlane.f32.xlu0 %v1509
    %v1511 = vpop.xlane.xlu0 %1510
    %v1512 = vsel %vm1040, %v685, 0.0
    %1513 = vadd.xlane.f32.xlu0 %v1512
    %v1514 = vpop.xlane.xlu0 %1513
    %v1515 = vsel %vm1040, %v686, 0.0
    %1516 = vadd.xlane.f32.xlu0 %v1515
    %v1517 = vpop.xlane.xlu0 %1516
    %v1518 = vsel %vm1040, %v687, 0.0
    %1519 = vadd.xlane.f32.xlu0 %v1518
    %v1520 = vpop.xlane.xlu0 %1519
    %v1521 = vsel %vm1040, %v688, 0.0
    %1522 = vadd.xlane.f32.xlu0 %v1521
    %v1523 = vpop.xlane.xlu0 %1522
    %v1524 = vsel %vm1040, %v689, 0.0
    %1525 = vadd.xlane.f32.xlu0 %v1524
    %v1526 = vpop.xlane.xlu0 %1525
    %v1527 = vsel %vm1040, %v690, 0.0
    %1528 = vadd.xlane.f32.xlu0 %v1527
    %v1529 = vpop.xlane.xlu0 %1528
    %v1530 = vsel %vm1040, %v691, 0.0
    %1531 = vadd.xlane.f32.xlu0 %v1530
    %v1532 = vpop.xlane.xlu0 %1531
    %v1533 = vsel %vm1040, %v692, 0.0
    %1534 = vadd.xlane.f32.xlu0 %v1533
    %v1535 = vpop.xlane.xlu0 %1534
    %v1536 = vsel %vm1040, %v693, 0.0
    %1537 = vadd.xlane.f32.xlu0 %v1536
    %v1538 = vpop.xlane.xlu0 %1537
    %v1539 = vsel %vm1040, %v694, 0.0
    %1540 = vadd.xlane.f32.xlu0 %v1539
    %v1541 = vpop.xlane.xlu0 %1540
    %v1542 = vsel %vm1040, %v695, 0.0
    %1543 = vadd.xlane.f32.xlu0 %v1542
    %v1544 = vpop.xlane.xlu0 %1543
    %v1545 = vsel %vm1040, %v696, 0.0
    %1546 = vadd.xlane.f32.xlu0 %v1545
    %v1547 = vpop.xlane.xlu0 %1546
    %v1548 = vsel %vm1040, %v697, 0.0
    %1549 = vadd.xlane.f32.xlu0 %v1548
    %v1550 = vpop.xlane.xlu0 %1549
    %v1551 = vsel %vm1040, %v698, 0.0
    %1552 = vadd.xlane.f32.xlu0 %v1551
    %v1553 = vpop.xlane.xlu0 %1552
    %v1554 = vsel %vm1040, %v699, 0.0
    %1555 = vadd.xlane.f32.xlu0 %v1554
    %v1556 = vpop.xlane.xlu0 %1555
    %v1557 = vsel %vm1040, %v700, 0.0
    %1558 = vadd.xlane.f32.xlu0 %v1557
    %v1559 = vpop.xlane.xlu0 %1558
    %v1560 = vsel %vm1040, %v701, 0.0
    %1561 = vadd.xlane.f32.xlu0 %v1560
    %v1562 = vpop.xlane.xlu0 %1561
    %v1563 = vsel %vm1040, %v702, 0.0
    %1564 = vadd.xlane.f32.xlu0 %v1563
    %v1565 = vpop.xlane.xlu0 %1564
    %v1566 = vsel %vm1040, %v703, 0.0
    %1567 = vadd.xlane.f32.xlu0 %v1566
    %v1568 = vpop.xlane.xlu0 %1567
    %v1569 = vsel %vm1040, %v704, 0.0
    %1570 = vadd.xlane.f32.xlu0 %v1569
    %v1571 = vpop.xlane.xlu0 %1570
    %v1572 = vsel %vm1040, %v705, 0.0
    %1573 = vadd.xlane.f32.xlu0 %v1572
    %v1574 = vpop.xlane.xlu0 %1573
    %v1575 = vsel %vm1040, %v706, 0.0
    %1576 = vadd.xlane.f32.xlu0 %v1575
    %v1577 = vpop.xlane.xlu0 %1576
    %v1578 = vsel %vm1040, %v707, 0.0
    %1579 = vadd.xlane.f32.xlu0 %v1578
    %v1580 = vpop.xlane.xlu0 %1579
    %v1581 = vsel %vm1040, %v708, 0.0
    %1582 = vadd.xlane.f32.xlu0 %v1581
    %v1583 = vpop.xlane.xlu0 %1582
    %v1584 = vsel %vm1040, %v709, 0.0
    %1585 = vadd.xlane.f32.xlu0 %v1584
    %v1586 = vpop.xlane.xlu0 %1585
    %v1587 = vsel %vm1040, %v710, 0.0
    %1588 = vadd.xlane.f32.xlu0 %v1587
    %v1589 = vpop.xlane.xlu0 %1588
    %v1590 = vsel %vm1040, %v711, 0.0
    %1591 = vadd.xlane.f32.xlu0 %v1590
    %v1592 = vpop.xlane.xlu0 %1591
    %v1593 = vsel %vm1040, %v712, 0.0
    %1594 = vadd.xlane.f32.xlu0 %v1593
    %v1595 = vpop.xlane.xlu0 %1594
    %v1596 = vsel %vm1040, %v713, 0.0
    %1597 = vadd.xlane.f32.xlu0 %v1596
    %v1598 = vpop.xlane.xlu0 %1597
    %v1599 = vsel %vm1040, %v714, 0.0
    %1600 = vadd.xlane.f32.xlu0 %v1599
    %v1601 = vpop.xlane.xlu0 %1600
    %v1602 = vsel %vm1040, %v715, 0.0
    %1603 = vadd.xlane.f32.xlu0 %v1602
    %v1604 = vpop.xlane.xlu0 %1603
    %v1605 = vsel %vm1040, %v716, 0.0
    %1606 = vadd.xlane.f32.xlu0 %v1605
    %v1607 = vpop.xlane.xlu0 %1606
    %v1608 = vsel %vm1040, %v717, 0.0
    %1609 = vadd.xlane.f32.xlu0 %v1608
    %v1610 = vpop.xlane.xlu0 %1609
    %v1611 = vsel %vm1040, %v718, 0.0
    %1612 = vadd.xlane.f32.xlu0 %v1611
    %v1613 = vpop.xlane.xlu0 %1612
    %v1614 = vsel %vm1040, %v719, 0.0
    %1615 = vadd.xlane.f32.xlu0 %v1614
    %v1616 = vpop.xlane.xlu0 %1615
    %v1617 = vsel %vm1040, %v720, 0.0
    %1618 = vadd.xlane.f32.xlu0 %v1617
    %v1619 = vpop.xlane.xlu0 %1618
    %v1620 = vsel %vm1040, %v721, 0.0
    %1621 = vadd.xlane.f32.xlu0 %v1620
    %v1622 = vpop.xlane.xlu0 %1621
    %v1623 = vsel %vm1040, %v722, 0.0
    %1624 = vadd.xlane.f32.xlu0 %v1623
    %v1625 = vpop.xlane.xlu0 %1624
    %v1626 = vsel %vm1040, %v723, 0.0
    %1627 = vadd.xlane.f32.xlu0 %v1626
    %v1628 = vpop.xlane.xlu0 %1627
    %v1629 = vsel %vm1040, %v724, 0.0
    %1630 = vadd.xlane.f32.xlu0 %v1629
    %v1631 = vpop.xlane.xlu0 %1630
    %v1632 = vsel %vm1040, %v725, 0.0
    %1633 = vadd.xlane.f32.xlu0 %v1632
    %v1634 = vpop.xlane.xlu0 %1633
    %v1635 = vsel %vm1040, %v726, 0.0
    %1636 = vadd.xlane.f32.xlu0 %v1635
    %v1637 = vpop.xlane.xlu0 %1636
    %v1638 = vsel %vm1040, %v727, 0.0
    %1639 = vadd.xlane.f32.xlu0 %v1638
    %v1640 = vpop.xlane.xlu0 %1639
    %v1641 = vsel %vm1040, %v728, 0.0
    %1642 = vadd.xlane.f32.xlu0 %v1641
    %v1643 = vpop.xlane.xlu0 %1642
    %v1644 = vsel %vm1040, %v729, 0.0
    %1645 = vadd.xlane.f32.xlu0 %v1644
    %v1646 = vpop.xlane.xlu0 %1645
    %v1647 = vsel %vm1040, %v730, 0.0
    %1648 = vadd.xlane.f32.xlu0 %v1647
    %v1649 = vpop.xlane.xlu0 %1648
    %v1650 = vsel %vm1040, %v731, 0.0
    %1651 = vadd.xlane.f32.xlu0 %v1650
    %v1652 = vpop.xlane.xlu0 %1651
    %v1653 = vsel %vm1040, %v732, 0.0
    %1654 = vadd.xlane.f32.xlu0 %v1653
    %v1655 = vpop.xlane.xlu0 %1654
    %v1656 = vsel %vm1040, %v733, 0.0
    %1657 = vadd.xlane.f32.xlu0 %v1656
    %v1658 = vpop.xlane.xlu0 %1657
    %v1659 = vsel %vm1040, %v734, 0.0
    %1660 = vadd.xlane.f32.xlu0 %v1659
    %v1661 = vpop.xlane.xlu0 %1660
    %v1662 = vsel %vm1040, %v735, 0.0
    %1663 = vadd.xlane.f32.xlu0 %v1662
    %v1664 = vpop.xlane.xlu0 %1663
    %v1665 = vsel %vm1040, %v736, 0.0
    %1666 = vadd.xlane.f32.xlu0 %v1665
    %v1667 = vpop.xlane.xlu0 %1666
    %v1668 = vsel %vm1040, %v737, 0.0
    %1669 = vadd.xlane.f32.xlu0 %v1668
    %v1670 = vpop.xlane.xlu0 %1669
    %v1671 = vsel %vm1040, %v738, 0.0
    %1672 = vadd.xlane.f32.xlu0 %v1671
    %v1673 = vpop.xlane.xlu0 %1672
    %v1674 = vsel %vm1040, %v739, 0.0
    %1675 = vadd.xlane.f32.xlu0 %v1674
    %v1676 = vpop.xlane.xlu0 %1675
    %v1677 = vsel %vm1040, %v740, 0.0
    %1678 = vadd.xlane.f32.xlu0 %v1677
    %v1679 = vpop.xlane.xlu0 %1678
    %v1680 = vsel %vm1040, %v741, 0.0
    %1681 = vadd.xlane.f32.xlu0 %v1680
    %v1682 = vpop.xlane.xlu0 %1681
    %v1683 = vsel %vm1040, %v742, 0.0
    %1684 = vadd.xlane.f32.xlu0 %v1683
    %v1685 = vpop.xlane.xlu0 %1684
    %v1686 = vsel %vm1040, %v743, 0.0
    %1687 = vadd.xlane.f32.xlu0 %v1686
    %v1688 = vpop.xlane.xlu0 %1687
    %v1689 = vsel %vm1040, %v744, 0.0
    %1690 = vadd.xlane.f32.xlu0 %v1689
    %v1691 = vpop.xlane.xlu0 %1690
    %v1692 = vsel %vm1040, %v745, 0.0
    %1693 = vadd.xlane.f32.xlu0 %v1692
    %v1694 = vpop.xlane.xlu0 %1693
    %v1695 = vsel %vm1040, %v746, 0.0
    %1696 = vadd.xlane.f32.xlu0 %v1695
    %v1697 = vpop.xlane.xlu0 %1696
    %v1698 = vsel %vm1040, %v747, 0.0
    %1699 = vadd.xlane.f32.xlu0 %v1698
    %v1700 = vpop.xlane.xlu0 %1699
    %v1701 = vsel %vm1040, %v748, 0.0
    %1702 = vadd.xlane.f32.xlu0 %v1701
    %v1703 = vpop.xlane.xlu0 %1702
    %v1704 = vsel %vm1040, %v749, 0.0
    %1705 = vadd.xlane.f32.xlu0 %v1704
    %v1706 = vpop.xlane.xlu0 %1705
    %v1707 = vsel %vm1040, %v750, 0.0
    %1708 = vadd.xlane.f32.xlu0 %v1707
    %v1709 = vpop.xlane.xlu0 %1708
    %v1710 = vsel %vm1040, %v751, 0.0
    %1711 = vadd.xlane.f32.xlu0 %v1710
    %v1712 = vpop.xlane.xlu0 %1711
    %v1713 = vsel %vm1040, %v752, 0.0
    %1714 = vadd.xlane.f32.xlu0 %v1713
    %v1715 = vpop.xlane.xlu0 %1714
    %v1716 = vsel %vm1040, %v753, 0.0
    %1717 = vadd.xlane.f32.xlu0 %v1716
    %v1718 = vpop.xlane.xlu0 %1717
    %v1719 = vsel %vm1040, %v754, 0.0
    %1720 = vadd.xlane.f32.xlu0 %v1719
    %v1721 = vpop.xlane.xlu0 %1720
    %v1722 = vsel %vm1040, %v755, 0.0
    %1723 = vadd.xlane.f32.xlu0 %v1722
    %v1724 = vpop.xlane.xlu0 %1723
    %v1725 = vsel %vm1040, %v756, 0.0
    %1726 = vadd.xlane.f32.xlu0 %v1725
    %v1727 = vpop.xlane.xlu0 %1726
    %v1728 = vsel %vm1040, %v757, 0.0
    %1729 = vadd.xlane.f32.xlu0 %v1728
    %v1730 = vpop.xlane.xlu0 %1729
    %v1731 = vsel %vm1040, %v758, 0.0
    %1732 = vadd.xlane.f32.xlu0 %v1731
    %v1733 = vpop.xlane.xlu0 %1732
    %v1734 = vsel %vm1040, %v759, 0.0
    %1735 = vadd.xlane.f32.xlu0 %v1734
    %v1736 = vpop.xlane.xlu0 %1735
    %v1737 = vsel %vm1040, %v760, 0.0
    %1738 = vadd.xlane.f32.xlu0 %v1737
    %v1739 = vpop.xlane.xlu0 %1738
    %v1740 = vsel %vm1040, %v761, 0.0
    %1741 = vadd.xlane.f32.xlu0 %v1740
    %v1742 = vpop.xlane.xlu0 %1741
    %v1743 = vsel %vm1040, %v762, 0.0
    %1744 = vadd.xlane.f32.xlu0 %v1743
    %v1745 = vpop.xlane.xlu0 %1744
    %v1746 = vsel %vm1040, %v763, 0.0
    %1747 = vadd.xlane.f32.xlu0 %v1746
    %v1748 = vpop.xlane.xlu0 %1747
    %v1749 = vsel %vm1040, %v764, 0.0
    %1750 = vadd.xlane.f32.xlu0 %v1749
    %v1751 = vpop.xlane.xlu0 %1750
    %v1752 = vsel %vm1040, %v765, 0.0
    %1753 = vadd.xlane.f32.xlu0 %v1752
    %v1754 = vpop.xlane.xlu0 %1753
    %v1755 = vsel %vm1040, %v766, 0.0
    %1756 = vadd.xlane.f32.xlu0 %v1755
    %v1757 = vpop.xlane.xlu0 %1756
    %v1758 = vsel %vm1040, %v767, 0.0
    %1759 = vadd.xlane.f32.xlu0 %v1758
    %v1760 = vpop.xlane.xlu0 %1759
    %v1761 = vsel %vm1040, %v768, 0.0
    %1762 = vadd.xlane.f32.xlu0 %v1761
    %v1763 = vpop.xlane.xlu0 %1762
    %v1764 = vsel %vm1040, %v769, 0.0
    %1765 = vadd.xlane.f32.xlu0 %v1764
    %v1766 = vpop.xlane.xlu0 %1765
    %v1767 = vsel %vm1040, %v770, 0.0
    %1768 = vadd.xlane.f32.xlu0 %v1767
    %v1769 = vpop.xlane.xlu0 %1768
    %v1770 = vsel %vm1040, %v771, 0.0
    %1771 = vadd.xlane.f32.xlu0 %v1770
    %v1772 = vpop.xlane.xlu0 %1771
    %v1773 = vsel %vm1040, %v772, 0.0
    %1774 = vadd.xlane.f32.xlu0 %v1773
    %v1775 = vpop.xlane.xlu0 %1774
    %v1776 = vsel %vm1040, %v773, 0.0
    %1777 = vadd.xlane.f32.xlu0 %v1776
    %v1778 = vpop.xlane.xlu0 %1777
    %v1779 = vsel %vm1040, %v774, 0.0
    %1780 = vadd.xlane.f32.xlu0 %v1779
    %v1781 = vpop.xlane.xlu0 %1780
    %v1782 = vsel %vm1040, %v775, 0.0
    %1783 = vadd.xlane.f32.xlu0 %v1782
    %v1784 = vpop.xlane.xlu0 %1783
    %v1785 = vsel %vm1040, %v776, 0.0
    %1786 = vadd.xlane.f32.xlu0 %v1785
    %v1787 = vpop.xlane.xlu0 %1786
    %v1788 = vsel %vm1040, %v777, 0.0
    %1789 = vadd.xlane.f32.xlu0 %v1788
    %v1790 = vpop.xlane.xlu0 %1789
    %v1791 = vsel %vm1040, %v778, 0.0
    %1792 = vadd.xlane.f32.xlu0 %v1791
    %v1793 = vpop.xlane.xlu0 %1792
    %v1794 = vsel %vm1040, %v779, 0.0
    %1795 = vadd.xlane.f32.xlu0 %v1794
    %v1796 = vpop.xlane.xlu0 %1795
    %v1797 = vsel %vm1040, %v780, 0.0
    %1798 = vadd.xlane.f32.xlu0 %v1797
    %v1799 = vpop.xlane.xlu0 %1798
    %v1800 = vsel %vm1040, %v781, 0.0
    %1801 = vadd.xlane.f32.xlu0 %v1800
    %v1802 = vpop.xlane.xlu0 %1801
    %v1803 = vsel %vm1040, %v782, 0.0
    %1804 = vadd.xlane.f32.xlu0 %v1803
    %v1805 = vpop.xlane.xlu0 %1804
    %v1806 = vsel %vm1040, %v783, 0.0
    %1807 = vadd.xlane.f32.xlu0 %v1806
    %v1808 = vpop.xlane.xlu0 %1807
    %v1809 = vsel %vm1040, %v784, 0.0
    %1810 = vadd.xlane.f32.xlu0 %v1809
    %v1811 = vpop.xlane.xlu0 %1810
    %v1812 = vsel %vm1040, %v785, 0.0
    %1813 = vadd.xlane.f32.xlu0 %v1812
    %v1814 = vpop.xlane.xlu0 %1813
    %v1815 = vsel %vm1040, %v786, 0.0
    %1816 = vadd.xlane.f32.xlu0 %v1815
    %v1817 = vpop.xlane.xlu0 %1816
    %v1818 = vsel %vm1040, %v787, 0.0
    %1819 = vadd.xlane.f32.xlu0 %v1818
    %v1820 = vpop.xlane.xlu0 %1819
    %v1821 = vsel %vm1040, %v788, 0.0
    %1822 = vadd.xlane.f32.xlu0 %v1821
    %v1823 = vpop.xlane.xlu0 %1822
    %v1824 = vsel %vm1040, %v789, 0.0
    %1825 = vadd.xlane.f32.xlu0 %v1824
    %v1826 = vpop.xlane.xlu0 %1825
    %v1827 = vsel %vm1040, %v790, 0.0
    %1828 = vadd.xlane.f32.xlu0 %v1827
    %v1829 = vpop.xlane.xlu0 %1828
    %v1830 = vsel %vm1040, %v791, 0.0
    %1831 = vadd.xlane.f32.xlu0 %v1830
    %v1832 = vpop.xlane.xlu0 %1831
    %v1833 = vsel %vm1040, %v792, 0.0
    %1834 = vadd.xlane.f32.xlu0 %v1833
    %v1835 = vpop.xlane.xlu0 %1834
    %v1836 = vsel %vm1040, %v793, 0.0
    %1837 = vadd.xlane.f32.xlu0 %v1836
    %v1838 = vpop.xlane.xlu0 %1837
    %v1839 = vsel %vm1040, %v794, 0.0
    %1840 = vadd.xlane.f32.xlu0 %v1839
    %v1841 = vpop.xlane.xlu0 %1840
    %v1842 = vsel %vm1040, %v795, 0.0
    %1843 = vadd.xlane.f32.xlu0 %v1842
    %v1844 = vpop.xlane.xlu0 %1843
    %v1845 = vsel %vm1040, %v796, 0.0
    %1846 = vadd.xlane.f32.xlu0 %v1845
    %v1847 = vpop.xlane.xlu0 %1846
    %v1848 = vsel %vm1040, %v797, 0.0
    %1849 = vadd.xlane.f32.xlu0 %v1848
    %v1850 = vpop.xlane.xlu0 %1849
    %v1851 = vsel %vm1040, %v798, 0.0
    %1852 = vadd.xlane.f32.xlu0 %v1851
    %v1853 = vpop.xlane.xlu0 %1852
    %v1854 = vsel %vm1040, %v799, 0.0
    %1855 = vadd.xlane.f32.xlu0 %v1854
    %v1856 = vpop.xlane.xlu0 %1855
    %v1857 = vsel %vm1040, %v800, 0.0
    %1858 = vadd.xlane.f32.xlu0 %v1857
    %v1859 = vpop.xlane.xlu0 %1858
    %v1860 = vsel %vm1040, %v801, 0.0
    %1861 = vadd.xlane.f32.xlu0 %v1860
    %v1862 = vpop.xlane.xlu0 %1861
    %v1863 = vsel %vm1040, %v802, 0.0
    %1864 = vadd.xlane.f32.xlu0 %v1863
    %v1865 = vpop.xlane.xlu0 %1864
    %v1866 = vsel %vm1040, %v803, 0.0
    %1867 = vadd.xlane.f32.xlu0 %v1866
    %v1868 = vpop.xlane.xlu0 %1867
    %v1869 = vsel %vm1040, %v804, 0.0
    %1870 = vadd.xlane.f32.xlu0 %v1869
    %v1871 = vpop.xlane.xlu0 %1870
    %v1872 = vsel %vm1040, %v805, 0.0
    %1873 = vadd.xlane.f32.xlu0 %v1872
    %v1874 = vpop.xlane.xlu0 %1873
    %v1875 = vsel %vm1040, %v806, 0.0
    %1876 = vadd.xlane.f32.xlu0 %v1875
    %v1877 = vpop.xlane.xlu0 %1876
    %v1878 = vsel %vm1040, %v807, 0.0
    %1879 = vadd.xlane.f32.xlu0 %v1878
    %v1880 = vpop.xlane.xlu0 %1879
    %v1881 = vsel %vm1040, %v808, 0.0
    %1882 = vadd.xlane.f32.xlu0 %v1881
    %v1883 = vpop.xlane.xlu0 %1882
    %v1884 = vsel %vm1040, %v809, 0.0
    %1885 = vadd.xlane.f32.xlu0 %v1884
    %v1886 = vpop.xlane.xlu0 %1885
    %v1887 = vsel %vm1040, %v810, 0.0
    %1888 = vadd.xlane.f32.xlu0 %v1887
    %v1889 = vpop.xlane.xlu0 %1888
    %v1890 = vsel %vm1040, %v811, 0.0
    %1891 = vadd.xlane.f32.xlu0 %v1890
    %v1892 = vpop.xlane.xlu0 %1891
    %v1893 = vsel %vm1040, %v812, 0.0
    %1894 = vadd.xlane.f32.xlu0 %v1893
    %v1895 = vpop.xlane.xlu0 %1894
    %v1896 = vsel %vm1040, %v813, 0.0
    %1897 = vadd.xlane.f32.xlu0 %v1896
    %v1898 = vpop.xlane.xlu0 %1897
    %v1899 = vsel %vm1040, %v814, 0.0
    %1900 = vadd.xlane.f32.xlu0 %v1899
    %v1901 = vpop.xlane.xlu0 %1900
    %v1902 = vsel %vm1040, %v815, 0.0
    %1903 = vadd.xlane.f32.xlu0 %v1902
    %v1904 = vpop.xlane.xlu0 %1903
    %v1905 = vsel %vm1040, %v816, 0.0
    %1906 = vadd.xlane.f32.xlu0 %v1905
    %v1907 = vpop.xlane.xlu0 %1906
    %v1908 = vsel %vm1040, %v817, 0.0
    %1909 = vadd.xlane.f32.xlu0 %v1908
    %v1910 = vpop.xlane.xlu0 %1909
    %v1911 = vsel %vm1040, %v818, 0.0
    %1912 = vadd.xlane.f32.xlu0 %v1911
    %v1913 = vpop.xlane.xlu0 %1912
    %v1914 = vsel %vm1040, %v819, 0.0
    %1915 = vadd.xlane.f32.xlu0 %v1914
    %v1916 = vpop.xlane.xlu0 %1915
    %v1917 = vsel %vm1040, %v820, 0.0
    %1918 = vadd.xlane.f32.xlu0 %v1917
    %v1919 = vpop.xlane.xlu0 %1918
    %v1920 = vsel %vm1040, %v821, 0.0
    %1921 = vadd.xlane.f32.xlu0 %v1920
    %v1922 = vpop.xlane.xlu0 %1921
    %v1923 = vsel %vm1040, %v822, 0.0
    %1924 = vadd.xlane.f32.xlu0 %v1923
    %v1925 = vpop.xlane.xlu0 %1924
    %v1926 = vsel %vm1040, %v823, 0.0
    %1927 = vadd.xlane.f32.xlu0 %v1926
    %v1928 = vpop.xlane.xlu0 %1927
    %v1929 = vsel %vm1040, %v824, 0.0
    %1930 = vadd.xlane.f32.xlu0 %v1929
    %v1931 = vpop.xlane.xlu0 %1930
    %v1932 = vsel %vm1040, %v825, 0.0
    %1933 = vadd.xlane.f32.xlu0 %v1932
    %v1934 = vpop.xlane.xlu0 %1933
    %v1935 = vsel %vm1040, %v826, 0.0
    %1936 = vadd.xlane.f32.xlu0 %v1935
    %v1937 = vpop.xlane.xlu0 %1936
    %v1938 = vsel %vm1040, %v827, 0.0
    %1939 = vadd.xlane.f32.xlu0 %v1938
    %v1940 = vpop.xlane.xlu0 %1939
    %v1941 = vsel %vm1040, %v828, 0.0
    %1942 = vadd.xlane.f32.xlu0 %v1941
    %v1943 = vpop.xlane.xlu0 %1942
    %v1944 = vsel %vm1040, %v829, 0.0
    %1945 = vadd.xlane.f32.xlu0 %v1944
    %v1946 = vpop.xlane.xlu0 %1945
    %v1947 = vsel %vm1040, %v830, 0.0
    %1948 = vadd.xlane.f32.xlu0 %v1947
    %v1949 = vpop.xlane.xlu0 %1948
    %v1950 = vsel %vm1040, %v831, 0.0
    %1951 = vadd.xlane.f32.xlu0 %v1950
    %v1952 = vpop.xlane.xlu0 %1951
    %v1953 = vsel %vm1040, %v832, 0.0
    %1954 = vadd.xlane.f32.xlu0 %v1953
    %v1955 = vpop.xlane.xlu0 %1954
    %v1956 = vsel %vm1040, %v833, 0.0
    %1957 = vadd.xlane.f32.xlu0 %v1956
    %v1958 = vpop.xlane.xlu0 %1957
    %v1959 = vsel %vm1040, %v834, 0.0
    %1960 = vadd.xlane.f32.xlu0 %v1959
    %v1961 = vpop.xlane.xlu0 %1960
    %v1962 = vsel %vm1040, %v835, 0.0
    %1963 = vadd.xlane.f32.xlu0 %v1962
    %v1964 = vpop.xlane.xlu0 %1963
    %v1965 = vsel %vm1040, %v836, 0.0
    %1966 = vadd.xlane.f32.xlu0 %v1965
    %v1967 = vpop.xlane.xlu0 %1966
    %v1968 = vsel %vm1040, %v837, 0.0
    %1969 = vadd.xlane.f32.xlu0 %v1968
    %v1970 = vpop.xlane.xlu0 %1969
    %v1971 = vsel %vm1040, %v838, 0.0
    %1972 = vadd.xlane.f32.xlu0 %v1971
    %v1973 = vpop.xlane.xlu0 %1972
    %v1974 = vsel %vm1040, %v839, 0.0
    %1975 = vadd.xlane.f32.xlu0 %v1974
    %v1976 = vpop.xlane.xlu0 %1975
    %v1977 = vsel %vm1040, %v840, 0.0
    %1978 = vadd.xlane.f32.xlu0 %v1977
    %v1979 = vpop.xlane.xlu0 %1978
    %v1980 = vsel %vm1040, %v841, 0.0
    %1981 = vadd.xlane.f32.xlu0 %v1980
    %v1982 = vpop.xlane.xlu0 %1981
    %v1983 = vsel %vm1040, %v842, 0.0
    %1984 = vadd.xlane.f32.xlu0 %v1983
    %v1985 = vpop.xlane.xlu0 %1984
    %v1986 = vsel %vm1040, %v843, 0.0
    %1987 = vadd.xlane.f32.xlu0 %v1986
    %v1988 = vpop.xlane.xlu0 %1987
    %v1989 = vsel %vm1040, %v844, 0.0
    %1990 = vadd.xlane.f32.xlu0 %v1989
    %v1991 = vpop.xlane.xlu0 %1990
    %v1992 = vsel %vm1040, %v845, 0.0
    %1993 = vadd.xlane.f32.xlu0 %v1992
    %v1994 = vpop.xlane.xlu0 %1993
    %v1995 = vsel %vm1040, %v846, 0.0
    %1996 = vadd.xlane.f32.xlu0 %v1995
    %v1997 = vpop.xlane.xlu0 %1996
    %v1998 = vsel %vm1040, %v847, 0.0
    %1999 = vadd.xlane.f32.xlu0 %v1998
    %v2000 = vpop.xlane.xlu0 %1999
    %v2001 = vsel %vm1040, %v848, 0.0
    %2002 = vadd.xlane.f32.xlu0 %v2001
    %v2003 = vpop.xlane.xlu0 %2002
    %v2004 = vsel %vm1040, %v849, 0.0
    %2005 = vadd.xlane.f32.xlu0 %v2004
    %v2006 = vpop.xlane.xlu0 %2005
    %v2007 = vsel %vm1040, %v850, 0.0
    %2008 = vadd.xlane.f32.xlu0 %v2007
    %v2009 = vpop.xlane.xlu0 %2008
    %v2010 = vsel %vm1040, %v851, 0.0
    %2011 = vadd.xlane.f32.xlu0 %v2010
    %v2012 = vpop.xlane.xlu0 %2011
    %v2013 = vsel %vm1040, %v852, 0.0
    %2014 = vadd.xlane.f32.xlu0 %v2013
    %v2015 = vpop.xlane.xlu0 %2014
    %v2016 = vsel %vm1040, %v853, 0.0
    %2017 = vadd.xlane.f32.xlu0 %v2016
    %v2018 = vpop.xlane.xlu0 %2017
    %v2019 = vsel %vm1040, %v854, 0.0
    %2020 = vadd.xlane.f32.xlu0 %v2019
    %v2021 = vpop.xlane.xlu0 %2020
    %v2022 = vsel %vm1040, %v855, 0.0
    %2023 = vadd.xlane.f32.xlu0 %v2022
    %v2024 = vpop.xlane.xlu0 %2023
    %v2025 = vsel %vm1040, %v856, 0.0
    %2026 = vadd.xlane.f32.xlu0 %v2025
    %v2027 = vpop.xlane.xlu0 %2026
    %v2028 = vsel %vm1040, %v857, 0.0
    %2029 = vadd.xlane.f32.xlu0 %v2028
    %v2030 = vpop.xlane.xlu0 %2029
    %v2031 = vsel %vm1040, %v858, 0.0
    %2032 = vadd.xlane.f32.xlu0 %v2031
    %v2033 = vpop.xlane.xlu0 %2032
    %v2034 = vsel %vm1040, %v859, 0.0
    %2035 = vadd.xlane.f32.xlu0 %v2034
    %v2036 = vpop.xlane.xlu0 %2035
    %v2037 = vsel %vm1040, %v860, 0.0
    %2038 = vadd.xlane.f32.xlu0 %v2037
    %v2039 = vpop.xlane.xlu0 %2038
    %v2040 = vsel %vm1040, %v861, 0.0
    %2041 = vadd.xlane.f32.xlu0 %v2040
    %v2042 = vpop.xlane.xlu0 %2041
    %v2043 = vsel %vm1040, %v862, 0.0
    %2044 = vadd.xlane.f32.xlu0 %v2043
    %v2045 = vpop.xlane.xlu0 %2044
    %v2046 = vsel %vm1040, %v863, 0.0
    %2047 = vadd.xlane.f32.xlu0 %v2046
    %v2048 = vpop.xlane.xlu0 %2047
    %v2049 = vsel %vm1040, %v864, 0.0
    %2050 = vadd.xlane.f32.xlu0 %v2049
    %v2051 = vpop.xlane.xlu0 %2050
    %v2052 = vsel %vm1040, %v865, 0.0
    %2053 = vadd.xlane.f32.xlu0 %v2052
    %v2054 = vpop.xlane.xlu0 %2053
    %v2055 = vsel %vm1040, %v866, 0.0
    %2056 = vadd.xlane.f32.xlu0 %v2055
    %v2057 = vpop.xlane.xlu0 %2056
    %v2058 = vsel %vm1040, %v867, 0.0
    %2059 = vadd.xlane.f32.xlu0 %v2058
    %v2060 = vpop.xlane.xlu0 %2059
    %v2061 = vsel %vm1040, %v868, 0.0
    %2062 = vadd.xlane.f32.xlu0 %v2061
    %v2063 = vpop.xlane.xlu0 %2062
    %v2064 = vsel %vm1040, %v869, 0.0
    %2065 = vadd.xlane.f32.xlu0 %v2064
    %v2066 = vpop.xlane.xlu0 %2065
    %v2067 = vsel %vm1040, %v870, 0.0
    %2068 = vadd.xlane.f32.xlu0 %v2067
    %v2069 = vpop.xlane.xlu0 %2068
    %v2070 = vsel %vm1040, %v871, 0.0
    %2071 = vadd.xlane.f32.xlu0 %v2070
    %v2072 = vpop.xlane.xlu0 %2071
    %v2073 = vsel %vm1040, %v872, 0.0
    %2074 = vadd.xlane.f32.xlu0 %v2073
    %v2075 = vpop.xlane.xlu0 %2074
    %v2076 = vsel %vm1040, %v873, 0.0
    %2077 = vadd.xlane.f32.xlu0 %v2076
    %v2078 = vpop.xlane.xlu0 %2077
    %v2079 = vsel %vm1040, %v874, 0.0
    %2080 = vadd.xlane.f32.xlu0 %v2079
    %v2081 = vpop.xlane.xlu0 %2080
    %v2082 = vsel %vm1040, %v875, 0.0
    %2083 = vadd.xlane.f32.xlu0 %v2082
    %v2084 = vpop.xlane.xlu0 %2083
    %v2085 = vsel %vm1040, %v876, 0.0
    %2086 = vadd.xlane.f32.xlu0 %v2085
    %v2087 = vpop.xlane.xlu0 %2086
    %v2088 = vsel %vm1040, %v877, 0.0
    %2089 = vadd.xlane.f32.xlu0 %v2088
    %v2090 = vpop.xlane.xlu0 %2089
    %v2091 = vsel %vm1040, %v878, 0.0
    %2092 = vadd.xlane.f32.xlu0 %v2091
    %v2093 = vpop.xlane.xlu0 %2092
    %v2094 = vsel %vm1040, %v879, 0.0
    %2095 = vadd.xlane.f32.xlu0 %v2094
    %v2096 = vpop.xlane.xlu0 %2095
    %v2097 = vsel %vm1040, %v880, 0.0
    %2098 = vadd.xlane.f32.xlu0 %v2097
    %v2099 = vpop.xlane.xlu0 %2098
    %v2100 = vsel %vm1040, %v881, 0.0
    %2101 = vadd.xlane.f32.xlu0 %v2100
    %v2102 = vpop.xlane.xlu0 %2101
    %v2103 = vsel %vm1040, %v882, 0.0
    %2104 = vadd.xlane.f32.xlu0 %v2103
    %v2105 = vpop.xlane.xlu0 %2104
    %v2106 = vsel %vm1040, %v883, 0.0
    %2107 = vadd.xlane.f32.xlu0 %v2106
    %v2108 = vpop.xlane.xlu0 %2107
    %v2109 = vsel %vm1040, %v884, 0.0
    %2110 = vadd.xlane.f32.xlu0 %v2109
    %v2111 = vpop.xlane.xlu0 %2110
    %v2112 = vsel %vm1040, %v885, 0.0
    %2113 = vadd.xlane.f32.xlu0 %v2112
    %v2114 = vpop.xlane.xlu0 %2113
    %v2115 = vsel %vm1040, %v886, 0.0
    %2116 = vadd.xlane.f32.xlu0 %v2115
    %v2117 = vpop.xlane.xlu0 %2116
    %v2118 = vsel %vm1040, %v887, 0.0
    %2119 = vadd.xlane.f32.xlu0 %v2118
    %v2120 = vpop.xlane.xlu0 %2119
    %v2121 = vsel %vm1040, %v888, 0.0
    %2122 = vadd.xlane.f32.xlu0 %v2121
    %v2123 = vpop.xlane.xlu0 %2122
    %v2124 = vsel %vm1040, %v889, 0.0
    %2125 = vadd.xlane.f32.xlu0 %v2124
    %v2126 = vpop.xlane.xlu0 %2125
    %v2127 = vsel %vm1040, %v890, 0.0
    %2128 = vadd.xlane.f32.xlu0 %v2127
    %v2129 = vpop.xlane.xlu0 %2128
    %v2130 = vsel %vm1040, %v891, 0.0
    %2131 = vadd.xlane.f32.xlu0 %v2130
    %v2132 = vpop.xlane.xlu0 %2131
    %v2133 = vsel %vm1040, %v892, 0.0
    %2134 = vadd.xlane.f32.xlu0 %v2133
    %v2135 = vpop.xlane.xlu0 %2134
    %v2136 = vsel %vm1040, %v893, 0.0
    %2137 = vadd.xlane.f32.xlu0 %v2136
    %v2138 = vpop.xlane.xlu0 %2137
    %v2139 = vsel %vm1040, %v894, 0.0
    %2140 = vadd.xlane.f32.xlu0 %v2139
    %v2141 = vpop.xlane.xlu0 %2140
    %v2142 = vsel %vm1040, %v895, 0.0
    %2143 = vadd.xlane.f32.xlu0 %v2142
    %v2144 = vpop.xlane.xlu0 %2143
    %v2145 = vsel %vm1040, %v896, 0.0
    %2146 = vadd.xlane.f32.xlu0 %v2145
    %v2147 = vpop.xlane.xlu0 %2146
    %v2148 = vsel %vm1040, %v897, 0.0
    %2149 = vadd.xlane.f32.xlu0 %v2148
    %v2150 = vpop.xlane.xlu0 %2149
    %v2151 = vsel %vm1040, %v898, 0.0
    %2152 = vadd.xlane.f32.xlu0 %v2151
    %v2153 = vpop.xlane.xlu0 %2152
    %v2154 = vsel %vm1040, %v899, 0.0
    %2155 = vadd.xlane.f32.xlu0 %v2154
    %v2156 = vpop.xlane.xlu0 %2155
    %v2157 = vsel %vm1040, %v900, 0.0
    %2158 = vadd.xlane.f32.xlu0 %v2157
    %v2159 = vpop.xlane.xlu0 %2158
    %v2160 = vsel %vm1040, %v901, 0.0
    %2161 = vadd.xlane.f32.xlu0 %v2160
    %v2162 = vpop.xlane.xlu0 %2161
    %v2163 = vsel %vm1040, %v902, 0.0
    %2164 = vadd.xlane.f32.xlu0 %v2163
    %v2165 = vpop.xlane.xlu0 %2164
    %v2166 = vsel %vm1040, %v903, 0.0
    %2167 = vadd.xlane.f32.xlu0 %v2166
    %v2168 = vpop.xlane.xlu0 %2167
    %v2169 = vsel %vm1040, %v904, 0.0
    %2170 = vadd.xlane.f32.xlu0 %v2169
    %v2171 = vpop.xlane.xlu0 %2170
    %v2172 = vsel %vm1040, %v905, 0.0
    %2173 = vadd.xlane.f32.xlu0 %v2172
    %v2174 = vpop.xlane.xlu0 %2173
    %v2175 = vsel %vm1040, %v906, 0.0
    %2176 = vadd.xlane.f32.xlu0 %v2175
    %v2177 = vpop.xlane.xlu0 %2176
    %v2178 = vsel %vm1040, %v907, 0.0
    %2179 = vadd.xlane.f32.xlu0 %v2178
    %v2180 = vpop.xlane.xlu0 %2179
    %v2181 = vsel %vm1040, %v908, 0.0
    %2182 = vadd.xlane.f32.xlu0 %v2181
    %v2183 = vpop.xlane.xlu0 %2182
    %v2184 = vsel %vm1040, %v909, 0.0
    %2185 = vadd.xlane.f32.xlu0 %v2184
    %v2186 = vpop.xlane.xlu0 %2185
    %v2187 = vsel %vm1040, %v910, 0.0
    %2188 = vadd.xlane.f32.xlu0 %v2187
    %v2189 = vpop.xlane.xlu0 %2188
    %v2190 = vsel %vm1040, %v911, 0.0
    %2191 = vadd.xlane.f32.xlu0 %v2190
    %v2192 = vpop.xlane.xlu0 %2191
    %v2193 = vsel %vm1040, %v912, 0.0
    %2194 = vadd.xlane.f32.xlu0 %v2193
    %v2195 = vpop.xlane.xlu0 %2194
    %v2196 = vsel %vm1040, %v913, 0.0
    %2197 = vadd.xlane.f32.xlu0 %v2196
    %v2198 = vpop.xlane.xlu0 %2197
    %v2199 = vsel %vm1040, %v914, 0.0
    %2200 = vadd.xlane.f32.xlu0 %v2199
    %v2201 = vpop.xlane.xlu0 %2200
    %v2202 = vsel %vm1040, %v915, 0.0
    %2203 = vadd.xlane.f32.xlu0 %v2202
    %v2204 = vpop.xlane.xlu0 %2203
    %v2205 = vsel %vm1040, %v916, 0.0
    %2206 = vadd.xlane.f32.xlu0 %v2205
    %v2207 = vpop.xlane.xlu0 %2206
    %v2208 = vsel %vm1040, %v917, 0.0
    %2209 = vadd.xlane.f32.xlu0 %v2208
    %v2210 = vpop.xlane.xlu0 %2209
    %v2211 = vsel %vm1040, %v918, 0.0
    %2212 = vadd.xlane.f32.xlu0 %v2211
    %v2213 = vpop.xlane.xlu0 %2212
    %v2214 = vsel %vm1040, %v919, 0.0
    %2215 = vadd.xlane.f32.xlu0 %v2214
    %v2216 = vpop.xlane.xlu0 %2215
    %v2217 = vsel %vm1040, %v920, 0.0
    %2218 = vadd.xlane.f32.xlu0 %v2217
    %v2219 = vpop.xlane.xlu0 %2218
    %v2220 = vsel %vm1040, %v921, 0.0
    %2221 = vadd.xlane.f32.xlu0 %v2220
    %v2222 = vpop.xlane.xlu0 %2221
    %v2223 = vsel %vm1040, %v922, 0.0
    %2224 = vadd.xlane.f32.xlu0 %v2223
    %v2225 = vpop.xlane.xlu0 %2224
    %v2226 = vsel %vm1040, %v923, 0.0
    %2227 = vadd.xlane.f32.xlu0 %v2226
    %v2228 = vpop.xlane.xlu0 %2227
    %v2229 = vsel %vm1040, %v924, 0.0
    %2230 = vadd.xlane.f32.xlu0 %v2229
    %v2231 = vpop.xlane.xlu0 %2230
    %v2232 = vsel %vm1040, %v925, 0.0
    %2233 = vadd.xlane.f32.xlu0 %v2232
    %v2234 = vpop.xlane.xlu0 %2233
    %v2235 = vsel %vm1040, %v926, 0.0
    %2236 = vadd.xlane.f32.xlu0 %v2235
    %v2237 = vpop.xlane.xlu0 %2236
    %v2238 = vsel %vm1040, %v927, 0.0
    %2239 = vadd.xlane.f32.xlu0 %v2238
    %v2240 = vpop.xlane.xlu0 %2239
    %v2241 = vsel %vm1040, %v928, 0.0
    %2242 = vadd.xlane.f32.xlu0 %v2241
    %v2243 = vpop.xlane.xlu0 %2242
    %v2244 = vsel %vm1040, %v929, 0.0
    %2245 = vadd.xlane.f32.xlu0 %v2244
    %v2246 = vpop.xlane.xlu0 %2245
    %v2247 = vsel %vm1040, %v930, 0.0
    %2248 = vadd.xlane.f32.xlu0 %v2247
    %v2249 = vpop.xlane.xlu0 %2248
    %v2250 = vsel %vm1040, %v931, 0.0
    %2251 = vadd.xlane.f32.xlu0 %v2250
    %v2252 = vpop.xlane.xlu0 %2251
    %v2253 = vsel %vm1040, %v932, 0.0
    %2254 = vadd.xlane.f32.xlu0 %v2253
    %v2255 = vpop.xlane.xlu0 %2254
    %v2256 = vsel %vm1040, %v933, 0.0
    %2257 = vadd.xlane.f32.xlu0 %v2256
    %v2258 = vpop.xlane.xlu0 %2257
    %v2259 = vsel %vm1040, %v934, 0.0
    %2260 = vadd.xlane.f32.xlu0 %v2259
    %v2261 = vpop.xlane.xlu0 %2260
    %v2262 = vsel %vm1040, %v935, 0.0
    %2263 = vadd.xlane.f32.xlu0 %v2262
    %v2264 = vpop.xlane.xlu0 %2263
    %v2265 = vsel %vm1040, %v936, 0.0
    %2266 = vadd.xlane.f32.xlu0 %v2265
    %v2267 = vpop.xlane.xlu0 %2266
    %v2268 = vsel %vm1040, %v937, 0.0
    %2269 = vadd.xlane.f32.xlu0 %v2268
    %v2270 = vpop.xlane.xlu0 %2269
    %v2271 = vsel %vm1040, %v938, 0.0
    %2272 = vadd.xlane.f32.xlu0 %v2271
    %v2273 = vpop.xlane.xlu0 %2272
    %v2274 = vsel %vm1040, %v939, 0.0
    %2275 = vadd.xlane.f32.xlu0 %v2274
    %v2276 = vpop.xlane.xlu0 %2275
    %v2277 = vsel %vm1040, %v940, 0.0
    %2278 = vadd.xlane.f32.xlu0 %v2277
    %v2279 = vpop.xlane.xlu0 %2278
    %v2280 = vsel %vm1040, %v941, 0.0
    %2281 = vadd.xlane.f32.xlu0 %v2280
    %v2282 = vpop.xlane.xlu0 %2281
    %v2283 = vsel %vm1040, %v942, 0.0
    %2284 = vadd.xlane.f32.xlu0 %v2283
    %v2285 = vpop.xlane.xlu0 %2284
    %v2286 = vsel %vm1040, %v943, 0.0
    %2287 = vadd.xlane.f32.xlu0 %v2286
    %v2288 = vpop.xlane.xlu0 %2287
    %v2289 = vsel %vm1040, %v944, 0.0
    %2290 = vadd.xlane.f32.xlu0 %v2289
    %v2291 = vpop.xlane.xlu0 %2290
    %v2292 = vsel %vm1040, %v945, 0.0
    %2293 = vadd.xlane.f32.xlu0 %v2292
    %v2294 = vpop.xlane.xlu0 %2293
    %v2295 = vsel %vm1040, %v946, 0.0
    %2296 = vadd.xlane.f32.xlu0 %v2295
    %v2297 = vpop.xlane.xlu0 %2296
    %v2298 = vsel %vm1040, %v947, 0.0
    %2299 = vadd.xlane.f32.xlu0 %v2298
    %v2300 = vpop.xlane.xlu0 %2299
    %v2301 = vsel %vm1040, %v948, 0.0
    %2302 = vadd.xlane.f32.xlu0 %v2301
    %v2303 = vpop.xlane.xlu0 %2302
    %v2304 = vsel %vm1040, %v949, 0.0
    %2305 = vadd.xlane.f32.xlu0 %v2304
    %v2306 = vpop.xlane.xlu0 %2305
    %v2307 = vsel %vm1040, %v950, 0.0
    %2308 = vadd.xlane.f32.xlu0 %v2307
    %v2309 = vpop.xlane.xlu0 %2308
    %v2310 = vsel %vm1040, %v951, 0.0
    %2311 = vadd.xlane.f32.xlu0 %v2310
    %v2312 = vpop.xlane.xlu0 %2311
    %v2313 = vsel %vm1040, %v952, 0.0
    %2314 = vadd.xlane.f32.xlu0 %v2313
    %v2315 = vpop.xlane.xlu0 %2314
    %v2316 = vsel %vm1040, %v953, 0.0
    %2317 = vadd.xlane.f32.xlu0 %v2316
    %v2318 = vpop.xlane.xlu0 %2317
    %v2319 = vsel %vm1040, %v954, 0.0
    %2320 = vadd.xlane.f32.xlu0 %v2319
    %v2321 = vpop.xlane.xlu0 %2320
    %v2322 = vsel %vm1040, %v955, 0.0
    %2323 = vadd.xlane.f32.xlu0 %v2322
    %v2324 = vpop.xlane.xlu0 %2323
    %v2325 = vsel %vm1040, %v956, 0.0
    %2326 = vadd.xlane.f32.xlu0 %v2325
    %v2327 = vpop.xlane.xlu0 %2326
    %v2328 = vsel %vm1040, %v957, 0.0
    %2329 = vadd.xlane.f32.xlu0 %v2328
    %v2330 = vpop.xlane.xlu0 %2329
    %v2331 = vsel %vm1040, %v958, 0.0
    %2332 = vadd.xlane.f32.xlu0 %v2331
    %v2333 = vpop.xlane.xlu0 %2332
    %v2334 = vsel %vm1040, %v959, 0.0
    %2335 = vadd.xlane.f32.xlu0 %v2334
    %v2336 = vpop.xlane.xlu0 %2335
    %v2337 = vsel %vm1040, %v960, 0.0
    %2338 = vadd.xlane.f32.xlu0 %v2337
    %v2339 = vpop.xlane.xlu0 %2338
    %v2340 = vsel %vm1040, %v961, 0.0
    %2341 = vadd.xlane.f32.xlu0 %v2340
    %v2342 = vpop.xlane.xlu0 %2341
    %v2343 = vsel %vm1040, %v962, 0.0
    %2344 = vadd.xlane.f32.xlu0 %v2343
    %v2345 = vpop.xlane.xlu0 %2344
    %v2346 = vsel %vm1040, %v963, 0.0
    %2347 = vadd.xlane.f32.xlu0 %v2346
    %v2348 = vpop.xlane.xlu0 %2347
    %v2349 = vsel %vm1040, %v964, 0.0
    %2350 = vadd.xlane.f32.xlu0 %v2349
    %v2351 = vpop.xlane.xlu0 %2350
    %v2352 = vsel %vm1040, %v965, 0.0
    %2353 = vadd.xlane.f32.xlu0 %v2352
    %v2354 = vpop.xlane.xlu0 %2353
    %v2355 = vsel %vm1040, %v966, 0.0
    %2356 = vadd.xlane.f32.xlu0 %v2355
    %v2357 = vpop.xlane.xlu0 %2356
    %v2358 = vsel %vm1040, %v967, 0.0
    %2359 = vadd.xlane.f32.xlu0 %v2358
    %v2360 = vpop.xlane.xlu0 %2359
    %v2361 = vsel %vm1040, %v968, 0.0
    %2362 = vadd.xlane.f32.xlu0 %v2361
    %v2363 = vpop.xlane.xlu0 %2362
    %v2364 = vsel %vm1040, %v969, 0.0
    %2365 = vadd.xlane.f32.xlu0 %v2364
    %v2366 = vpop.xlane.xlu0 %2365
    %v2367 = vsel %vm1040, %v970, 0.0
    %2368 = vadd.xlane.f32.xlu0 %v2367
    %v2369 = vpop.xlane.xlu0 %2368
    %v2370 = vsel %vm1040, %v971, 0.0
    %2371 = vadd.xlane.f32.xlu0 %v2370
    %v2372 = vpop.xlane.xlu0 %2371
    %v2373 = vsel %vm1040, %v972, 0.0
    %2374 = vadd.xlane.f32.xlu0 %v2373
    %v2375 = vpop.xlane.xlu0 %2374
    %v2376 = vsel %vm1040, %v973, 0.0
    %2377 = vadd.xlane.f32.xlu0 %v2376
    %v2378 = vpop.xlane.xlu0 %2377
    %v2379 = vsel %vm1040, %v974, 0.0
    %2380 = vadd.xlane.f32.xlu0 %v2379
    %v2381 = vpop.xlane.xlu0 %2380
    %v2382 = vsel %vm1040, %v975, 0.0
    %2383 = vadd.xlane.f32.xlu0 %v2382
    %v2384 = vpop.xlane.xlu0 %2383
    %v2385 = vsel %vm1040, %v976, 0.0
    %2386 = vadd.xlane.f32.xlu0 %v2385
    %v2387 = vpop.xlane.xlu0 %2386
    %v2388 = vsel %vm1040, %v977, 0.0
    %2389 = vadd.xlane.f32.xlu0 %v2388
    %v2390 = vpop.xlane.xlu0 %2389
    %v2391 = vsel %vm1040, %v978, 0.0
    %2392 = vadd.xlane.f32.xlu0 %v2391
    %v2393 = vpop.xlane.xlu0 %2392
    %v2394 = vsel %vm1040, %v979, 0.0
    %2395 = vadd.xlane.f32.xlu0 %v2394
    %v2396 = vpop.xlane.xlu0 %2395
    %v2397 = vsel %vm1040, %v980, 0.0
    %2398 = vadd.xlane.f32.xlu0 %v2397
    %v2399 = vpop.xlane.xlu0 %2398
    %v2400 = vsel %vm1040, %v981, 0.0
    %2401 = vadd.xlane.f32.xlu0 %v2400
    %v2402 = vpop.xlane.xlu0 %2401
    %v2403 = vsel %vm1040, %v982, 0.0
    %2404 = vadd.xlane.f32.xlu0 %v2403
    %v2405 = vpop.xlane.xlu0 %2404
    %v2406 = vsel %vm1040, %v983, 0.0
    %2407 = vadd.xlane.f32.xlu0 %v2406
    %v2408 = vpop.xlane.xlu0 %2407
    %v2409 = vsel %vm1040, %v984, 0.0
    %2410 = vadd.xlane.f32.xlu0 %v2409
    %v2411 = vpop.xlane.xlu0 %2410
    %v2412 = vsel %vm1040, %v985, 0.0
    %2413 = vadd.xlane.f32.xlu0 %v2412
    %v2414 = vpop.xlane.xlu0 %2413
    %v2415 = vsel %vm1040, %v986, 0.0
    %2416 = vadd.xlane.f32.xlu0 %v2415
    %v2417 = vpop.xlane.xlu0 %2416
    %v2418 = vsel %vm1040, %v987, 0.0
    %2419 = vadd.xlane.f32.xlu0 %v2418
    %v2420 = vpop.xlane.xlu0 %2419
    %v2421 = vsel %vm1040, %v988, 0.0
    %2422 = vadd.xlane.f32.xlu0 %v2421
    %v2423 = vpop.xlane.xlu0 %2422
    %v2424 = vsel %vm1040, %v989, 0.0
    %2425 = vadd.xlane.f32.xlu0 %v2424
    %v2426 = vpop.xlane.xlu0 %2425
    %v2427 = vsel %vm1040, %v990, 0.0
    %2428 = vadd.xlane.f32.xlu0 %v2427
    %v2429 = vpop.xlane.xlu0 %2428
    %v2430 = vsel %vm1040, %v991, 0.0
    %2431 = vadd.xlane.f32.xlu0 %v2430
    %v2432 = vpop.xlane.xlu0 %2431
    %v2433 = vsel %vm1040, %v992, 0.0
    %2434 = vadd.xlane.f32.xlu0 %v2433
    %v2435 = vpop.xlane.xlu0 %2434
    %v2436 = vsel %vm1040, %v993, 0.0
    %2437 = vadd.xlane.f32.xlu0 %v2436
    %v2438 = vpop.xlane.xlu0 %2437
    %v2439 = vsel %vm1040, %v994, 0.0
    %2440 = vadd.xlane.f32.xlu0 %v2439
    %v2441 = vpop.xlane.xlu0 %2440
    %v2442 = vsel %vm1040, %v995, 0.0
    %2443 = vadd.xlane.f32.xlu0 %v2442
    %v2444 = vpop.xlane.xlu0 %2443
    %v2445 = vsel %vm1040, %v996, 0.0
    %2446 = vadd.xlane.f32.xlu0 %v2445
    %v2447 = vpop.xlane.xlu0 %2446
    %v2448 = vsel %vm1040, %v997, 0.0
    %2449 = vadd.xlane.f32.xlu0 %v2448
    %v2450 = vpop.xlane.xlu0 %2449
    %v2451 = vsel %vm1040, %v998, 0.0
    %2452 = vadd.xlane.f32.xlu0 %v2451
    %v2453 = vpop.xlane.xlu0 %2452
    %v2454 = vsel %vm1040, %v999, 0.0
    %2455 = vadd.xlane.f32.xlu0 %v2454
    %v2456 = vpop.xlane.xlu0 %2455
    %v2457 = vsel %vm1040, %v1000, 0.0
    %2458 = vadd.xlane.f32.xlu0 %v2457
    %v2459 = vpop.xlane.xlu0 %2458
    %v2460 = vsel %vm1040, %v1001, 0.0
    %2461 = vadd.xlane.f32.xlu0 %v2460
    %v2462 = vpop.xlane.xlu0 %2461
    %v2463 = vsel %vm1040, %v1002, 0.0
    %2464 = vadd.xlane.f32.xlu0 %v2463
    %v2465 = vpop.xlane.xlu0 %2464
    %v2466 = vsel %vm1040, %v1003, 0.0
    %2467 = vadd.xlane.f32.xlu0 %v2466
    %v2468 = vpop.xlane.xlu0 %2467
    %v2469 = vsel %vm1040, %v1004, 0.0
    %2470 = vadd.xlane.f32.xlu0 %v2469
    %v2471 = vpop.xlane.xlu0 %2470
    %v2472 = vsel %vm1040, %v1005, 0.0
    %2473 = vadd.xlane.f32.xlu0 %v2472
    %v2474 = vpop.xlane.xlu0 %2473
    %v2475 = vsel %vm1040, %v1006, 0.0
    %2476 = vadd.xlane.f32.xlu0 %v2475
    %v2477 = vpop.xlane.xlu0 %2476
    %v2478 = vsel %vm1040, %v1007, 0.0
    %2479 = vadd.xlane.f32.xlu0 %v2478
    %v2480 = vpop.xlane.xlu0 %2479
    %v2481 = vsel %vm1040, %v1008, 0.0
    %2482 = vadd.xlane.f32.xlu0 %v2481
    %v2483 = vpop.xlane.xlu0 %2482
    %v2484 = vsel %vm1040, %v1009, 0.0
    %2485 = vadd.xlane.f32.xlu0 %v2484
    %v2486 = vpop.xlane.xlu0 %2485
    %v2487 = vsel %vm1040, %v1010, 0.0
    %2488 = vadd.xlane.f32.xlu0 %v2487
    %v2489 = vpop.xlane.xlu0 %2488
    %v2490 = vsel %vm1040, %v1011, 0.0
    %2491 = vadd.xlane.f32.xlu0 %v2490
    %v2492 = vpop.xlane.xlu0 %2491
    %v2493 = vsel %vm1040, %v1012, 0.0
    %2494 = vadd.xlane.f32.xlu0 %v2493
    %v2495 = vpop.xlane.xlu0 %2494
    %v2496 = vsel %vm1040, %v1013, 0.0
    %2497 = vadd.xlane.f32.xlu0 %v2496
    %v2498 = vpop.xlane.xlu0 %2497
    %v2499 = vsel %vm1040, %v1014, 0.0
    %2500 = vadd.xlane.f32.xlu0 %v2499
    %v2501 = vpop.xlane.xlu0 %2500
    %v2502 = vsel %vm1040, %v1015, 0.0
    %2503 = vadd.xlane.f32.xlu0 %v2502
    %v2504 = vpop.xlane.xlu0 %2503
    %v2505 = vsel %vm1040, %v1016, 0.0
    %2506 = vadd.xlane.f32.xlu0 %v2505
    %v2507 = vpop.xlane.xlu0 %2506
    %v2508 = vsel %vm1040, %v1017, 0.0
    %2509 = vadd.xlane.f32.xlu0 %v2508
    %v2510 = vpop.xlane.xlu0 %2509
    %v2511 = vsel %vm1040, %v1018, 0.0
    %2512 = vadd.xlane.f32.xlu0 %v2511
    %v2513 = vpop.xlane.xlu0 %2512
    %v2514 = vsel %vm1040, %v1019, 0.0
    %2515 = vadd.xlane.f32.xlu0 %v2514
    %v2516 = vpop.xlane.xlu0 %2515
    %v2517 = vsel %vm1040, %v1020, 0.0
    %2518 = vadd.xlane.f32.xlu0 %v2517
    %v2519 = vpop.xlane.xlu0 %2518
    %v2520 = vsel %vm1040, %v1021, 0.0
    %2521 = vadd.xlane.f32.xlu0 %v2520
    %v2522 = vpop.xlane.xlu0 %2521
    %v2523 = vsel %vm1040, %v1022, 0.0
    %2524 = vadd.xlane.f32.xlu0 %v2523
    %v2525 = vpop.xlane.xlu0 %2524
    %v2526 = vsel %vm1040, %v1023, 0.0
    %2527 = vadd.xlane.f32.xlu0 %v2526
    %v2528 = vpop.xlane.xlu0 %2527
    %v2529 = vsel %vm1040, %v1024, 0.0
    %2530 = vadd.xlane.f32.xlu0 %v2529
    %v2531 = vpop.xlane.xlu0 %2530
    %v2532 = vsel %vm1040, %v1025, 0.0
    %2533 = vadd.xlane.f32.xlu0 %v2532
    %v2534 = vpop.xlane.xlu0 %2533
    %v2535 = vsel %vm1040, %v1026, 0.0
    %2536 = vadd.xlane.f32.xlu0 %v2535
    %v2537 = vpop.xlane.xlu0 %2536
    %v2538 = vsel %vm1040, %v1027, 0.0
    %2539 = vadd.xlane.f32.xlu0 %v2538
    %v2540 = vpop.xlane.xlu0 %2539
    %v2541 = vsel %vm1040, %v1028, 0.0
    %2542 = vadd.xlane.f32.xlu0 %v2541
    %v2543 = vpop.xlane.xlu0 %2542
    %v2544 = vsel %vm1040, %v1029, 0.0
    %2545 = vadd.xlane.f32.xlu0 %v2544
    %v2546 = vpop.xlane.xlu0 %2545
    %v2547 = vsel %vm1040, %v1030, 0.0
    %2548 = vadd.xlane.f32.xlu0 %v2547
    %v2549 = vpop.xlane.xlu0 %2548
    %v2550 = vsel %vm1040, %v1031, 0.0
    %2551 = vadd.xlane.f32.xlu0 %v2550
    %v2552 = vpop.xlane.xlu0 %2551
    %v2553 = vsel %vm1040, %v1032, 0.0
    %2554 = vadd.xlane.f32.xlu0 %v2553
    %v2555 = vpop.xlane.xlu0 %2554
    %v2556 = vsel %vm1040, %v1033, 0.0
    %2557 = vadd.xlane.f32.xlu0 %v2556
    %v2558 = vpop.xlane.xlu0 %2557
    %v2559 = vsel %vm1040, %v1034, 0.0
    %2560 = vadd.xlane.f32.xlu0 %v2559
    %v2561 = vpop.xlane.xlu0 %2560
    %v2562 = vsel %vm1040, %v1035, 0.0
    %2563 = vadd.xlane.f32.xlu0 %v2562
    %v2564 = vpop.xlane.xlu0 %2563
    %v2565 = vsel %vm1040, %v1036, 0.0
    %2566 = vadd.xlane.f32.xlu0 %v2565
    %v2567 = vpop.xlane.xlu0 %2566
    %v2568 = vsel %vm1040, %v1037, 0.0
    %2569 = vadd.xlane.f32.xlu0 %v2568
    %v2570 = vpop.xlane.xlu0 %2569
    %v2571 = vsel %vm1040, %v1038, 0.0
    %2572 = vadd.xlane.f32.xlu0 %v2571
    %v2573 = vpop.xlane.xlu0 %2572
    %v2574 = vsel %vm1040, %v1039, 0.0
    %2575 = vadd.xlane.f32.xlu0 %v2574
    %v2576 = vpop.xlane.xlu0 %2575
    %v2577 = vpack.c.bf16 %v1046, %v1043
    %v2578 = vpack.c.bf16 %v1052, %v1049
    %v2579 = vpack.c.bf16 %v1058, %v1055
    %v2580 = vpack.c.bf16 %v1064, %v1061
    %v2581 = vpack.c.bf16 %v1070, %v1067
    %v2582 = vpack.c.bf16 %v1076, %v1073
    %v2583 = vpack.c.bf16 %v1082, %v1079
    %v2584 = vpack.c.bf16 %v1088, %v1085
    %v2585 = vpack.c.bf16 %v1094, %v1091
    %v2586 = vpack.c.bf16 %v1100, %v1097
    %v2587 = vpack.c.bf16 %v1106, %v1103
    %v2588 = vpack.c.bf16 %v1112, %v1109
    %v2589 = vpack.c.bf16 %v1118, %v1115
    %v2590 = vpack.c.bf16 %v1124, %v1121
    %v2591 = vpack.c.bf16 %v1130, %v1127
    %v2592 = vpack.c.bf16 %v1136, %v1133
    %v2593 = vpack.c.bf16 %v1142, %v1139
    %v2594 = vpack.c.bf16 %v1148, %v1145
    %v2595 = vpack.c.bf16 %v1154, %v1151
    %v2596 = vpack.c.bf16 %v1160, %v1157
    %v2597 = vpack.c.bf16 %v1166, %v1163
    %v2598 = vpack.c.bf16 %v1172, %v1169
    %v2599 = vpack.c.bf16 %v1178, %v1175
    %v2600 = vpack.c.bf16 %v1184, %v1181
    %v2601 = vpack.c.bf16 %v1190, %v1187
    %v2602 = vpack.c.bf16 %v1196, %v1193
    %v2603 = vpack.c.bf16 %v1202, %v1199
    %v2604 = vpack.c.bf16 %v1208, %v1205
    %v2605 = vpack.c.bf16 %v1214, %v1211
    %v2606 = vpack.c.bf16 %v1220, %v1217
    %v2607 = vpack.c.bf16 %v1226, %v1223
    %v2608 = vpack.c.bf16 %v1232, %v1229
    %v2609 = vpack.c.bf16 %v1238, %v1235
    %v2610 = vpack.c.bf16 %v1244, %v1241
    %v2611 = vpack.c.bf16 %v1250, %v1247
    %v2612 = vpack.c.bf16 %v1256, %v1253
    %v2613 = vpack.c.bf16 %v1262, %v1259
    %v2614 = vpack.c.bf16 %v1268, %v1265
    %v2615 = vpack.c.bf16 %v1274, %v1271
    %v2616 = vpack.c.bf16 %v1280, %v1277
    %v2617 = vpack.c.bf16 %v1286, %v1283
    %v2618 = vpack.c.bf16 %v1292, %v1289
    %v2619 = vpack.c.bf16 %v1298, %v1295
    %v2620 = vpack.c.bf16 %v1304, %v1301
    %v2621 = vpack.c.bf16 %v1310, %v1307
    %v2622 = vpack.c.bf16 %v1316, %v1313
    %v2623 = vpack.c.bf16 %v1322, %v1319
    %v2624 = vpack.c.bf16 %v1328, %v1325
    %v2625 = vpack.c.bf16 %v1334, %v1331
    %v2626 = vpack.c.bf16 %v1340, %v1337
    %v2627 = vpack.c.bf16 %v1346, %v1343
    %v2628 = vpack.c.bf16 %v1352, %v1349
    %v2629 = vpack.c.bf16 %v1358, %v1355
    %v2630 = vpack.c.bf16 %v1364, %v1361
    %v2631 = vpack.c.bf16 %v1370, %v1367
    %v2632 = vpack.c.bf16 %v1376, %v1373
    %v2633 = vpack.c.bf16 %v1382, %v1379
    %v2634 = vpack.c.bf16 %v1388, %v1385
    %v2635 = vpack.c.bf16 %v1394, %v1391
    %v2636 = vpack.c.bf16 %v1400, %v1397
    %v2637 = vpack.c.bf16 %v1406, %v1403
    %v2638 = vpack.c.bf16 %v1412, %v1409
    %v2639 = vpack.c.bf16 %v1418, %v1415
    %v2640 = vpack.c.bf16 %v1424, %v1421
    %v2641 = vpack.c.bf16 %v1430, %v1427
    %v2642 = vpack.c.bf16 %v1436, %v1433
    %v2643 = vpack.c.bf16 %v1442, %v1439
    %v2644 = vpack.c.bf16 %v1448, %v1445
    %v2645 = vpack.c.bf16 %v1454, %v1451
    %v2646 = vpack.c.bf16 %v1460, %v1457
    %v2647 = vpack.c.bf16 %v1466, %v1463
    %v2648 = vpack.c.bf16 %v1472, %v1469
    %v2649 = vpack.c.bf16 %v1478, %v1475
    %v2650 = vpack.c.bf16 %v1484, %v1481
    %v2651 = vpack.c.bf16 %v1490, %v1487
    %v2652 = vpack.c.bf16 %v1496, %v1493
    %v2653 = vpack.c.bf16 %v1502, %v1499
    %v2654 = vpack.c.bf16 %v1508, %v1505
    %v2655 = vpack.c.bf16 %v1514, %v1511
    %v2656 = vpack.c.bf16 %v1520, %v1517
    %v2657 = vpack.c.bf16 %v1526, %v1523
    %v2658 = vpack.c.bf16 %v1532, %v1529
    %v2659 = vpack.c.bf16 %v1538, %v1535
    %v2660 = vpack.c.bf16 %v1544, %v1541
    %v2661 = vpack.c.bf16 %v1550, %v1547
    %v2662 = vpack.c.bf16 %v1556, %v1553
    %v2663 = vpack.c.bf16 %v1562, %v1559
    %v2664 = vpack.c.bf16 %v1568, %v1565
    %v2665 = vpack.c.bf16 %v1574, %v1571
    %v2666 = vpack.c.bf16 %v1580, %v1577
    %v2667 = vpack.c.bf16 %v1586, %v1583
    %v2668 = vpack.c.bf16 %v1592, %v1589
    %v2669 = vpack.c.bf16 %v1598, %v1595
    %v2670 = vpack.c.bf16 %v1604, %v1601
    %v2671 = vpack.c.bf16 %v1610, %v1607
    %v2672 = vpack.c.bf16 %v1616, %v1613
    %v2673 = vpack.c.bf16 %v1622, %v1619
    %v2674 = vpack.c.bf16 %v1628, %v1625
    %v2675 = vpack.c.bf16 %v1634, %v1631
    %v2676 = vpack.c.bf16 %v1640, %v1637
    %v2677 = vpack.c.bf16 %v1646, %v1643
    %v2678 = vpack.c.bf16 %v1652, %v1649
    %v2679 = vpack.c.bf16 %v1658, %v1655
    %v2680 = vpack.c.bf16 %v1664, %v1661
    %v2681 = vpack.c.bf16 %v1670, %v1667
    %v2682 = vpack.c.bf16 %v1676, %v1673
    %v2683 = vpack.c.bf16 %v1682, %v1679
    %v2684 = vpack.c.bf16 %v1688, %v1685
    %v2685 = vpack.c.bf16 %v1694, %v1691
    %v2686 = vpack.c.bf16 %v1700, %v1697
    %v2687 = vpack.c.bf16 %v1706, %v1703
    %v2688 = vpack.c.bf16 %v1712, %v1709
    %v2689 = vpack.c.bf16 %v1718, %v1715
    %v2690 = vpack.c.bf16 %v1724, %v1721
    %v2691 = vpack.c.bf16 %v1730, %v1727
    %v2692 = vpack.c.bf16 %v1736, %v1733
    %v2693 = vpack.c.bf16 %v1742, %v1739
    %v2694 = vpack.c.bf16 %v1748, %v1745
    %v2695 = vpack.c.bf16 %v1754, %v1751
    %v2696 = vpack.c.bf16 %v1760, %v1757
    %v2697 = vpack.c.bf16 %v1766, %v1763
    %v2698 = vpack.c.bf16 %v1772, %v1769
    %v2699 = vpack.c.bf16 %v1778, %v1775
    %v2700 = vpack.c.bf16 %v1784, %v1781
    %v2701 = vpack.c.bf16 %v1790, %v1787
    %v2702 = vpack.c.bf16 %v1796, %v1793
    %v2703 = vpack.c.bf16 %v1802, %v1799
    %v2704 = vpack.c.bf16 %v1808, %v1805
    %v2705 = vpack.c.bf16 %v1814, %v1811
    %v2706 = vpack.c.bf16 %v1820, %v1817
    %v2707 = vpack.c.bf16 %v1826, %v1823
    %v2708 = vpack.c.bf16 %v1832, %v1829
    %v2709 = vpack.c.bf16 %v1838, %v1835
    %v2710 = vpack.c.bf16 %v1844, %v1841
    %v2711 = vpack.c.bf16 %v1850, %v1847
    %v2712 = vpack.c.bf16 %v1856, %v1853
    %v2713 = vpack.c.bf16 %v1862, %v1859
    %v2714 = vpack.c.bf16 %v1868, %v1865
    %v2715 = vpack.c.bf16 %v1874, %v1871
    %v2716 = vpack.c.bf16 %v1880, %v1877
    %v2717 = vpack.c.bf16 %v1886, %v1883
    %v2718 = vpack.c.bf16 %v1892, %v1889
    %v2719 = vpack.c.bf16 %v1898, %v1895
    %v2720 = vpack.c.bf16 %v1904, %v1901
    %v2721 = vpack.c.bf16 %v1910, %v1907
    %v2722 = vpack.c.bf16 %v1916, %v1913
    %v2723 = vpack.c.bf16 %v1922, %v1919
    %v2724 = vpack.c.bf16 %v1928, %v1925
    %v2725 = vpack.c.bf16 %v1934, %v1931
    %v2726 = vpack.c.bf16 %v1940, %v1937
    %v2727 = vpack.c.bf16 %v1946, %v1943
    %v2728 = vpack.c.bf16 %v1952, %v1949
    %v2729 = vpack.c.bf16 %v1958, %v1955
    %v2730 = vpack.c.bf16 %v1964, %v1961
    %v2731 = vpack.c.bf16 %v1970, %v1967
    %v2732 = vpack.c.bf16 %v1976, %v1973
    %v2733 = vpack.c.bf16 %v1982, %v1979
    %v2734 = vpack.c.bf16 %v1988, %v1985
    %v2735 = vpack.c.bf16 %v1994, %v1991
    %v2736 = vpack.c.bf16 %v2000, %v1997
    %v2737 = vpack.c.bf16 %v2006, %v2003
    %v2738 = vpack.c.bf16 %v2012, %v2009
    %v2739 = vpack.c.bf16 %v2018, %v2015
    %v2740 = vpack.c.bf16 %v2024, %v2021
    %v2741 = vpack.c.bf16 %v2030, %v2027
    %v2742 = vpack.c.bf16 %v2036, %v2033
    %v2743 = vpack.c.bf16 %v2042, %v2039
    %v2744 = vpack.c.bf16 %v2048, %v2045
    %v2745 = vpack.c.bf16 %v2054, %v2051
    %v2746 = vpack.c.bf16 %v2060, %v2057
    %v2747 = vpack.c.bf16 %v2066, %v2063
    %v2748 = vpack.c.bf16 %v2072, %v2069
    %v2749 = vpack.c.bf16 %v2078, %v2075
    %v2750 = vpack.c.bf16 %v2084, %v2081
    %v2751 = vpack.c.bf16 %v2090, %v2087
    %v2752 = vpack.c.bf16 %v2096, %v2093
    %v2753 = vpack.c.bf16 %v2102, %v2099
    %v2754 = vpack.c.bf16 %v2108, %v2105
    %v2755 = vpack.c.bf16 %v2114, %v2111
    %v2756 = vpack.c.bf16 %v2120, %v2117
    %v2757 = vpack.c.bf16 %v2126, %v2123
    %v2758 = vpack.c.bf16 %v2132, %v2129
    %v2759 = vpack.c.bf16 %v2138, %v2135
    %v2760 = vpack.c.bf16 %v2144, %v2141
    %v2761 = vpack.c.bf16 %v2150, %v2147
    %v2762 = vpack.c.bf16 %v2156, %v2153
    %v2763 = vpack.c.bf16 %v2162, %v2159
    %v2764 = vpack.c.bf16 %v2168, %v2165
    %v2765 = vpack.c.bf16 %v2174, %v2171
    %v2766 = vpack.c.bf16 %v2180, %v2177
    %v2767 = vpack.c.bf16 %v2186, %v2183
    %v2768 = vpack.c.bf16 %v2192, %v2189
    %v2769 = vpack.c.bf16 %v2198, %v2195
    %v2770 = vpack.c.bf16 %v2204, %v2201
    %v2771 = vpack.c.bf16 %v2210, %v2207
    %v2772 = vpack.c.bf16 %v2216, %v2213
    %v2773 = vpack.c.bf16 %v2222, %v2219
    %v2774 = vpack.c.bf16 %v2228, %v2225
    %v2775 = vpack.c.bf16 %v2234, %v2231
    %v2776 = vpack.c.bf16 %v2240, %v2237
    %v2777 = vpack.c.bf16 %v2246, %v2243
    %v2778 = vpack.c.bf16 %v2252, %v2249
    %v2779 = vpack.c.bf16 %v2258, %v2255
    %v2780 = vpack.c.bf16 %v2264, %v2261
    %v2781 = vpack.c.bf16 %v2270, %v2267
    %v2782 = vpack.c.bf16 %v2276, %v2273
    %v2783 = vpack.c.bf16 %v2282, %v2279
    %v2784 = vpack.c.bf16 %v2288, %v2285
    %v2785 = vpack.c.bf16 %v2294, %v2291
    %v2786 = vpack.c.bf16 %v2300, %v2297
    %v2787 = vpack.c.bf16 %v2306, %v2303
    %v2788 = vpack.c.bf16 %v2312, %v2309
    %v2789 = vpack.c.bf16 %v2318, %v2315
    %v2790 = vpack.c.bf16 %v2324, %v2321
    %v2791 = vpack.c.bf16 %v2330, %v2327
    %v2792 = vpack.c.bf16 %v2336, %v2333
    %v2793 = vpack.c.bf16 %v2342, %v2339
    %v2794 = vpack.c.bf16 %v2348, %v2345
    %v2795 = vpack.c.bf16 %v2354, %v2351
    %v2796 = vpack.c.bf16 %v2360, %v2357
    %v2797 = vpack.c.bf16 %v2366, %v2363
    %v2798 = vpack.c.bf16 %v2372, %v2369
    %v2799 = vpack.c.bf16 %v2378, %v2375
    %v2800 = vpack.c.bf16 %v2384, %v2381
    %v2801 = vpack.c.bf16 %v2390, %v2387
    %v2802 = vpack.c.bf16 %v2396, %v2393
    %v2803 = vpack.c.bf16 %v2402, %v2399
    %v2804 = vpack.c.bf16 %v2408, %v2405
    %v2805 = vpack.c.bf16 %v2414, %v2411
    %v2806 = vpack.c.bf16 %v2420, %v2417
    %v2807 = vpack.c.bf16 %v2426, %v2423
    %v2808 = vpack.c.bf16 %v2432, %v2429
    %v2809 = vpack.c.bf16 %v2438, %v2435
    %v2810 = vpack.c.bf16 %v2444, %v2441
    %v2811 = vpack.c.bf16 %v2450, %v2447
    %v2812 = vpack.c.bf16 %v2456, %v2453
    %v2813 = vpack.c.bf16 %v2462, %v2459
    %v2814 = vpack.c.bf16 %v2468, %v2465
    %v2815 = vpack.c.bf16 %v2474, %v2471
    %v2816 = vpack.c.bf16 %v2480, %v2477
    %v2817 = vpack.c.bf16 %v2486, %v2483
    %v2818 = vpack.c.bf16 %v2492, %v2489
    %v2819 = vpack.c.bf16 %v2498, %v2495
    %v2820 = vpack.c.bf16 %v2504, %v2501
    %v2821 = vpack.c.bf16 %v2510, %v2507
    %v2822 = vpack.c.bf16 %v2516, %v2513
    %v2823 = vpack.c.bf16 %v2522, %v2519
    %v2824 = vpack.c.bf16 %v2528, %v2525
    %v2825 = vpack.c.bf16 %v2534, %v2531
    %v2826 = vpack.c.bf16 %v2540, %v2537
    %v2827 = vpack.c.bf16 %v2546, %v2543
    %v2828 = vpack.c.bf16 %v2552, %v2549
    %v2829 = vpack.c.bf16 %v2558, %v2555
    %v2830 = vpack.c.bf16 %v2564, %v2561
    %v2831 = vpack.c.bf16 %v2570, %v2567
    %v2832 = vpack.c.bf16 %v2576, %v2573
    %v2833 = vld [vmem:[%s1] sm:$0xf]
    %v2834 = vld [vmem:[%s1 + $0x4] sm:$0xf]
    %v2835 = vld [vmem:[%s1 + $0x8] sm:$0xf]
    %v2836 = vld [vmem:[%s1 + $0xc] sm:$0xf]
    %v2837 = vld [vmem:[%s1 + $0x10] sm:$0xf]
    %v2838 = vld [vmem:[%s1 + $0x14] sm:$0xf]
    %v2839 = vld [vmem:[%s1 + $0x18] sm:$0xf]
    %v2840 = vld [vmem:[%s1 + $0x1c] sm:$0xf]
    %v2841 = vld [vmem:[%s1 + $0x20] sm:$0xf]
    %v2842 = vld [vmem:[%s1 + $0x24] sm:$0xf]
    %v2843 = vld [vmem:[%s1 + $0x28] sm:$0xf]
    %v2844 = vld [vmem:[%s1 + $0x2c] sm:$0xf]
    %v2845 = vld [vmem:[%s1 + $0x30] sm:$0xf]
    %v2846 = vld [vmem:[%s1 + $0x34] sm:$0xf]
    %v2847 = vld [vmem:[%s1 + $0x38] sm:$0xf]
    %v2848 = vld [vmem:[%s1 + $0x3c] sm:$0xf]
    %v2849 = vld [vmem:[%s1 + $0x40] sm:$0xf]
    %v2850 = vld [vmem:[%s1 + $0x44] sm:$0xf]
    %v2851 = vld [vmem:[%s1 + $0x48] sm:$0xf]
    %v2852 = vld [vmem:[%s1 + $0x4c] sm:$0xf]
    %v2853 = vld [vmem:[%s1 + $0x50] sm:$0xf]
    %v2854 = vld [vmem:[%s1 + $0x54] sm:$0xf]
    %v2855 = vld [vmem:[%s1 + $0x58] sm:$0xf]
    %v2856 = vld [vmem:[%s1 + $0x5c] sm:$0xf]
    %v2857 = vld [vmem:[%s1 + $0x60] sm:$0xf]
    %v2858 = vld [vmem:[%s1 + $0x64] sm:$0xf]
    %v2859 = vld [vmem:[%s1 + $0x68] sm:$0xf]
    %v2860 = vld [vmem:[%s1 + $0x6c] sm:$0xf]
    %v2861 = vld [vmem:[%s1 + $0x70] sm:$0xf]
    %v2862 = vld [vmem:[%s1 + $0x74] sm:$0xf]
    %v2863 = vld [vmem:[%s1 + $0x78] sm:$0xf]
    %v2864 = vld [vmem:[%s1 + $0x7c] sm:$0xf]
    %v2865 = vld [vmem:[%s1 + $0x80] sm:$0xf]
    %v2866 = vld [vmem:[%s1 + $0x84] sm:$0xf]
    %v2867 = vld [vmem:[%s1 + $0x88] sm:$0xf]
    %v2868 = vld [vmem:[%s1 + $0x8c] sm:$0xf]
    %v2869 = vld [vmem:[%s1 + $0x90] sm:$0xf]
    %v2870 = vld [vmem:[%s1 + $0x94] sm:$0xf]
    %v2871 = vld [vmem:[%s1 + $0x98] sm:$0xf]
    %v2872 = vld [vmem:[%s1 + $0x9c] sm:$0xf]
    %v2873 = vld [vmem:[%s1 + $0xa0] sm:$0xf]
    %v2874 = vld [vmem:[%s1 + $0xa4] sm:$0xf]
    %v2875 = vld [vmem:[%s1 + $0xa8] sm:$0xf]
    %v2876 = vld [vmem:[%s1 + $0xac] sm:$0xf]
    %v2877 = vld [vmem:[%s1 + $0xb0] sm:$0xf]
    %v2878 = vld [vmem:[%s1 + $0xb4] sm:$0xf]
    %v2879 = vld [vmem:[%s1 + $0xb8] sm:$0xf]
    %v2880 = vld [vmem:[%s1 + $0xbc] sm:$0xf]
    %v2881 = vld [vmem:[%s1 + $0xc0] sm:$0xf]
    %v2882 = vld [vmem:[%s1 + $0xc4] sm:$0xf]
    %v2883 = vld [vmem:[%s1 + $0xc8] sm:$0xf]
    %v2884 = vld [vmem:[%s1 + $0xcc] sm:$0xf]
    %v2885 = vld [vmem:[%s1 + $0xd0] sm:$0xf]
    %v2886 = vld [vmem:[%s1 + $0xd4] sm:$0xf]
    %v2887 = vld [vmem:[%s1 + $0xd8] sm:$0xf]
    %v2888 = vld [vmem:[%s1 + $0xdc] sm:$0xf]
    %v2889 = vld [vmem:[%s1 + $0xe0] sm:$0xf]
    %v2890 = vld [vmem:[%s1 + $0xe4] sm:$0xf]
    %v2891 = vld [vmem:[%s1 + $0xe8] sm:$0xf]
    %v2892 = vld [vmem:[%s1 + $0xec] sm:$0xf]
    %v2893 = vld [vmem:[%s1 + $0xf0] sm:$0xf]
    %v2894 = vld [vmem:[%s1 + $0xf4] sm:$0xf]
    %v2895 = vld [vmem:[%s1 + $0xf8] sm:$0xf]
    %v2896 = vld [vmem:[%s1 + $0xfc] sm:$0xf]
    %v2897 = vld [vmem:[%s1 + $0x100] sm:$0xf]
    %v2898 = vld [vmem:[%s1 + $0x104] sm:$0xf]
    %v2899 = vld [vmem:[%s1 + $0x108] sm:$0xf]
    %v2900 = vld [vmem:[%s1 + $0x10c] sm:$0xf]
    %v2901 = vld [vmem:[%s1 + $0x110] sm:$0xf]
    %v2902 = vld [vmem:[%s1 + $0x114] sm:$0xf]
    %v2903 = vld [vmem:[%s1 + $0x118] sm:$0xf]
    %v2904 = vld [vmem:[%s1 + $0x11c] sm:$0xf]
    %v2905 = vld [vmem:[%s1 + $0x120] sm:$0xf]
    %v2906 = vld [vmem:[%s1 + $0x124] sm:$0xf]
    %v2907 = vld [vmem:[%s1 + $0x128] sm:$0xf]
    %v2908 = vld [vmem:[%s1 + $0x12c] sm:$0xf]
    %v2909 = vld [vmem:[%s1 + $0x130] sm:$0xf]
    %v2910 = vld [vmem:[%s1 + $0x134] sm:$0xf]
    %v2911 = vld [vmem:[%s1 + $0x138] sm:$0xf]
    %v2912 = vld [vmem:[%s1 + $0x13c] sm:$0xf]
    %v2913 = vld [vmem:[%s1 + $0x140] sm:$0xf]
    %v2914 = vld [vmem:[%s1 + $0x144] sm:$0xf]
    %v2915 = vld [vmem:[%s1 + $0x148] sm:$0xf]
    %v2916 = vld [vmem:[%s1 + $0x14c] sm:$0xf]
    %v2917 = vld [vmem:[%s1 + $0x150] sm:$0xf]
    %v2918 = vld [vmem:[%s1 + $0x154] sm:$0xf]
    %v2919 = vld [vmem:[%s1 + $0x158] sm:$0xf]
    %v2920 = vld [vmem:[%s1 + $0x15c] sm:$0xf]
    %v2921 = vld [vmem:[%s1 + $0x160] sm:$0xf]
    %v2922 = vld [vmem:[%s1 + $0x164] sm:$0xf]
    %v2923 = vld [vmem:[%s1 + $0x168] sm:$0xf]
    %v2924 = vld [vmem:[%s1 + $0x16c] sm:$0xf]
    %v2925 = vld [vmem:[%s1 + $0x170] sm:$0xf]
    %v2926 = vld [vmem:[%s1 + $0x174] sm:$0xf]
    %v2927 = vld [vmem:[%s1 + $0x178] sm:$0xf]
    %v2928 = vld [vmem:[%s1 + $0x17c] sm:$0xf]
    %v2929 = vld [vmem:[%s1 + $0x180] sm:$0xf]
    %v2930 = vld [vmem:[%s1 + $0x184] sm:$0xf]
    %v2931 = vld [vmem:[%s1 + $0x188] sm:$0xf]
    %v2932 = vld [vmem:[%s1 + $0x18c] sm:$0xf]
    %v2933 = vld [vmem:[%s1 + $0x190] sm:$0xf]
    %v2934 = vld [vmem:[%s1 + $0x194] sm:$0xf]
    %v2935 = vld [vmem:[%s1 + $0x198] sm:$0xf]
    %v2936 = vld [vmem:[%s1 + $0x19c] sm:$0xf]
    %v2937 = vld [vmem:[%s1 + $0x1a0] sm:$0xf]
    %v2938 = vld [vmem:[%s1 + $0x1a4] sm:$0xf]
    %v2939 = vld [vmem:[%s1 + $0x1a8] sm:$0xf]
    %v2940 = vld [vmem:[%s1 + $0x1ac] sm:$0xf]
    %v2941 = vld [vmem:[%s1 + $0x1b0] sm:$0xf]
    %v2942 = vld [vmem:[%s1 + $0x1b4] sm:$0xf]
    %v2943 = vld [vmem:[%s1 + $0x1b8] sm:$0xf]
    %v2944 = vld [vmem:[%s1 + $0x1bc] sm:$0xf]
    %v2945 = vld [vmem:[%s1 + $0x1c0] sm:$0xf]
    %v2946 = vld [vmem:[%s1 + $0x1c4] sm:$0xf]
    %v2947 = vld [vmem:[%s1 + $0x1c8] sm:$0xf]
    %v2948 = vld [vmem:[%s1 + $0x1cc] sm:$0xf]
    %v2949 = vld [vmem:[%s1 + $0x1d0] sm:$0xf]
    %v2950 = vld [vmem:[%s1 + $0x1d4] sm:$0xf]
    %v2951 = vld [vmem:[%s1 + $0x1d8] sm:$0xf]
    %v2952 = vld [vmem:[%s1 + $0x1dc] sm:$0xf]
    %v2953 = vld [vmem:[%s1 + $0x1e0] sm:$0xf]
    %v2954 = vld [vmem:[%s1 + $0x1e4] sm:$0xf]
    %v2955 = vld [vmem:[%s1 + $0x1e8] sm:$0xf]
    %v2956 = vld [vmem:[%s1 + $0x1ec] sm:$0xf]
    %v2957 = vld [vmem:[%s1 + $0x1f0] sm:$0xf]
    %v2958 = vld [vmem:[%s1 + $0x1f4] sm:$0xf]
    %v2959 = vld [vmem:[%s1 + $0x1f8] sm:$0xf]
    %v2960 = vld [vmem:[%s1 + $0x1fc] sm:$0xf]
    %v2961 = vld [vmem:[%s1 + $0x200] sm:$0xf]
    %v2962 = vld [vmem:[%s1 + $0x204] sm:$0xf]
    %v2963 = vld [vmem:[%s1 + $0x208] sm:$0xf]
    %v2964 = vld [vmem:[%s1 + $0x20c] sm:$0xf]
    %v2965 = vld [vmem:[%s1 + $0x210] sm:$0xf]
    %v2966 = vld [vmem:[%s1 + $0x214] sm:$0xf]
    %v2967 = vld [vmem:[%s1 + $0x218] sm:$0xf]
    %v2968 = vld [vmem:[%s1 + $0x21c] sm:$0xf]
    %v2969 = vld [vmem:[%s1 + $0x220] sm:$0xf]
    %v2970 = vld [vmem:[%s1 + $0x224] sm:$0xf]
    %v2971 = vld [vmem:[%s1 + $0x228] sm:$0xf]
    %v2972 = vld [vmem:[%s1 + $0x22c] sm:$0xf]
    %v2973 = vld [vmem:[%s1 + $0x230] sm:$0xf]
    %v2974 = vld [vmem:[%s1 + $0x234] sm:$0xf]
    %v2975 = vld [vmem:[%s1 + $0x238] sm:$0xf]
    %v2976 = vld [vmem:[%s1 + $0x23c] sm:$0xf]
    %v2977 = vld [vmem:[%s1 + $0x240] sm:$0xf]
    %v2978 = vld [vmem:[%s1 + $0x244] sm:$0xf]
    %v2979 = vld [vmem:[%s1 + $0x248] sm:$0xf]
    %v2980 = vld [vmem:[%s1 + $0x24c] sm:$0xf]
    %v2981 = vld [vmem:[%s1 + $0x250] sm:$0xf]
    %v2982 = vld [vmem:[%s1 + $0x254] sm:$0xf]
    %v2983 = vld [vmem:[%s1 + $0x258] sm:$0xf]
    %v2984 = vld [vmem:[%s1 + $0x25c] sm:$0xf]
    %v2985 = vld [vmem:[%s1 + $0x260] sm:$0xf]
    %v2986 = vld [vmem:[%s1 + $0x264] sm:$0xf]
    %v2987 = vld [vmem:[%s1 + $0x268] sm:$0xf]
    %v2988 = vld [vmem:[%s1 + $0x26c] sm:$0xf]
    %v2989 = vld [vmem:[%s1 + $0x270] sm:$0xf]
    %v2990 = vld [vmem:[%s1 + $0x274] sm:$0xf]
    %v2991 = vld [vmem:[%s1 + $0x278] sm:$0xf]
    %v2992 = vld [vmem:[%s1 + $0x27c] sm:$0xf]
    %v2993 = vld [vmem:[%s1 + $0x280] sm:$0xf]
    %v2994 = vld [vmem:[%s1 + $0x284] sm:$0xf]
    %v2995 = vld [vmem:[%s1 + $0x288] sm:$0xf]
    %v2996 = vld [vmem:[%s1 + $0x28c] sm:$0xf]
    %v2997 = vld [vmem:[%s1 + $0x290] sm:$0xf]
    %v2998 = vld [vmem:[%s1 + $0x294] sm:$0xf]
    %v2999 = vld [vmem:[%s1 + $0x298] sm:$0xf]
    %v3000 = vld [vmem:[%s1 + $0x29c] sm:$0xf]
    %v3001 = vld [vmem:[%s1 + $0x2a0] sm:$0xf]
    %v3002 = vld [vmem:[%s1 + $0x2a4] sm:$0xf]
    %v3003 = vld [vmem:[%s1 + $0x2a8] sm:$0xf]
    %v3004 = vld [vmem:[%s1 + $0x2ac] sm:$0xf]
    %v3005 = vld [vmem:[%s1 + $0x2b0] sm:$0xf]
    %v3006 = vld [vmem:[%s1 + $0x2b4] sm:$0xf]
    %v3007 = vld [vmem:[%s1 + $0x2b8] sm:$0xf]
    %v3008 = vld [vmem:[%s1 + $0x2bc] sm:$0xf]
    %v3009 = vld [vmem:[%s1 + $0x2c0] sm:$0xf]
    %v3010 = vld [vmem:[%s1 + $0x2c4] sm:$0xf]
    %v3011 = vld [vmem:[%s1 + $0x2c8] sm:$0xf]
    %v3012 = vld [vmem:[%s1 + $0x2cc] sm:$0xf]
    %v3013 = vld [vmem:[%s1 + $0x2d0] sm:$0xf]
    %v3014 = vld [vmem:[%s1 + $0x2d4] sm:$0xf]
    %v3015 = vld [vmem:[%s1 + $0x2d8] sm:$0xf]
    %v3016 = vld [vmem:[%s1 + $0x2dc] sm:$0xf]
    %v3017 = vld [vmem:[%s1 + $0x2e0] sm:$0xf]
    %v3018 = vld [vmem:[%s1 + $0x2e4] sm:$0xf]
    %v3019 = vld [vmem:[%s1 + $0x2e8] sm:$0xf]
    %v3020 = vld [vmem:[%s1 + $0x2ec] sm:$0xf]
    %v3021 = vld [vmem:[%s1 + $0x2f0] sm:$0xf]
    %v3022 = vld [vmem:[%s1 + $0x2f4] sm:$0xf]
    %v3023 = vld [vmem:[%s1 + $0x2f8] sm:$0xf]
    %v3024 = vld [vmem:[%s1 + $0x2fc] sm:$0xf]
    %v3025 = vld [vmem:[%s1 + $0x300] sm:$0xf]
    %v3026 = vld [vmem:[%s1 + $0x304] sm:$0xf]
    %v3027 = vld [vmem:[%s1 + $0x308] sm:$0xf]
    %v3028 = vld [vmem:[%s1 + $0x30c] sm:$0xf]
    %v3029 = vld [vmem:[%s1 + $0x310] sm:$0xf]
    %v3030 = vld [vmem:[%s1 + $0x314] sm:$0xf]
    %v3031 = vld [vmem:[%s1 + $0x318] sm:$0xf]
    %v3032 = vld [vmem:[%s1 + $0x31c] sm:$0xf]
    %v3033 = vld [vmem:[%s1 + $0x320] sm:$0xf]
    %v3034 = vld [vmem:[%s1 + $0x324] sm:$0xf]
    %v3035 = vld [vmem:[%s1 + $0x328] sm:$0xf]
    %v3036 = vld [vmem:[%s1 + $0x32c] sm:$0xf]
    %v3037 = vld [vmem:[%s1 + $0x330] sm:$0xf]
    %v3038 = vld [vmem:[%s1 + $0x334] sm:$0xf]
    %v3039 = vld [vmem:[%s1 + $0x338] sm:$0xf]
    %v3040 = vld [vmem:[%s1 + $0x33c] sm:$0xf]
    %v3041 = vld [vmem:[%s1 + $0x340] sm:$0xf]
    %v3042 = vld [vmem:[%s1 + $0x344] sm:$0xf]
    %v3043 = vld [vmem:[%s1 + $0x348] sm:$0xf]
    %v3044 = vld [vmem:[%s1 + $0x34c] sm:$0xf]
    %v3045 = vld [vmem:[%s1 + $0x350] sm:$0xf]
    %v3046 = vld [vmem:[%s1 + $0x354] sm:$0xf]
    %v3047 = vld [vmem:[%s1 + $0x358] sm:$0xf]
    %v3048 = vld [vmem:[%s1 + $0x35c] sm:$0xf]
    %v3049 = vld [vmem:[%s1 + $0x360] sm:$0xf]
    %v3050 = vld [vmem:[%s1 + $0x364] sm:$0xf]
    %v3051 = vld [vmem:[%s1 + $0x368] sm:$0xf]
    %v3052 = vld [vmem:[%s1 + $0x36c] sm:$0xf]
    %v3053 = vld [vmem:[%s1 + $0x370] sm:$0xf]
    %v3054 = vld [vmem:[%s1 + $0x374] sm:$0xf]
    %v3055 = vld [vmem:[%s1 + $0x378] sm:$0xf]
    %v3056 = vld [vmem:[%s1 + $0x37c] sm:$0xf]
    %v3057 = vld [vmem:[%s1 + $0x380] sm:$0xf]
    %v3058 = vld [vmem:[%s1 + $0x384] sm:$0xf]
    %v3059 = vld [vmem:[%s1 + $0x388] sm:$0xf]
    %v3060 = vld [vmem:[%s1 + $0x38c] sm:$0xf]
    %v3061 = vld [vmem:[%s1 + $0x390] sm:$0xf]
    %v3062 = vld [vmem:[%s1 + $0x394] sm:$0xf]
    %v3063 = vld [vmem:[%s1 + $0x398] sm:$0xf]
    %v3064 = vld [vmem:[%s1 + $0x39c] sm:$0xf]
    %v3065 = vld [vmem:[%s1 + $0x3a0] sm:$0xf]
    %v3066 = vld [vmem:[%s1 + $0x3a4] sm:$0xf]
    %v3067 = vld [vmem:[%s1 + $0x3a8] sm:$0xf]
    %v3068 = vld [vmem:[%s1 + $0x3ac] sm:$0xf]
    %v3069 = vld [vmem:[%s1 + $0x3b0] sm:$0xf]
    %v3070 = vld [vmem:[%s1 + $0x3b4] sm:$0xf]
    %v3071 = vld [vmem:[%s1 + $0x3b8] sm:$0xf]
    %v3072 = vld [vmem:[%s1 + $0x3bc] sm:$0xf]
    %v3073 = vld [vmem:[%s1 + $0x3c0] sm:$0xf]
    %v3074 = vld [vmem:[%s1 + $0x3c4] sm:$0xf]
    %v3075 = vld [vmem:[%s1 + $0x3c8] sm:$0xf]
    %v3076 = vld [vmem:[%s1 + $0x3cc] sm:$0xf]
    %v3077 = vld [vmem:[%s1 + $0x3d0] sm:$0xf]
    %v3078 = vld [vmem:[%s1 + $0x3d4] sm:$0xf]
    %v3079 = vld [vmem:[%s1 + $0x3d8] sm:$0xf]
    %v3080 = vld [vmem:[%s1 + $0x3dc] sm:$0xf]
    %v3081 = vld [vmem:[%s1 + $0x3e0] sm:$0xf]
    %v3082 = vld [vmem:[%s1 + $0x3e4] sm:$0xf]
    %v3083 = vld [vmem:[%s1 + $0x3e8] sm:$0xf]
    %v3084 = vld [vmem:[%s1 + $0x3ec] sm:$0xf]
    %v3085 = vld [vmem:[%s1 + $0x3f0] sm:$0xf]
    %v3086 = vld [vmem:[%s1 + $0x3f4] sm:$0xf]
    %v3087 = vld [vmem:[%s1 + $0x3f8] sm:$0xf]
    %v3088 = vld [vmem:[%s1 + $0x3fc] sm:$0xf]
    %v3089 = vld [vmem:[%s2] sm:$0x1]
    %v3091 = vlaneseq
    %v3092 = vshrl.u32 %v3091, 7
    %v3093 = vsub.s32 0, %v3092
    %v3094 = vrot.slane %v3089, %v3093
    %v3352 = vunpack.c.l.b16 %v2577
    %v3353 = vunpack.c.h.b16 %v2577
    %v3354 = vunpack.c.l.b16 %v2578
    %v3355 = vunpack.c.h.b16 %v2578
    %v3356 = vunpack.c.l.b16 %v2579
    %v3357 = vunpack.c.h.b16 %v2579
    %v3358 = vunpack.c.l.b16 %v2580
    %v3359 = vunpack.c.h.b16 %v2580
    %v3360 = vunpack.c.l.b16 %v2581
    %v3361 = vunpack.c.h.b16 %v2581
    %v3362 = vunpack.c.l.b16 %v2582
    %v3363 = vunpack.c.h.b16 %v2582
    %v3364 = vunpack.c.l.b16 %v2583
    %v3365 = vunpack.c.h.b16 %v2583
    %v3366 = vunpack.c.l.b16 %v2584
    %v3367 = vunpack.c.h.b16 %v2584
    %v3368 = vunpack.c.l.b16 %v2585
    %v3369 = vunpack.c.h.b16 %v2585
    %v3370 = vunpack.c.l.b16 %v2586
    %v3371 = vunpack.c.h.b16 %v2586
    %v3372 = vunpack.c.l.b16 %v2587
    %v3373 = vunpack.c.h.b16 %v2587
    %v3374 = vunpack.c.l.b16 %v2588
    %v3375 = vunpack.c.h.b16 %v2588
    %v3376 = vunpack.c.l.b16 %v2589
    %v3377 = vunpack.c.h.b16 %v2589
    %v3378 = vunpack.c.l.b16 %v2590
    %v3379 = vunpack.c.h.b16 %v2590
    %v3380 = vunpack.c.l.b16 %v2591
    %v3381 = vunpack.c.h.b16 %v2591
    %v3382 = vunpack.c.l.b16 %v2592
    %v3383 = vunpack.c.h.b16 %v2592
    %v3384 = vunpack.c.l.b16 %v2593
    %v3385 = vunpack.c.h.b16 %v2593
    %v3386 = vunpack.c.l.b16 %v2594
    %v3387 = vunpack.c.h.b16 %v2594
    %v3388 = vunpack.c.l.b16 %v2595
    %v3389 = vunpack.c.h.b16 %v2595
    %v3390 = vunpack.c.l.b16 %v2596
    %v3391 = vunpack.c.h.b16 %v2596
    %v3392 = vunpack.c.l.b16 %v2597
    %v3393 = vunpack.c.h.b16 %v2597
    %v3394 = vunpack.c.l.b16 %v2598
    %v3395 = vunpack.c.h.b16 %v2598
    %v3396 = vunpack.c.l.b16 %v2599
    %v3397 = vunpack.c.h.b16 %v2599
    %v3398 = vunpack.c.l.b16 %v2600
    %v3399 = vunpack.c.h.b16 %v2600
    %v3400 = vunpack.c.l.b16 %v2601
    %v3401 = vunpack.c.h.b16 %v2601
    %v3402 = vunpack.c.l.b16 %v2602
    %v3403 = vunpack.c.h.b16 %v2602
    %v3404 = vunpack.c.l.b16 %v2603
    %v3405 = vunpack.c.h.b16 %v2603
    %v3406 = vunpack.c.l.b16 %v2604
    %v3407 = vunpack.c.h.b16 %v2604
    %v3408 = vunpack.c.l.b16 %v2605
    %v3409 = vunpack.c.h.b16 %v2605
    %v3410 = vunpack.c.l.b16 %v2606
    %v3411 = vunpack.c.h.b16 %v2606
    %v3412 = vunpack.c.l.b16 %v2607
    %v3413 = vunpack.c.h.b16 %v2607
    %v3414 = vunpack.c.l.b16 %v2608
    %v3415 = vunpack.c.h.b16 %v2608
    %v3416 = vunpack.c.l.b16 %v2609
    %v3417 = vunpack.c.h.b16 %v2609
    %v3418 = vunpack.c.l.b16 %v2610
    %v3419 = vunpack.c.h.b16 %v2610
    %v3420 = vunpack.c.l.b16 %v2611
    %v3421 = vunpack.c.h.b16 %v2611
    %v3422 = vunpack.c.l.b16 %v2612
    %v3423 = vunpack.c.h.b16 %v2612
    %v3424 = vunpack.c.l.b16 %v2613
    %v3425 = vunpack.c.h.b16 %v2613
    %v3426 = vunpack.c.l.b16 %v2614
    %v3427 = vunpack.c.h.b16 %v2614
    %v3428 = vunpack.c.l.b16 %v2615
    %v3429 = vunpack.c.h.b16 %v2615
    %v3430 = vunpack.c.l.b16 %v2616
    %v3431 = vunpack.c.h.b16 %v2616
    %v3432 = vunpack.c.l.b16 %v2617
    %v3433 = vunpack.c.h.b16 %v2617
    %v3434 = vunpack.c.l.b16 %v2618
    %v3435 = vunpack.c.h.b16 %v2618
    %v3436 = vunpack.c.l.b16 %v2619
    %v3437 = vunpack.c.h.b16 %v2619
    %v3438 = vunpack.c.l.b16 %v2620
    %v3439 = vunpack.c.h.b16 %v2620
    %v3440 = vunpack.c.l.b16 %v2621
    %v3441 = vunpack.c.h.b16 %v2621
    %v3442 = vunpack.c.l.b16 %v2622
    %v3443 = vunpack.c.h.b16 %v2622
    %v3444 = vunpack.c.l.b16 %v2623
    %v3445 = vunpack.c.h.b16 %v2623
    %v3446 = vunpack.c.l.b16 %v2624
    %v3447 = vunpack.c.h.b16 %v2624
    %v3448 = vunpack.c.l.b16 %v2625
    %v3449 = vunpack.c.h.b16 %v2625
    %v3450 = vunpack.c.l.b16 %v2626
    %v3451 = vunpack.c.h.b16 %v2626
    %v3452 = vunpack.c.l.b16 %v2627
    %v3453 = vunpack.c.h.b16 %v2627
    %v3454 = vunpack.c.l.b16 %v2628
    %v3455 = vunpack.c.h.b16 %v2628
    %v3456 = vunpack.c.l.b16 %v2629
    %v3457 = vunpack.c.h.b16 %v2629
    %v3458 = vunpack.c.l.b16 %v2630
    %v3459 = vunpack.c.h.b16 %v2630
    %v3460 = vunpack.c.l.b16 %v2631
    %v3461 = vunpack.c.h.b16 %v2631
    %v3462 = vunpack.c.l.b16 %v2632
    %v3463 = vunpack.c.h.b16 %v2632
    %v3464 = vunpack.c.l.b16 %v2633
    %v3465 = vunpack.c.h.b16 %v2633
    %v3466 = vunpack.c.l.b16 %v2634
    %v3467 = vunpack.c.h.b16 %v2634
    %v3468 = vunpack.c.l.b16 %v2635
    %v3469 = vunpack.c.h.b16 %v2635
    %v3470 = vunpack.c.l.b16 %v2636
    %v3471 = vunpack.c.h.b16 %v2636
    %v3472 = vunpack.c.l.b16 %v2637
    %v3473 = vunpack.c.h.b16 %v2637
    %v3474 = vunpack.c.l.b16 %v2638
    %v3475 = vunpack.c.h.b16 %v2638
    %v3476 = vunpack.c.l.b16 %v2639
    %v3477 = vunpack.c.h.b16 %v2639
    %v3478 = vunpack.c.l.b16 %v2640
    %v3479 = vunpack.c.h.b16 %v2640
    %v3480 = vunpack.c.l.b16 %v2641
    %v3481 = vunpack.c.h.b16 %v2641
    %v3482 = vunpack.c.l.b16 %v2642
    %v3483 = vunpack.c.h.b16 %v2642
    %v3484 = vunpack.c.l.b16 %v2643
    %v3485 = vunpack.c.h.b16 %v2643
    %v3486 = vunpack.c.l.b16 %v2644
    %v3487 = vunpack.c.h.b16 %v2644
    %v3488 = vunpack.c.l.b16 %v2645
    %v3489 = vunpack.c.h.b16 %v2645
    %v3490 = vunpack.c.l.b16 %v2646
    %v3491 = vunpack.c.h.b16 %v2646
    %v3492 = vunpack.c.l.b16 %v2647
    %v3493 = vunpack.c.h.b16 %v2647
    %v3494 = vunpack.c.l.b16 %v2648
    %v3495 = vunpack.c.h.b16 %v2648
    %v3496 = vunpack.c.l.b16 %v2649
    %v3497 = vunpack.c.h.b16 %v2649
    %v3498 = vunpack.c.l.b16 %v2650
    %v3499 = vunpack.c.h.b16 %v2650
    %v3500 = vunpack.c.l.b16 %v2651
    %v3501 = vunpack.c.h.b16 %v2651
    %v3502 = vunpack.c.l.b16 %v2652
    %v3503 = vunpack.c.h.b16 %v2652
    %v3504 = vunpack.c.l.b16 %v2653
    %v3505 = vunpack.c.h.b16 %v2653
    %v3506 = vunpack.c.l.b16 %v2654
    %v3507 = vunpack.c.h.b16 %v2654
    %v3508 = vunpack.c.l.b16 %v2655
    %v3509 = vunpack.c.h.b16 %v2655
    %v3510 = vunpack.c.l.b16 %v2656
    %v3511 = vunpack.c.h.b16 %v2656
    %v3512 = vunpack.c.l.b16 %v2657
    %v3513 = vunpack.c.h.b16 %v2657
    %v3514 = vunpack.c.l.b16 %v2658
    %v3515 = vunpack.c.h.b16 %v2658
    %v3516 = vunpack.c.l.b16 %v2659
    %v3517 = vunpack.c.h.b16 %v2659
    %v3518 = vunpack.c.l.b16 %v2660
    %v3519 = vunpack.c.h.b16 %v2660
    %v3520 = vunpack.c.l.b16 %v2661
    %v3521 = vunpack.c.h.b16 %v2661
    %v3522 = vunpack.c.l.b16 %v2662
    %v3523 = vunpack.c.h.b16 %v2662
    %v3524 = vunpack.c.l.b16 %v2663
    %v3525 = vunpack.c.h.b16 %v2663
    %v3526 = vunpack.c.l.b16 %v2664
    %v3527 = vunpack.c.h.b16 %v2664
    %v3528 = vunpack.c.l.b16 %v2665
    %v3529 = vunpack.c.h.b16 %v2665
    %v3530 = vunpack.c.l.b16 %v2666
    %v3531 = vunpack.c.h.b16 %v2666
    %v3532 = vunpack.c.l.b16 %v2667
    %v3533 = vunpack.c.h.b16 %v2667
    %v3534 = vunpack.c.l.b16 %v2668
    %v3535 = vunpack.c.h.b16 %v2668
    %v3536 = vunpack.c.l.b16 %v2669
    %v3537 = vunpack.c.h.b16 %v2669
    %v3538 = vunpack.c.l.b16 %v2670
    %v3539 = vunpack.c.h.b16 %v2670
    %v3540 = vunpack.c.l.b16 %v2671
    %v3541 = vunpack.c.h.b16 %v2671
    %v3542 = vunpack.c.l.b16 %v2672
    %v3543 = vunpack.c.h.b16 %v2672
    %v3544 = vunpack.c.l.b16 %v2673
    %v3545 = vunpack.c.h.b16 %v2673
    %v3546 = vunpack.c.l.b16 %v2674
    %v3547 = vunpack.c.h.b16 %v2674
    %v3548 = vunpack.c.l.b16 %v2675
    %v3549 = vunpack.c.h.b16 %v2675
    %v3550 = vunpack.c.l.b16 %v2676
    %v3551 = vunpack.c.h.b16 %v2676
    %v3552 = vunpack.c.l.b16 %v2677
    %v3553 = vunpack.c.h.b16 %v2677
    %v3554 = vunpack.c.l.b16 %v2678
    %v3555 = vunpack.c.h.b16 %v2678
    %v3556 = vunpack.c.l.b16 %v2679
    %v3557 = vunpack.c.h.b16 %v2679
    %v3558 = vunpack.c.l.b16 %v2680
    %v3559 = vunpack.c.h.b16 %v2680
    %v3560 = vunpack.c.l.b16 %v2681
    %v3561 = vunpack.c.h.b16 %v2681
    %v3562 = vunpack.c.l.b16 %v2682
    %v3563 = vunpack.c.h.b16 %v2682
    %v3564 = vunpack.c.l.b16 %v2683
    %v3565 = vunpack.c.h.b16 %v2683
    %v3566 = vunpack.c.l.b16 %v2684
    %v3567 = vunpack.c.h.b16 %v2684
    %v3568 = vunpack.c.l.b16 %v2685
    %v3569 = vunpack.c.h.b16 %v2685
    %v3570 = vunpack.c.l.b16 %v2686
    %v3571 = vunpack.c.h.b16 %v2686
    %v3572 = vunpack.c.l.b16 %v2687
    %v3573 = vunpack.c.h.b16 %v2687
    %v3574 = vunpack.c.l.b16 %v2688
    %v3575 = vunpack.c.h.b16 %v2688
    %v3576 = vunpack.c.l.b16 %v2689
    %v3577 = vunpack.c.h.b16 %v2689
    %v3578 = vunpack.c.l.b16 %v2690
    %v3579 = vunpack.c.h.b16 %v2690
    %v3580 = vunpack.c.l.b16 %v2691
    %v3581 = vunpack.c.h.b16 %v2691
    %v3582 = vunpack.c.l.b16 %v2692
    %v3583 = vunpack.c.h.b16 %v2692
    %v3584 = vunpack.c.l.b16 %v2693
    %v3585 = vunpack.c.h.b16 %v2693
    %v3586 = vunpack.c.l.b16 %v2694
    %v3587 = vunpack.c.h.b16 %v2694
    %v3588 = vunpack.c.l.b16 %v2695
    %v3589 = vunpack.c.h.b16 %v2695
    %v3590 = vunpack.c.l.b16 %v2696
    %v3591 = vunpack.c.h.b16 %v2696
    %v3592 = vunpack.c.l.b16 %v2697
    %v3593 = vunpack.c.h.b16 %v2697
    %v3594 = vunpack.c.l.b16 %v2698
    %v3595 = vunpack.c.h.b16 %v2698
    %v3596 = vunpack.c.l.b16 %v2699
    %v3597 = vunpack.c.h.b16 %v2699
    %v3598 = vunpack.c.l.b16 %v2700
    %v3599 = vunpack.c.h.b16 %v2700
    %v3600 = vunpack.c.l.b16 %v2701
    %v3601 = vunpack.c.h.b16 %v2701
    %v3602 = vunpack.c.l.b16 %v2702
    %v3603 = vunpack.c.h.b16 %v2702
    %v3604 = vunpack.c.l.b16 %v2703
    %v3605 = vunpack.c.h.b16 %v2703
    %v3606 = vunpack.c.l.b16 %v2704
    %v3607 = vunpack.c.h.b16 %v2704
    %v3608 = vunpack.c.l.b16 %v2705
    %v3609 = vunpack.c.h.b16 %v2705
    %v3610 = vunpack.c.l.b16 %v2706
    %v3611 = vunpack.c.h.b16 %v2706
    %v3612 = vunpack.c.l.b16 %v2707
    %v3613 = vunpack.c.h.b16 %v2707
    %v3614 = vunpack.c.l.b16 %v2708
    %v3615 = vunpack.c.h.b16 %v2708
    %v3616 = vunpack.c.l.b16 %v2709
    %v3617 = vunpack.c.h.b16 %v2709
    %v3618 = vunpack.c.l.b16 %v2710
    %v3619 = vunpack.c.h.b16 %v2710
    %v3620 = vunpack.c.l.b16 %v2711
    %v3621 = vunpack.c.h.b16 %v2711
    %v3622 = vunpack.c.l.b16 %v2712
    %v3623 = vunpack.c.h.b16 %v2712
    %v3624 = vunpack.c.l.b16 %v2713
    %v3625 = vunpack.c.h.b16 %v2713
    %v3626 = vunpack.c.l.b16 %v2714
    %v3627 = vunpack.c.h.b16 %v2714
    %v3628 = vunpack.c.l.b16 %v2715
    %v3629 = vunpack.c.h.b16 %v2715
    %v3630 = vunpack.c.l.b16 %v2716
    %v3631 = vunpack.c.h.b16 %v2716
    %v3632 = vunpack.c.l.b16 %v2717
    %v3633 = vunpack.c.h.b16 %v2717
    %v3634 = vunpack.c.l.b16 %v2718
    %v3635 = vunpack.c.h.b16 %v2718
    %v3636 = vunpack.c.l.b16 %v2719
    %v3637 = vunpack.c.h.b16 %v2719
    %v3638 = vunpack.c.l.b16 %v2720
    %v3639 = vunpack.c.h.b16 %v2720
    %v3640 = vunpack.c.l.b16 %v2721
    %v3641 = vunpack.c.h.b16 %v2721
    %v3642 = vunpack.c.l.b16 %v2722
    %v3643 = vunpack.c.h.b16 %v2722
    %v3644 = vunpack.c.l.b16 %v2723
    %v3645 = vunpack.c.h.b16 %v2723
    %v3646 = vunpack.c.l.b16 %v2724
    %v3647 = vunpack.c.h.b16 %v2724
    %v3648 = vunpack.c.l.b16 %v2725
    %v3649 = vunpack.c.h.b16 %v2725
    %v3650 = vunpack.c.l.b16 %v2726
    %v3651 = vunpack.c.h.b16 %v2726
    %v3652 = vunpack.c.l.b16 %v2727
    %v3653 = vunpack.c.h.b16 %v2727
    %v3654 = vunpack.c.l.b16 %v2728
    %v3655 = vunpack.c.h.b16 %v2728
    %v3656 = vunpack.c.l.b16 %v2729
    %v3657 = vunpack.c.h.b16 %v2729
    %v3658 = vunpack.c.l.b16 %v2730
    %v3659 = vunpack.c.h.b16 %v2730
    %v3660 = vunpack.c.l.b16 %v2731
    %v3661 = vunpack.c.h.b16 %v2731
    %v3662 = vunpack.c.l.b16 %v2732
    %v3663 = vunpack.c.h.b16 %v2732
    %v3664 = vunpack.c.l.b16 %v2733
    %v3665 = vunpack.c.h.b16 %v2733
    %v3666 = vunpack.c.l.b16 %v2734
    %v3667 = vunpack.c.h.b16 %v2734
    %v3668 = vunpack.c.l.b16 %v2735
    %v3669 = vunpack.c.h.b16 %v2735
    %v3670 = vunpack.c.l.b16 %v2736
    %v3671 = vunpack.c.h.b16 %v2736
    %v3672 = vunpack.c.l.b16 %v2737
    %v3673 = vunpack.c.h.b16 %v2737
    %v3674 = vunpack.c.l.b16 %v2738
    %v3675 = vunpack.c.h.b16 %v2738
    %v3676 = vunpack.c.l.b16 %v2739
    %v3677 = vunpack.c.h.b16 %v2739
    %v3678 = vunpack.c.l.b16 %v2740
    %v3679 = vunpack.c.h.b16 %v2740
    %v3680 = vunpack.c.l.b16 %v2741
    %v3681 = vunpack.c.h.b16 %v2741
    %v3682 = vunpack.c.l.b16 %v2742
    %v3683 = vunpack.c.h.b16 %v2742
    %v3684 = vunpack.c.l.b16 %v2743
    %v3685 = vunpack.c.h.b16 %v2743
    %v3686 = vunpack.c.l.b16 %v2744
    %v3687 = vunpack.c.h.b16 %v2744
    %v3688 = vunpack.c.l.b16 %v2745
    %v3689 = vunpack.c.h.b16 %v2745
    %v3690 = vunpack.c.l.b16 %v2746
    %v3691 = vunpack.c.h.b16 %v2746
    %v3692 = vunpack.c.l.b16 %v2747
    %v3693 = vunpack.c.h.b16 %v2747
    %v3694 = vunpack.c.l.b16 %v2748
    %v3695 = vunpack.c.h.b16 %v2748
    %v3696 = vunpack.c.l.b16 %v2749
    %v3697 = vunpack.c.h.b16 %v2749
    %v3698 = vunpack.c.l.b16 %v2750
    %v3699 = vunpack.c.h.b16 %v2750
    %v3700 = vunpack.c.l.b16 %v2751
    %v3701 = vunpack.c.h.b16 %v2751
    %v3702 = vunpack.c.l.b16 %v2752
    %v3703 = vunpack.c.h.b16 %v2752
    %v3704 = vunpack.c.l.b16 %v2753
    %v3705 = vunpack.c.h.b16 %v2753
    %v3706 = vunpack.c.l.b16 %v2754
    %v3707 = vunpack.c.h.b16 %v2754
    %v3708 = vunpack.c.l.b16 %v2755
    %v3709 = vunpack.c.h.b16 %v2755
    %v3710 = vunpack.c.l.b16 %v2756
    %v3711 = vunpack.c.h.b16 %v2756
    %v3712 = vunpack.c.l.b16 %v2757
    %v3713 = vunpack.c.h.b16 %v2757
    %v3714 = vunpack.c.l.b16 %v2758
    %v3715 = vunpack.c.h.b16 %v2758
    %v3716 = vunpack.c.l.b16 %v2759
    %v3717 = vunpack.c.h.b16 %v2759
    %v3718 = vunpack.c.l.b16 %v2760
    %v3719 = vunpack.c.h.b16 %v2760
    %v3720 = vunpack.c.l.b16 %v2761
    %v3721 = vunpack.c.h.b16 %v2761
    %v3722 = vunpack.c.l.b16 %v2762
    %v3723 = vunpack.c.h.b16 %v2762
    %v3724 = vunpack.c.l.b16 %v2763
    %v3725 = vunpack.c.h.b16 %v2763
    %v3726 = vunpack.c.l.b16 %v2764
    %v3727 = vunpack.c.h.b16 %v2764
    %v3728 = vunpack.c.l.b16 %v2765
    %v3729 = vunpack.c.h.b16 %v2765
    %v3730 = vunpack.c.l.b16 %v2766
    %v3731 = vunpack.c.h.b16 %v2766
    %v3732 = vunpack.c.l.b16 %v2767
    %v3733 = vunpack.c.h.b16 %v2767
    %v3734 = vunpack.c.l.b16 %v2768
    %v3735 = vunpack.c.h.b16 %v2768
    %v3736 = vunpack.c.l.b16 %v2769
    %v3737 = vunpack.c.h.b16 %v2769
    %v3738 = vunpack.c.l.b16 %v2770
    %v3739 = vunpack.c.h.b16 %v2770
    %v3740 = vunpack.c.l.b16 %v2771
    %v3741 = vunpack.c.h.b16 %v2771
    %v3742 = vunpack.c.l.b16 %v2772
    %v3743 = vunpack.c.h.b16 %v2772
    %v3744 = vunpack.c.l.b16 %v2773
    %v3745 = vunpack.c.h.b16 %v2773
    %v3746 = vunpack.c.l.b16 %v2774
    %v3747 = vunpack.c.h.b16 %v2774
    %v3748 = vunpack.c.l.b16 %v2775
    %v3749 = vunpack.c.h.b16 %v2775
    %v3750 = vunpack.c.l.b16 %v2776
    %v3751 = vunpack.c.h.b16 %v2776
    %v3752 = vunpack.c.l.b16 %v2777
    %v3753 = vunpack.c.h.b16 %v2777
    %v3754 = vunpack.c.l.b16 %v2778
    %v3755 = vunpack.c.h.b16 %v2778
    %v3756 = vunpack.c.l.b16 %v2779
    %v3757 = vunpack.c.h.b16 %v2779
    %v3758 = vunpack.c.l.b16 %v2780
    %v3759 = vunpack.c.h.b16 %v2780
    %v3760 = vunpack.c.l.b16 %v2781
    %v3761 = vunpack.c.h.b16 %v2781
    %v3762 = vunpack.c.l.b16 %v2782
    %v3763 = vunpack.c.h.b16 %v2782
    %v3764 = vunpack.c.l.b16 %v2783
    %v3765 = vunpack.c.h.b16 %v2783
    %v3766 = vunpack.c.l.b16 %v2784
    %v3767 = vunpack.c.h.b16 %v2784
    %v3768 = vunpack.c.l.b16 %v2785
    %v3769 = vunpack.c.h.b16 %v2785
    %v3770 = vunpack.c.l.b16 %v2786
    %v3771 = vunpack.c.h.b16 %v2786
    %v3772 = vunpack.c.l.b16 %v2787
    %v3773 = vunpack.c.h.b16 %v2787
    %v3774 = vunpack.c.l.b16 %v2788
    %v3775 = vunpack.c.h.b16 %v2788
    %v3776 = vunpack.c.l.b16 %v2789
    %v3777 = vunpack.c.h.b16 %v2789
    %v3778 = vunpack.c.l.b16 %v2790
    %v3779 = vunpack.c.h.b16 %v2790
    %v3780 = vunpack.c.l.b16 %v2791
    %v3781 = vunpack.c.h.b16 %v2791
    %v3782 = vunpack.c.l.b16 %v2792
    %v3783 = vunpack.c.h.b16 %v2792
    %v3784 = vunpack.c.l.b16 %v2793
    %v3785 = vunpack.c.h.b16 %v2793
    %v3786 = vunpack.c.l.b16 %v2794
    %v3787 = vunpack.c.h.b16 %v2794
    %v3788 = vunpack.c.l.b16 %v2795
    %v3789 = vunpack.c.h.b16 %v2795
    %v3790 = vunpack.c.l.b16 %v2796
    %v3791 = vunpack.c.h.b16 %v2796
    %v3792 = vunpack.c.l.b16 %v2797
    %v3793 = vunpack.c.h.b16 %v2797
    %v3794 = vunpack.c.l.b16 %v2798
    %v3795 = vunpack.c.h.b16 %v2798
    %v3796 = vunpack.c.l.b16 %v2799
    %v3797 = vunpack.c.h.b16 %v2799
    %v3798 = vunpack.c.l.b16 %v2800
    %v3799 = vunpack.c.h.b16 %v2800
    %v3800 = vunpack.c.l.b16 %v2801
    %v3801 = vunpack.c.h.b16 %v2801
    %v3802 = vunpack.c.l.b16 %v2802
    %v3803 = vunpack.c.h.b16 %v2802
    %v3804 = vunpack.c.l.b16 %v2803
    %v3805 = vunpack.c.h.b16 %v2803
    %v3806 = vunpack.c.l.b16 %v2804
    %v3807 = vunpack.c.h.b16 %v2804
    %v3808 = vunpack.c.l.b16 %v2805
    %v3809 = vunpack.c.h.b16 %v2805
    %v3810 = vunpack.c.l.b16 %v2806
    %v3811 = vunpack.c.h.b16 %v2806
    %v3812 = vunpack.c.l.b16 %v2807
    %v3813 = vunpack.c.h.b16 %v2807
    %v3814 = vunpack.c.l.b16 %v2808
    %v3815 = vunpack.c.h.b16 %v2808
    %v3816 = vunpack.c.l.b16 %v2809
    %v3817 = vunpack.c.h.b16 %v2809
    %v3818 = vunpack.c.l.b16 %v2810
    %v3819 = vunpack.c.h.b16 %v2810
    %v3820 = vunpack.c.l.b16 %v2811
    %v3821 = vunpack.c.h.b16 %v2811
    %v3822 = vunpack.c.l.b16 %v2812
    %v3823 = vunpack.c.h.b16 %v2812
    %v3824 = vunpack.c.l.b16 %v2813
    %v3825 = vunpack.c.h.b16 %v2813
    %v3826 = vunpack.c.l.b16 %v2814
    %v3827 = vunpack.c.h.b16 %v2814
    %v3828 = vunpack.c.l.b16 %v2815
    %v3829 = vunpack.c.h.b16 %v2815
    %v3830 = vunpack.c.l.b16 %v2816
    %v3831 = vunpack.c.h.b16 %v2816
    %v3832 = vunpack.c.l.b16 %v2817
    %v3833 = vunpack.c.h.b16 %v2817
    %v3834 = vunpack.c.l.b16 %v2818
    %v3835 = vunpack.c.h.b16 %v2818
    %v3836 = vunpack.c.l.b16 %v2819
    %v3837 = vunpack.c.h.b16 %v2819
    %v3838 = vunpack.c.l.b16 %v2820
    %v3839 = vunpack.c.h.b16 %v2820
    %v3840 = vunpack.c.l.b16 %v2821
    %v3841 = vunpack.c.h.b16 %v2821
    %v3842 = vunpack.c.l.b16 %v2822
    %v3843 = vunpack.c.h.b16 %v2822
    %v3844 = vunpack.c.l.b16 %v2823
    %v3845 = vunpack.c.h.b16 %v2823
    %v3846 = vunpack.c.l.b16 %v2824
    %v3847 = vunpack.c.h.b16 %v2824
    %v3848 = vunpack.c.l.b16 %v2825
    %v3849 = vunpack.c.h.b16 %v2825
    %v3850 = vunpack.c.l.b16 %v2826
    %v3851 = vunpack.c.h.b16 %v2826
    %v3852 = vunpack.c.l.b16 %v2827
    %v3853 = vunpack.c.h.b16 %v2827
    %v3854 = vunpack.c.l.b16 %v2828
    %v3855 = vunpack.c.h.b16 %v2828
    %v3856 = vunpack.c.l.b16 %v2829
    %v3857 = vunpack.c.h.b16 %v2829
    %v3858 = vunpack.c.l.b16 %v2830
    %v3859 = vunpack.c.h.b16 %v2830
    %v3860 = vunpack.c.l.b16 %v2831
    %v3861 = vunpack.c.h.b16 %v2831
    %v3862 = vunpack.c.l.b16 %v2832
    %v3863 = vunpack.c.h.b16 %v2832
    %v3864 = vlaneseq
    %v3865 = vand.u32 %v3864, 127
    %v3866 = vlaneseq
    %v3867 = vshrl.u32 %v3866, 7
    %v3868 = vsub.s32 %v3865, %v3867
    %v3869 = vrot.slane %v3352, %v3868
    %v3870 = vadd.s32 %v3865, 4294967288
    %v3871 = vlaneseq
    %v3872 = vshrl.u32 %v3871, 7
    %v3873 = vsub.s32 %v3870, %v3872
    %v3874 = vrot.slane %v3353, %v3873
    %vm3875 = vcmask 130112
    %v3876 = vsel %vm3875, %v3874, %v3869
    %v3877 = vadd.s32 %v3865, 4294967280
    %v3878 = vlaneseq
    %v3879 = vshrl.u32 %v3878, 7
    %v3880 = vsub.s32 %v3877, %v3879
    %v3881 = vrot.slane %v3354, %v3880
    %vm3882 = vcmask 195712
    %v3883 = vsel %vm3882, %v3881, %v3876
    %v3884 = vadd.s32 %v3865, 4294967272
    %v3885 = vlaneseq
    %v3886 = vshrl.u32 %v3885, 7
    %v3887 = vsub.s32 %v3884, %v3886
    %v3888 = vrot.slane %v3355, %v3887
    %vm3889 = vcmask 261312
    %v3890 = vsel %vm3889, %v3888, %v3883
    %v3891 = vadd.s32 %v3865, 4294967264
    %v3892 = vlaneseq
    %v3893 = vshrl.u32 %v3892, 7
    %v3894 = vsub.s32 %v3891, %v3893
    %v3895 = vrot.slane %v3356, %v3894
    %vm3896 = vcmask 326912
    %v3897 = vsel %vm3896, %v3895, %v3890
    %v3898 = vadd.s32 %v3865, 4294967256
    %v3899 = vlaneseq
    %v3900 = vshrl.u32 %v3899, 7
    %v3901 = vsub.s32 %v3898, %v3900
    %v3902 = vrot.slane %v3357, %v3901
    %vm3903 = vcmask 392512
    %v3904 = vsel %vm3903, %v3902, %v3897
    %v3905 = vadd.s32 %v3865, 4294967248
    %v3906 = vlaneseq
    %v3907 = vshrl.u32 %v3906, 7
    %v3908 = vsub.s32 %v3905, %v3907
    %v3909 = vrot.slane %v3358, %v3908
    %vm3910 = vcmask 458112
    %v3911 = vsel %vm3910, %v3909, %v3904
    %v3912 = vadd.s32 %v3865, 4294967240
    %v3913 = vlaneseq
    %v3914 = vshrl.u32 %v3913, 7
    %v3915 = vsub.s32 %v3912, %v3914
    %v3916 = vrot.slane %v3359, %v3915
    %vm3917 = vcmask 523712
    %v3918 = vsel %vm3917, %v3916, %v3911
    %v3919 = vadd.s32 %v3865, 4294967232
    %v3920 = vlaneseq
    %v3921 = vshrl.u32 %v3920, 7
    %v3922 = vsub.s32 %v3919, %v3921
    %v3923 = vrot.slane %v3360, %v3922
    %vm3924 = vcmask 589312
    %v3925 = vsel %vm3924, %v3923, %v3918
    %v3926 = vadd.s32 %v3865, 4294967224
    %v3927 = vlaneseq
    %v3928 = vshrl.u32 %v3927, 7
    %v3929 = vsub.s32 %v3926, %v3928
    %v3930 = vrot.slane %v3361, %v3929
    %vm3931 = vcmask 654912
    %v3932 = vsel %vm3931, %v3930, %v3925
    %v3933 = vadd.s32 %v3865, 4294967216
    %v3934 = vlaneseq
    %v3935 = vshrl.u32 %v3934, 7
    %v3936 = vsub.s32 %v3933, %v3935
    %v3937 = vrot.slane %v3362, %v3936
    %vm3938 = vcmask 720512
    %v3939 = vsel %vm3938, %v3937, %v3932
    %v3940 = vadd.s32 %v3865, 4294967208
    %v3941 = vlaneseq
    %v3942 = vshrl.u32 %v3941, 7
    %v3943 = vsub.s32 %v3940, %v3942
    %v3944 = vrot.slane %v3363, %v3943
    %vm3945 = vcmask 786112
    %v3946 = vsel %vm3945, %v3944, %v3939
    %v3947 = vadd.s32 %v3865, 4294967200
    %v3948 = vlaneseq
    %v3949 = vshrl.u32 %v3948, 7
    %v3950 = vsub.s32 %v3947, %v3949
    %v3951 = vrot.slane %v3364, %v3950
    %vm3952 = vcmask 851712
    %v3953 = vsel %vm3952, %v3951, %v3946
    %v3954 = vadd.s32 %v3865, 4294967192
    %v3955 = vlaneseq
    %v3956 = vshrl.u32 %v3955, 7
    %v3957 = vsub.s32 %v3954, %v3956
    %v3958 = vrot.slane %v3365, %v3957
    %vm3959 = vcmask 917312
    %v3960 = vsel %vm3959, %v3958, %v3953
    %v3961 = vadd.s32 %v3865, 4294967184
    %v3962 = vlaneseq
    %v3963 = vshrl.u32 %v3962, 7
    %v3964 = vsub.s32 %v3961, %v3963
    %v3965 = vrot.slane %v3366, %v3964
    %vm3966 = vcmask 982912
    %v3967 = vsel %vm3966, %v3965, %v3960
    %v3968 = vadd.s32 %v3865, 4294967176
    %v3969 = vlaneseq
    %v3970 = vshrl.u32 %v3969, 7
    %v3971 = vsub.s32 %v3968, %v3970
    %v3972 = vrot.slane %v3367, %v3971
    %vm3973 = vcmask 1048512
    %v3974 = vsel %vm3973, %v3972, %v3967
    %v3975 = vlaneseq
    %v3976 = vshrl.u32 %v3975, 7
    %v3977 = vsub.s32 %v3865, %v3976
    %v3978 = vrot.slane %v3368, %v3977
    %v3979 = vlaneseq
    %v3980 = vshrl.u32 %v3979, 7
    %v3981 = vsub.s32 %v3870, %v3980
    %v3982 = vrot.slane %v3369, %v3981
    %v3983 = vsel %vm3875, %v3982, %v3978
    %v3984 = vlaneseq
    %v3985 = vshrl.u32 %v3984, 7
    %v3986 = vsub.s32 %v3877, %v3985
    %v3987 = vrot.slane %v3370, %v3986
    %v3988 = vsel %vm3882, %v3987, %v3983
    %v3989 = vlaneseq
    %v3990 = vshrl.u32 %v3989, 7
    %v3991 = vsub.s32 %v3884, %v3990
    %v3992 = vrot.slane %v3371, %v3991
    %v3993 = vsel %vm3889, %v3992, %v3988
    %v3994 = vlaneseq
    %v3995 = vshrl.u32 %v3994, 7
    %v3996 = vsub.s32 %v3891, %v3995
    %v3997 = vrot.slane %v3372, %v3996
    %v3998 = vsel %vm3896, %v3997, %v3993
    %v3999 = vlaneseq
    %v4000 = vshrl.u32 %v3999, 7
    %v4001 = vsub.s32 %v3898, %v4000
    %v4002 = vrot.slane %v3373, %v4001
    %v4003 = vsel %vm3903, %v4002, %v3998
    %v4004 = vlaneseq
    %v4005 = vshrl.u32 %v4004, 7
    %v4006 = vsub.s32 %v3905, %v4005
    %v4007 = vrot.slane %v3374, %v4006
    %v4008 = vsel %vm3910, %v4007, %v4003
    %v4009 = vlaneseq
    %v4010 = vshrl.u32 %v4009, 7
    %v4011 = vsub.s32 %v3912, %v4010
    %v4012 = vrot.slane %v3375, %v4011
    %v4013 = vsel %vm3917, %v4012, %v4008
    %v4014 = vlaneseq
    %v4015 = vshrl.u32 %v4014, 7
    %v4016 = vsub.s32 %v3919, %v4015
    %v4017 = vrot.slane %v3376, %v4016
    %v4018 = vsel %vm3924, %v4017, %v4013
    %v4019 = vlaneseq
    %v4020 = vshrl.u32 %v4019, 7
    %v4021 = vsub.s32 %v3926, %v4020
    %v4022 = vrot.slane %v3377, %v4021
    %v4023 = vsel %vm3931, %v4022, %v4018
    %v4024 = vlaneseq
    %v4025 = vshrl.u32 %v4024, 7
    %v4026 = vsub.s32 %v3933, %v4025
    %v4027 = vrot.slane %v3378, %v4026
    %v4028 = vsel %vm3938, %v4027, %v4023
    %v4029 = vlaneseq
    %v4030 = vshrl.u32 %v4029, 7
    %v4031 = vsub.s32 %v3940, %v4030
    %v4032 = vrot.slane %v3379, %v4031
    %v4033 = vsel %vm3945, %v4032, %v4028
    %v4034 = vlaneseq
    %v4035 = vshrl.u32 %v4034, 7
    %v4036 = vsub.s32 %v3947, %v4035
    %v4037 = vrot.slane %v3380, %v4036
    %v4038 = vsel %vm3952, %v4037, %v4033
    %v4039 = vlaneseq
    %v4040 = vshrl.u32 %v4039, 7
    %v4041 = vsub.s32 %v3954, %v4040
    %v4042 = vrot.slane %v3381, %v4041
    %v4043 = vsel %vm3959, %v4042, %v4038
    %v4044 = vlaneseq
    %v4045 = vshrl.u32 %v4044, 7
    %v4046 = vsub.s32 %v3961, %v4045
    %v4047 = vrot.slane %v3382, %v4046
    %v4048 = vsel %vm3966, %v4047, %v4043
    %v4049 = vlaneseq
    %v4050 = vshrl.u32 %v4049, 7
    %v4051 = vsub.s32 %v3968, %v4050
    %v4052 = vrot.slane %v3383, %v4051
    %v4053 = vsel %vm3973, %v4052, %v4048
    %v4054 = vlaneseq
    %v4055 = vshrl.u32 %v4054, 7
    %v4056 = vsub.s32 %v3865, %v4055
    %v4057 = vrot.slane %v3384, %v4056
    %v4058 = vlaneseq
    %v4059 = vshrl.u32 %v4058, 7
    %v4060 = vsub.s32 %v3870, %v4059
    %v4061 = vrot.slane %v3385, %v4060
    %v4062 = vsel %vm3875, %v4061, %v4057
    %v4063 = vlaneseq
    %v4064 = vshrl.u32 %v4063, 7
    %v4065 = vsub.s32 %v3877, %v4064
    %v4066 = vrot.slane %v3386, %v4065
    %v4067 = vsel %vm3882, %v4066, %v4062
    %v4068 = vlaneseq
    %v4069 = vshrl.u32 %v4068, 7
    %v4070 = vsub.s32 %v3884, %v4069
    %v4071 = vrot.slane %v3387, %v4070
    %v4072 = vsel %vm3889, %v4071, %v4067
    %v4073 = vlaneseq
    %v4074 = vshrl.u32 %v4073, 7
    %v4075 = vsub.s32 %v3891, %v4074
    %v4076 = vrot.slane %v3388, %v4075
    %v4077 = vsel %vm3896, %v4076, %v4072
    %v4078 = vlaneseq
    %v4079 = vshrl.u32 %v4078, 7
    %v4080 = vsub.s32 %v3898, %v4079
    %v4081 = vrot.slane %v3389, %v4080
    %v4082 = vsel %vm3903, %v4081, %v4077
    %v4083 = vlaneseq
    %v4084 = vshrl.u32 %v4083, 7
    %v4085 = vsub.s32 %v3905, %v4084
    %v4086 = vrot.slane %v3390, %v4085
    %v4087 = vsel %vm3910, %v4086, %v4082
    %v4088 = vlaneseq
    %v4089 = vshrl.u32 %v4088, 7
    %v4090 = vsub.s32 %v3912, %v4089
    %v4091 = vrot.slane %v3391, %v4090
    %v4092 = vsel %vm3917, %v4091, %v4087
    %v4093 = vlaneseq
    %v4094 = vshrl.u32 %v4093, 7
    %v4095 = vsub.s32 %v3919, %v4094
    %v4096 = vrot.slane %v3392, %v4095
    %v4097 = vsel %vm3924, %v4096, %v4092
    %v4098 = vlaneseq
    %v4099 = vshrl.u32 %v4098, 7
    %v4100 = vsub.s32 %v3926, %v4099
    %v4101 = vrot.slane %v3393, %v4100
    %v4102 = vsel %vm3931, %v4101, %v4097
    %v4103 = vlaneseq
    %v4104 = vshrl.u32 %v4103, 7
    %v4105 = vsub.s32 %v3933, %v4104
    %v4106 = vrot.slane %v3394, %v4105
    %v4107 = vsel %vm3938, %v4106, %v4102
    %v4108 = vlaneseq
    %v4109 = vshrl.u32 %v4108, 7
    %v4110 = vsub.s32 %v3940, %v4109
    %v4111 = vrot.slane %v3395, %v4110
    %v4112 = vsel %vm3945, %v4111, %v4107
    %v4113 = vlaneseq
    %v4114 = vshrl.u32 %v4113, 7
    %v4115 = vsub.s32 %v3947, %v4114
    %v4116 = vrot.slane %v3396, %v4115
    %v4117 = vsel %vm3952, %v4116, %v4112
    %v4118 = vlaneseq
    %v4119 = vshrl.u32 %v4118, 7
    %v4120 = vsub.s32 %v3954, %v4119
    %v4121 = vrot.slane %v3397, %v4120
    %v4122 = vsel %vm3959, %v4121, %v4117
    %v4123 = vlaneseq
    %v4124 = vshrl.u32 %v4123, 7
    %v4125 = vsub.s32 %v3961, %v4124
    %v4126 = vrot.slane %v3398, %v4125
    %v4127 = vsel %vm3966, %v4126, %v4122
    %v4128 = vlaneseq
    %v4129 = vshrl.u32 %v4128, 7
    %v4130 = vsub.s32 %v3968, %v4129
    %v4131 = vrot.slane %v3399, %v4130
    %v4132 = vsel %vm3973, %v4131, %v4127
    %v4133 = vlaneseq
    %v4134 = vshrl.u32 %v4133, 7
    %v4135 = vsub.s32 %v3865, %v4134
    %v4136 = vrot.slane %v3400, %v4135
    %v4137 = vlaneseq
    %v4138 = vshrl.u32 %v4137, 7
    %v4139 = vsub.s32 %v3870, %v4138
    %v4140 = vrot.slane %v3401, %v4139
    %v4141 = vsel %vm3875, %v4140, %v4136
    %v4142 = vlaneseq
    %v4143 = vshrl.u32 %v4142, 7
    %v4144 = vsub.s32 %v3877, %v4143
    %v4145 = vrot.slane %v3402, %v4144
    %v4146 = vsel %vm3882, %v4145, %v4141
    %v4147 = vlaneseq
    %v4148 = vshrl.u32 %v4147, 7
    %v4149 = vsub.s32 %v3884, %v4148
    %v4150 = vrot.slane %v3403, %v4149
    %v4151 = vsel %vm3889, %v4150, %v4146
    %v4152 = vlaneseq
    %v4153 = vshrl.u32 %v4152, 7
    %v4154 = vsub.s32 %v3891, %v4153
    %v4155 = vrot.slane %v3404, %v4154
    %v4156 = vsel %vm3896, %v4155, %v4151
    %v4157 = vlaneseq
    %v4158 = vshrl.u32 %v4157, 7
    %v4159 = vsub.s32 %v3898, %v4158
    %v4160 = vrot.slane %v3405, %v4159
    %v4161 = vsel %vm3903, %v4160, %v4156
    %v4162 = vlaneseq
    %v4163 = vshrl.u32 %v4162, 7
    %v4164 = vsub.s32 %v3905, %v4163
    %v4165 = vrot.slane %v3406, %v4164
    %v4166 = vsel %vm3910, %v4165, %v4161
    %v4167 = vlaneseq
    %v4168 = vshrl.u32 %v4167, 7
    %v4169 = vsub.s32 %v3912, %v4168
    %v4170 = vrot.slane %v3407, %v4169
    %v4171 = vsel %vm3917, %v4170, %v4166
    %v4172 = vlaneseq
    %v4173 = vshrl.u32 %v4172, 7
    %v4174 = vsub.s32 %v3919, %v4173
    %v4175 = vrot.slane %v3408, %v4174
    %v4176 = vsel %vm3924, %v4175, %v4171
    %v4177 = vlaneseq
    %v4178 = vshrl.u32 %v4177, 7
    %v4179 = vsub.s32 %v3926, %v4178
    %v4180 = vrot.slane %v3409, %v4179
    %v4181 = vsel %vm3931, %v4180, %v4176
    %v4182 = vlaneseq
    %v4183 = vshrl.u32 %v4182, 7
    %v4184 = vsub.s32 %v3933, %v4183
    %v4185 = vrot.slane %v3410, %v4184
    %v4186 = vsel %vm3938, %v4185, %v4181
    %v4187 = vlaneseq
    %v4188 = vshrl.u32 %v4187, 7
    %v4189 = vsub.s32 %v3940, %v4188
    %v4190 = vrot.slane %v3411, %v4189
    %v4191 = vsel %vm3945, %v4190, %v4186
    %v4192 = vlaneseq
    %v4193 = vshrl.u32 %v4192, 7
    %v4194 = vsub.s32 %v3947, %v4193
    %v4195 = vrot.slane %v3412, %v4194
    %v4196 = vsel %vm3952, %v4195, %v4191
    %v4197 = vlaneseq
    %v4198 = vshrl.u32 %v4197, 7
    %v4199 = vsub.s32 %v3954, %v4198
    %v4200 = vrot.slane %v3413, %v4199
    %v4201 = vsel %vm3959, %v4200, %v4196
    %v4202 = vlaneseq
    %v4203 = vshrl.u32 %v4202, 7
    %v4204 = vsub.s32 %v3961, %v4203
    %v4205 = vrot.slane %v3414, %v4204
    %v4206 = vsel %vm3966, %v4205, %v4201
    %v4207 = vlaneseq
    %v4208 = vshrl.u32 %v4207, 7
    %v4209 = vsub.s32 %v3968, %v4208
    %v4210 = vrot.slane %v3415, %v4209
    %v4211 = vsel %vm3973, %v4210, %v4206
    %v4212 = vlaneseq
    %v4213 = vshrl.u32 %v4212, 7
    %v4214 = vsub.s32 %v3865, %v4213
    %v4215 = vrot.slane %v3416, %v4214
    %v4216 = vlaneseq
    %v4217 = vshrl.u32 %v4216, 7
    %v4218 = vsub.s32 %v3870, %v4217
    %v4219 = vrot.slane %v3417, %v4218
    %v4220 = vsel %vm3875, %v4219, %v4215
    %v4221 = vlaneseq
    %v4222 = vshrl.u32 %v4221, 7
    %v4223 = vsub.s32 %v3877, %v4222
    %v4224 = vrot.slane %v3418, %v4223
    %v4225 = vsel %vm3882, %v4224, %v4220
    %v4226 = vlaneseq
    %v4227 = vshrl.u32 %v4226, 7
    %v4228 = vsub.s32 %v3884, %v4227
    %v4229 = vrot.slane %v3419, %v4228
    %v4230 = vsel %vm3889, %v4229, %v4225
    %v4231 = vlaneseq
    %v4232 = vshrl.u32 %v4231, 7
    %v4233 = vsub.s32 %v3891, %v4232
    %v4234 = vrot.slane %v3420, %v4233
    %v4235 = vsel %vm3896, %v4234, %v4230
    %v4236 = vlaneseq
    %v4237 = vshrl.u32 %v4236, 7
    %v4238 = vsub.s32 %v3898, %v4237
    %v4239 = vrot.slane %v3421, %v4238
    %v4240 = vsel %vm3903, %v4239, %v4235
    %v4241 = vlaneseq
    %v4242 = vshrl.u32 %v4241, 7
    %v4243 = vsub.s32 %v3905, %v4242
    %v4244 = vrot.slane %v3422, %v4243
    %v4245 = vsel %vm3910, %v4244, %v4240
    %v4246 = vlaneseq
    %v4247 = vshrl.u32 %v4246, 7
    %v4248 = vsub.s32 %v3912, %v4247
    %v4249 = vrot.slane %v3423, %v4248
    %v4250 = vsel %vm3917, %v4249, %v4245
    %v4251 = vlaneseq
    %v4252 = vshrl.u32 %v4251, 7
    %v4253 = vsub.s32 %v3919, %v4252
    %v4254 = vrot.slane %v3424, %v4253
    %v4255 = vsel %vm3924, %v4254, %v4250
    %v4256 = vlaneseq
    %v4257 = vshrl.u32 %v4256, 7
    %v4258 = vsub.s32 %v3926, %v4257
    %v4259 = vrot.slane %v3425, %v4258
    %v4260 = vsel %vm3931, %v4259, %v4255
    %v4261 = vlaneseq
    %v4262 = vshrl.u32 %v4261, 7
    %v4263 = vsub.s32 %v3933, %v4262
    %v4264 = vrot.slane %v3426, %v4263
    %v4265 = vsel %vm3938, %v4264, %v4260
    %v4266 = vlaneseq
    %v4267 = vshrl.u32 %v4266, 7
    %v4268 = vsub.s32 %v3940, %v4267
    %v4269 = vrot.slane %v3427, %v4268
    %v4270 = vsel %vm3945, %v4269, %v4265
    %v4271 = vlaneseq
    %v4272 = vshrl.u32 %v4271, 7
    %v4273 = vsub.s32 %v3947, %v4272
    %v4274 = vrot.slane %v3428, %v4273
    %v4275 = vsel %vm3952, %v4274, %v4270
    %v4276 = vlaneseq
    %v4277 = vshrl.u32 %v4276, 7
    %v4278 = vsub.s32 %v3954, %v4277
    %v4279 = vrot.slane %v3429, %v4278
    %v4280 = vsel %vm3959, %v4279, %v4275
    %v4281 = vlaneseq
    %v4282 = vshrl.u32 %v4281, 7
    %v4283 = vsub.s32 %v3961, %v4282
    %v4284 = vrot.slane %v3430, %v4283
    %v4285 = vsel %vm3966, %v4284, %v4280
    %v4286 = vlaneseq
    %v4287 = vshrl.u32 %v4286, 7
    %v4288 = vsub.s32 %v3968, %v4287
    %v4289 = vrot.slane %v3431, %v4288
    %v4290 = vsel %vm3973, %v4289, %v4285
    %v4291 = vlaneseq
    %v4292 = vshrl.u32 %v4291, 7
    %v4293 = vsub.s32 %v3865, %v4292
    %v4294 = vrot.slane %v3432, %v4293
    %v4295 = vlaneseq
    %v4296 = vshrl.u32 %v4295, 7
    %v4297 = vsub.s32 %v3870, %v4296
    %v4298 = vrot.slane %v3433, %v4297
    %v4299 = vsel %vm3875, %v4298, %v4294
    %v4300 = vlaneseq
    %v4301 = vshrl.u32 %v4300, 7
    %v4302 = vsub.s32 %v3877, %v4301
    %v4303 = vrot.slane %v3434, %v4302
    %v4304 = vsel %vm3882, %v4303, %v4299
    %v4305 = vlaneseq
    %v4306 = vshrl.u32 %v4305, 7
    %v4307 = vsub.s32 %v3884, %v4306
    %v4308 = vrot.slane %v3435, %v4307
    %v4309 = vsel %vm3889, %v4308, %v4304
    %v4310 = vlaneseq
    %v4311 = vshrl.u32 %v4310, 7
    %v4312 = vsub.s32 %v3891, %v4311
    %v4313 = vrot.slane %v3436, %v4312
    %v4314 = vsel %vm3896, %v4313, %v4309
    %v4315 = vlaneseq
    %v4316 = vshrl.u32 %v4315, 7
    %v4317 = vsub.s32 %v3898, %v4316
    %v4318 = vrot.slane %v3437, %v4317
    %v4319 = vsel %vm3903, %v4318, %v4314
    %v4320 = vlaneseq
    %v4321 = vshrl.u32 %v4320, 7
    %v4322 = vsub.s32 %v3905, %v4321
    %v4323 = vrot.slane %v3438, %v4322
    %v4324 = vsel %vm3910, %v4323, %v4319
    %v4325 = vlaneseq
    %v4326 = vshrl.u32 %v4325, 7
    %v4327 = vsub.s32 %v3912, %v4326
    %v4328 = vrot.slane %v3439, %v4327
    %v4329 = vsel %vm3917, %v4328, %v4324
    %v4330 = vlaneseq
    %v4331 = vshrl.u32 %v4330, 7
    %v4332 = vsub.s32 %v3919, %v4331
    %v4333 = vrot.slane %v3440, %v4332
    %v4334 = vsel %vm3924, %v4333, %v4329
    %v4335 = vlaneseq
    %v4336 = vshrl.u32 %v4335, 7
    %v4337 = vsub.s32 %v3926, %v4336
    %v4338 = vrot.slane %v3441, %v4337
    %v4339 = vsel %vm3931, %v4338, %v4334
    %v4340 = vlaneseq
    %v4341 = vshrl.u32 %v4340, 7
    %v4342 = vsub.s32 %v3933, %v4341
    %v4343 = vrot.slane %v3442, %v4342
    %v4344 = vsel %vm3938, %v4343, %v4339
    %v4345 = vlaneseq
    %v4346 = vshrl.u32 %v4345, 7
    %v4347 = vsub.s32 %v3940, %v4346
    %v4348 = vrot.slane %v3443, %v4347
    %v4349 = vsel %vm3945, %v4348, %v4344
    %v4350 = vlaneseq
    %v4351 = vshrl.u32 %v4350, 7
    %v4352 = vsub.s32 %v3947, %v4351
    %v4353 = vrot.slane %v3444, %v4352
    %v4354 = vsel %vm3952, %v4353, %v4349
    %v4355 = vlaneseq
    %v4356 = vshrl.u32 %v4355, 7
    %v4357 = vsub.s32 %v3954, %v4356
    %v4358 = vrot.slane %v3445, %v4357
    %v4359 = vsel %vm3959, %v4358, %v4354
    %v4360 = vlaneseq
    %v4361 = vshrl.u32 %v4360, 7
    %v4362 = vsub.s32 %v3961, %v4361
    %v4363 = vrot.slane %v3446, %v4362
    %v4364 = vsel %vm3966, %v4363, %v4359
    %v4365 = vlaneseq
    %v4366 = vshrl.u32 %v4365, 7
    %v4367 = vsub.s32 %v3968, %v4366
    %v4368 = vrot.slane %v3447, %v4367
    %v4369 = vsel %vm3973, %v4368, %v4364
    %v4370 = vlaneseq
    %v4371 = vshrl.u32 %v4370, 7
    %v4372 = vsub.s32 %v3865, %v4371
    %v4373 = vrot.slane %v3448, %v4372
    %v4374 = vlaneseq
    %v4375 = vshrl.u32 %v4374, 7
    %v4376 = vsub.s32 %v3870, %v4375
    %v4377 = vrot.slane %v3449, %v4376
    %v4378 = vsel %vm3875, %v4377, %v4373
    %v4379 = vlaneseq
    %v4380 = vshrl.u32 %v4379, 7
    %v4381 = vsub.s32 %v3877, %v4380
    %v4382 = vrot.slane %v3450, %v4381
    %v4383 = vsel %vm3882, %v4382, %v4378
    %v4384 = vlaneseq
    %v4385 = vshrl.u32 %v4384, 7
    %v4386 = vsub.s32 %v3884, %v4385
    %v4387 = vrot.slane %v3451, %v4386
    %v4388 = vsel %vm3889, %v4387, %v4383
    %v4389 = vlaneseq
    %v4390 = vshrl.u32 %v4389, 7
    %v4391 = vsub.s32 %v3891, %v4390
    %v4392 = vrot.slane %v3452, %v4391
    %v4393 = vsel %vm3896, %v4392, %v4388
    %v4394 = vlaneseq
    %v4395 = vshrl.u32 %v4394, 7
    %v4396 = vsub.s32 %v3898, %v4395
    %v4397 = vrot.slane %v3453, %v4396
    %v4398 = vsel %vm3903, %v4397, %v4393
    %v4399 = vlaneseq
    %v4400 = vshrl.u32 %v4399, 7
    %v4401 = vsub.s32 %v3905, %v4400
    %v4402 = vrot.slane %v3454, %v4401
    %v4403 = vsel %vm3910, %v4402, %v4398
    %v4404 = vlaneseq
    %v4405 = vshrl.u32 %v4404, 7
    %v4406 = vsub.s32 %v3912, %v4405
    %v4407 = vrot.slane %v3455, %v4406
    %v4408 = vsel %vm3917, %v4407, %v4403
    %v4409 = vlaneseq
    %v4410 = vshrl.u32 %v4409, 7
    %v4411 = vsub.s32 %v3919, %v4410
    %v4412 = vrot.slane %v3456, %v4411
    %v4413 = vsel %vm3924, %v4412, %v4408
    %v4414 = vlaneseq
    %v4415 = vshrl.u32 %v4414, 7
    %v4416 = vsub.s32 %v3926, %v4415
    %v4417 = vrot.slane %v3457, %v4416
    %v4418 = vsel %vm3931, %v4417, %v4413
    %v4419 = vlaneseq
    %v4420 = vshrl.u32 %v4419, 7
    %v4421 = vsub.s32 %v3933, %v4420
    %v4422 = vrot.slane %v3458, %v4421
    %v4423 = vsel %vm3938, %v4422, %v4418
    %v4424 = vlaneseq
    %v4425 = vshrl.u32 %v4424, 7
    %v4426 = vsub.s32 %v3940, %v4425
    %v4427 = vrot.slane %v3459, %v4426
    %v4428 = vsel %vm3945, %v4427, %v4423
    %v4429 = vlaneseq
    %v4430 = vshrl.u32 %v4429, 7
    %v4431 = vsub.s32 %v3947, %v4430
    %v4432 = vrot.slane %v3460, %v4431
    %v4433 = vsel %vm3952, %v4432, %v4428
    %v4434 = vlaneseq
    %v4435 = vshrl.u32 %v4434, 7
    %v4436 = vsub.s32 %v3954, %v4435
    %v4437 = vrot.slane %v3461, %v4436
    %v4438 = vsel %vm3959, %v4437, %v4433
    %v4439 = vlaneseq
    %v4440 = vshrl.u32 %v4439, 7
    %v4441 = vsub.s32 %v3961, %v4440
    %v4442 = vrot.slane %v3462, %v4441
    %v4443 = vsel %vm3966, %v4442, %v4438
    %v4444 = vlaneseq
    %v4445 = vshrl.u32 %v4444, 7
    %v4446 = vsub.s32 %v3968, %v4445
    %v4447 = vrot.slane %v3463, %v4446
    %v4448 = vsel %vm3973, %v4447, %v4443
    %v4449 = vlaneseq
    %v4450 = vshrl.u32 %v4449, 7
    %v4451 = vsub.s32 %v3865, %v4450
    %v4452 = vrot.slane %v3464, %v4451
    %v4453 = vlaneseq
    %v4454 = vshrl.u32 %v4453, 7
    %v4455 = vsub.s32 %v3870, %v4454
    %v4456 = vrot.slane %v3465, %v4455
    %v4457 = vsel %vm3875, %v4456, %v4452
    %v4458 = vlaneseq
    %v4459 = vshrl.u32 %v4458, 7
    %v4460 = vsub.s32 %v3877, %v4459
    %v4461 = vrot.slane %v3466, %v4460
    %v4462 = vsel %vm3882, %v4461, %v4457
    %v4463 = vlaneseq
    %v4464 = vshrl.u32 %v4463, 7
    %v4465 = vsub.s32 %v3884, %v4464
    %v4466 = vrot.slane %v3467, %v4465
    %v4467 = vsel %vm3889, %v4466, %v4462
    %v4468 = vlaneseq
    %v4469 = vshrl.u32 %v4468, 7
    %v4470 = vsub.s32 %v3891, %v4469
    %v4471 = vrot.slane %v3468, %v4470
    %v4472 = vsel %vm3896, %v4471, %v4467
    %v4473 = vlaneseq
    %v4474 = vshrl.u32 %v4473, 7
    %v4475 = vsub.s32 %v3898, %v4474
    %v4476 = vrot.slane %v3469, %v4475
    %v4477 = vsel %vm3903, %v4476, %v4472
    %v4478 = vlaneseq
    %v4479 = vshrl.u32 %v4478, 7
    %v4480 = vsub.s32 %v3905, %v4479
    %v4481 = vrot.slane %v3470, %v4480
    %v4482 = vsel %vm3910, %v4481, %v4477
    %v4483 = vlaneseq
    %v4484 = vshrl.u32 %v4483, 7
    %v4485 = vsub.s32 %v3912, %v4484
    %v4486 = vrot.slane %v3471, %v4485
    %v4487 = vsel %vm3917, %v4486, %v4482
    %v4488 = vlaneseq
    %v4489 = vshrl.u32 %v4488, 7
    %v4490 = vsub.s32 %v3919, %v4489
    %v4491 = vrot.slane %v3472, %v4490
    %v4492 = vsel %vm3924, %v4491, %v4487
    %v4493 = vlaneseq
    %v4494 = vshrl.u32 %v4493, 7
    %v4495 = vsub.s32 %v3926, %v4494
    %v4496 = vrot.slane %v3473, %v4495
    %v4497 = vsel %vm3931, %v4496, %v4492
    %v4498 = vlaneseq
    %v4499 = vshrl.u32 %v4498, 7
    %v4500 = vsub.s32 %v3933, %v4499
    %v4501 = vrot.slane %v3474, %v4500
    %v4502 = vsel %vm3938, %v4501, %v4497
    %v4503 = vlaneseq
    %v4504 = vshrl.u32 %v4503, 7
    %v4505 = vsub.s32 %v3940, %v4504
    %v4506 = vrot.slane %v3475, %v4505
    %v4507 = vsel %vm3945, %v4506, %v4502
    %v4508 = vlaneseq
    %v4509 = vshrl.u32 %v4508, 7
    %v4510 = vsub.s32 %v3947, %v4509
    %v4511 = vrot.slane %v3476, %v4510
    %v4512 = vsel %vm3952, %v4511, %v4507
    %v4513 = vlaneseq
    %v4514 = vshrl.u32 %v4513, 7
    %v4515 = vsub.s32 %v3954, %v4514
    %v4516 = vrot.slane %v3477, %v4515
    %v4517 = vsel %vm3959, %v4516, %v4512
    %v4518 = vlaneseq
    %v4519 = vshrl.u32 %v4518, 7
    %v4520 = vsub.s32 %v3961, %v4519
    %v4521 = vrot.slane %v3478, %v4520
    %v4522 = vsel %vm3966, %v4521, %v4517
    %v4523 = vlaneseq
    %v4524 = vshrl.u32 %v4523, 7
    %v4525 = vsub.s32 %v3968, %v4524
    %v4526 = vrot.slane %v3479, %v4525
    %v4527 = vsel %vm3973, %v4526, %v4522
    %v4528 = vlaneseq
    %v4529 = vshrl.u32 %v4528, 7
    %v4530 = vsub.s32 %v3865, %v4529
    %v4531 = vrot.slane %v3480, %v4530
    %v4532 = vlaneseq
    %v4533 = vshrl.u32 %v4532, 7
    %v4534 = vsub.s32 %v3870, %v4533
    %v4535 = vrot.slane %v3481, %v4534
    %v4536 = vsel %vm3875, %v4535, %v4531
    %v4537 = vlaneseq
    %v4538 = vshrl.u32 %v4537, 7
    %v4539 = vsub.s32 %v3877, %v4538
    %v4540 = vrot.slane %v3482, %v4539
    %v4541 = vsel %vm3882, %v4540, %v4536
    %v4542 = vlaneseq
    %v4543 = vshrl.u32 %v4542, 7
    %v4544 = vsub.s32 %v3884, %v4543
    %v4545 = vrot.slane %v3483, %v4544
    %v4546 = vsel %vm3889, %v4545, %v4541
    %v4547 = vlaneseq
    %v4548 = vshrl.u32 %v4547, 7
    %v4549 = vsub.s32 %v3891, %v4548
    %v4550 = vrot.slane %v3484, %v4549
    %v4551 = vsel %vm3896, %v4550, %v4546
    %v4552 = vlaneseq
    %v4553 = vshrl.u32 %v4552, 7
    %v4554 = vsub.s32 %v3898, %v4553
    %v4555 = vrot.slane %v3485, %v4554
    %v4556 = vsel %vm3903, %v4555, %v4551
    %v4557 = vlaneseq
    %v4558 = vshrl.u32 %v4557, 7
    %v4559 = vsub.s32 %v3905, %v4558
    %v4560 = vrot.slane %v3486, %v4559
    %v4561 = vsel %vm3910, %v4560, %v4556
    %v4562 = vlaneseq
    %v4563 = vshrl.u32 %v4562, 7
    %v4564 = vsub.s32 %v3912, %v4563
    %v4565 = vrot.slane %v3487, %v4564
    %v4566 = vsel %vm3917, %v4565, %v4561
    %v4567 = vlaneseq
    %v4568 = vshrl.u32 %v4567, 7
    %v4569 = vsub.s32 %v3919, %v4568
    %v4570 = vrot.slane %v3488, %v4569
    %v4571 = vsel %vm3924, %v4570, %v4566
    %v4572 = vlaneseq
    %v4573 = vshrl.u32 %v4572, 7
    %v4574 = vsub.s32 %v3926, %v4573
    %v4575 = vrot.slane %v3489, %v4574
    %v4576 = vsel %vm3931, %v4575, %v4571
    %v4577 = vlaneseq
    %v4578 = vshrl.u32 %v4577, 7
    %v4579 = vsub.s32 %v3933, %v4578
    %v4580 = vrot.slane %v3490, %v4579
    %v4581 = vsel %vm3938, %v4580, %v4576
    %v4582 = vlaneseq
    %v4583 = vshrl.u32 %v4582, 7
    %v4584 = vsub.s32 %v3940, %v4583
    %v4585 = vrot.slane %v3491, %v4584
    %v4586 = vsel %vm3945, %v4585, %v4581
    %v4587 = vlaneseq
    %v4588 = vshrl.u32 %v4587, 7
    %v4589 = vsub.s32 %v3947, %v4588
    %v4590 = vrot.slane %v3492, %v4589
    %v4591 = vsel %vm3952, %v4590, %v4586
    %v4592 = vlaneseq
    %v4593 = vshrl.u32 %v4592, 7
    %v4594 = vsub.s32 %v3954, %v4593
    %v4595 = vrot.slane %v3493, %v4594
    %v4596 = vsel %vm3959, %v4595, %v4591
    %v4597 = vlaneseq
    %v4598 = vshrl.u32 %v4597, 7
    %v4599 = vsub.s32 %v3961, %v4598
    %v4600 = vrot.slane %v3494, %v4599
    %v4601 = vsel %vm3966, %v4600, %v4596
    %v4602 = vlaneseq
    %v4603 = vshrl.u32 %v4602, 7
    %v4604 = vsub.s32 %v3968, %v4603
    %v4605 = vrot.slane %v3495, %v4604
    %v4606 = vsel %vm3973, %v4605, %v4601
    %v4607 = vlaneseq
    %v4608 = vshrl.u32 %v4607, 7
    %v4609 = vsub.s32 %v3865, %v4608
    %v4610 = vrot.slane %v3496, %v4609
    %v4611 = vlaneseq
    %v4612 = vshrl.u32 %v4611, 7
    %v4613 = vsub.s32 %v3870, %v4612
    %v4614 = vrot.slane %v3497, %v4613
    %v4615 = vsel %vm3875, %v4614, %v4610
    %v4616 = vlaneseq
    %v4617 = vshrl.u32 %v4616, 7
    %v4618 = vsub.s32 %v3877, %v4617
    %v4619 = vrot.slane %v3498, %v4618
    %v4620 = vsel %vm3882, %v4619, %v4615
    %v4621 = vlaneseq
    %v4622 = vshrl.u32 %v4621, 7
    %v4623 = vsub.s32 %v3884, %v4622
    %v4624 = vrot.slane %v3499, %v4623
    %v4625 = vsel %vm3889, %v4624, %v4620
    %v4626 = vlaneseq
    %v4627 = vshrl.u32 %v4626, 7
    %v4628 = vsub.s32 %v3891, %v4627
    %v4629 = vrot.slane %v3500, %v4628
    %v4630 = vsel %vm3896, %v4629, %v4625
    %v4631 = vlaneseq
    %v4632 = vshrl.u32 %v4631, 7
    %v4633 = vsub.s32 %v3898, %v4632
    %v4634 = vrot.slane %v3501, %v4633
    %v4635 = vsel %vm3903, %v4634, %v4630
    %v4636 = vlaneseq
    %v4637 = vshrl.u32 %v4636, 7
    %v4638 = vsub.s32 %v3905, %v4637
    %v4639 = vrot.slane %v3502, %v4638
    %v4640 = vsel %vm3910, %v4639, %v4635
    %v4641 = vlaneseq
    %v4642 = vshrl.u32 %v4641, 7
    %v4643 = vsub.s32 %v3912, %v4642
    %v4644 = vrot.slane %v3503, %v4643
    %v4645 = vsel %vm3917, %v4644, %v4640
    %v4646 = vlaneseq
    %v4647 = vshrl.u32 %v4646, 7
    %v4648 = vsub.s32 %v3919, %v4647
    %v4649 = vrot.slane %v3504, %v4648
    %v4650 = vsel %vm3924, %v4649, %v4645
    %v4651 = vlaneseq
    %v4652 = vshrl.u32 %v4651, 7
    %v4653 = vsub.s32 %v3926, %v4652
    %v4654 = vrot.slane %v3505, %v4653
    %v4655 = vsel %vm3931, %v4654, %v4650
    %v4656 = vlaneseq
    %v4657 = vshrl.u32 %v4656, 7
    %v4658 = vsub.s32 %v3933, %v4657
    %v4659 = vrot.slane %v3506, %v4658
    %v4660 = vsel %vm3938, %v4659, %v4655
    %v4661 = vlaneseq
    %v4662 = vshrl.u32 %v4661, 7
    %v4663 = vsub.s32 %v3940, %v4662
    %v4664 = vrot.slane %v3507, %v4663
    %v4665 = vsel %vm3945, %v4664, %v4660
    %v4666 = vlaneseq
    %v4667 = vshrl.u32 %v4666, 7
    %v4668 = vsub.s32 %v3947, %v4667
    %v4669 = vrot.slane %v3508, %v4668
    %v4670 = vsel %vm3952, %v4669, %v4665
    %v4671 = vlaneseq
    %v4672 = vshrl.u32 %v4671, 7
    %v4673 = vsub.s32 %v3954, %v4672
    %v4674 = vrot.slane %v3509, %v4673
    %v4675 = vsel %vm3959, %v4674, %v4670
    %v4676 = vlaneseq
    %v4677 = vshrl.u32 %v4676, 7
    %v4678 = vsub.s32 %v3961, %v4677
    %v4679 = vrot.slane %v3510, %v4678
    %v4680 = vsel %vm3966, %v4679, %v4675
    %v4681 = vlaneseq
    %v4682 = vshrl.u32 %v4681, 7
    %v4683 = vsub.s32 %v3968, %v4682
    %v4684 = vrot.slane %v3511, %v4683
    %v4685 = vsel %vm3973, %v4684, %v4680
    %v4686 = vlaneseq
    %v4687 = vshrl.u32 %v4686, 7
    %v4688 = vsub.s32 %v3865, %v4687
    %v4689 = vrot.slane %v3512, %v4688
    %v4690 = vlaneseq
    %v4691 = vshrl.u32 %v4690, 7
    %v4692 = vsub.s32 %v3870, %v4691
    %v4693 = vrot.slane %v3513, %v4692
    %v4694 = vsel %vm3875, %v4693, %v4689
    %v4695 = vlaneseq
    %v4696 = vshrl.u32 %v4695, 7
    %v4697 = vsub.s32 %v3877, %v4696
    %v4698 = vrot.slane %v3514, %v4697
    %v4699 = vsel %vm3882, %v4698, %v4694
    %v4700 = vlaneseq
    %v4701 = vshrl.u32 %v4700, 7
    %v4702 = vsub.s32 %v3884, %v4701
    %v4703 = vrot.slane %v3515, %v4702
    %v4704 = vsel %vm3889, %v4703, %v4699
    %v4705 = vlaneseq
    %v4706 = vshrl.u32 %v4705, 7
    %v4707 = vsub.s32 %v3891, %v4706
    %v4708 = vrot.slane %v3516, %v4707
    %v4709 = vsel %vm3896, %v4708, %v4704
    %v4710 = vlaneseq
    %v4711 = vshrl.u32 %v4710, 7
    %v4712 = vsub.s32 %v3898, %v4711
    %v4713 = vrot.slane %v3517, %v4712
    %v4714 = vsel %vm3903, %v4713, %v4709
    %v4715 = vlaneseq
    %v4716 = vshrl.u32 %v4715, 7
    %v4717 = vsub.s32 %v3905, %v4716
    %v4718 = vrot.slane %v3518, %v4717
    %v4719 = vsel %vm3910, %v4718, %v4714
    %v4720 = vlaneseq
    %v4721 = vshrl.u32 %v4720, 7
    %v4722 = vsub.s32 %v3912, %v4721
    %v4723 = vrot.slane %v3519, %v4722
    %v4724 = vsel %vm3917, %v4723, %v4719
    %v4725 = vlaneseq
    %v4726 = vshrl.u32 %v4725, 7
    %v4727 = vsub.s32 %v3919, %v4726
    %v4728 = vrot.slane %v3520, %v4727
    %v4729 = vsel %vm3924, %v4728, %v4724
    %v4730 = vlaneseq
    %v4731 = vshrl.u32 %v4730, 7
    %v4732 = vsub.s32 %v3926, %v4731
    %v4733 = vrot.slane %v3521, %v4732
    %v4734 = vsel %vm3931, %v4733, %v4729
    %v4735 = vlaneseq
    %v4736 = vshrl.u32 %v4735, 7
    %v4737 = vsub.s32 %v3933, %v4736
    %v4738 = vrot.slane %v3522, %v4737
    %v4739 = vsel %vm3938, %v4738, %v4734
    %v4740 = vlaneseq
    %v4741 = vshrl.u32 %v4740, 7
    %v4742 = vsub.s32 %v3940, %v4741
    %v4743 = vrot.slane %v3523, %v4742
    %v4744 = vsel %vm3945, %v4743, %v4739
    %v4745 = vlaneseq
    %v4746 = vshrl.u32 %v4745, 7
    %v4747 = vsub.s32 %v3947, %v4746
    %v4748 = vrot.slane %v3524, %v4747
    %v4749 = vsel %vm3952, %v4748, %v4744
    %v4750 = vlaneseq
    %v4751 = vshrl.u32 %v4750, 7
    %v4752 = vsub.s32 %v3954, %v4751
    %v4753 = vrot.slane %v3525, %v4752
    %v4754 = vsel %vm3959, %v4753, %v4749
    %v4755 = vlaneseq
    %v4756 = vshrl.u32 %v4755, 7
    %v4757 = vsub.s32 %v3961, %v4756
    %v4758 = vrot.slane %v3526, %v4757
    %v4759 = vsel %vm3966, %v4758, %v4754
    %v4760 = vlaneseq
    %v4761 = vshrl.u32 %v4760, 7
    %v4762 = vsub.s32 %v3968, %v4761
    %v4763 = vrot.slane %v3527, %v4762
    %v4764 = vsel %vm3973, %v4763, %v4759
    %v4765 = vlaneseq
    %v4766 = vshrl.u32 %v4765, 7
    %v4767 = vsub.s32 %v3865, %v4766
    %v4768 = vrot.slane %v3528, %v4767
    %v4769 = vlaneseq
    %v4770 = vshrl.u32 %v4769, 7
    %v4771 = vsub.s32 %v3870, %v4770
    %v4772 = vrot.slane %v3529, %v4771
    %v4773 = vsel %vm3875, %v4772, %v4768
    %v4774 = vlaneseq
    %v4775 = vshrl.u32 %v4774, 7
    %v4776 = vsub.s32 %v3877, %v4775
    %v4777 = vrot.slane %v3530, %v4776
    %v4778 = vsel %vm3882, %v4777, %v4773
    %v4779 = vlaneseq
    %v4780 = vshrl.u32 %v4779, 7
    %v4781 = vsub.s32 %v3884, %v4780
    %v4782 = vrot.slane %v3531, %v4781
    %v4783 = vsel %vm3889, %v4782, %v4778
    %v4784 = vlaneseq
    %v4785 = vshrl.u32 %v4784, 7
    %v4786 = vsub.s32 %v3891, %v4785
    %v4787 = vrot.slane %v3532, %v4786
    %v4788 = vsel %vm3896, %v4787, %v4783
    %v4789 = vlaneseq
    %v4790 = vshrl.u32 %v4789, 7
    %v4791 = vsub.s32 %v3898, %v4790
    %v4792 = vrot.slane %v3533, %v4791
    %v4793 = vsel %vm3903, %v4792, %v4788
    %v4794 = vlaneseq
    %v4795 = vshrl.u32 %v4794, 7
    %v4796 = vsub.s32 %v3905, %v4795
    %v4797 = vrot.slane %v3534, %v4796
    %v4798 = vsel %vm3910, %v4797, %v4793
    %v4799 = vlaneseq
    %v4800 = vshrl.u32 %v4799, 7
    %v4801 = vsub.s32 %v3912, %v4800
    %v4802 = vrot.slane %v3535, %v4801
    %v4803 = vsel %vm3917, %v4802, %v4798
    %v4804 = vlaneseq
    %v4805 = vshrl.u32 %v4804, 7
    %v4806 = vsub.s32 %v3919, %v4805
    %v4807 = vrot.slane %v3536, %v4806
    %v4808 = vsel %vm3924, %v4807, %v4803
    %v4809 = vlaneseq
    %v4810 = vshrl.u32 %v4809, 7
    %v4811 = vsub.s32 %v3926, %v4810
    %v4812 = vrot.slane %v3537, %v4811
    %v4813 = vsel %vm3931, %v4812, %v4808
    %v4814 = vlaneseq
    %v4815 = vshrl.u32 %v4814, 7
    %v4816 = vsub.s32 %v3933, %v4815
    %v4817 = vrot.slane %v3538, %v4816
    %v4818 = vsel %vm3938, %v4817, %v4813
    %v4819 = vlaneseq
    %v4820 = vshrl.u32 %v4819, 7
    %v4821 = vsub.s32 %v3940, %v4820
    %v4822 = vrot.slane %v3539, %v4821
    %v4823 = vsel %vm3945, %v4822, %v4818
    %v4824 = vlaneseq
    %v4825 = vshrl.u32 %v4824, 7
    %v4826 = vsub.s32 %v3947, %v4825
    %v4827 = vrot.slane %v3540, %v4826
    %v4828 = vsel %vm3952, %v4827, %v4823
    %v4829 = vlaneseq
    %v4830 = vshrl.u32 %v4829, 7
    %v4831 = vsub.s32 %v3954, %v4830
    %v4832 = vrot.slane %v3541, %v4831
    %v4833 = vsel %vm3959, %v4832, %v4828
    %v4834 = vlaneseq
    %v4835 = vshrl.u32 %v4834, 7
    %v4836 = vsub.s32 %v3961, %v4835
    %v4837 = vrot.slane %v3542, %v4836
    %v4838 = vsel %vm3966, %v4837, %v4833
    %v4839 = vlaneseq
    %v4840 = vshrl.u32 %v4839, 7
    %v4841 = vsub.s32 %v3968, %v4840
    %v4842 = vrot.slane %v3543, %v4841
    %v4843 = vsel %vm3973, %v4842, %v4838
    %v4844 = vlaneseq
    %v4845 = vshrl.u32 %v4844, 7
    %v4846 = vsub.s32 %v3865, %v4845
    %v4847 = vrot.slane %v3544, %v4846
    %v4848 = vlaneseq
    %v4849 = vshrl.u32 %v4848, 7
    %v4850 = vsub.s32 %v3870, %v4849
    %v4851 = vrot.slane %v3545, %v4850
    %v4852 = vsel %vm3875, %v4851, %v4847
    %v4853 = vlaneseq
    %v4854 = vshrl.u32 %v4853, 7
    %v4855 = vsub.s32 %v3877, %v4854
    %v4856 = vrot.slane %v3546, %v4855
    %v4857 = vsel %vm3882, %v4856, %v4852
    %v4858 = vlaneseq
    %v4859 = vshrl.u32 %v4858, 7
    %v4860 = vsub.s32 %v3884, %v4859
    %v4861 = vrot.slane %v3547, %v4860
    %v4862 = vsel %vm3889, %v4861, %v4857
    %v4863 = vlaneseq
    %v4864 = vshrl.u32 %v4863, 7
    %v4865 = vsub.s32 %v3891, %v4864
    %v4866 = vrot.slane %v3548, %v4865
    %v4867 = vsel %vm3896, %v4866, %v4862
    %v4868 = vlaneseq
    %v4869 = vshrl.u32 %v4868, 7
    %v4870 = vsub.s32 %v3898, %v4869
    %v4871 = vrot.slane %v3549, %v4870
    %v4872 = vsel %vm3903, %v4871, %v4867
    %v4873 = vlaneseq
    %v4874 = vshrl.u32 %v4873, 7
    %v4875 = vsub.s32 %v3905, %v4874
    %v4876 = vrot.slane %v3550, %v4875
    %v4877 = vsel %vm3910, %v4876, %v4872
    %v4878 = vlaneseq
    %v4879 = vshrl.u32 %v4878, 7
    %v4880 = vsub.s32 %v3912, %v4879
    %v4881 = vrot.slane %v3551, %v4880
    %v4882 = vsel %vm3917, %v4881, %v4877
    %v4883 = vlaneseq
    %v4884 = vshrl.u32 %v4883, 7
    %v4885 = vsub.s32 %v3919, %v4884
    %v4886 = vrot.slane %v3552, %v4885
    %v4887 = vsel %vm3924, %v4886, %v4882
    %v4888 = vlaneseq
    %v4889 = vshrl.u32 %v4888, 7
    %v4890 = vsub.s32 %v3926, %v4889
    %v4891 = vrot.slane %v3553, %v4890
    %v4892 = vsel %vm3931, %v4891, %v4887
    %v4893 = vlaneseq
    %v4894 = vshrl.u32 %v4893, 7
    %v4895 = vsub.s32 %v3933, %v4894
    %v4896 = vrot.slane %v3554, %v4895
    %v4897 = vsel %vm3938, %v4896, %v4892
    %v4898 = vlaneseq
    %v4899 = vshrl.u32 %v4898, 7
    %v4900 = vsub.s32 %v3940, %v4899
    %v4901 = vrot.slane %v3555, %v4900
    %v4902 = vsel %vm3945, %v4901, %v4897
    %v4903 = vlaneseq
    %v4904 = vshrl.u32 %v4903, 7
    %v4905 = vsub.s32 %v3947, %v4904
    %v4906 = vrot.slane %v3556, %v4905
    %v4907 = vsel %vm3952, %v4906, %v4902
    %v4908 = vlaneseq
    %v4909 = vshrl.u32 %v4908, 7
    %v4910 = vsub.s32 %v3954, %v4909
    %v4911 = vrot.slane %v3557, %v4910
    %v4912 = vsel %vm3959, %v4911, %v4907
    %v4913 = vlaneseq
    %v4914 = vshrl.u32 %v4913, 7
    %v4915 = vsub.s32 %v3961, %v4914
    %v4916 = vrot.slane %v3558, %v4915
    %v4917 = vsel %vm3966, %v4916, %v4912
    %v4918 = vlaneseq
    %v4919 = vshrl.u32 %v4918, 7
    %v4920 = vsub.s32 %v3968, %v4919
    %v4921 = vrot.slane %v3559, %v4920
    %v4922 = vsel %vm3973, %v4921, %v4917
    %v4923 = vlaneseq
    %v4924 = vshrl.u32 %v4923, 7
    %v4925 = vsub.s32 %v3865, %v4924
    %v4926 = vrot.slane %v3560, %v4925
    %v4927 = vlaneseq
    %v4928 = vshrl.u32 %v4927, 7
    %v4929 = vsub.s32 %v3870, %v4928
    %v4930 = vrot.slane %v3561, %v4929
    %v4931 = vsel %vm3875, %v4930, %v4926
    %v4932 = vlaneseq
    %v4933 = vshrl.u32 %v4932, 7
    %v4934 = vsub.s32 %v3877, %v4933
    %v4935 = vrot.slane %v3562, %v4934
    %v4936 = vsel %vm3882, %v4935, %v4931
    %v4937 = vlaneseq
    %v4938 = vshrl.u32 %v4937, 7
    %v4939 = vsub.s32 %v3884, %v4938
    %v4940 = vrot.slane %v3563, %v4939
    %v4941 = vsel %vm3889, %v4940, %v4936
    %v4942 = vlaneseq
    %v4943 = vshrl.u32 %v4942, 7
    %v4944 = vsub.s32 %v3891, %v4943
    %v4945 = vrot.slane %v3564, %v4944
    %v4946 = vsel %vm3896, %v4945, %v4941
    %v4947 = vlaneseq
    %v4948 = vshrl.u32 %v4947, 7
    %v4949 = vsub.s32 %v3898, %v4948
    %v4950 = vrot.slane %v3565, %v4949
    %v4951 = vsel %vm3903, %v4950, %v4946
    %v4952 = vlaneseq
    %v4953 = vshrl.u32 %v4952, 7
    %v4954 = vsub.s32 %v3905, %v4953
    %v4955 = vrot.slane %v3566, %v4954
    %v4956 = vsel %vm3910, %v4955, %v4951
    %v4957 = vlaneseq
    %v4958 = vshrl.u32 %v4957, 7
    %v4959 = vsub.s32 %v3912, %v4958
    %v4960 = vrot.slane %v3567, %v4959
    %v4961 = vsel %vm3917, %v4960, %v4956
    %v4962 = vlaneseq
    %v4963 = vshrl.u32 %v4962, 7
    %v4964 = vsub.s32 %v3919, %v4963
    %v4965 = vrot.slane %v3568, %v4964
    %v4966 = vsel %vm3924, %v4965, %v4961
    %v4967 = vlaneseq
    %v4968 = vshrl.u32 %v4967, 7
    %v4969 = vsub.s32 %v3926, %v4968
    %v4970 = vrot.slane %v3569, %v4969
    %v4971 = vsel %vm3931, %v4970, %v4966
    %v4972 = vlaneseq
    %v4973 = vshrl.u32 %v4972, 7
    %v4974 = vsub.s32 %v3933, %v4973
    %v4975 = vrot.slane %v3570, %v4974
    %v4976 = vsel %vm3938, %v4975, %v4971
    %v4977 = vlaneseq
    %v4978 = vshrl.u32 %v4977, 7
    %v4979 = vsub.s32 %v3940, %v4978
    %v4980 = vrot.slane %v3571, %v4979
    %v4981 = vsel %vm3945, %v4980, %v4976
    %v4982 = vlaneseq
    %v4983 = vshrl.u32 %v4982, 7
    %v4984 = vsub.s32 %v3947, %v4983
    %v4985 = vrot.slane %v3572, %v4984
    %v4986 = vsel %vm3952, %v4985, %v4981
    %v4987 = vlaneseq
    %v4988 = vshrl.u32 %v4987, 7
    %v4989 = vsub.s32 %v3954, %v4988
    %v4990 = vrot.slane %v3573, %v4989
    %v4991 = vsel %vm3959, %v4990, %v4986
    %v4992 = vlaneseq
    %v4993 = vshrl.u32 %v4992, 7
    %v4994 = vsub.s32 %v3961, %v4993
    %v4995 = vrot.slane %v3574, %v4994
    %v4996 = vsel %vm3966, %v4995, %v4991
    %v4997 = vlaneseq
    %v4998 = vshrl.u32 %v4997, 7
    %v4999 = vsub.s32 %v3968, %v4998
    %v5000 = vrot.slane %v3575, %v4999
    %v5001 = vsel %vm3973, %v5000, %v4996
    %v5002 = vlaneseq
    %v5003 = vshrl.u32 %v5002, 7
    %v5004 = vsub.s32 %v3865, %v5003
    %v5005 = vrot.slane %v3576, %v5004
    %v5006 = vlaneseq
    %v5007 = vshrl.u32 %v5006, 7
    %v5008 = vsub.s32 %v3870, %v5007
    %v5009 = vrot.slane %v3577, %v5008
    %v5010 = vsel %vm3875, %v5009, %v5005
    %v5011 = vlaneseq
    %v5012 = vshrl.u32 %v5011, 7
    %v5013 = vsub.s32 %v3877, %v5012
    %v5014 = vrot.slane %v3578, %v5013
    %v5015 = vsel %vm3882, %v5014, %v5010
    %v5016 = vlaneseq
    %v5017 = vshrl.u32 %v5016, 7
    %v5018 = vsub.s32 %v3884, %v5017
    %v5019 = vrot.slane %v3579, %v5018
    %v5020 = vsel %vm3889, %v5019, %v5015
    %v5021 = vlaneseq
    %v5022 = vshrl.u32 %v5021, 7
    %v5023 = vsub.s32 %v3891, %v5022
    %v5024 = vrot.slane %v3580, %v5023
    %v5025 = vsel %vm3896, %v5024, %v5020
    %v5026 = vlaneseq
    %v5027 = vshrl.u32 %v5026, 7
    %v5028 = vsub.s32 %v3898, %v5027
    %v5029 = vrot.slane %v3581, %v5028
    %v5030 = vsel %vm3903, %v5029, %v5025
    %v5031 = vlaneseq
    %v5032 = vshrl.u32 %v5031, 7
    %v5033 = vsub.s32 %v3905, %v5032
    %v5034 = vrot.slane %v3582, %v5033
    %v5035 = vsel %vm3910, %v5034, %v5030
    %v5036 = vlaneseq
    %v5037 = vshrl.u32 %v5036, 7
    %v5038 = vsub.s32 %v3912, %v5037
    %v5039 = vrot.slane %v3583, %v5038
    %v5040 = vsel %vm3917, %v5039, %v5035
    %v5041 = vlaneseq
    %v5042 = vshrl.u32 %v5041, 7
    %v5043 = vsub.s32 %v3919, %v5042
    %v5044 = vrot.slane %v3584, %v5043
    %v5045 = vsel %vm3924, %v5044, %v5040
    %v5046 = vlaneseq
    %v5047 = vshrl.u32 %v5046, 7
    %v5048 = vsub.s32 %v3926, %v5047
    %v5049 = vrot.slane %v3585, %v5048
    %v5050 = vsel %vm3931, %v5049, %v5045
    %v5051 = vlaneseq
    %v5052 = vshrl.u32 %v5051, 7
    %v5053 = vsub.s32 %v3933, %v5052
    %v5054 = vrot.slane %v3586, %v5053
    %v5055 = vsel %vm3938, %v5054, %v5050
    %v5056 = vlaneseq
    %v5057 = vshrl.u32 %v5056, 7
    %v5058 = vsub.s32 %v3940, %v5057
    %v5059 = vrot.slane %v3587, %v5058
    %v5060 = vsel %vm3945, %v5059, %v5055
    %v5061 = vlaneseq
    %v5062 = vshrl.u32 %v5061, 7
    %v5063 = vsub.s32 %v3947, %v5062
    %v5064 = vrot.slane %v3588, %v5063
    %v5065 = vsel %vm3952, %v5064, %v5060
    %v5066 = vlaneseq
    %v5067 = vshrl.u32 %v5066, 7
    %v5068 = vsub.s32 %v3954, %v5067
    %v5069 = vrot.slane %v3589, %v5068
    %v5070 = vsel %vm3959, %v5069, %v5065
    %v5071 = vlaneseq
    %v5072 = vshrl.u32 %v5071, 7
    %v5073 = vsub.s32 %v3961, %v5072
    %v5074 = vrot.slane %v3590, %v5073
    %v5075 = vsel %vm3966, %v5074, %v5070
    %v5076 = vlaneseq
    %v5077 = vshrl.u32 %v5076, 7
    %v5078 = vsub.s32 %v3968, %v5077
    %v5079 = vrot.slane %v3591, %v5078
    %v5080 = vsel %vm3973, %v5079, %v5075
    %v5081 = vlaneseq
    %v5082 = vshrl.u32 %v5081, 7
    %v5083 = vsub.s32 %v3865, %v5082
    %v5084 = vrot.slane %v3592, %v5083
    %v5085 = vlaneseq
    %v5086 = vshrl.u32 %v5085, 7
    %v5087 = vsub.s32 %v3870, %v5086
    %v5088 = vrot.slane %v3593, %v5087
    %v5089 = vsel %vm3875, %v5088, %v5084
    %v5090 = vlaneseq
    %v5091 = vshrl.u32 %v5090, 7
    %v5092 = vsub.s32 %v3877, %v5091
    %v5093 = vrot.slane %v3594, %v5092
    %v5094 = vsel %vm3882, %v5093, %v5089
    %v5095 = vlaneseq
    %v5096 = vshrl.u32 %v5095, 7
    %v5097 = vsub.s32 %v3884, %v5096
    %v5098 = vrot.slane %v3595, %v5097
    %v5099 = vsel %vm3889, %v5098, %v5094
    %v5100 = vlaneseq
    %v5101 = vshrl.u32 %v5100, 7
    %v5102 = vsub.s32 %v3891, %v5101
    %v5103 = vrot.slane %v3596, %v5102
    %v5104 = vsel %vm3896, %v5103, %v5099
    %v5105 = vlaneseq
    %v5106 = vshrl.u32 %v5105, 7
    %v5107 = vsub.s32 %v3898, %v5106
    %v5108 = vrot.slane %v3597, %v5107
    %v5109 = vsel %vm3903, %v5108, %v5104
    %v5110 = vlaneseq
    %v5111 = vshrl.u32 %v5110, 7
    %v5112 = vsub.s32 %v3905, %v5111
    %v5113 = vrot.slane %v3598, %v5112
    %v5114 = vsel %vm3910, %v5113, %v5109
    %v5115 = vlaneseq
    %v5116 = vshrl.u32 %v5115, 7
    %v5117 = vsub.s32 %v3912, %v5116
    %v5118 = vrot.slane %v3599, %v5117
    %v5119 = vsel %vm3917, %v5118, %v5114
    %v5120 = vlaneseq
    %v5121 = vshrl.u32 %v5120, 7
    %v5122 = vsub.s32 %v3919, %v5121
    %v5123 = vrot.slane %v3600, %v5122
    %v5124 = vsel %vm3924, %v5123, %v5119
    %v5125 = vlaneseq
    %v5126 = vshrl.u32 %v5125, 7
    %v5127 = vsub.s32 %v3926, %v5126
    %v5128 = vrot.slane %v3601, %v5127
    %v5129 = vsel %vm3931, %v5128, %v5124
    %v5130 = vlaneseq
    %v5131 = vshrl.u32 %v5130, 7
    %v5132 = vsub.s32 %v3933, %v5131
    %v5133 = vrot.slane %v3602, %v5132
    %v5134 = vsel %vm3938, %v5133, %v5129
    %v5135 = vlaneseq
    %v5136 = vshrl.u32 %v5135, 7
    %v5137 = vsub.s32 %v3940, %v5136
    %v5138 = vrot.slane %v3603, %v5137
    %v5139 = vsel %vm3945, %v5138, %v5134
    %v5140 = vlaneseq
    %v5141 = vshrl.u32 %v5140, 7
    %v5142 = vsub.s32 %v3947, %v5141
    %v5143 = vrot.slane %v3604, %v5142
    %v5144 = vsel %vm3952, %v5143, %v5139
    %v5145 = vlaneseq
    %v5146 = vshrl.u32 %v5145, 7
    %v5147 = vsub.s32 %v3954, %v5146
    %v5148 = vrot.slane %v3605, %v5147
    %v5149 = vsel %vm3959, %v5148, %v5144
    %v5150 = vlaneseq
    %v5151 = vshrl.u32 %v5150, 7
    %v5152 = vsub.s32 %v3961, %v5151
    %v5153 = vrot.slane %v3606, %v5152
    %v5154 = vsel %vm3966, %v5153, %v5149
    %v5155 = vlaneseq
    %v5156 = vshrl.u32 %v5155, 7
    %v5157 = vsub.s32 %v3968, %v5156
    %v5158 = vrot.slane %v3607, %v5157
    %v5159 = vsel %vm3973, %v5158, %v5154
    %v5160 = vlaneseq
    %v5161 = vshrl.u32 %v5160, 7
    %v5162 = vsub.s32 %v3865, %v5161
    %v5163 = vrot.slane %v3608, %v5162
    %v5164 = vlaneseq
    %v5165 = vshrl.u32 %v5164, 7
    %v5166 = vsub.s32 %v3870, %v5165
    %v5167 = vrot.slane %v3609, %v5166
    %v5168 = vsel %vm3875, %v5167, %v5163
    %v5169 = vlaneseq
    %v5170 = vshrl.u32 %v5169, 7
    %v5171 = vsub.s32 %v3877, %v5170
    %v5172 = vrot.slane %v3610, %v5171
    %v5173 = vsel %vm3882, %v5172, %v5168
    %v5174 = vlaneseq
    %v5175 = vshrl.u32 %v5174, 7
    %v5176 = vsub.s32 %v3884, %v5175
    %v5177 = vrot.slane %v3611, %v5176
    %v5178 = vsel %vm3889, %v5177, %v5173
    %v5179 = vlaneseq
    %v5180 = vshrl.u32 %v5179, 7
    %v5181 = vsub.s32 %v3891, %v5180
    %v5182 = vrot.slane %v3612, %v5181
    %v5183 = vsel %vm3896, %v5182, %v5178
    %v5184 = vlaneseq
    %v5185 = vshrl.u32 %v5184, 7
    %v5186 = vsub.s32 %v3898, %v5185
    %v5187 = vrot.slane %v3613, %v5186
    %v5188 = vsel %vm3903, %v5187, %v5183
    %v5189 = vlaneseq
    %v5190 = vshrl.u32 %v5189, 7
    %v5191 = vsub.s32 %v3905, %v5190
    %v5192 = vrot.slane %v3614, %v5191
    %v5193 = vsel %vm3910, %v5192, %v5188
    %v5194 = vlaneseq
    %v5195 = vshrl.u32 %v5194, 7
    %v5196 = vsub.s32 %v3912, %v5195
    %v5197 = vrot.slane %v3615, %v5196
    %v5198 = vsel %vm3917, %v5197, %v5193
    %v5199 = vlaneseq
    %v5200 = vshrl.u32 %v5199, 7
    %v5201 = vsub.s32 %v3919, %v5200
    %v5202 = vrot.slane %v3616, %v5201
    %v5203 = vsel %vm3924, %v5202, %v5198
    %v5204 = vlaneseq
    %v5205 = vshrl.u32 %v5204, 7
    %v5206 = vsub.s32 %v3926, %v5205
    %v5207 = vrot.slane %v3617, %v5206
    %v5208 = vsel %vm3931, %v5207, %v5203
    %v5209 = vlaneseq
    %v5210 = vshrl.u32 %v5209, 7
    %v5211 = vsub.s32 %v3933, %v5210
    %v5212 = vrot.slane %v3618, %v5211
    %v5213 = vsel %vm3938, %v5212, %v5208
    %v5214 = vlaneseq
    %v5215 = vshrl.u32 %v5214, 7
    %v5216 = vsub.s32 %v3940, %v5215
    %v5217 = vrot.slane %v3619, %v5216
    %v5218 = vsel %vm3945, %v5217, %v5213
    %v5219 = vlaneseq
    %v5220 = vshrl.u32 %v5219, 7
    %v5221 = vsub.s32 %v3947, %v5220
    %v5222 = vrot.slane %v3620, %v5221
    %v5223 = vsel %vm3952, %v5222, %v5218
    %v5224 = vlaneseq
    %v5225 = vshrl.u32 %v5224, 7
    %v5226 = vsub.s32 %v3954, %v5225
    %v5227 = vrot.slane %v3621, %v5226
    %v5228 = vsel %vm3959, %v5227, %v5223
    %v5229 = vlaneseq
    %v5230 = vshrl.u32 %v5229, 7
    %v5231 = vsub.s32 %v3961, %v5230
    %v5232 = vrot.slane %v3622, %v5231
    %v5233 = vsel %vm3966, %v5232, %v5228
    %v5234 = vlaneseq
    %v5235 = vshrl.u32 %v5234, 7
    %v5236 = vsub.s32 %v3968, %v5235
    %v5237 = vrot.slane %v3623, %v5236
    %v5238 = vsel %vm3973, %v5237, %v5233
    %v5239 = vlaneseq
    %v5240 = vshrl.u32 %v5239, 7
    %v5241 = vsub.s32 %v3865, %v5240
    %v5242 = vrot.slane %v3624, %v5241
    %v5243 = vlaneseq
    %v5244 = vshrl.u32 %v5243, 7
    %v5245 = vsub.s32 %v3870, %v5244
    %v5246 = vrot.slane %v3625, %v5245
    %v5247 = vsel %vm3875, %v5246, %v5242
    %v5248 = vlaneseq
    %v5249 = vshrl.u32 %v5248, 7
    %v5250 = vsub.s32 %v3877, %v5249
    %v5251 = vrot.slane %v3626, %v5250
    %v5252 = vsel %vm3882, %v5251, %v5247
    %v5253 = vlaneseq
    %v5254 = vshrl.u32 %v5253, 7
    %v5255 = vsub.s32 %v3884, %v5254
    %v5256 = vrot.slane %v3627, %v5255
    %v5257 = vsel %vm3889, %v5256, %v5252
    %v5258 = vlaneseq
    %v5259 = vshrl.u32 %v5258, 7
    %v5260 = vsub.s32 %v3891, %v5259
    %v5261 = vrot.slane %v3628, %v5260
    %v5262 = vsel %vm3896, %v5261, %v5257
    %v5263 = vlaneseq
    %v5264 = vshrl.u32 %v5263, 7
    %v5265 = vsub.s32 %v3898, %v5264
    %v5266 = vrot.slane %v3629, %v5265
    %v5267 = vsel %vm3903, %v5266, %v5262
    %v5268 = vlaneseq
    %v5269 = vshrl.u32 %v5268, 7
    %v5270 = vsub.s32 %v3905, %v5269
    %v5271 = vrot.slane %v3630, %v5270
    %v5272 = vsel %vm3910, %v5271, %v5267
    %v5273 = vlaneseq
    %v5274 = vshrl.u32 %v5273, 7
    %v5275 = vsub.s32 %v3912, %v5274
    %v5276 = vrot.slane %v3631, %v5275
    %v5277 = vsel %vm3917, %v5276, %v5272
    %v5278 = vlaneseq
    %v5279 = vshrl.u32 %v5278, 7
    %v5280 = vsub.s32 %v3919, %v5279
    %v5281 = vrot.slane %v3632, %v5280
    %v5282 = vsel %vm3924, %v5281, %v5277
    %v5283 = vlaneseq
    %v5284 = vshrl.u32 %v5283, 7
    %v5285 = vsub.s32 %v3926, %v5284
    %v5286 = vrot.slane %v3633, %v5285
    %v5287 = vsel %vm3931, %v5286, %v5282
    %v5288 = vlaneseq
    %v5289 = vshrl.u32 %v5288, 7
    %v5290 = vsub.s32 %v3933, %v5289
    %v5291 = vrot.slane %v3634, %v5290
    %v5292 = vsel %vm3938, %v5291, %v5287
    %v5293 = vlaneseq
    %v5294 = vshrl.u32 %v5293, 7
    %v5295 = vsub.s32 %v3940, %v5294
    %v5296 = vrot.slane %v3635, %v5295
    %v5297 = vsel %vm3945, %v5296, %v5292
    %v5298 = vlaneseq
    %v5299 = vshrl.u32 %v5298, 7
    %v5300 = vsub.s32 %v3947, %v5299
    %v5301 = vrot.slane %v3636, %v5300
    %v5302 = vsel %vm3952, %v5301, %v5297
    %v5303 = vlaneseq
    %v5304 = vshrl.u32 %v5303, 7
    %v5305 = vsub.s32 %v3954, %v5304
    %v5306 = vrot.slane %v3637, %v5305
    %v5307 = vsel %vm3959, %v5306, %v5302
    %v5308 = vlaneseq
    %v5309 = vshrl.u32 %v5308, 7
    %v5310 = vsub.s32 %v3961, %v5309
    %v5311 = vrot.slane %v3638, %v5310
    %v5312 = vsel %vm3966, %v5311, %v5307
    %v5313 = vlaneseq
    %v5314 = vshrl.u32 %v5313, 7
    %v5315 = vsub.s32 %v3968, %v5314
    %v5316 = vrot.slane %v3639, %v5315
    %v5317 = vsel %vm3973, %v5316, %v5312
    %v5318 = vlaneseq
    %v5319 = vshrl.u32 %v5318, 7
    %v5320 = vsub.s32 %v3865, %v5319
    %v5321 = vrot.slane %v3640, %v5320
    %v5322 = vlaneseq
    %v5323 = vshrl.u32 %v5322, 7
    %v5324 = vsub.s32 %v3870, %v5323
    %v5325 = vrot.slane %v3641, %v5324
    %v5326 = vsel %vm3875, %v5325, %v5321
    %v5327 = vlaneseq
    %v5328 = vshrl.u32 %v5327, 7
    %v5329 = vsub.s32 %v3877, %v5328
    %v5330 = vrot.slane %v3642, %v5329
    %v5331 = vsel %vm3882, %v5330, %v5326
    %v5332 = vlaneseq
    %v5333 = vshrl.u32 %v5332, 7
    %v5334 = vsub.s32 %v3884, %v5333
    %v5335 = vrot.slane %v3643, %v5334
    %v5336 = vsel %vm3889, %v5335, %v5331
    %v5337 = vlaneseq
    %v5338 = vshrl.u32 %v5337, 7
    %v5339 = vsub.s32 %v3891, %v5338
    %v5340 = vrot.slane %v3644, %v5339
    %v5341 = vsel %vm3896, %v5340, %v5336
    %v5342 = vlaneseq
    %v5343 = vshrl.u32 %v5342, 7
    %v5344 = vsub.s32 %v3898, %v5343
    %v5345 = vrot.slane %v3645, %v5344
    %v5346 = vsel %vm3903, %v5345, %v5341
    %v5347 = vlaneseq
    %v5348 = vshrl.u32 %v5347, 7
    %v5349 = vsub.s32 %v3905, %v5348
    %v5350 = vrot.slane %v3646, %v5349
    %v5351 = vsel %vm3910, %v5350, %v5346
    %v5352 = vlaneseq
    %v5353 = vshrl.u32 %v5352, 7
    %v5354 = vsub.s32 %v3912, %v5353
    %v5355 = vrot.slane %v3647, %v5354
    %v5356 = vsel %vm3917, %v5355, %v5351
    %v5357 = vlaneseq
    %v5358 = vshrl.u32 %v5357, 7
    %v5359 = vsub.s32 %v3919, %v5358
    %v5360 = vrot.slane %v3648, %v5359
    %v5361 = vsel %vm3924, %v5360, %v5356
    %v5362 = vlaneseq
    %v5363 = vshrl.u32 %v5362, 7
    %v5364 = vsub.s32 %v3926, %v5363
    %v5365 = vrot.slane %v3649, %v5364
    %v5366 = vsel %vm3931, %v5365, %v5361
    %v5367 = vlaneseq
    %v5368 = vshrl.u32 %v5367, 7
    %v5369 = vsub.s32 %v3933, %v5368
    %v5370 = vrot.slane %v3650, %v5369
    %v5371 = vsel %vm3938, %v5370, %v5366
    %v5372 = vlaneseq
    %v5373 = vshrl.u32 %v5372, 7
    %v5374 = vsub.s32 %v3940, %v5373
    %v5375 = vrot.slane %v3651, %v5374
    %v5376 = vsel %vm3945, %v5375, %v5371
    %v5377 = vlaneseq
    %v5378 = vshrl.u32 %v5377, 7
    %v5379 = vsub.s32 %v3947, %v5378
    %v5380 = vrot.slane %v3652, %v5379
    %v5381 = vsel %vm3952, %v5380, %v5376
    %v5382 = vlaneseq
    %v5383 = vshrl.u32 %v5382, 7
    %v5384 = vsub.s32 %v3954, %v5383
    %v5385 = vrot.slane %v3653, %v5384
    %v5386 = vsel %vm3959, %v5385, %v5381
    %v5387 = vlaneseq
    %v5388 = vshrl.u32 %v5387, 7
    %v5389 = vsub.s32 %v3961, %v5388
    %v5390 = vrot.slane %v3654, %v5389
    %v5391 = vsel %vm3966, %v5390, %v5386
    %v5392 = vlaneseq
    %v5393 = vshrl.u32 %v5392, 7
    %v5394 = vsub.s32 %v3968, %v5393
    %v5395 = vrot.slane %v3655, %v5394
    %v5396 = vsel %vm3973, %v5395, %v5391
    %v5397 = vlaneseq
    %v5398 = vshrl.u32 %v5397, 7
    %v5399 = vsub.s32 %v3865, %v5398
    %v5400 = vrot.slane %v3656, %v5399
    %v5401 = vlaneseq
    %v5402 = vshrl.u32 %v5401, 7
    %v5403 = vsub.s32 %v3870, %v5402
    %v5404 = vrot.slane %v3657, %v5403
    %v5405 = vsel %vm3875, %v5404, %v5400
    %v5406 = vlaneseq
    %v5407 = vshrl.u32 %v5406, 7
    %v5408 = vsub.s32 %v3877, %v5407
    %v5409 = vrot.slane %v3658, %v5408
    %v5410 = vsel %vm3882, %v5409, %v5405
    %v5411 = vlaneseq
    %v5412 = vshrl.u32 %v5411, 7
    %v5413 = vsub.s32 %v3884, %v5412
    %v5414 = vrot.slane %v3659, %v5413
    %v5415 = vsel %vm3889, %v5414, %v5410
    %v5416 = vlaneseq
    %v5417 = vshrl.u32 %v5416, 7
    %v5418 = vsub.s32 %v3891, %v5417
    %v5419 = vrot.slane %v3660, %v5418
    %v5420 = vsel %vm3896, %v5419, %v5415
    %v5421 = vlaneseq
    %v5422 = vshrl.u32 %v5421, 7
    %v5423 = vsub.s32 %v3898, %v5422
    %v5424 = vrot.slane %v3661, %v5423
    %v5425 = vsel %vm3903, %v5424, %v5420
    %v5426 = vlaneseq
    %v5427 = vshrl.u32 %v5426, 7
    %v5428 = vsub.s32 %v3905, %v5427
    %v5429 = vrot.slane %v3662, %v5428
    %v5430 = vsel %vm3910, %v5429, %v5425
    %v5431 = vlaneseq
    %v5432 = vshrl.u32 %v5431, 7
    %v5433 = vsub.s32 %v3912, %v5432
    %v5434 = vrot.slane %v3663, %v5433
    %v5435 = vsel %vm3917, %v5434, %v5430
    %v5436 = vlaneseq
    %v5437 = vshrl.u32 %v5436, 7
    %v5438 = vsub.s32 %v3919, %v5437
    %v5439 = vrot.slane %v3664, %v5438
    %v5440 = vsel %vm3924, %v5439, %v5435
    %v5441 = vlaneseq
    %v5442 = vshrl.u32 %v5441, 7
    %v5443 = vsub.s32 %v3926, %v5442
    %v5444 = vrot.slane %v3665, %v5443
    %v5445 = vsel %vm3931, %v5444, %v5440
    %v5446 = vlaneseq
    %v5447 = vshrl.u32 %v5446, 7
    %v5448 = vsub.s32 %v3933, %v5447
    %v5449 = vrot.slane %v3666, %v5448
    %v5450 = vsel %vm3938, %v5449, %v5445
    %v5451 = vlaneseq
    %v5452 = vshrl.u32 %v5451, 7
    %v5453 = vsub.s32 %v3940, %v5452
    %v5454 = vrot.slane %v3667, %v5453
    %v5455 = vsel %vm3945, %v5454, %v5450
    %v5456 = vlaneseq
    %v5457 = vshrl.u32 %v5456, 7
    %v5458 = vsub.s32 %v3947, %v5457
    %v5459 = vrot.slane %v3668, %v5458
    %v5460 = vsel %vm3952, %v5459, %v5455
    %v5461 = vlaneseq
    %v5462 = vshrl.u32 %v5461, 7
    %v5463 = vsub.s32 %v3954, %v5462
    %v5464 = vrot.slane %v3669, %v5463
    %v5465 = vsel %vm3959, %v5464, %v5460
    %v5466 = vlaneseq
    %v5467 = vshrl.u32 %v5466, 7
    %v5468 = vsub.s32 %v3961, %v5467
    %v5469 = vrot.slane %v3670, %v5468
    %v5470 = vsel %vm3966, %v5469, %v5465
    %v5471 = vlaneseq
    %v5472 = vshrl.u32 %v5471, 7
    %v5473 = vsub.s32 %v3968, %v5472
    %v5474 = vrot.slane %v3671, %v5473
    %v5475 = vsel %vm3973, %v5474, %v5470
    %v5476 = vlaneseq
    %v5477 = vshrl.u32 %v5476, 7
    %v5478 = vsub.s32 %v3865, %v5477
    %v5479 = vrot.slane %v3672, %v5478
    %v5480 = vlaneseq
    %v5481 = vshrl.u32 %v5480, 7
    %v5482 = vsub.s32 %v3870, %v5481
    %v5483 = vrot.slane %v3673, %v5482
    %v5484 = vsel %vm3875, %v5483, %v5479
    %v5485 = vlaneseq
    %v5486 = vshrl.u32 %v5485, 7
    %v5487 = vsub.s32 %v3877, %v5486
    %v5488 = vrot.slane %v3674, %v5487
    %v5489 = vsel %vm3882, %v5488, %v5484
    %v5490 = vlaneseq
    %v5491 = vshrl.u32 %v5490, 7
    %v5492 = vsub.s32 %v3884, %v5491
    %v5493 = vrot.slane %v3675, %v5492
    %v5494 = vsel %vm3889, %v5493, %v5489
    %v5495 = vlaneseq
    %v5496 = vshrl.u32 %v5495, 7
    %v5497 = vsub.s32 %v3891, %v5496
    %v5498 = vrot.slane %v3676, %v5497
    %v5499 = vsel %vm3896, %v5498, %v5494
    %v5500 = vlaneseq
    %v5501 = vshrl.u32 %v5500, 7
    %v5502 = vsub.s32 %v3898, %v5501
    %v5503 = vrot.slane %v3677, %v5502
    %v5504 = vsel %vm3903, %v5503, %v5499
    %v5505 = vlaneseq
    %v5506 = vshrl.u32 %v5505, 7
    %v5507 = vsub.s32 %v3905, %v5506
    %v5508 = vrot.slane %v3678, %v5507
    %v5509 = vsel %vm3910, %v5508, %v5504
    %v5510 = vlaneseq
    %v5511 = vshrl.u32 %v5510, 7
    %v5512 = vsub.s32 %v3912, %v5511
    %v5513 = vrot.slane %v3679, %v5512
    %v5514 = vsel %vm3917, %v5513, %v5509
    %v5515 = vlaneseq
    %v5516 = vshrl.u32 %v5515, 7
    %v5517 = vsub.s32 %v3919, %v5516
    %v5518 = vrot.slane %v3680, %v5517
    %v5519 = vsel %vm3924, %v5518, %v5514
    %v5520 = vlaneseq
    %v5521 = vshrl.u32 %v5520, 7
    %v5522 = vsub.s32 %v3926, %v5521
    %v5523 = vrot.slane %v3681, %v5522
    %v5524 = vsel %vm3931, %v5523, %v5519
    %v5525 = vlaneseq
    %v5526 = vshrl.u32 %v5525, 7
    %v5527 = vsub.s32 %v3933, %v5526
    %v5528 = vrot.slane %v3682, %v5527
    %v5529 = vsel %vm3938, %v5528, %v5524
    %v5530 = vlaneseq
    %v5531 = vshrl.u32 %v5530, 7
    %v5532 = vsub.s32 %v3940, %v5531
    %v5533 = vrot.slane %v3683, %v5532
    %v5534 = vsel %vm3945, %v5533, %v5529
    %v5535 = vlaneseq
    %v5536 = vshrl.u32 %v5535, 7
    %v5537 = vsub.s32 %v3947, %v5536
    %v5538 = vrot.slane %v3684, %v5537
    %v5539 = vsel %vm3952, %v5538, %v5534
    %v5540 = vlaneseq
    %v5541 = vshrl.u32 %v5540, 7
    %v5542 = vsub.s32 %v3954, %v5541
    %v5543 = vrot.slane %v3685, %v5542
    %v5544 = vsel %vm3959, %v5543, %v5539
    %v5545 = vlaneseq
    %v5546 = vshrl.u32 %v5545, 7
    %v5547 = vsub.s32 %v3961, %v5546
    %v5548 = vrot.slane %v3686, %v5547
    %v5549 = vsel %vm3966, %v5548, %v5544
    %v5550 = vlaneseq
    %v5551 = vshrl.u32 %v5550, 7
    %v5552 = vsub.s32 %v3968, %v5551
    %v5553 = vrot.slane %v3687, %v5552
    %v5554 = vsel %vm3973, %v5553, %v5549
    %v5555 = vlaneseq
    %v5556 = vshrl.u32 %v5555, 7
    %v5557 = vsub.s32 %v3865, %v5556
    %v5558 = vrot.slane %v3688, %v5557
    %v5559 = vlaneseq
    %v5560 = vshrl.u32 %v5559, 7
    %v5561 = vsub.s32 %v3870, %v5560
    %v5562 = vrot.slane %v3689, %v5561
    %v5563 = vsel %vm3875, %v5562, %v5558
    %v5564 = vlaneseq
    %v5565 = vshrl.u32 %v5564, 7
    %v5566 = vsub.s32 %v3877, %v5565
    %v5567 = vrot.slane %v3690, %v5566
    %v5568 = vsel %vm3882, %v5567, %v5563
    %v5569 = vlaneseq
    %v5570 = vshrl.u32 %v5569, 7
    %v5571 = vsub.s32 %v3884, %v5570
    %v5572 = vrot.slane %v3691, %v5571
    %v5573 = vsel %vm3889, %v5572, %v5568
    %v5574 = vlaneseq
    %v5575 = vshrl.u32 %v5574, 7
    %v5576 = vsub.s32 %v3891, %v5575
    %v5577 = vrot.slane %v3692, %v5576
    %v5578 = vsel %vm3896, %v5577, %v5573
    %v5579 = vlaneseq
    %v5580 = vshrl.u32 %v5579, 7
    %v5581 = vsub.s32 %v3898, %v5580
    %v5582 = vrot.slane %v3693, %v5581
    %v5583 = vsel %vm3903, %v5582, %v5578
    %v5584 = vlaneseq
    %v5585 = vshrl.u32 %v5584, 7
    %v5586 = vsub.s32 %v3905, %v5585
    %v5587 = vrot.slane %v3694, %v5586
    %v5588 = vsel %vm3910, %v5587, %v5583
    %v5589 = vlaneseq
    %v5590 = vshrl.u32 %v5589, 7
    %v5591 = vsub.s32 %v3912, %v5590
    %v5592 = vrot.slane %v3695, %v5591
    %v5593 = vsel %vm3917, %v5592, %v5588
    %v5594 = vlaneseq
    %v5595 = vshrl.u32 %v5594, 7
    %v5596 = vsub.s32 %v3919, %v5595
    %v5597 = vrot.slane %v3696, %v5596
    %v5598 = vsel %vm3924, %v5597, %v5593
    %v5599 = vlaneseq
    %v5600 = vshrl.u32 %v5599, 7
    %v5601 = vsub.s32 %v3926, %v5600
    %v5602 = vrot.slane %v3697, %v5601
    %v5603 = vsel %vm3931, %v5602, %v5598
    %v5604 = vlaneseq
    %v5605 = vshrl.u32 %v5604, 7
    %v5606 = vsub.s32 %v3933, %v5605
    %v5607 = vrot.slane %v3698, %v5606
    %v5608 = vsel %vm3938, %v5607, %v5603
    %v5609 = vlaneseq
    %v5610 = vshrl.u32 %v5609, 7
    %v5611 = vsub.s32 %v3940, %v5610
    %v5612 = vrot.slane %v3699, %v5611
    %v5613 = vsel %vm3945, %v5612, %v5608
    %v5614 = vlaneseq
    %v5615 = vshrl.u32 %v5614, 7
    %v5616 = vsub.s32 %v3947, %v5615
    %v5617 = vrot.slane %v3700, %v5616
    %v5618 = vsel %vm3952, %v5617, %v5613
    %v5619 = vlaneseq
    %v5620 = vshrl.u32 %v5619, 7
    %v5621 = vsub.s32 %v3954, %v5620
    %v5622 = vrot.slane %v3701, %v5621
    %v5623 = vsel %vm3959, %v5622, %v5618
    %v5624 = vlaneseq
    %v5625 = vshrl.u32 %v5624, 7
    %v5626 = vsub.s32 %v3961, %v5625
    %v5627 = vrot.slane %v3702, %v5626
    %v5628 = vsel %vm3966, %v5627, %v5623
    %v5629 = vlaneseq
    %v5630 = vshrl.u32 %v5629, 7
    %v5631 = vsub.s32 %v3968, %v5630
    %v5632 = vrot.slane %v3703, %v5631
    %v5633 = vsel %vm3973, %v5632, %v5628
    %v5634 = vlaneseq
    %v5635 = vshrl.u32 %v5634, 7
    %v5636 = vsub.s32 %v3865, %v5635
    %v5637 = vrot.slane %v3704, %v5636
    %v5638 = vlaneseq
    %v5639 = vshrl.u32 %v5638, 7
    %v5640 = vsub.s32 %v3870, %v5639
    %v5641 = vrot.slane %v3705, %v5640
    %v5642 = vsel %vm3875, %v5641, %v5637
    %v5643 = vlaneseq
    %v5644 = vshrl.u32 %v5643, 7
    %v5645 = vsub.s32 %v3877, %v5644
    %v5646 = vrot.slane %v3706, %v5645
    %v5647 = vsel %vm3882, %v5646, %v5642
    %v5648 = vlaneseq
    %v5649 = vshrl.u32 %v5648, 7
    %v5650 = vsub.s32 %v3884, %v5649
    %v5651 = vrot.slane %v3707, %v5650
    %v5652 = vsel %vm3889, %v5651, %v5647
    %v5653 = vlaneseq
    %v5654 = vshrl.u32 %v5653, 7
    %v5655 = vsub.s32 %v3891, %v5654
    %v5656 = vrot.slane %v3708, %v5655
    %v5657 = vsel %vm3896, %v5656, %v5652
    %v5658 = vlaneseq
    %v5659 = vshrl.u32 %v5658, 7
    %v5660 = vsub.s32 %v3898, %v5659
    %v5661 = vrot.slane %v3709, %v5660
    %v5662 = vsel %vm3903, %v5661, %v5657
    %v5663 = vlaneseq
    %v5664 = vshrl.u32 %v5663, 7
    %v5665 = vsub.s32 %v3905, %v5664
    %v5666 = vrot.slane %v3710, %v5665
    %v5667 = vsel %vm3910, %v5666, %v5662
    %v5668 = vlaneseq
    %v5669 = vshrl.u32 %v5668, 7
    %v5670 = vsub.s32 %v3912, %v5669
    %v5671 = vrot.slane %v3711, %v5670
    %v5672 = vsel %vm3917, %v5671, %v5667
    %v5673 = vlaneseq
    %v5674 = vshrl.u32 %v5673, 7
    %v5675 = vsub.s32 %v3919, %v5674
    %v5676 = vrot.slane %v3712, %v5675
    %v5677 = vsel %vm3924, %v5676, %v5672
    %v5678 = vlaneseq
    %v5679 = vshrl.u32 %v5678, 7
    %v5680 = vsub.s32 %v3926, %v5679
    %v5681 = vrot.slane %v3713, %v5680
    %v5682 = vsel %vm3931, %v5681, %v5677
    %v5683 = vlaneseq
    %v5684 = vshrl.u32 %v5683, 7
    %v5685 = vsub.s32 %v3933, %v5684
    %v5686 = vrot.slane %v3714, %v5685
    %v5687 = vsel %vm3938, %v5686, %v5682
    %v5688 = vlaneseq
    %v5689 = vshrl.u32 %v5688, 7
    %v5690 = vsub.s32 %v3940, %v5689
    %v5691 = vrot.slane %v3715, %v5690
    %v5692 = vsel %vm3945, %v5691, %v5687
    %v5693 = vlaneseq
    %v5694 = vshrl.u32 %v5693, 7
    %v5695 = vsub.s32 %v3947, %v5694
    %v5696 = vrot.slane %v3716, %v5695
    %v5697 = vsel %vm3952, %v5696, %v5692
    %v5698 = vlaneseq
    %v5699 = vshrl.u32 %v5698, 7
    %v5700 = vsub.s32 %v3954, %v5699
    %v5701 = vrot.slane %v3717, %v5700
    %v5702 = vsel %vm3959, %v5701, %v5697
    %v5703 = vlaneseq
    %v5704 = vshrl.u32 %v5703, 7
    %v5705 = vsub.s32 %v3961, %v5704
    %v5706 = vrot.slane %v3718, %v5705
    %v5707 = vsel %vm3966, %v5706, %v5702
    %v5708 = vlaneseq
    %v5709 = vshrl.u32 %v5708, 7
    %v5710 = vsub.s32 %v3968, %v5709
    %v5711 = vrot.slane %v3719, %v5710
    %v5712 = vsel %vm3973, %v5711, %v5707
    %v5713 = vlaneseq
    %v5714 = vshrl.u32 %v5713, 7
    %v5715 = vsub.s32 %v3865, %v5714
    %v5716 = vrot.slane %v3720, %v5715
    %v5717 = vlaneseq
    %v5718 = vshrl.u32 %v5717, 7
    %v5719 = vsub.s32 %v3870, %v5718
    %v5720 = vrot.slane %v3721, %v5719
    %v5721 = vsel %vm3875, %v5720, %v5716
    %v5722 = vlaneseq
    %v5723 = vshrl.u32 %v5722, 7
    %v5724 = vsub.s32 %v3877, %v5723
    %v5725 = vrot.slane %v3722, %v5724
    %v5726 = vsel %vm3882, %v5725, %v5721
    %v5727 = vlaneseq
    %v5728 = vshrl.u32 %v5727, 7
    %v5729 = vsub.s32 %v3884, %v5728
    %v5730 = vrot.slane %v3723, %v5729
    %v5731 = vsel %vm3889, %v5730, %v5726
    %v5732 = vlaneseq
    %v5733 = vshrl.u32 %v5732, 7
    %v5734 = vsub.s32 %v3891, %v5733
    %v5735 = vrot.slane %v3724, %v5734
    %v5736 = vsel %vm3896, %v5735, %v5731
    %v5737 = vlaneseq
    %v5738 = vshrl.u32 %v5737, 7
    %v5739 = vsub.s32 %v3898, %v5738
    %v5740 = vrot.slane %v3725, %v5739
    %v5741 = vsel %vm3903, %v5740, %v5736
    %v5742 = vlaneseq
    %v5743 = vshrl.u32 %v5742, 7
    %v5744 = vsub.s32 %v3905, %v5743
    %v5745 = vrot.slane %v3726, %v5744
    %v5746 = vsel %vm3910, %v5745, %v5741
    %v5747 = vlaneseq
    %v5748 = vshrl.u32 %v5747, 7
    %v5749 = vsub.s32 %v3912, %v5748
    %v5750 = vrot.slane %v3727, %v5749
    %v5751 = vsel %vm3917, %v5750, %v5746
    %v5752 = vlaneseq
    %v5753 = vshrl.u32 %v5752, 7
    %v5754 = vsub.s32 %v3919, %v5753
    %v5755 = vrot.slane %v3728, %v5754
    %v5756 = vsel %vm3924, %v5755, %v5751
    %v5757 = vlaneseq
    %v5758 = vshrl.u32 %v5757, 7
    %v5759 = vsub.s32 %v3926, %v5758
    %v5760 = vrot.slane %v3729, %v5759
    %v5761 = vsel %vm3931, %v5760, %v5756
    %v5762 = vlaneseq
    %v5763 = vshrl.u32 %v5762, 7
    %v5764 = vsub.s32 %v3933, %v5763
    %v5765 = vrot.slane %v3730, %v5764
    %v5766 = vsel %vm3938, %v5765, %v5761
    %v5767 = vlaneseq
    %v5768 = vshrl.u32 %v5767, 7
    %v5769 = vsub.s32 %v3940, %v5768
    %v5770 = vrot.slane %v3731, %v5769
    %v5771 = vsel %vm3945, %v5770, %v5766
    %v5772 = vlaneseq
    %v5773 = vshrl.u32 %v5772, 7
    %v5774 = vsub.s32 %v3947, %v5773
    %v5775 = vrot.slane %v3732, %v5774
    %v5776 = vsel %vm3952, %v5775, %v5771
    %v5777 = vlaneseq
    %v5778 = vshrl.u32 %v5777, 7
    %v5779 = vsub.s32 %v3954, %v5778
    %v5780 = vrot.slane %v3733, %v5779
    %v5781 = vsel %vm3959, %v5780, %v5776
    %v5782 = vlaneseq
    %v5783 = vshrl.u32 %v5782, 7
    %v5784 = vsub.s32 %v3961, %v5783
    %v5785 = vrot.slane %v3734, %v5784
    %v5786 = vsel %vm3966, %v5785, %v5781
    %v5787 = vlaneseq
    %v5788 = vshrl.u32 %v5787, 7
    %v5789 = vsub.s32 %v3968, %v5788
    %v5790 = vrot.slane %v3735, %v5789
    %v5791 = vsel %vm3973, %v5790, %v5786
    %v5792 = vlaneseq
    %v5793 = vshrl.u32 %v5792, 7
    %v5794 = vsub.s32 %v3865, %v5793
    %v5795 = vrot.slane %v3736, %v5794
    %v5796 = vlaneseq
    %v5797 = vshrl.u32 %v5796, 7
    %v5798 = vsub.s32 %v3870, %v5797
    %v5799 = vrot.slane %v3737, %v5798
    %v5800 = vsel %vm3875, %v5799, %v5795
    %v5801 = vlaneseq
    %v5802 = vshrl.u32 %v5801, 7
    %v5803 = vsub.s32 %v3877, %v5802
    %v5804 = vrot.slane %v3738, %v5803
    %v5805 = vsel %vm3882, %v5804, %v5800
    %v5806 = vlaneseq
    %v5807 = vshrl.u32 %v5806, 7
    %v5808 = vsub.s32 %v3884, %v5807
    %v5809 = vrot.slane %v3739, %v5808
    %v5810 = vsel %vm3889, %v5809, %v5805
    %v5811 = vlaneseq
    %v5812 = vshrl.u32 %v5811, 7
    %v5813 = vsub.s32 %v3891, %v5812
    %v5814 = vrot.slane %v3740, %v5813
    %v5815 = vsel %vm3896, %v5814, %v5810
    %v5816 = vlaneseq
    %v5817 = vshrl.u32 %v5816, 7
    %v5818 = vsub.s32 %v3898, %v5817
    %v5819 = vrot.slane %v3741, %v5818
    %v5820 = vsel %vm3903, %v5819, %v5815
    %v5821 = vlaneseq
    %v5822 = vshrl.u32 %v5821, 7
    %v5823 = vsub.s32 %v3905, %v5822
    %v5824 = vrot.slane %v3742, %v5823
    %v5825 = vsel %vm3910, %v5824, %v5820
    %v5826 = vlaneseq
    %v5827 = vshrl.u32 %v5826, 7
    %v5828 = vsub.s32 %v3912, %v5827
    %v5829 = vrot.slane %v3743, %v5828
    %v5830 = vsel %vm3917, %v5829, %v5825
    %v5831 = vlaneseq
    %v5832 = vshrl.u32 %v5831, 7
    %v5833 = vsub.s32 %v3919, %v5832
    %v5834 = vrot.slane %v3744, %v5833
    %v5835 = vsel %vm3924, %v5834, %v5830
    %v5836 = vlaneseq
    %v5837 = vshrl.u32 %v5836, 7
    %v5838 = vsub.s32 %v3926, %v5837
    %v5839 = vrot.slane %v3745, %v5838
    %v5840 = vsel %vm3931, %v5839, %v5835
    %v5841 = vlaneseq
    %v5842 = vshrl.u32 %v5841, 7
    %v5843 = vsub.s32 %v3933, %v5842
    %v5844 = vrot.slane %v3746, %v5843
    %v5845 = vsel %vm3938, %v5844, %v5840
    %v5846 = vlaneseq
    %v5847 = vshrl.u32 %v5846, 7
    %v5848 = vsub.s32 %v3940, %v5847
    %v5849 = vrot.slane %v3747, %v5848
    %v5850 = vsel %vm3945, %v5849, %v5845
    %v5851 = vlaneseq
    %v5852 = vshrl.u32 %v5851, 7
    %v5853 = vsub.s32 %v3947, %v5852
    %v5854 = vrot.slane %v3748, %v5853
    %v5855 = vsel %vm3952, %v5854, %v5850
    %v5856 = vlaneseq
    %v5857 = vshrl.u32 %v5856, 7
    %v5858 = vsub.s32 %v3954, %v5857
    %v5859 = vrot.slane %v3749, %v5858
    %v5860 = vsel %vm3959, %v5859, %v5855
    %v5861 = vlaneseq
    %v5862 = vshrl.u32 %v5861, 7
    %v5863 = vsub.s32 %v3961, %v5862
    %v5864 = vrot.slane %v3750, %v5863
    %v5865 = vsel %vm3966, %v5864, %v5860
    %v5866 = vlaneseq
    %v5867 = vshrl.u32 %v5866, 7
    %v5868 = vsub.s32 %v3968, %v5867
    %v5869 = vrot.slane %v3751, %v5868
    %v5870 = vsel %vm3973, %v5869, %v5865
    %v5871 = vlaneseq
    %v5872 = vshrl.u32 %v5871, 7
    %v5873 = vsub.s32 %v3865, %v5872
    %v5874 = vrot.slane %v3752, %v5873
    %v5875 = vlaneseq
    %v5876 = vshrl.u32 %v5875, 7
    %v5877 = vsub.s32 %v3870, %v5876
    %v5878 = vrot.slane %v3753, %v5877
    %v5879 = vsel %vm3875, %v5878, %v5874
    %v5880 = vlaneseq
    %v5881 = vshrl.u32 %v5880, 7
    %v5882 = vsub.s32 %v3877, %v5881
    %v5883 = vrot.slane %v3754, %v5882
    %v5884 = vsel %vm3882, %v5883, %v5879
    %v5885 = vlaneseq
    %v5886 = vshrl.u32 %v5885, 7
    %v5887 = vsub.s32 %v3884, %v5886
    %v5888 = vrot.slane %v3755, %v5887
    %v5889 = vsel %vm3889, %v5888, %v5884
    %v5890 = vlaneseq
    %v5891 = vshrl.u32 %v5890, 7
    %v5892 = vsub.s32 %v3891, %v5891
    %v5893 = vrot.slane %v3756, %v5892
    %v5894 = vsel %vm3896, %v5893, %v5889
    %v5895 = vlaneseq
    %v5896 = vshrl.u32 %v5895, 7
    %v5897 = vsub.s32 %v3898, %v5896
    %v5898 = vrot.slane %v3757, %v5897
    %v5899 = vsel %vm3903, %v5898, %v5894
    %v5900 = vlaneseq
    %v5901 = vshrl.u32 %v5900, 7
    %v5902 = vsub.s32 %v3905, %v5901
    %v5903 = vrot.slane %v3758, %v5902
    %v5904 = vsel %vm3910, %v5903, %v5899
    %v5905 = vlaneseq
    %v5906 = vshrl.u32 %v5905, 7
    %v5907 = vsub.s32 %v3912, %v5906
    %v5908 = vrot.slane %v3759, %v5907
    %v5909 = vsel %vm3917, %v5908, %v5904
    %v5910 = vlaneseq
    %v5911 = vshrl.u32 %v5910, 7
    %v5912 = vsub.s32 %v3919, %v5911
    %v5913 = vrot.slane %v3760, %v5912
    %v5914 = vsel %vm3924, %v5913, %v5909
    %v5915 = vlaneseq
    %v5916 = vshrl.u32 %v5915, 7
    %v5917 = vsub.s32 %v3926, %v5916
    %v5918 = vrot.slane %v3761, %v5917
    %v5919 = vsel %vm3931, %v5918, %v5914
    %v5920 = vlaneseq
    %v5921 = vshrl.u32 %v5920, 7
    %v5922 = vsub.s32 %v3933, %v5921
    %v5923 = vrot.slane %v3762, %v5922
    %v5924 = vsel %vm3938, %v5923, %v5919
    %v5925 = vlaneseq
    %v5926 = vshrl.u32 %v5925, 7
    %v5927 = vsub.s32 %v3940, %v5926
    %v5928 = vrot.slane %v3763, %v5927
    %v5929 = vsel %vm3945, %v5928, %v5924
    %v5930 = vlaneseq
    %v5931 = vshrl.u32 %v5930, 7
    %v5932 = vsub.s32 %v3947, %v5931
    %v5933 = vrot.slane %v3764, %v5932
    %v5934 = vsel %vm3952, %v5933, %v5929
    %v5935 = vlaneseq
    %v5936 = vshrl.u32 %v5935, 7
    %v5937 = vsub.s32 %v3954, %v5936
    %v5938 = vrot.slane %v3765, %v5937
    %v5939 = vsel %vm3959, %v5938, %v5934
    %v5940 = vlaneseq
    %v5941 = vshrl.u32 %v5940, 7
    %v5942 = vsub.s32 %v3961, %v5941
    %v5943 = vrot.slane %v3766, %v5942
    %v5944 = vsel %vm3966, %v5943, %v5939
    %v5945 = vlaneseq
    %v5946 = vshrl.u32 %v5945, 7
    %v5947 = vsub.s32 %v3968, %v5946
    %v5948 = vrot.slane %v3767, %v5947
    %v5949 = vsel %vm3973, %v5948, %v5944
    %v5950 = vlaneseq
    %v5951 = vshrl.u32 %v5950, 7
    %v5952 = vsub.s32 %v3865, %v5951
    %v5953 = vrot.slane %v3768, %v5952
    %v5954 = vlaneseq
    %v5955 = vshrl.u32 %v5954, 7
    %v5956 = vsub.s32 %v3870, %v5955
    %v5957 = vrot.slane %v3769, %v5956
    %v5958 = vsel %vm3875, %v5957, %v5953
    %v5959 = vlaneseq
    %v5960 = vshrl.u32 %v5959, 7
    %v5961 = vsub.s32 %v3877, %v5960
    %v5962 = vrot.slane %v3770, %v5961
    %v5963 = vsel %vm3882, %v5962, %v5958
    %v5964 = vlaneseq
    %v5965 = vshrl.u32 %v5964, 7
    %v5966 = vsub.s32 %v3884, %v5965
    %v5967 = vrot.slane %v3771, %v5966
    %v5968 = vsel %vm3889, %v5967, %v5963
    %v5969 = vlaneseq
    %v5970 = vshrl.u32 %v5969, 7
    %v5971 = vsub.s32 %v3891, %v5970
    %v5972 = vrot.slane %v3772, %v5971
    %v5973 = vsel %vm3896, %v5972, %v5968
    %v5974 = vlaneseq
    %v5975 = vshrl.u32 %v5974, 7
    %v5976 = vsub.s32 %v3898, %v5975
    %v5977 = vrot.slane %v3773, %v5976
    %v5978 = vsel %vm3903, %v5977, %v5973
    %v5979 = vlaneseq
    %v5980 = vshrl.u32 %v5979, 7
    %v5981 = vsub.s32 %v3905, %v5980
    %v5982 = vrot.slane %v3774, %v5981
    %v5983 = vsel %vm3910, %v5982, %v5978
    %v5984 = vlaneseq
    %v5985 = vshrl.u32 %v5984, 7
    %v5986 = vsub.s32 %v3912, %v5985
    %v5987 = vrot.slane %v3775, %v5986
    %v5988 = vsel %vm3917, %v5987, %v5983
    %v5989 = vlaneseq
    %v5990 = vshrl.u32 %v5989, 7
    %v5991 = vsub.s32 %v3919, %v5990
    %v5992 = vrot.slane %v3776, %v5991
    %v5993 = vsel %vm3924, %v5992, %v5988
    %v5994 = vlaneseq
    %v5995 = vshrl.u32 %v5994, 7
    %v5996 = vsub.s32 %v3926, %v5995
    %v5997 = vrot.slane %v3777, %v5996
    %v5998 = vsel %vm3931, %v5997, %v5993
    %v5999 = vlaneseq
    %v6000 = vshrl.u32 %v5999, 7
    %v6001 = vsub.s32 %v3933, %v6000
    %v6002 = vrot.slane %v3778, %v6001
    %v6003 = vsel %vm3938, %v6002, %v5998
    %v6004 = vlaneseq
    %v6005 = vshrl.u32 %v6004, 7
    %v6006 = vsub.s32 %v3940, %v6005
    %v6007 = vrot.slane %v3779, %v6006
    %v6008 = vsel %vm3945, %v6007, %v6003
    %v6009 = vlaneseq
    %v6010 = vshrl.u32 %v6009, 7
    %v6011 = vsub.s32 %v3947, %v6010
    %v6012 = vrot.slane %v3780, %v6011
    %v6013 = vsel %vm3952, %v6012, %v6008
    %v6014 = vlaneseq
    %v6015 = vshrl.u32 %v6014, 7
    %v6016 = vsub.s32 %v3954, %v6015
    %v6017 = vrot.slane %v3781, %v6016
    %v6018 = vsel %vm3959, %v6017, %v6013
    %v6019 = vlaneseq
    %v6020 = vshrl.u32 %v6019, 7
    %v6021 = vsub.s32 %v3961, %v6020
    %v6022 = vrot.slane %v3782, %v6021
    %v6023 = vsel %vm3966, %v6022, %v6018
    %v6024 = vlaneseq
    %v6025 = vshrl.u32 %v6024, 7
    %v6026 = vsub.s32 %v3968, %v6025
    %v6027 = vrot.slane %v3783, %v6026
    %v6028 = vsel %vm3973, %v6027, %v6023
    %v6029 = vlaneseq
    %v6030 = vshrl.u32 %v6029, 7
    %v6031 = vsub.s32 %v3865, %v6030
    %v6032 = vrot.slane %v3784, %v6031
    %v6033 = vlaneseq
    %v6034 = vshrl.u32 %v6033, 7
    %v6035 = vsub.s32 %v3870, %v6034
    %v6036 = vrot.slane %v3785, %v6035
    %v6037 = vsel %vm3875, %v6036, %v6032
    %v6038 = vlaneseq
    %v6039 = vshrl.u32 %v6038, 7
    %v6040 = vsub.s32 %v3877, %v6039
    %v6041 = vrot.slane %v3786, %v6040
    %v6042 = vsel %vm3882, %v6041, %v6037
    %v6043 = vlaneseq
    %v6044 = vshrl.u32 %v6043, 7
    %v6045 = vsub.s32 %v3884, %v6044
    %v6046 = vrot.slane %v3787, %v6045
    %v6047 = vsel %vm3889, %v6046, %v6042
    %v6048 = vlaneseq
    %v6049 = vshrl.u32 %v6048, 7
    %v6050 = vsub.s32 %v3891, %v6049
    %v6051 = vrot.slane %v3788, %v6050
    %v6052 = vsel %vm3896, %v6051, %v6047
    %v6053 = vlaneseq
    %v6054 = vshrl.u32 %v6053, 7
    %v6055 = vsub.s32 %v3898, %v6054
    %v6056 = vrot.slane %v3789, %v6055
    %v6057 = vsel %vm3903, %v6056, %v6052
    %v6058 = vlaneseq
    %v6059 = vshrl.u32 %v6058, 7
    %v6060 = vsub.s32 %v3905, %v6059
    %v6061 = vrot.slane %v3790, %v6060
    %v6062 = vsel %vm3910, %v6061, %v6057
    %v6063 = vlaneseq
    %v6064 = vshrl.u32 %v6063, 7
    %v6065 = vsub.s32 %v3912, %v6064
    %v6066 = vrot.slane %v3791, %v6065
    %v6067 = vsel %vm3917, %v6066, %v6062
    %v6068 = vlaneseq
    %v6069 = vshrl.u32 %v6068, 7
    %v6070 = vsub.s32 %v3919, %v6069
    %v6071 = vrot.slane %v3792, %v6070
    %v6072 = vsel %vm3924, %v6071, %v6067
    %v6073 = vlaneseq
    %v6074 = vshrl.u32 %v6073, 7
    %v6075 = vsub.s32 %v3926, %v6074
    %v6076 = vrot.slane %v3793, %v6075
    %v6077 = vsel %vm3931, %v6076, %v6072
    %v6078 = vlaneseq
    %v6079 = vshrl.u32 %v6078, 7
    %v6080 = vsub.s32 %v3933, %v6079
    %v6081 = vrot.slane %v3794, %v6080
    %v6082 = vsel %vm3938, %v6081, %v6077
    %v6083 = vlaneseq
    %v6084 = vshrl.u32 %v6083, 7
    %v6085 = vsub.s32 %v3940, %v6084
    %v6086 = vrot.slane %v3795, %v6085
    %v6087 = vsel %vm3945, %v6086, %v6082
    %v6088 = vlaneseq
    %v6089 = vshrl.u32 %v6088, 7
    %v6090 = vsub.s32 %v3947, %v6089
    %v6091 = vrot.slane %v3796, %v6090
    %v6092 = vsel %vm3952, %v6091, %v6087
    %v6093 = vlaneseq
    %v6094 = vshrl.u32 %v6093, 7
    %v6095 = vsub.s32 %v3954, %v6094
    %v6096 = vrot.slane %v3797, %v6095
    %v6097 = vsel %vm3959, %v6096, %v6092
    %v6098 = vlaneseq
    %v6099 = vshrl.u32 %v6098, 7
    %v6100 = vsub.s32 %v3961, %v6099
    %v6101 = vrot.slane %v3798, %v6100
    %v6102 = vsel %vm3966, %v6101, %v6097
    %v6103 = vlaneseq
    %v6104 = vshrl.u32 %v6103, 7
    %v6105 = vsub.s32 %v3968, %v6104
    %v6106 = vrot.slane %v3799, %v6105
    %v6107 = vsel %vm3973, %v6106, %v6102
    %v6108 = vlaneseq
    %v6109 = vshrl.u32 %v6108, 7
    %v6110 = vsub.s32 %v3865, %v6109
    %v6111 = vrot.slane %v3800, %v6110
    %v6112 = vlaneseq
    %v6113 = vshrl.u32 %v6112, 7
    %v6114 = vsub.s32 %v3870, %v6113
    %v6115 = vrot.slane %v3801, %v6114
    %v6116 = vsel %vm3875, %v6115, %v6111
    %v6117 = vlaneseq
    %v6118 = vshrl.u32 %v6117, 7
    %v6119 = vsub.s32 %v3877, %v6118
    %v6120 = vrot.slane %v3802, %v6119
    %v6121 = vsel %vm3882, %v6120, %v6116
    %v6122 = vlaneseq
    %v6123 = vshrl.u32 %v6122, 7
    %v6124 = vsub.s32 %v3884, %v6123
    %v6125 = vrot.slane %v3803, %v6124
    %v6126 = vsel %vm3889, %v6125, %v6121
    %v6127 = vlaneseq
    %v6128 = vshrl.u32 %v6127, 7
    %v6129 = vsub.s32 %v3891, %v6128
    %v6130 = vrot.slane %v3804, %v6129
    %v6131 = vsel %vm3896, %v6130, %v6126
    %v6132 = vlaneseq
    %v6133 = vshrl.u32 %v6132, 7
    %v6134 = vsub.s32 %v3898, %v6133
    %v6135 = vrot.slane %v3805, %v6134
    %v6136 = vsel %vm3903, %v6135, %v6131
    %v6137 = vlaneseq
    %v6138 = vshrl.u32 %v6137, 7
    %v6139 = vsub.s32 %v3905, %v6138
    %v6140 = vrot.slane %v3806, %v6139
    %v6141 = vsel %vm3910, %v6140, %v6136
    %v6142 = vlaneseq
    %v6143 = vshrl.u32 %v6142, 7
    %v6144 = vsub.s32 %v3912, %v6143
    %v6145 = vrot.slane %v3807, %v6144
    %v6146 = vsel %vm3917, %v6145, %v6141
    %v6147 = vlaneseq
    %v6148 = vshrl.u32 %v6147, 7
    %v6149 = vsub.s32 %v3919, %v6148
    %v6150 = vrot.slane %v3808, %v6149
    %v6151 = vsel %vm3924, %v6150, %v6146
    %v6152 = vlaneseq
    %v6153 = vshrl.u32 %v6152, 7
    %v6154 = vsub.s32 %v3926, %v6153
    %v6155 = vrot.slane %v3809, %v6154
    %v6156 = vsel %vm3931, %v6155, %v6151
    %v6157 = vlaneseq
    %v6158 = vshrl.u32 %v6157, 7
    %v6159 = vsub.s32 %v3933, %v6158
    %v6160 = vrot.slane %v3810, %v6159
    %v6161 = vsel %vm3938, %v6160, %v6156
    %v6162 = vlaneseq
    %v6163 = vshrl.u32 %v6162, 7
    %v6164 = vsub.s32 %v3940, %v6163
    %v6165 = vrot.slane %v3811, %v6164
    %v6166 = vsel %vm3945, %v6165, %v6161
    %v6167 = vlaneseq
    %v6168 = vshrl.u32 %v6167, 7
    %v6169 = vsub.s32 %v3947, %v6168
    %v6170 = vrot.slane %v3812, %v6169
    %v6171 = vsel %vm3952, %v6170, %v6166
    %v6172 = vlaneseq
    %v6173 = vshrl.u32 %v6172, 7
    %v6174 = vsub.s32 %v3954, %v6173
    %v6175 = vrot.slane %v3813, %v6174
    %v6176 = vsel %vm3959, %v6175, %v6171
    %v6177 = vlaneseq
    %v6178 = vshrl.u32 %v6177, 7
    %v6179 = vsub.s32 %v3961, %v6178
    %v6180 = vrot.slane %v3814, %v6179
    %v6181 = vsel %vm3966, %v6180, %v6176
    %v6182 = vlaneseq
    %v6183 = vshrl.u32 %v6182, 7
    %v6184 = vsub.s32 %v3968, %v6183
    %v6185 = vrot.slane %v3815, %v6184
    %v6186 = vsel %vm3973, %v6185, %v6181
    %v6187 = vlaneseq
    %v6188 = vshrl.u32 %v6187, 7
    %v6189 = vsub.s32 %v3865, %v6188
    %v6190 = vrot.slane %v3816, %v6189
    %v6191 = vlaneseq
    %v6192 = vshrl.u32 %v6191, 7
    %v6193 = vsub.s32 %v3870, %v6192
    %v6194 = vrot.slane %v3817, %v6193
    %v6195 = vsel %vm3875, %v6194, %v6190
    %v6196 = vlaneseq
    %v6197 = vshrl.u32 %v6196, 7
    %v6198 = vsub.s32 %v3877, %v6197
    %v6199 = vrot.slane %v3818, %v6198
    %v6200 = vsel %vm3882, %v6199, %v6195
    %v6201 = vlaneseq
    %v6202 = vshrl.u32 %v6201, 7
    %v6203 = vsub.s32 %v3884, %v6202
    %v6204 = vrot.slane %v3819, %v6203
    %v6205 = vsel %vm3889, %v6204, %v6200
    %v6206 = vlaneseq
    %v6207 = vshrl.u32 %v6206, 7
    %v6208 = vsub.s32 %v3891, %v6207
    %v6209 = vrot.slane %v3820, %v6208
    %v6210 = vsel %vm3896, %v6209, %v6205
    %v6211 = vlaneseq
    %v6212 = vshrl.u32 %v6211, 7
    %v6213 = vsub.s32 %v3898, %v6212
    %v6214 = vrot.slane %v3821, %v6213
    %v6215 = vsel %vm3903, %v6214, %v6210
    %v6216 = vlaneseq
    %v6217 = vshrl.u32 %v6216, 7
    %v6218 = vsub.s32 %v3905, %v6217
    %v6219 = vrot.slane %v3822, %v6218
    %v6220 = vsel %vm3910, %v6219, %v6215
    %v6221 = vlaneseq
    %v6222 = vshrl.u32 %v6221, 7
    %v6223 = vsub.s32 %v3912, %v6222
    %v6224 = vrot.slane %v3823, %v6223
    %v6225 = vsel %vm3917, %v6224, %v6220
    %v6226 = vlaneseq
    %v6227 = vshrl.u32 %v6226, 7
    %v6228 = vsub.s32 %v3919, %v6227
    %v6229 = vrot.slane %v3824, %v6228
    %v6230 = vsel %vm3924, %v6229, %v6225
    %v6231 = vlaneseq
    %v6232 = vshrl.u32 %v6231, 7
    %v6233 = vsub.s32 %v3926, %v6232
    %v6234 = vrot.slane %v3825, %v6233
    %v6235 = vsel %vm3931, %v6234, %v6230
    %v6236 = vlaneseq
    %v6237 = vshrl.u32 %v6236, 7
    %v6238 = vsub.s32 %v3933, %v6237
    %v6239 = vrot.slane %v3826, %v6238
    %v6240 = vsel %vm3938, %v6239, %v6235
    %v6241 = vlaneseq
    %v6242 = vshrl.u32 %v6241, 7
    %v6243 = vsub.s32 %v3940, %v6242
    %v6244 = vrot.slane %v3827, %v6243
    %v6245 = vsel %vm3945, %v6244, %v6240
    %v6246 = vlaneseq
    %v6247 = vshrl.u32 %v6246, 7
    %v6248 = vsub.s32 %v3947, %v6247
    %v6249 = vrot.slane %v3828, %v6248
    %v6250 = vsel %vm3952, %v6249, %v6245
    %v6251 = vlaneseq
    %v6252 = vshrl.u32 %v6251, 7
    %v6253 = vsub.s32 %v3954, %v6252
    %v6254 = vrot.slane %v3829, %v6253
    %v6255 = vsel %vm3959, %v6254, %v6250
    %v6256 = vlaneseq
    %v6257 = vshrl.u32 %v6256, 7
    %v6258 = vsub.s32 %v3961, %v6257
    %v6259 = vrot.slane %v3830, %v6258
    %v6260 = vsel %vm3966, %v6259, %v6255
    %v6261 = vlaneseq
    %v6262 = vshrl.u32 %v6261, 7
    %v6263 = vsub.s32 %v3968, %v6262
    %v6264 = vrot.slane %v3831, %v6263
    %v6265 = vsel %vm3973, %v6264, %v6260
    %v6266 = vlaneseq
    %v6267 = vshrl.u32 %v6266, 7
    %v6268 = vsub.s32 %v3865, %v6267
    %v6269 = vrot.slane %v3832, %v6268
    %v6270 = vlaneseq
    %v6271 = vshrl.u32 %v6270, 7
    %v6272 = vsub.s32 %v3870, %v6271
    %v6273 = vrot.slane %v3833, %v6272
    %v6274 = vsel %vm3875, %v6273, %v6269
    %v6275 = vlaneseq
    %v6276 = vshrl.u32 %v6275, 7
    %v6277 = vsub.s32 %v3877, %v6276
    %v6278 = vrot.slane %v3834, %v6277
    %v6279 = vsel %vm3882, %v6278, %v6274
    %v6280 = vlaneseq
    %v6281 = vshrl.u32 %v6280, 7
    %v6282 = vsub.s32 %v3884, %v6281
    %v6283 = vrot.slane %v3835, %v6282
    %v6284 = vsel %vm3889, %v6283, %v6279
    %v6285 = vlaneseq
    %v6286 = vshrl.u32 %v6285, 7
    %v6287 = vsub.s32 %v3891, %v6286
    %v6288 = vrot.slane %v3836, %v6287
    %v6289 = vsel %vm3896, %v6288, %v6284
    %v6290 = vlaneseq
    %v6291 = vshrl.u32 %v6290, 7
    %v6292 = vsub.s32 %v3898, %v6291
    %v6293 = vrot.slane %v3837, %v6292
    %v6294 = vsel %vm3903, %v6293, %v6289
    %v6295 = vlaneseq
    %v6296 = vshrl.u32 %v6295, 7
    %v6297 = vsub.s32 %v3905, %v6296
    %v6298 = vrot.slane %v3838, %v6297
    %v6299 = vsel %vm3910, %v6298, %v6294
    %v6300 = vlaneseq
    %v6301 = vshrl.u32 %v6300, 7
    %v6302 = vsub.s32 %v3912, %v6301
    %v6303 = vrot.slane %v3839, %v6302
    %v6304 = vsel %vm3917, %v6303, %v6299
    %v6305 = vlaneseq
    %v6306 = vshrl.u32 %v6305, 7
    %v6307 = vsub.s32 %v3919, %v6306
    %v6308 = vrot.slane %v3840, %v6307
    %v6309 = vsel %vm3924, %v6308, %v6304
    %v6310 = vlaneseq
    %v6311 = vshrl.u32 %v6310, 7
    %v6312 = vsub.s32 %v3926, %v6311
    %v6313 = vrot.slane %v3841, %v6312
    %v6314 = vsel %vm3931, %v6313, %v6309
    %v6315 = vlaneseq
    %v6316 = vshrl.u32 %v6315, 7
    %v6317 = vsub.s32 %v3933, %v6316
    %v6318 = vrot.slane %v3842, %v6317
    %v6319 = vsel %vm3938, %v6318, %v6314
    %v6320 = vlaneseq
    %v6321 = vshrl.u32 %v6320, 7
    %v6322 = vsub.s32 %v3940, %v6321
    %v6323 = vrot.slane %v3843, %v6322
    %v6324 = vsel %vm3945, %v6323, %v6319
    %v6325 = vlaneseq
    %v6326 = vshrl.u32 %v6325, 7
    %v6327 = vsub.s32 %v3947, %v6326
    %v6328 = vrot.slane %v3844, %v6327
    %v6329 = vsel %vm3952, %v6328, %v6324
    %v6330 = vlaneseq
    %v6331 = vshrl.u32 %v6330, 7
    %v6332 = vsub.s32 %v3954, %v6331
    %v6333 = vrot.slane %v3845, %v6332
    %v6334 = vsel %vm3959, %v6333, %v6329
    %v6335 = vlaneseq
    %v6336 = vshrl.u32 %v6335, 7
    %v6337 = vsub.s32 %v3961, %v6336
    %v6338 = vrot.slane %v3846, %v6337
    %v6339 = vsel %vm3966, %v6338, %v6334
    %v6340 = vlaneseq
    %v6341 = vshrl.u32 %v6340, 7
    %v6342 = vsub.s32 %v3968, %v6341
    %v6343 = vrot.slane %v3847, %v6342
    %v6344 = vsel %vm3973, %v6343, %v6339
    %v6345 = vlaneseq
    %v6346 = vshrl.u32 %v6345, 7
    %v6347 = vsub.s32 %v3865, %v6346
    %v6348 = vrot.slane %v3848, %v6347
    %v6349 = vlaneseq
    %v6350 = vshrl.u32 %v6349, 7
    %v6351 = vsub.s32 %v3870, %v6350
    %v6352 = vrot.slane %v3849, %v6351
    %v6353 = vsel %vm3875, %v6352, %v6348
    %v6354 = vlaneseq
    %v6355 = vshrl.u32 %v6354, 7
    %v6356 = vsub.s32 %v3877, %v6355
    %v6357 = vrot.slane %v3850, %v6356
    %v6358 = vsel %vm3882, %v6357, %v6353
    %v6359 = vlaneseq
    %v6360 = vshrl.u32 %v6359, 7
    %v6361 = vsub.s32 %v3884, %v6360
    %v6362 = vrot.slane %v3851, %v6361
    %v6363 = vsel %vm3889, %v6362, %v6358
    %v6364 = vlaneseq
    %v6365 = vshrl.u32 %v6364, 7
    %v6366 = vsub.s32 %v3891, %v6365
    %v6367 = vrot.slane %v3852, %v6366
    %v6368 = vsel %vm3896, %v6367, %v6363
    %v6369 = vlaneseq
    %v6370 = vshrl.u32 %v6369, 7
    %v6371 = vsub.s32 %v3898, %v6370
    %v6372 = vrot.slane %v3853, %v6371
    %v6373 = vsel %vm3903, %v6372, %v6368
    %v6374 = vlaneseq
    %v6375 = vshrl.u32 %v6374, 7
    %v6376 = vsub.s32 %v3905, %v6375
    %v6377 = vrot.slane %v3854, %v6376
    %v6378 = vsel %vm3910, %v6377, %v6373
    %v6379 = vlaneseq
    %v6380 = vshrl.u32 %v6379, 7
    %v6381 = vsub.s32 %v3912, %v6380
    %v6382 = vrot.slane %v3855, %v6381
    %v6383 = vsel %vm3917, %v6382, %v6378
    %v6384 = vlaneseq
    %v6385 = vshrl.u32 %v6384, 7
    %v6386 = vsub.s32 %v3919, %v6385
    %v6387 = vrot.slane %v3856, %v6386
    %v6388 = vsel %vm3924, %v6387, %v6383
    %v6389 = vlaneseq
    %v6390 = vshrl.u32 %v6389, 7
    %v6391 = vsub.s32 %v3926, %v6390
    %v6392 = vrot.slane %v3857, %v6391
    %v6393 = vsel %vm3931, %v6392, %v6388
    %v6394 = vlaneseq
    %v6395 = vshrl.u32 %v6394, 7
    %v6396 = vsub.s32 %v3933, %v6395
    %v6397 = vrot.slane %v3858, %v6396
    %v6398 = vsel %vm3938, %v6397, %v6393
    %v6399 = vlaneseq
    %v6400 = vshrl.u32 %v6399, 7
    %v6401 = vsub.s32 %v3940, %v6400
    %v6402 = vrot.slane %v3859, %v6401
    %v6403 = vsel %vm3945, %v6402, %v6398
    %v6404 = vlaneseq
    %v6405 = vshrl.u32 %v6404, 7
    %v6406 = vsub.s32 %v3947, %v6405
    %v6407 = vrot.slane %v3860, %v6406
    %v6408 = vsel %vm3952, %v6407, %v6403
    %v6409 = vlaneseq
    %v6410 = vshrl.u32 %v6409, 7
    %v6411 = vsub.s32 %v3954, %v6410
    %v6412 = vrot.slane %v3861, %v6411
    %v6413 = vsel %vm3959, %v6412, %v6408
    %v6414 = vlaneseq
    %v6415 = vshrl.u32 %v6414, 7
    %v6416 = vsub.s32 %v3961, %v6415
    %v6417 = vrot.slane %v3862, %v6416
    %v6418 = vsel %vm3966, %v6417, %v6413
    %v6419 = vlaneseq
    %v6420 = vshrl.u32 %v6419, 7
    %v6421 = vsub.s32 %v3968, %v6420
    %v6422 = vrot.slane %v3863, %v6421
    %v6423 = vsel %vm3973, %v6422, %v6418
    %vm6424 = vcmask 1041409
    %v6425 = vsel %vm6424, %v5238, %v3974
    %v6426 = vsel %vm6424, %v5317, %v4053
    %v6427 = vsel %vm6424, %v5396, %v4132
    %v6428 = vsel %vm6424, %v5475, %v4211
    %v6429 = vsel %vm6424, %v5554, %v4290
    %v6430 = vsel %vm6424, %v5633, %v4369
    %v6431 = vsel %vm6424, %v5712, %v4448
    %v6432 = vsel %vm6424, %v5791, %v4527
    %v6433 = vsel %vm6424, %v5870, %v4606
    %v6434 = vsel %vm6424, %v5949, %v4685
    %v6435 = vsel %vm6424, %v6028, %v4764
    %v6436 = vsel %vm6424, %v6107, %v4843
    %v6437 = vsel %vm6424, %v6186, %v4922
    %v6438 = vsel %vm6424, %v6265, %v5001
    %v6439 = vsel %vm6424, %v6344, %v5080
    %v6440 = vsel %vm6424, %v6423, %v5159
    %v6441 = vpack.c.b16 %v6425, %v6425
    %v6442 = vpack.c.b16 %v6426, %v6426
    %v6443 = vpack.c.b16 %v6427, %v6427
    %v6444 = vpack.c.b16 %v6428, %v6428
    %v6445 = vpack.c.b16 %v6429, %v6429
    %v6446 = vpack.c.b16 %v6430, %v6430
    %v6447 = vpack.c.b16 %v6431, %v6431
    %v6448 = vpack.c.b16 %v6432, %v6432
    %v6449 = vpack.c.b16 %v6433, %v6433
    %v6450 = vpack.c.b16 %v6434, %v6434
    %v6451 = vpack.c.b16 %v6435, %v6435
    %v6452 = vpack.c.b16 %v6436, %v6436
    %v6453 = vpack.c.b16 %v6437, %v6437
    %v6454 = vpack.c.b16 %v6438, %v6438
    %v6455 = vpack.c.b16 %v6439, %v6439
    %v6456 = vpack.c.b16 %v6440, %v6440
    %v6729 = vunpack.c.l.b16 %v2833
    %v6730 = vunpack.c.l.b16 %v2834
    %v6731 = vunpack.c.l.b16 %v2835
    %v6732 = vunpack.c.l.b16 %v2836
    %v6733 = vunpack.c.l.b16 %v2837
    %v6734 = vunpack.c.l.b16 %v2838
    %v6735 = vunpack.c.l.b16 %v2839
    %v6736 = vunpack.c.l.b16 %v2840
    %v6737 = vunpack.c.l.b16 %v2841
    %v6738 = vunpack.c.l.b16 %v2842
    %v6739 = vunpack.c.l.b16 %v2843
    %v6740 = vunpack.c.l.b16 %v2844
    %v6741 = vunpack.c.l.b16 %v2845
    %v6742 = vunpack.c.l.b16 %v2846
    %v6743 = vunpack.c.l.b16 %v2847
    %v6744 = vunpack.c.l.b16 %v2848
    %v6745 = vunpack.c.l.b16 %v2849
    %v6746 = vunpack.c.l.b16 %v2850
    %v6747 = vunpack.c.l.b16 %v2851
    %v6748 = vunpack.c.l.b16 %v2852
    %v6749 = vunpack.c.l.b16 %v2853
    %v6750 = vunpack.c.l.b16 %v2854
    %v6751 = vunpack.c.l.b16 %v2855
    %v6752 = vunpack.c.l.b16 %v2856
    %v6753 = vunpack.c.l.b16 %v2857
    %v6754 = vunpack.c.l.b16 %v2858
    %v6755 = vunpack.c.l.b16 %v2859
    %v6756 = vunpack.c.l.b16 %v2860
    %v6757 = vunpack.c.l.b16 %v2861
    %v6758 = vunpack.c.l.b16 %v2862
    %v6759 = vunpack.c.l.b16 %v2863
    %v6760 = vunpack.c.l.b16 %v2864
    %v6761 = vunpack.c.l.b16 %v2865
    %v6762 = vunpack.c.l.b16 %v2866
    %v6763 = vunpack.c.l.b16 %v2867
    %v6764 = vunpack.c.l.b16 %v2868
    %v6765 = vunpack.c.l.b16 %v2869
    %v6766 = vunpack.c.l.b16 %v2870
    %v6767 = vunpack.c.l.b16 %v2871
    %v6768 = vunpack.c.l.b16 %v2872
    %v6769 = vunpack.c.l.b16 %v2873
    %v6770 = vunpack.c.l.b16 %v2874
    %v6771 = vunpack.c.l.b16 %v2875
    %v6772 = vunpack.c.l.b16 %v2876
    %v6773 = vunpack.c.l.b16 %v2877
    %v6774 = vunpack.c.l.b16 %v2878
    %v6775 = vunpack.c.l.b16 %v2879
    %v6776 = vunpack.c.l.b16 %v2880
    %v6777 = vunpack.c.l.b16 %v2881
    %v6778 = vunpack.c.l.b16 %v2882
    %v6779 = vunpack.c.l.b16 %v2883
    %v6780 = vunpack.c.l.b16 %v2884
    %v6781 = vunpack.c.l.b16 %v2885
    %v6782 = vunpack.c.l.b16 %v2886
    %v6783 = vunpack.c.l.b16 %v2887
    %v6784 = vunpack.c.l.b16 %v2888
    %v6785 = vunpack.c.l.b16 %v2889
    %v6786 = vunpack.c.l.b16 %v2890
    %v6787 = vunpack.c.l.b16 %v2891
    %v6788 = vunpack.c.l.b16 %v2892
    %v6789 = vunpack.c.l.b16 %v2893
    %v6790 = vunpack.c.l.b16 %v2894
    %v6791 = vunpack.c.l.b16 %v2895
    %v6792 = vunpack.c.l.b16 %v2896
    %v6793 = vunpack.c.l.b16 %v2897
    %v6794 = vunpack.c.l.b16 %v2898
    %v6795 = vunpack.c.l.b16 %v2899
    %v6796 = vunpack.c.l.b16 %v2900
    %v6797 = vunpack.c.l.b16 %v2901
    %v6798 = vunpack.c.l.b16 %v2902
    %v6799 = vunpack.c.l.b16 %v2903
    %v6800 = vunpack.c.l.b16 %v2904
    %v6801 = vunpack.c.l.b16 %v2905
    %v6802 = vunpack.c.l.b16 %v2906
    %v6803 = vunpack.c.l.b16 %v2907
    %v6804 = vunpack.c.l.b16 %v2908
    %v6805 = vunpack.c.l.b16 %v2909
    %v6806 = vunpack.c.l.b16 %v2910
    %v6807 = vunpack.c.l.b16 %v2911
    %v6808 = vunpack.c.l.b16 %v2912
    %v6809 = vunpack.c.l.b16 %v2913
    %v6810 = vunpack.c.l.b16 %v2914
    %v6811 = vunpack.c.l.b16 %v2915
    %v6812 = vunpack.c.l.b16 %v2916
    %v6813 = vunpack.c.l.b16 %v2917
    %v6814 = vunpack.c.l.b16 %v2918
    %v6815 = vunpack.c.l.b16 %v2919
    %v6816 = vunpack.c.l.b16 %v2920
    %v6817 = vunpack.c.l.b16 %v2921
    %v6818 = vunpack.c.l.b16 %v2922
    %v6819 = vunpack.c.l.b16 %v2923
    %v6820 = vunpack.c.l.b16 %v2924
    %v6821 = vunpack.c.l.b16 %v2925
    %v6822 = vunpack.c.l.b16 %v2926
    %v6823 = vunpack.c.l.b16 %v2927
    %v6824 = vunpack.c.l.b16 %v2928
    %v6825 = vunpack.c.l.b16 %v2929
    %v6826 = vunpack.c.l.b16 %v2930
    %v6827 = vunpack.c.l.b16 %v2931
    %v6828 = vunpack.c.l.b16 %v2932
    %v6829 = vunpack.c.l.b16 %v2933
    %v6830 = vunpack.c.l.b16 %v2934
    %v6831 = vunpack.c.l.b16 %v2935
    %v6832 = vunpack.c.l.b16 %v2936
    %v6833 = vunpack.c.l.b16 %v2937
    %v6834 = vunpack.c.l.b16 %v2938
    %v6835 = vunpack.c.l.b16 %v2939
    %v6836 = vunpack.c.l.b16 %v2940
    %v6837 = vunpack.c.l.b16 %v2941
    %v6838 = vunpack.c.l.b16 %v2942
    %v6839 = vunpack.c.l.b16 %v2943
    %v6840 = vunpack.c.l.b16 %v2944
    %v6841 = vunpack.c.l.b16 %v2945
    %v6842 = vunpack.c.l.b16 %v2946
    %v6843 = vunpack.c.l.b16 %v2947
    %v6844 = vunpack.c.l.b16 %v2948
    %v6845 = vunpack.c.l.b16 %v2949
    %v6846 = vunpack.c.l.b16 %v2950
    %v6847 = vunpack.c.l.b16 %v2951
    %v6848 = vunpack.c.l.b16 %v2952
    %v6849 = vunpack.c.l.b16 %v2953
    %v6850 = vunpack.c.l.b16 %v2954
    %v6851 = vunpack.c.l.b16 %v2955
    %v6852 = vunpack.c.l.b16 %v2956
    %v6853 = vunpack.c.l.b16 %v2957
    %v6854 = vunpack.c.l.b16 %v2958
    %v6855 = vunpack.c.l.b16 %v2959
    %v6856 = vunpack.c.l.b16 %v2960
    %v6857 = vunpack.c.l.b16 %v2961
    %v6858 = vunpack.c.l.b16 %v2962
    %v6859 = vunpack.c.l.b16 %v2963
    %v6860 = vunpack.c.l.b16 %v2964
    %v6861 = vunpack.c.l.b16 %v2965
    %v6862 = vunpack.c.l.b16 %v2966
    %v6863 = vunpack.c.l.b16 %v2967
    %v6864 = vunpack.c.l.b16 %v2968
    %v6865 = vunpack.c.l.b16 %v2969
    %v6866 = vunpack.c.l.b16 %v2970
    %v6867 = vunpack.c.l.b16 %v2971
    %v6868 = vunpack.c.l.b16 %v2972
    %v6869 = vunpack.c.l.b16 %v2973
    %v6870 = vunpack.c.l.b16 %v2974
    %v6871 = vunpack.c.l.b16 %v2975
    %v6872 = vunpack.c.l.b16 %v2976
    %v6873 = vunpack.c.l.b16 %v2977
    %v6874 = vunpack.c.l.b16 %v2978
    %v6875 = vunpack.c.l.b16 %v2979
    %v6876 = vunpack.c.l.b16 %v2980
    %v6877 = vunpack.c.l.b16 %v2981
    %v6878 = vunpack.c.l.b16 %v2982
    %v6879 = vunpack.c.l.b16 %v2983
    %v6880 = vunpack.c.l.b16 %v2984
    %v6881 = vunpack.c.l.b16 %v2985
    %v6882 = vunpack.c.l.b16 %v2986
    %v6883 = vunpack.c.l.b16 %v2987
    %v6884 = vunpack.c.l.b16 %v2988
    %v6885 = vunpack.c.l.b16 %v2989
    %v6886 = vunpack.c.l.b16 %v2990
    %v6887 = vunpack.c.l.b16 %v2991
    %v6888 = vunpack.c.l.b16 %v2992
    %v6889 = vunpack.c.l.b16 %v2993
    %v6890 = vunpack.c.l.b16 %v2994
    %v6891 = vunpack.c.l.b16 %v2995
    %v6892 = vunpack.c.l.b16 %v2996
    %v6893 = vunpack.c.l.b16 %v2997
    %v6894 = vunpack.c.l.b16 %v2998
    %v6895 = vunpack.c.l.b16 %v2999
    %v6896 = vunpack.c.l.b16 %v3000
    %v6897 = vunpack.c.l.b16 %v3001
    %v6898 = vunpack.c.l.b16 %v3002
    %v6899 = vunpack.c.l.b16 %v3003
    %v6900 = vunpack.c.l.b16 %v3004
    %v6901 = vunpack.c.l.b16 %v3005
    %v6902 = vunpack.c.l.b16 %v3006
    %v6903 = vunpack.c.l.b16 %v3007
    %v6904 = vunpack.c.l.b16 %v3008
    %v6905 = vunpack.c.l.b16 %v3009
    %v6906 = vunpack.c.l.b16 %v3010
    %v6907 = vunpack.c.l.b16 %v3011
    %v6908 = vunpack.c.l.b16 %v3012
    %v6909 = vunpack.c.l.b16 %v3013
    %v6910 = vunpack.c.l.b16 %v3014
    %v6911 = vunpack.c.l.b16 %v3015
    %v6912 = vunpack.c.l.b16 %v3016
    %v6913 = vunpack.c.l.b16 %v3017
    %v6914 = vunpack.c.l.b16 %v3018
    %v6915 = vunpack.c.l.b16 %v3019
    %v6916 = vunpack.c.l.b16 %v3020
    %v6917 = vunpack.c.l.b16 %v3021
    %v6918 = vunpack.c.l.b16 %v3022
    %v6919 = vunpack.c.l.b16 %v3023
    %v6920 = vunpack.c.l.b16 %v3024
    %v6921 = vunpack.c.l.b16 %v3025
    %v6922 = vunpack.c.l.b16 %v3026
    %v6923 = vunpack.c.l.b16 %v3027
    %v6924 = vunpack.c.l.b16 %v3028
    %v6925 = vunpack.c.l.b16 %v3029
    %v6926 = vunpack.c.l.b16 %v3030
    %v6927 = vunpack.c.l.b16 %v3031
    %v6928 = vunpack.c.l.b16 %v3032
    %v6929 = vunpack.c.l.b16 %v3033
    %v6930 = vunpack.c.l.b16 %v3034
    %v6931 = vunpack.c.l.b16 %v3035
    %v6932 = vunpack.c.l.b16 %v3036
    %v6933 = vunpack.c.l.b16 %v3037
    %v6934 = vunpack.c.l.b16 %v3038
    %v6935 = vunpack.c.l.b16 %v3039
    %v6936 = vunpack.c.l.b16 %v3040
    %v6937 = vunpack.c.l.b16 %v3041
    %v6938 = vunpack.c.l.b16 %v3042
    %v6939 = vunpack.c.l.b16 %v3043
    %v6940 = vunpack.c.l.b16 %v3044
    %v6941 = vunpack.c.l.b16 %v3045
    %v6942 = vunpack.c.l.b16 %v3046
    %v6943 = vunpack.c.l.b16 %v3047
    %v6944 = vunpack.c.l.b16 %v3048
    %v6945 = vunpack.c.l.b16 %v3049
    %v6946 = vunpack.c.l.b16 %v3050
    %v6947 = vunpack.c.l.b16 %v3051
    %v6948 = vunpack.c.l.b16 %v3052
    %v6949 = vunpack.c.l.b16 %v3053
    %v6950 = vunpack.c.l.b16 %v3054
    %v6951 = vunpack.c.l.b16 %v3055
    %v6952 = vunpack.c.l.b16 %v3056
    %v6953 = vunpack.c.l.b16 %v3057
    %v6954 = vunpack.c.l.b16 %v3058
    %v6955 = vunpack.c.l.b16 %v3059
    %v6956 = vunpack.c.l.b16 %v3060
    %v6957 = vunpack.c.l.b16 %v3061
    %v6958 = vunpack.c.l.b16 %v3062
    %v6959 = vunpack.c.l.b16 %v3063
    %v6960 = vunpack.c.l.b16 %v3064
    %v6961 = vunpack.c.l.b16 %v3065
    %v6962 = vunpack.c.l.b16 %v3066
    %v6963 = vunpack.c.l.b16 %v3067
    %v6964 = vunpack.c.l.b16 %v3068
    %v6965 = vunpack.c.l.b16 %v3069
    %v6966 = vunpack.c.l.b16 %v3070
    %v6967 = vunpack.c.l.b16 %v3071
    %v6968 = vunpack.c.l.b16 %v3072
    %v6969 = vunpack.c.l.b16 %v3073
    %v6970 = vunpack.c.l.b16 %v3074
    %v6971 = vunpack.c.l.b16 %v3075
    %v6972 = vunpack.c.l.b16 %v3076
    %v6973 = vunpack.c.l.b16 %v3077
    %v6974 = vunpack.c.l.b16 %v3078
    %v6975 = vunpack.c.l.b16 %v3079
    %v6976 = vunpack.c.l.b16 %v3080
    %v6977 = vunpack.c.l.b16 %v3081
    %v6978 = vunpack.c.l.b16 %v3082
    %v6979 = vunpack.c.l.b16 %v3083
    %v6980 = vunpack.c.l.b16 %v3084
    %v6981 = vunpack.c.l.b16 %v3085
    %v6982 = vunpack.c.l.b16 %v3086
    %v6983 = vunpack.c.l.b16 %v3087
    %v6984 = vunpack.c.l.b16 %v3088
    %v6985 = vpack.c.b16 %v6730, %v6729
    %v6986 = vpack.c.b16 %v6732, %v6731
    %v6987 = vpack.c.b16 %v6734, %v6733
    %v6988 = vpack.c.b16 %v6736, %v6735
    %v6989 = vpack.c.b16 %v6738, %v6737
    %v6990 = vpack.c.b16 %v6740, %v6739
    %v6991 = vpack.c.b16 %v6742, %v6741
    %v6992 = vpack.c.b16 %v6744, %v6743
    %v6993 = vpack.c.b16 %v6746, %v6745
    %v6994 = vpack.c.b16 %v6748, %v6747
    %v6995 = vpack.c.b16 %v6750, %v6749
    %v6996 = vpack.c.b16 %v6752, %v6751
    %v6997 = vpack.c.b16 %v6754, %v6753
    %v6998 = vpack.c.b16 %v6756, %v6755
    %v6999 = vpack.c.b16 %v6758, %v6757
    %v7000 = vpack.c.b16 %v6760, %v6759
    %v7001 = vpack.c.b16 %v6762, %v6761
    %v7002 = vpack.c.b16 %v6764, %v6763
    %v7003 = vpack.c.b16 %v6766, %v6765
    %v7004 = vpack.c.b16 %v6768, %v6767
    %v7005 = vpack.c.b16 %v6770, %v6769
    %v7006 = vpack.c.b16 %v6772, %v6771
    %v7007 = vpack.c.b16 %v6774, %v6773
    %v7008 = vpack.c.b16 %v6776, %v6775
    %v7009 = vpack.c.b16 %v6778, %v6777
    %v7010 = vpack.c.b16 %v6780, %v6779
    %v7011 = vpack.c.b16 %v6782, %v6781
    %v7012 = vpack.c.b16 %v6784, %v6783
    %v7013 = vpack.c.b16 %v6786, %v6785
    %v7014 = vpack.c.b16 %v6788, %v6787
    %v7015 = vpack.c.b16 %v6790, %v6789
    %v7016 = vpack.c.b16 %v6792, %v6791
    %v7017 = vpack.c.b16 %v6794, %v6793
    %v7018 = vpack.c.b16 %v6796, %v6795
    %v7019 = vpack.c.b16 %v6798, %v6797
    %v7020 = vpack.c.b16 %v6800, %v6799
    %v7021 = vpack.c.b16 %v6802, %v6801
    %v7022 = vpack.c.b16 %v6804, %v6803
    %v7023 = vpack.c.b16 %v6806, %v6805
    %v7024 = vpack.c.b16 %v6808, %v6807
    %v7025 = vpack.c.b16 %v6810, %v6809
    %v7026 = vpack.c.b16 %v6812, %v6811
    %v7027 = vpack.c.b16 %v6814, %v6813
    %v7028 = vpack.c.b16 %v6816, %v6815
    %v7029 = vpack.c.b16 %v6818, %v6817
    %v7030 = vpack.c.b16 %v6820, %v6819
    %v7031 = vpack.c.b16 %v6822, %v6821
    %v7032 = vpack.c.b16 %v6824, %v6823
    %v7033 = vpack.c.b16 %v6826, %v6825
    %v7034 = vpack.c.b16 %v6828, %v6827
    %v7035 = vpack.c.b16 %v6830, %v6829
    %v7036 = vpack.c.b16 %v6832, %v6831
    %v7037 = vpack.c.b16 %v6834, %v6833
    %v7038 = vpack.c.b16 %v6836, %v6835
    %v7039 = vpack.c.b16 %v6838, %v6837
    %v7040 = vpack.c.b16 %v6840, %v6839
    %v7041 = vpack.c.b16 %v6842, %v6841
    %v7042 = vpack.c.b16 %v6844, %v6843
    %v7043 = vpack.c.b16 %v6846, %v6845
    %v7044 = vpack.c.b16 %v6848, %v6847
    %v7045 = vpack.c.b16 %v6850, %v6849
    %v7046 = vpack.c.b16 %v6852, %v6851
    %v7047 = vpack.c.b16 %v6854, %v6853
    %v7048 = vpack.c.b16 %v6856, %v6855
    %v7049 = vpack.c.b16 %v6858, %v6857
    %v7050 = vpack.c.b16 %v6860, %v6859
    %v7051 = vpack.c.b16 %v6862, %v6861
    %v7052 = vpack.c.b16 %v6864, %v6863
    %v7053 = vpack.c.b16 %v6866, %v6865
    %v7054 = vpack.c.b16 %v6868, %v6867
    %v7055 = vpack.c.b16 %v6870, %v6869
    %v7056 = vpack.c.b16 %v6872, %v6871
    %v7057 = vpack.c.b16 %v6874, %v6873
    %v7058 = vpack.c.b16 %v6876, %v6875
    %v7059 = vpack.c.b16 %v6878, %v6877
    %v7060 = vpack.c.b16 %v6880, %v6879
    %v7061 = vpack.c.b16 %v6882, %v6881
    %v7062 = vpack.c.b16 %v6884, %v6883
    %v7063 = vpack.c.b16 %v6886, %v6885
    %v7064 = vpack.c.b16 %v6888, %v6887
    %v7065 = vpack.c.b16 %v6890, %v6889
    %v7066 = vpack.c.b16 %v6892, %v6891
    %v7067 = vpack.c.b16 %v6894, %v6893
    %v7068 = vpack.c.b16 %v6896, %v6895
    %v7069 = vpack.c.b16 %v6898, %v6897
    %v7070 = vpack.c.b16 %v6900, %v6899
    %v7071 = vpack.c.b16 %v6902, %v6901
    %v7072 = vpack.c.b16 %v6904, %v6903
    %v7073 = vpack.c.b16 %v6906, %v6905
    %v7074 = vpack.c.b16 %v6908, %v6907
    %v7075 = vpack.c.b16 %v6910, %v6909
    %v7076 = vpack.c.b16 %v6912, %v6911
    %v7077 = vpack.c.b16 %v6914, %v6913
    %v7078 = vpack.c.b16 %v6916, %v6915
    %v7079 = vpack.c.b16 %v6918, %v6917
    %v7080 = vpack.c.b16 %v6920, %v6919
    %v7081 = vpack.c.b16 %v6922, %v6921
    %v7082 = vpack.c.b16 %v6924, %v6923
    %v7083 = vpack.c.b16 %v6926, %v6925
    %v7084 = vpack.c.b16 %v6928, %v6927
    %v7085 = vpack.c.b16 %v6930, %v6929
    %v7086 = vpack.c.b16 %v6932, %v6931
    %v7087 = vpack.c.b16 %v6934, %v6933
    %v7088 = vpack.c.b16 %v6936, %v6935
    %v7089 = vpack.c.b16 %v6938, %v6937
    %v7090 = vpack.c.b16 %v6940, %v6939
    %v7091 = vpack.c.b16 %v6942, %v6941
    %v7092 = vpack.c.b16 %v6944, %v6943
    %v7093 = vpack.c.b16 %v6946, %v6945
    %v7094 = vpack.c.b16 %v6948, %v6947
    %v7095 = vpack.c.b16 %v6950, %v6949
    %v7096 = vpack.c.b16 %v6952, %v6951
    %v7097 = vpack.c.b16 %v6954, %v6953
    %v7098 = vpack.c.b16 %v6956, %v6955
    %v7099 = vpack.c.b16 %v6958, %v6957
    %v7100 = vpack.c.b16 %v6960, %v6959
    %v7101 = vpack.c.b16 %v6962, %v6961
    %v7102 = vpack.c.b16 %v6964, %v6963
    %v7103 = vpack.c.b16 %v6966, %v6965
    %v7104 = vpack.c.b16 %v6968, %v6967
    %v7105 = vpack.c.b16 %v6970, %v6969
    %v7106 = vpack.c.b16 %v6972, %v6971
    %v7107 = vpack.c.b16 %v6974, %v6973
    %v7108 = vpack.c.b16 %v6976, %v6975
    %v7109 = vpack.c.b16 %v6978, %v6977
    %v7110 = vpack.c.b16 %v6980, %v6979
    %v7111 = vpack.c.b16 %v6982, %v6981
    %v7112 = vpack.c.b16 %v6984, %v6983
    %7241 = vmatprep.subr.bf16.mxu0 0
    %7242 = vmatpush1.bf16.msra.mxu0 %v6992
    %7243 = vmatprep.subr.bf16.mxu0 0
    %7244 = vmatpush1.bf16.msra.mxu0 %v6991
    %7245 = vmatprep.subr.bf16.mxu0 0
    %7246 = vmatpush1.bf16.msra.mxu0 %v6990
    %7247 = vmatprep.subr.bf16.mxu0 0
    %7248 = vmatpush1.bf16.msra.mxu0 %v6989
    %7249 = vmatprep.subr.bf16.mxu0 0
    %7250 = vmatpush1.bf16.msra.mxu0 %v6988
    %7251 = vmatprep.subr.bf16.mxu0 0
    %7252 = vmatpush1.bf16.msra.mxu0 %v6987
    %7253 = vmatprep.subr.bf16.mxu0 0
    %7254 = vmatpush1.bf16.msra.mxu0 %v6986
    %7255 = vmatprep.subr.bf16.mxu0 0
    %7256 = vmatpush1.bf16.msra.mxu0 %v6985
    %7257 = vmatprep.subr.bf16.mxu0 0
    %7258 = vmatpush2.bf16.msra.mxu0 %v7000
    %7259 = vmatprep.subr.bf16.mxu0 0
    %7260 = vmatpush2.bf16.msra.mxu0 %v6999
    %7261 = vmatprep.subr.bf16.mxu0 0
    %7262 = vmatpush2.bf16.msra.mxu0 %v6998
    %7263 = vmatprep.subr.bf16.mxu0 0
    %7264 = vmatpush2.bf16.msra.mxu0 %v6997
    %7265 = vmatprep.subr.bf16.mxu0 0
    %7266 = vmatpush2.bf16.msra.mxu0 %v6996
    %7267 = vmatprep.subr.bf16.mxu0 0
    %7268 = vmatpush2.bf16.msra.mxu0 %v6995
    %7269 = vmatprep.subr.bf16.mxu0 0
    %7270 = vmatpush2.bf16.msra.mxu0 %v6994
    %7271 = vmatprep.subr.bf16.mxu0 0
    %7272 = vmatpush2.bf16.msra.mxu0 %v6993
    %7273 = vmatprep.mubr.bf16.mxu0 %v6442
    %7274 = vmatmul.mubr.bf16.gmra.mxu0 %v6441
    %v7275 = vpop.f32.mrf.mxu0
    %v7276 = vadd.f32 %v3094, %v7275
    %v7277 = vpop.f32.mrf.mxu0
    %v7278 = vpop.f32.mrf.mxu0
    %v7279 = vpop.f32.mrf.mxu0
    %7280 = vdwg.mxu0
    %7281 = vmatprep.subr.bf16.mxu0 0
    %7282 = vmatpush1.bf16.msra.mxu0 %v7008
    %7283 = vmatprep.subr.bf16.mxu0 0
    %7284 = vmatpush1.bf16.msra.mxu0 %v7007
    %7285 = vmatprep.subr.bf16.mxu0 0
    %7286 = vmatpush1.bf16.msra.mxu0 %v7006
    %7287 = vmatprep.subr.bf16.mxu0 0
    %7288 = vmatpush1.bf16.msra.mxu0 %v7005
    %7289 = vmatprep.subr.bf16.mxu0 0
    %7290 = vmatpush1.bf16.msra.mxu0 %v7004
    %7291 = vmatprep.subr.bf16.mxu0 0
    %7292 = vmatpush1.bf16.msra.mxu0 %v7003
    %7293 = vmatprep.subr.bf16.mxu0 0
    %7294 = vmatpush1.bf16.msra.mxu0 %v7002
    %7295 = vmatprep.subr.bf16.mxu0 0
    %7296 = vmatpush1.bf16.msra.mxu0 %v7001
    %7297 = vmatprep.subr.bf16.mxu0 0
    %7298 = vmatpush2.bf16.msra.mxu0 %v7016
    %7299 = vmatprep.subr.bf16.mxu0 0
    %7300 = vmatpush2.bf16.msra.mxu0 %v7015
    %7301 = vmatprep.subr.bf16.mxu0 0
    %7302 = vmatpush2.bf16.msra.mxu0 %v7014
    %7303 = vmatprep.subr.bf16.mxu0 0
    %7304 = vmatpush2.bf16.msra.mxu0 %v7013
    %7305 = vmatprep.subr.bf16.mxu0 0
    %7306 = vmatpush2.bf16.msra.mxu0 %v7012
    %7307 = vmatprep.subr.bf16.mxu0 0
    %7308 = vmatpush2.bf16.msra.mxu0 %v7011
    %7309 = vmatprep.subr.bf16.mxu0 0
    %7310 = vmatpush2.bf16.msra.mxu0 %v7010
    %7311 = vmatprep.subr.bf16.mxu0 0
    %7312 = vmatpush2.bf16.msra.mxu0 %v7009
    %7313 = vmatprep.mubr.bf16.mxu0 %v6444
    %7314 = vmatmul.mubr.bf16.gmra.mxu0 %v6443
    %v7315 = vpop.f32.mrf.mxu0
    %v7316 = vadd.f32 %v7276, %v7315
    %v7317 = vpop.f32.mrf.mxu0
    %v7318 = vpop.f32.mrf.mxu0
    %v7319 = vpop.f32.mrf.mxu0
    %7320 = vdwg.mxu0
    %7321 = vmatprep.subr.bf16.mxu0 0
    %7322 = vmatpush1.bf16.msra.mxu0 %v7024
    %7323 = vmatprep.subr.bf16.mxu0 0
    %7324 = vmatpush1.bf16.msra.mxu0 %v7023
    %7325 = vmatprep.subr.bf16.mxu0 0
    %7326 = vmatpush1.bf16.msra.mxu0 %v7022
    %7327 = vmatprep.subr.bf16.mxu0 0
    %7328 = vmatpush1.bf16.msra.mxu0 %v7021
    %7329 = vmatprep.subr.bf16.mxu0 0
    %7330 = vmatpush1.bf16.msra.mxu0 %v7020
    %7331 = vmatprep.subr.bf16.mxu0 0
    %7332 = vmatpush1.bf16.msra.mxu0 %v7019
    %7333 = vmatprep.subr.bf16.mxu0 0
    %7334 = vmatpush1.bf16.msra.mxu0 %v7018
    %7335 = vmatprep.subr.bf16.mxu0 0
    %7336 = vmatpush1.bf16.msra.mxu0 %v7017
    %7337 = vmatprep.subr.bf16.mxu0 0
    %7338 = vmatpush2.bf16.msra.mxu0 %v7032
    %7339 = vmatprep.subr.bf16.mxu0 0
    %7340 = vmatpush2.bf16.msra.mxu0 %v7031
    %7341 = vmatprep.subr.bf16.mxu0 0
    %7342 = vmatpush2.bf16.msra.mxu0 %v7030
    %7343 = vmatprep.subr.bf16.mxu0 0
    %7344 = vmatpush2.bf16.msra.mxu0 %v7029
    %7345 = vmatprep.subr.bf16.mxu0 0
    %7346 = vmatpush2.bf16.msra.mxu0 %v7028
    %7347 = vmatprep.subr.bf16.mxu0 0
    %7348 = vmatpush2.bf16.msra.mxu0 %v7027
    %7349 = vmatprep.subr.bf16.mxu0 0
    %7350 = vmatpush2.bf16.msra.mxu0 %v7026
    %7351 = vmatprep.subr.bf16.mxu0 0
    %7352 = vmatpush2.bf16.msra.mxu0 %v7025
    %7353 = vmatprep.mubr.bf16.mxu0 %v6446
    %7354 = vmatmul.mubr.bf16.gmra.mxu0 %v6445
    %v7355 = vpop.f32.mrf.mxu0
    %v7356 = vadd.f32 %v7316, %v7355
    %v7357 = vpop.f32.mrf.mxu0
    %v7358 = vpop.f32.mrf.mxu0
    %v7359 = vpop.f32.mrf.mxu0
    %7360 = vdwg.mxu0
    %7361 = vmatprep.subr.bf16.mxu0 0
    %7362 = vmatpush1.bf16.msra.mxu0 %v7040
    %7363 = vmatprep.subr.bf16.mxu0 0
    %7364 = vmatpush1.bf16.msra.mxu0 %v7039
    %7365 = vmatprep.subr.bf16.mxu0 0
    %7366 = vmatpush1.bf16.msra.mxu0 %v7038
    %7367 = vmatprep.subr.bf16.mxu0 0
    %7368 = vmatpush1.bf16.msra.mxu0 %v7037
    %7369 = vmatprep.subr.bf16.mxu0 0
    %7370 = vmatpush1.bf16.msra.mxu0 %v7036
    %7371 = vmatprep.subr.bf16.mxu0 0
    %7372 = vmatpush1.bf16.msra.mxu0 %v7035
    %7373 = vmatprep.subr.bf16.mxu0 0
    %7374 = vmatpush1.bf16.msra.mxu0 %v7034
    %7375 = vmatprep.subr.bf16.mxu0 0
    %7376 = vmatpush1.bf16.msra.mxu0 %v7033
    %7377 = vmatprep.subr.bf16.mxu0 0
    %7378 = vmatpush2.bf16.msra.mxu0 %v7048
    %7379 = vmatprep.subr.bf16.mxu0 0
    %7380 = vmatpush2.bf16.msra.mxu0 %v7047
    %7381 = vmatprep.subr.bf16.mxu0 0
    %7382 = vmatpush2.bf16.msra.mxu0 %v7046
    %7383 = vmatprep.subr.bf16.mxu0 0
    %7384 = vmatpush2.bf16.msra.mxu0 %v7045
    %7385 = vmatprep.subr.bf16.mxu0 0
    %7386 = vmatpush2.bf16.msra.mxu0 %v7044
    %7387 = vmatprep.subr.bf16.mxu0 0
    %7388 = vmatpush2.bf16.msra.mxu0 %v7043
    %7389 = vmatprep.subr.bf16.mxu0 0
    %7390 = vmatpush2.bf16.msra.mxu0 %v7042
    %7391 = vmatprep.subr.bf16.mxu0 0
    %7392 = vmatpush2.bf16.msra.mxu0 %v7041
    %7393 = vmatprep.mubr.bf16.mxu0 %v6448
    %7394 = vmatmul.mubr.bf16.gmra.mxu0 %v6447
    %v7395 = vpop.f32.mrf.mxu0
    %v7396 = vadd.f32 %v7356, %v7395
    %v7397 = vpop.f32.mrf.mxu0
    %v7398 = vpop.f32.mrf.mxu0
    %v7399 = vpop.f32.mrf.mxu0
    %7400 = vdwg.mxu0
    %7401 = vmatprep.subr.bf16.mxu0 0
    %7402 = vmatpush1.bf16.msra.mxu0 %v7056
    %7403 = vmatprep.subr.bf16.mxu0 0
    %7404 = vmatpush1.bf16.msra.mxu0 %v7055
    %7405 = vmatprep.subr.bf16.mxu0 0
    %7406 = vmatpush1.bf16.msra.mxu0 %v7054
    %7407 = vmatprep.subr.bf16.mxu0 0
    %7408 = vmatpush1.bf16.msra.mxu0 %v7053
    %7409 = vmatprep.subr.bf16.mxu0 0
    %7410 = vmatpush1.bf16.msra.mxu0 %v7052
    %7411 = vmatprep.subr.bf16.mxu0 0
    %7412 = vmatpush1.bf16.msra.mxu0 %v7051
    %7413 = vmatprep.subr.bf16.mxu0 0
    %7414 = vmatpush1.bf16.msra.mxu0 %v7050
    %7415 = vmatprep.subr.bf16.mxu0 0
    %7416 = vmatpush1.bf16.msra.mxu0 %v7049
    %7417 = vmatprep.subr.bf16.mxu0 0
    %7418 = vmatpush2.bf16.msra.mxu0 %v7064
    %7419 = vmatprep.subr.bf16.mxu0 0
    %7420 = vmatpush2.bf16.msra.mxu0 %v7063
    %7421 = vmatprep.subr.bf16.mxu0 0
    %7422 = vmatpush2.bf16.msra.mxu0 %v7062
    %7423 = vmatprep.subr.bf16.mxu0 0
    %7424 = vmatpush2.bf16.msra.mxu0 %v7061
    %7425 = vmatprep.subr.bf16.mxu0 0
    %7426 = vmatpush2.bf16.msra.mxu0 %v7060
    %7427 = vmatprep.subr.bf16.mxu0 0
    %7428 = vmatpush2.bf16.msra.mxu0 %v7059
    %7429 = vmatprep.subr.bf16.mxu0 0
    %7430 = vmatpush2.bf16.msra.mxu0 %v7058
    %7431 = vmatprep.subr.bf16.mxu0 0
    %7432 = vmatpush2.bf16.msra.mxu0 %v7057
    %7433 = vmatprep.mubr.bf16.mxu0 %v6450
    %7434 = vmatmul.mubr.bf16.gmra.mxu0 %v6449
    %v7435 = vpop.f32.mrf.mxu0
    %v7436 = vadd.f32 %v7396, %v7435
    %v7437 = vpop.f32.mrf.mxu0
    %v7438 = vpop.f32.mrf.mxu0
    %v7439 = vpop.f32.mrf.mxu0
    %7440 = vdwg.mxu0
    %7441 = vmatprep.subr.bf16.mxu0 0
    %7442 = vmatpush1.bf16.msra.mxu0 %v7072
    %7443 = vmatprep.subr.bf16.mxu0 0
    %7444 = vmatpush1.bf16.msra.mxu0 %v7071
    %7445 = vmatprep.subr.bf16.mxu0 0
    %7446 = vmatpush1.bf16.msra.mxu0 %v7070
    %7447 = vmatprep.subr.bf16.mxu0 0
    %7448 = vmatpush1.bf16.msra.mxu0 %v7069
    %7449 = vmatprep.subr.bf16.mxu0 0
    %7450 = vmatpush1.bf16.msra.mxu0 %v7068
    %7451 = vmatprep.subr.bf16.mxu0 0
    %7452 = vmatpush1.bf16.msra.mxu0 %v7067
    %7453 = vmatprep.subr.bf16.mxu0 0
    %7454 = vmatpush1.bf16.msra.mxu0 %v7066
    %7455 = vmatprep.subr.bf16.mxu0 0
    %7456 = vmatpush1.bf16.msra.mxu0 %v7065
    %7457 = vmatprep.subr.bf16.mxu0 0
    %7458 = vmatpush2.bf16.msra.mxu0 %v7080
    %7459 = vmatprep.subr.bf16.mxu0 0
    %7460 = vmatpush2.bf16.msra.mxu0 %v7079
    %7461 = vmatprep.subr.bf16.mxu0 0
    %7462 = vmatpush2.bf16.msra.mxu0 %v7078
    %7463 = vmatprep.subr.bf16.mxu0 0
    %7464 = vmatpush2.bf16.msra.mxu0 %v7077
    %7465 = vmatprep.subr.bf16.mxu0 0
    %7466 = vmatpush2.bf16.msra.mxu0 %v7076
    %7467 = vmatprep.subr.bf16.mxu0 0
    %7468 = vmatpush2.bf16.msra.mxu0 %v7075
    %7469 = vmatprep.subr.bf16.mxu0 0
    %7470 = vmatpush2.bf16.msra.mxu0 %v7074
    %7471 = vmatprep.subr.bf16.mxu0 0
    %7472 = vmatpush2.bf16.msra.mxu0 %v7073
    %7473 = vmatprep.mubr.bf16.mxu0 %v6452
    %7474 = vmatmul.mubr.bf16.gmra.mxu0 %v6451
    %v7475 = vpop.f32.mrf.mxu0
    %v7476 = vadd.f32 %v7436, %v7475
    %v7477 = vpop.f32.mrf.mxu0
    %v7478 = vpop.f32.mrf.mxu0
    %v7479 = vpop.f32.mrf.mxu0
    %7480 = vdwg.mxu0
    %7481 = vmatprep.subr.bf16.mxu0 0
    %7482 = vmatpush1.bf16.msra.mxu0 %v7088
    %7483 = vmatprep.subr.bf16.mxu0 0
    %7484 = vmatpush1.bf16.msra.mxu0 %v7087
    %7485 = vmatprep.subr.bf16.mxu0 0
    %7486 = vmatpush1.bf16.msra.mxu0 %v7086
    %7487 = vmatprep.subr.bf16.mxu0 0
    %7488 = vmatpush1.bf16.msra.mxu0 %v7085
    %7489 = vmatprep.subr.bf16.mxu0 0
    %7490 = vmatpush1.bf16.msra.mxu0 %v7084
    %7491 = vmatprep.subr.bf16.mxu0 0
    %7492 = vmatpush1.bf16.msra.mxu0 %v7083
    %7493 = vmatprep.subr.bf16.mxu0 0
    %7494 = vmatpush1.bf16.msra.mxu0 %v7082
    %7495 = vmatprep.subr.bf16.mxu0 0
    %7496 = vmatpush1.bf16.msra.mxu0 %v7081
    %7497 = vmatprep.subr.bf16.mxu0 0
    %7498 = vmatpush2.bf16.msra.mxu0 %v7096
    %7499 = vmatprep.subr.bf16.mxu0 0
    %7500 = vmatpush2.bf16.msra.mxu0 %v7095
    %7501 = vmatprep.subr.bf16.mxu0 0
    %7502 = vmatpush2.bf16.msra.mxu0 %v7094
    %7503 = vmatprep.subr.bf16.mxu0 0
    %7504 = vmatpush2.bf16.msra.mxu0 %v7093
    %7505 = vmatprep.subr.bf16.mxu0 0
    %7506 = vmatpush2.bf16.msra.mxu0 %v7092
    %7507 = vmatprep.subr.bf16.mxu0 0
    %7508 = vmatpush2.bf16.msra.mxu0 %v7091
    %7509 = vmatprep.subr.bf16.mxu0 0
    %7510 = vmatpush2.bf16.msra.mxu0 %v7090
    %7511 = vmatprep.subr.bf16.mxu0 0
    %7512 = vmatpush2.bf16.msra.mxu0 %v7089
    %7513 = vmatprep.mubr.bf16.mxu0 %v6454
    %7514 = vmatmul.mubr.bf16.gmra.mxu0 %v6453
    %v7515 = vpop.f32.mrf.mxu0
    %v7516 = vadd.f32 %v7476, %v7515
    %v7517 = vpop.f32.mrf.mxu0
    %v7518 = vpop.f32.mrf.mxu0
    %v7519 = vpop.f32.mrf.mxu0
    %7520 = vdwg.mxu0
    %7521 = vmatprep.subr.bf16.mxu0 0
    %7522 = vmatpush1.bf16.msra.mxu0 %v7104
    %7523 = vmatprep.subr.bf16.mxu0 0
    %7524 = vmatpush1.bf16.msra.mxu0 %v7103
    %7525 = vmatprep.subr.bf16.mxu0 0
    %7526 = vmatpush1.bf16.msra.mxu0 %v7102
    %7527 = vmatprep.subr.bf16.mxu0 0
    %7528 = vmatpush1.bf16.msra.mxu0 %v7101
    %7529 = vmatprep.subr.bf16.mxu0 0
    %7530 = vmatpush1.bf16.msra.mxu0 %v7100
    %7531 = vmatprep.subr.bf16.mxu0 0
    %7532 = vmatpush1.bf16.msra.mxu0 %v7099
    %7533 = vmatprep.subr.bf16.mxu0 0
    %7534 = vmatpush1.bf16.msra.mxu0 %v7098
    %7535 = vmatprep.subr.bf16.mxu0 0
    %7536 = vmatpush1.bf16.msra.mxu0 %v7097
    %7537 = vmatprep.subr.bf16.mxu0 0
    %7538 = vmatpush2.bf16.msra.mxu0 %v7112
    %7539 = vmatprep.subr.bf16.mxu0 0
    %7540 = vmatpush2.bf16.msra.mxu0 %v7111
    %7541 = vmatprep.subr.bf16.mxu0 0
    %7542 = vmatpush2.bf16.msra.mxu0 %v7110
    %7543 = vmatprep.subr.bf16.mxu0 0
    %7544 = vmatpush2.bf16.msra.mxu0 %v7109
    %7545 = vmatprep.subr.bf16.mxu0 0
    %7546 = vmatpush2.bf16.msra.mxu0 %v7108
    %7547 = vmatprep.subr.bf16.mxu0 0
    %7548 = vmatpush2.bf16.msra.mxu0 %v7107
    %7549 = vmatprep.subr.bf16.mxu0 0
    %7550 = vmatpush2.bf16.msra.mxu0 %v7106
    %7551 = vmatprep.subr.bf16.mxu0 0
    %7552 = vmatpush2.bf16.msra.mxu0 %v7105
    %7553 = vmatprep.mubr.bf16.mxu0 %v6456
    %7554 = vmatmul.mubr.bf16.gmra.mxu0 %v6455
    %v7555 = vpop.f32.mrf.mxu0
    %v7556 = vadd.f32 %v7516, %v7555
    %v7557 = vpop.f32.mrf.mxu0
    %v7558 = vpop.f32.mrf.mxu0
    %v7559 = vpop.f32.mrf.mxu0
    %7560 = vdwg.mxu0
    %7561 = vst [vmem:[#allocation2] sm:$0x3] %v7556
    // Predicated region
    $region14: #{tf_efficientnet_b5_ns_forward.1} parent=1 // pred_check
      _
    $region15: #{tf_efficientnet_b5_ns_forward.1} parent=1 // pred_check_branch
      %7563 = sbr.rel (0) target = $region17
    $region16: #{tf_efficientnet_b5_ns_forward.1} parent=1 // pred_region
      %s7565 = ssub.s32 32, 32
      %7566 = vsyncadd [#allocation3], %s7565
      %s7568 = sshll.u32 [#allocation2], 4
      %s7569 = int_to_ptr.vmem [resolvable:$true] %s7568
      %7571 = dma.vmem_to_hbm [thread:$0]  %s7569, 32, %s3, [#allocation3]
    $region17: #{tf_efficientnet_b5_ns_forward.1} parent=1 // pred_fallthru
      _
    // Predicated region
    $region18: #{tf_efficientnet_b5_ns_forward.1} parent=1 // pred_check
      _
    $region19: #{tf_efficientnet_b5_ns_forward.1} parent=1 // pred_check_branch
      %7573 = sbr.rel (0) target = $region21
    $region20: #{tf_efficientnet_b5_ns_forward.1} parent=1 // pred_region
      %7574 = dma.done [#allocation3], 32
    $region21: #{tf_efficientnet_b5_ns_forward.1} parent=1 // pred_fallthru
      _
    %7575 = vsyncpa [#allocation3], 1

</llo_original>
